<compile_context>
chip_gen: v6e
topology: v6e:2x2x1
jax: 0.10.0
libtpu: 0.0.40
codegen_flags: <defaults>
</compile_context>

<pallas_src>
import functools

import jax
import jax.numpy as jnp
from jax.experimental import pallas as pl
from jax.experimental.pallas import tpu as pltpu

LATENT_SPACE_DIM = 8
EN_C, EN_H, EN_W = 128, 4, 4           # (C, H, W) at the encoder bottleneck
EN_OUT_DIM = EN_C * EN_H * EN_W        # 2048
LANE = 128
VMEM_LIMIT_BYTES = 32 * 1024 * 1024    # explicit scoped-VMEM limit on every call


# ----------------------------------------------------------------------------
# Pallas kernels
# ----------------------------------------------------------------------------
def _mm_bias_act_kernel(x_ref, w_ref, b_ref, o_ref, *, act, out_cols):
    """Fused (M,K)@(K,N) + bias + activation. bf16 operands, f32 accumulate."""
    y = jnp.dot(x_ref[...], w_ref[...], preferred_element_type=jnp.float32)
    y = y + b_ref[...]                          # (1, N) broadcast over rows
    if out_cols is not None:                    # drop N-padding lanes in-kernel
        y = y[:, :out_cols]
    if act == "relu":
        y = jnp.maximum(y, 0.0)
    elif act == "sigmoid":
        # sigmoid(y) = 0.5*(tanh(y/2)+1): lands on the EUP, no overflow.
        y = 0.5 * jnp.tanh(0.5 * y) + 0.5
    o_ref[...] = y.astype(o_ref.dtype)


def matmul_bias_act(x, w, b2, *, act="none", out_dtype=jnp.bfloat16,
                    out_cols=None, tile_m=1024):
    """x:(M,K) bf16, w:(K,N) bf16 (pre-laid-out), b2:(1,N) f32 -> (M,out_cols).

    M <= tile_m: single-shot, whole problem VMEM-resident (best for the single
    TensorCore on v5e/v6e; every layer at B=2 except the final conv).
    M > tile_m: grid over M (cdiv, M zero-padded to a tile multiple), parallel
    semantics so both v7x TensorCores get work; final conv at B=2 -> 2 steps."""
    M, K = x.shape
    N = w.shape[1]
    slice_cols = None if (out_cols is None or out_cols == N) else out_cols
    n_out = N if slice_cols is None else slice_cols
    kernel = functools.partial(_mm_bias_act_kernel, act=act, out_cols=slice_cols)

    if M > tile_m:
        m_pad = -M % tile_m
        if m_pad:
            x = jnp.pad(x, ((0, m_pad), (0, 0)))
        mp = M + m_pad
        y = pl.pallas_call(
            kernel,
            out_shape=jax.ShapeDtypeStruct((mp, n_out), out_dtype),
            grid=(mp // tile_m,),
            in_specs=[
                pl.BlockSpec((tile_m, K), lambda i: (i, 0)),
                pl.BlockSpec((K, N), lambda i: (0, 0)),   # resident weight block
                pl.BlockSpec((1, N), lambda i: (0, 0)),
            ],
            out_specs=pl.BlockSpec((tile_m, n_out), lambda i: (i, 0)),
            compiler_params=pltpu.CompilerParams(
                dimension_semantics=("parallel",),
                vmem_limit_bytes=VMEM_LIMIT_BYTES),
        )(x, w, b2)
        return y[:M] if m_pad else y

    # small problem: no grid, everything resident in VMEM (ragged M here only
    # costs a few masked sublane stores on tiny tensors, so no extra pad/slice
    # XLA ops are spent on it).
    return pl.pallas_call(
        kernel,
        out_shape=jax.ShapeDtypeStruct((M, n_out), out_dtype),
        in_specs=[pl.BlockSpec(memory_space=pltpu.MemorySpace.VMEM)] * 3,
        out_specs=pl.BlockSpec(memory_space=pltpu.MemorySpace.VMEM),
        compiler_params=pltpu.CompilerParams(vmem_limit_bytes=VMEM_LIMIT_BYTES),
    )(x, w, b2)


def _latent_kernel(x_ref, wh_ref, bh_ref, eps_ref, wd_ref, bd_ref,
                   mu_ref, ls_ref, z_ref, d_ref):
    """Fused: [mu | log_std] = x @ Wh + bh ; z = mu + exp(log_std)*eps ;
    d = z @ Wd + bd  — one launch, z never leaves VMEM. bf16 MXU operands."""
    L = LATENT_SPACE_DIM
    h = jnp.dot(x_ref[...], wh_ref[...], preferred_element_type=jnp.float32)
    h = h + bh_ref[...]
    mu = h[:, :L]
    ls = h[:, L:]
    z = mu + jnp.exp(ls) * eps_ref[...]
    mu_ref[...] = mu
    ls_ref[...] = ls
    z_ref[...] = z
    d = jnp.dot(z.astype(wd_ref.dtype), wd_ref[...],
                preferred_element_type=jnp.float32) + bd_ref[...]
    d_ref[...] = d.astype(d_ref.dtype)


def latent_and_decode_dense(flat, w_h, b_h, eps, w_d, b_d):
    B = flat.shape[0]
    L = LATENT_SPACE_DIM
    D = w_d.shape[1]
    outs = (
        jax.ShapeDtypeStruct((B, L), jnp.float32),   # means
        jax.ShapeDtypeStruct((B, L), jnp.float32),   # log_stds
        jax.ShapeDtypeStruct((B, L), jnp.float32),   # z
        jax.ShapeDtypeStruct((B, D), jnp.bfloat16),  # decoder dense out (NHWC order)
    )
    return pl.pallas_call(
        _latent_kernel,
        out_shape=outs,
        in_specs=[pl.BlockSpec(memory_space=pltpu.MemorySpace.VMEM)] * 6,
        out_specs=tuple(pl.BlockSpec(memory_space=pltpu.MemorySpace.VMEM)
                        for _ in range(4)),
        compiler_params=pltpu.CompilerParams(vmem_limit_bytes=VMEM_LIMIT_BYTES),
    )(flat, w_h, b_h, eps, w_d, b_d)


# ----------------------------------------------------------------------------
# XLA glue: im2col + sub-pixel phase interleave (small tensors only)
# ----------------------------------------------------------------------------
def _im2col(x, kh, kw, stride, pad):
    """x: NHWC -> (B*Ho*Wo, kh*kw*C) patches, (ky, kx, c) feature ordering."""
    if pad > 0:
        x = jnp.pad(x, ((0, 0), (pad, pad), (pad, pad), (0, 0)))
    B, Hp, Wp, C = x.shape
    Ho = (Hp - kh) // stride + 1
    Wo = (Wp - kw) // stride + 1
    cols = []
    for i in range(kh):
        for j in range(kw):
            cols.append(x[:, i:i + (Ho - 1) * stride + 1:stride,
                            j:j + (Wo - 1) * stride + 1:stride, :])
    patches = jnp.concatenate(cols, axis=-1)
    return patches.reshape(B * Ho * Wo, kh * kw * C), (B, Ho, Wo)


def conv2d_relu(x_nhwc, w_mat, b2):
    """3x3 / stride-2 / pad-1 conv + ReLU using a prepared (9*Cin, Cout) weight."""
    patches, (B, Ho, Wo) = _im2col(x_nhwc, 3, 3, 2, 1)
    cout = w_mat.shape[1]
    y = matmul_bias_act(patches, w_mat, b2, act="relu")
    return y.reshape(B, Ho, Wo, cout)


def conv_transpose2d_s2(x_nhwc, w_mat, b2, cout):
    """PyTorch ConvTranspose2d(k=4, s=2, p=1) + ReLU via the sub-pixel
    decomposition: one 2x2/stride-1 im2col of the 1-padded input and a single
    (4*Cin, 4*Cout) matmul; the 4 output phases are interleaved afterwards."""
    B, H, W, _ = x_nhwc.shape
    patches, (_, Hp1, Wp1) = _im2col(x_nhwc, 2, 2, 1, 1)
    y = matmul_bias_act(patches, w_mat, b2, act="relu")          # (B*(H+1)*(W+1), 4*Cout)
    y = y.reshape(B, Hp1, Wp1, 2, 2, cout)
    # out[b, 2m+py, 2n+px, c] = y[b, m+py, n+px, py, px, c]
    phases = [y[:, py:py + H, px:px + W, py, px, :]
              for py in (0, 1) for px in (0, 1)]                 # each (B,H,W,Cout)
    t = jnp.stack(phases, axis=3).reshape(B, H, W, 2, 2, cout)
    # TODO(synk): this sub-pixel interleave needs stride-2 sublane stores to be
    # fused into the Pallas kernel; it stays as one XLA shuffle per deconv.
    return jnp.transpose(t, (0, 1, 3, 2, 4, 5)).reshape(B, 2 * H, 2 * W, cout)


# ----------------------------------------------------------------------------
# Parameters: torch-layout init + one-time matmul-ready preparation
# ----------------------------------------------------------------------------
def init_params(key):
    """Deterministic synthetic init mirroring the module's __init__ (torch layouts)."""
    scale = 0.05
    names_shapes = [
        # variational encoder
        ("enc_w1", (32, 1, 3, 3)),   ("enc_b1", (32,)),
        ("enc_w2", (64, 32, 3, 3)),  ("enc_b2", (64,)),
        ("enc_w3", (128, 64, 3, 3)), ("enc_b3", (128,)),
        ("enc_wmu", (LATENT_SPACE_DIM, EN_OUT_DIM)), ("enc_bmu", (LATENT_SPACE_DIM,)),
        ("enc_wls", (LATENT_SPACE_DIM, EN_OUT_DIM)), ("enc_bls", (LATENT_SPACE_DIM,)),
        # decoder
        ("dec_wd", (EN_OUT_DIM, LATENT_SPACE_DIM)), ("dec_bd", (EN_OUT_DIM,)),
        ("dec_wt1", (128, 128, 4, 4)), ("dec_bt1", (128,)),
        ("dec_wt2", (128, 64, 4, 4)),  ("dec_bt2", (64,)),
        ("dec_wt3", (64, 32, 4, 4)),   ("dec_bt3", (32,)),
        ("dec_wo", (1, 32, 3, 3)),     ("dec_bo", (1,)),
    ]
    params = {}
    keys = jax.random.split(key, len(names_shapes))
    for (name, shape), k in zip(names_shapes, keys):
        params[name] = scale * jax.random.normal(k, shape, dtype=jnp.float32)
    return params


def prepare_params(p):
    """One-time layout/cast of torch-layout weights into matmul-ready operands.
    Executed ONCE outside the jitted forward, so no reshape/pad/cast glue is
    re-run per generation."""
    out = {}

    def conv_w(w):  # torch Conv2d (Cout,Cin,kh,kw) -> (kh*kw*Cin, Cout) bf16
        cout, cin, kh, kw = w.shape
        return (jnp.transpose(w, (2, 3, 1, 0))
                .reshape(kh * kw * cin, cout).astype(jnp.bfloat16))

    def bias(b):
        return b.reshape(1, -1).astype(jnp.float32)

    out["enc1_w"], out["enc1_b"] = conv_w(p["enc_w1"]), bias(p["enc_b1"])
    out["enc2_w"], out["enc2_b"] = conv_w(p["enc_w2"]), bias(p["enc_b2"])
    out["enc3_w"], out["enc3_b"] = conv_w(p["enc_w3"]), bias(p["enc_b3"])

    # Fused (mu | log_std) heads: rows permuted from torch Flatten (c,h,w) order
    # to the NHWC (h,w,c) order the conv3 Pallas matmul produces -> no activation
    # transpose in the forward.
    def head(w):  # (L, 2048) torch -> (2048, L) with NHWC row order
        w = w.reshape(LATENT_SPACE_DIM, EN_C, EN_H, EN_W)
        return jnp.transpose(w, (2, 3, 1, 0)).reshape(EN_OUT_DIM, LATENT_SPACE_DIM)

    out["head_w"] = jnp.concatenate([head(p["enc_wmu"]), head(p["enc_wls"])],
                                    axis=1).astype(jnp.bfloat16)           # (2048, 16)
    out["head_b"] = jnp.concatenate([p["enc_bmu"], p["enc_bls"]]).reshape(
        1, 2 * LATENT_SPACE_DIM).astype(jnp.float32)

    # Decoder dense: columns permuted so the output is already NHWC (h,w,c);
    # the (B, 2048) result then reshapes to (B,4,4,128) for free.
    wd = p["dec_wd"].reshape(EN_C, EN_H, EN_W, LATENT_SPACE_DIM)
    wd = jnp.transpose(wd, (1, 2, 0, 3)).reshape(EN_OUT_DIM, LATENT_SPACE_DIM)
    out["dec_dense_w"] = wd.T.astype(jnp.bfloat16)                          # (8, 2048)
    out["dec_dense_b"] = jnp.transpose(
        p["dec_bd"].reshape(EN_C, EN_H, EN_W), (1, 2, 0)
    ).reshape(1, EN_OUT_DIM).astype(jnp.float32)

    # ConvTranspose2d(k=4,s=2,p=1) sub-pixel phase weights:
    # rows (i, j, cin) matching the 2x2 im2col; cols (py, px, cout).
    # Tap mapping: (ky, kx) = (3 - py - 2i, 3 - px - 2j).
    def deconv_w(w):  # torch ConvTranspose2d weight (Cin, Cout, 4, 4)
        cin, cout, _, _ = w.shape
        blocks = []
        for i in (0, 1):
            for j in (0, 1):
                row = []
                for py in (0, 1):
                    for px in (0, 1):
                        row.append(w[:, :, 3 - py - 2 * i, 3 - px - 2 * j])
                blocks.append(jnp.concatenate(row, axis=1))                 # (Cin, 4*Cout)
        return jnp.stack(blocks, axis=0).reshape(4 * cin, 4 * cout).astype(jnp.bfloat16)

    def deconv_b(b):
        return jnp.tile(b, 4).reshape(1, -1).astype(jnp.float32)

    out["dec1_w"], out["dec1_b"] = deconv_w(p["dec_wt1"]), deconv_b(p["dec_bt1"])
    out["dec2_w"], out["dec2_b"] = deconv_w(p["dec_wt2"]), deconv_b(p["dec_bt2"])
    out["dec3_w"], out["dec3_b"] = deconv_w(p["dec_wt3"]), deconv_b(p["dec_bt3"])

    # Output conv: N padded 1 -> 128 so the MXU matmul is lane-dense; the kernel
    # slices column 0 back out before the sigmoid + store.
    wo = conv_w(p["dec_wo"])                                                # (288, 1)
    out["out_w"] = jnp.pad(wo, ((0, 0), (0, LANE - 1)))
    out["out_b"] = jnp.pad(p["dec_bo"], (0, LANE - 1)).reshape(1, LANE).astype(jnp.float32)
    return out


# ----------------------------------------------------------------------------
# Forward pass (mirrors VariationalAutoEncoder.forward)
# ----------------------------------------------------------------------------
def vae_forward(wp, x_nchw, eps):
    B, _, H, W = x_nchw.shape
    # NCHW (B,1,H,W) -> NHWC: the channel dim is 1, so this is a free reshape.
    x = x_nchw.reshape(B, H, W, 1).astype(jnp.bfloat16)

    # ---- variational encoder: 3x (stride-2 3x3 conv + ReLU), bf16 activations
    h = conv2d_relu(x, wp["enc1_w"], wp["enc1_b"])     # (B,16,16, 32)
    h = conv2d_relu(h, wp["enc2_w"], wp["enc2_b"])     # (B, 8, 8, 64)
    h = conv2d_relu(h, wp["enc3_w"], wp["enc3_b"])     # (B, 4, 4,128)
    # torch-Flatten order is folded into the head weights -> free reshape.
    flat = h.reshape(B, EN_OUT_DIM)

    # ---- fused heads + reparameterization trick + decoder dense (one launch)
    means, log_stds, z, d = latent_and_decode_dense(
        flat, wp["head_w"], wp["head_b"], eps, wp["dec_dense_w"], wp["dec_dense_b"])

    # decoder dense columns are already NHWC-ordered -> free reshape.
    d = d.reshape(B, EN_H, EN_W, EN_C)                                       # (B,4,4,128)

    # ---- decoder
    d = conv_transpose2d_s2(d, wp["dec1_w"], wp["dec1_b"], 128)              # (B, 8, 8,128)
    d = conv_transpose2d_s2(d, wp["dec2_w"], wp["dec2_b"], 64)               # (B,16,16, 64)
    d = conv_transpose2d_s2(d, wp["dec3_w"], wp["dec3_b"], 32)               # (B,32,32, 32)

    # output conv 3x3/s1/p1 + sigmoid; kernel extracts the single real channel.
    patches, (_, Ho, Wo) = _im2col(d, 3, 3, 1, 1)
    y = matmul_bias_act(patches, wp["out_w"], wp["out_b"], act="sigmoid",
                        out_dtype=jnp.float32, out_cols=1)                   # (B*Ho*Wo, 1)
    reproduction = y.reshape(B, 1, Ho, Wo)                                   # NCHW, free
    return reproduction, means, log_stds, z


# ----------------------------------------------------------------------------
if __name__ == "__main__":
    key = jax.random.PRNGKey(0)
    k_params, k_x, k_eps = jax.random.split(key, 3)

    B = 2
    x = jax.random.uniform(k_x, (B, 1, 32, 32), dtype=jnp.float32)   # NCHW like PyTorch
    # TODO(synk): torch.distributions.MultivariateNormal(0, I) sampling is replaced
    # by an equivalent deterministic standard-normal draw from JAX's PRNG.
    eps = jax.random.normal(k_eps, (B, LATENT_SPACE_DIM), dtype=jnp.float32)

    params = init_params(k_params)
    prepped = prepare_params(params)     # one-time weight layout/cast (hoisted)

    fwd = jax.jit(vae_forward)
    reproduction, means, log_stds, z = fwd(prepped, x, eps)
    jax.block_until_ready(reproduction)

    assert reproduction.shape == (B, 1, 32, 32)
    assert means.shape == (B, LATENT_SPACE_DIM)
    assert log_stds.shape == (B, LATENT_SPACE_DIM)
    assert z.shape == (B, LATENT_SPACE_DIM)
    assert bool(jnp.all(jnp.isfinite(reproduction)))
    assert bool(jnp.all((reproduction >= 0.0) & (reproduction <= 1.0)))

    print("KERNEL_OK")
</pallas_src>

<mosaic_0001>
module attributes {stable_mosaic.version = 11 : i64} {
  func.func @_mm_bias_act_kernel(%arg0: memref<512x9xbf16, #tpu.memory_space<vmem>>, %arg1: memref<9x32xbf16, #tpu.memory_space<vmem>>, %arg2: memref<1x32xf32, #tpu.memory_space<vmem>>, %arg3: memref<512x32xbf16, #tpu.memory_space<vmem>>) attributes {dimension_semantics = [], scalar_prefetch = 0 : i64, scratch_operands = 0 : i64, tpu.core_type = #tpu.core_type<tc>} {
    %c0 = arith.constant 0 : index
    %c0_0 = arith.constant 0 : index
    %0 = vector.load %arg0[%c0, %c0_0] : memref<512x9xbf16, #tpu.memory_space<vmem>>, vector<512x9xbf16>
    %c0_1 = arith.constant 0 : index
    %c0_2 = arith.constant 0 : index
    %1 = vector.load %arg1[%c0_1, %c0_2] : memref<9x32xbf16, #tpu.memory_space<vmem>>, vector<9x32xbf16>
    %cst = arith.constant dense<0.000000e+00> : vector<512x32xf32>
    %2 = tpu.matmul %0, %1, %cst {dimension_numbers = #tpu.dot_dimension_numbers<[1], [0], [0], [1], [0, 0, 1, 1], [], []>} : vector<512x9xbf16>, vector<9x32xbf16>, vector<512x32xf32> -> vector<512x32xf32>
    %c0_3 = arith.constant 0 : index
    %c0_4 = arith.constant 0 : index
    %3 = vector.load %arg2[%c0_3, %c0_4] : memref<1x32xf32, #tpu.memory_space<vmem>>, vector<1x32xf32>
    %4 = vector.broadcast %3 : vector<1x32xf32> to vector<512x32xf32>
    %5 = arith.addf %2, %4 : vector<512x32xf32>
    %cst_5 = arith.constant 0.000000e+00 : f32
    %6 = vector.broadcast %cst_5 : f32 to vector<512x32xf32>
    %7 = arith.maximumf %5, %6 : vector<512x32xf32>
    %8 = arith.truncf %7 : vector<512x32xf32> to vector<512x32xbf16>
    %c0_6 = arith.constant 0 : index
    %c0_7 = arith.constant 0 : index
    %9 = vector.load %arg3[%c0_6, %c0_7] : memref<512x32xbf16, #tpu.memory_space<vmem>>, vector<512x32xbf16>
    tpu.vector_store %arg3[%c0_6, %c0_7], %8 {strides = array<i32>} : memref<512x32xbf16, #tpu.memory_space<vmem>>, vector<512x32xbf16>,
    return
  }
}

module attributes {stable_mosaic.version = 11 : i64} {
  func.func @_mm_bias_act_kernel(%arg0: memref<128x288xbf16, #tpu.memory_space<vmem>>, %arg1: memref<288x64xbf16, #tpu.memory_space<vmem>>, %arg2: memref<1x64xf32, #tpu.memory_space<vmem>>, %arg3: memref<128x64xbf16, #tpu.memory_space<vmem>>) attributes {dimension_semantics = [], scalar_prefetch = 0 : i64, scratch_operands = 0 : i64, tpu.core_type = #tpu.core_type<tc>} {
    %c0 = arith.constant 0 : index
    %c0_0 = arith.constant 0 : index
    %0 = vector.load %arg0[%c0, %c0_0] : memref<128x288xbf16, #tpu.memory_space<vmem>>, vector<128x288xbf16>
    %c0_1 = arith.constant 0 : index
    %c0_2 = arith.constant 0 : index
    %1 = vector.load %arg1[%c0_1, %c0_2] : memref<288x64xbf16, #tpu.memory_space<vmem>>, vector<288x64xbf16>
    %cst = arith.constant dense<0.000000e+00> : vector<128x64xf32>
    %2 = tpu.matmul %0, %1, %cst {dimension_numbers = #tpu.dot_dimension_numbers<[1], [0], [0], [1], [0, 0, 1, 1], [], []>} : vector<128x288xbf16>, vector<288x64xbf16>, vector<128x64xf32> -> vector<128x64xf32>
    %c0_3 = arith.constant 0 : index
    %c0_4 = arith.constant 0 : index
    %3 = vector.load %arg2[%c0_3, %c0_4] : memref<1x64xf32, #tpu.memory_space<vmem>>, vector<1x64xf32>
    %4 = vector.broadcast %3 : vector<1x64xf32> to vector<128x64xf32>
    %5 = arith.addf %2, %4 : vector<128x64xf32>
    %cst_5 = arith.constant 0.000000e+00 : f32
    %6 = vector.broadcast %cst_5 : f32 to vector<128x64xf32>
    %7 = arith.maximumf %5, %6 : vector<128x64xf32>
    %8 = arith.truncf %7 : vector<128x64xf32> to vector<128x64xbf16>
    %c0_6 = arith.constant 0 : index
    %c0_7 = arith.constant 0 : index
    %9 = vector.load %arg3[%c0_6, %c0_7] : memref<128x64xbf16, #tpu.memory_space<vmem>>, vector<128x64xbf16>
    tpu.vector_store %arg3[%c0_6, %c0_7], %8 {strides = array<i32>} : memref<128x64xbf16, #tpu.memory_space<vmem>>, vector<128x64xbf16>,
    return
  }
}

module attributes {stable_mosaic.version = 11 : i64} {
  func.func @_mm_bias_act_kernel(%arg0: memref<32x576xbf16, #tpu.memory_space<vmem>>, %arg1: memref<576x128xbf16, #tpu.memory_space<vmem>>, %arg2: memref<1x128xf32, #tpu.memory_space<vmem>>, %arg3: memref<32x128xbf16, #tpu.memory_space<vmem>>) attributes {dimension_semantics = [], scalar_prefetch = 0 : i64, scratch_operands = 0 : i64, tpu.core_type = #tpu.core_type<tc>} {
    %c0 = arith.constant 0 : index
    %c0_0 = arith.constant 0 : index
    %0 = vector.load %arg0[%c0, %c0_0] : memref<32x576xbf16, #tpu.memory_space<vmem>>, vector<32x576xbf16>
    %c0_1 = arith.constant 0 : index
    %c0_2 = arith.constant 0 : index
    %1 = vector.load %arg1[%c0_1, %c0_2] : memref<576x128xbf16, #tpu.memory_space<vmem>>, vector<576x128xbf16>
    %cst = arith.constant dense<0.000000e+00> : vector<32x128xf32>
    %2 = tpu.matmul %0, %1, %cst {dimension_numbers = #tpu.dot_dimension_numbers<[1], [0], [0], [1], [0, 0, 1, 1], [], []>} : vector<32x576xbf16>, vector<576x128xbf16>, vector<32x128xf32> -> vector<32x128xf32>
    %c0_3 = arith.constant 0 : index
    %c0_4 = arith.constant 0 : index
    %3 = vector.load %arg2[%c0_3, %c0_4] : memref<1x128xf32, #tpu.memory_space<vmem>>, vector<1x128xf32>
    %4 = vector.broadcast %3 : vector<1x128xf32> to vector<32x128xf32>
    %5 = arith.addf %2, %4 : vector<32x128xf32>
    %cst_5 = arith.constant 0.000000e+00 : f32
    %6 = vector.broadcast %cst_5 : f32 to vector<32x128xf32>
    %7 = arith.maximumf %5, %6 : vector<32x128xf32>
    %8 = arith.truncf %7 : vector<32x128xf32> to vector<32x128xbf16>
    %c0_6 = arith.constant 0 : index
    %c0_7 = arith.constant 0 : index
    %9 = vector.load %arg3[%c0_6, %c0_7] : memref<32x128xbf16, #tpu.memory_space<vmem>>, vector<32x128xbf16>
    tpu.vector_store %arg3[%c0_6, %c0_7], %8 {strides = array<i32>} : memref<32x128xbf16, #tpu.memory_space<vmem>>, vector<32x128xbf16>,
    return
  }
}

module attributes {stable_mosaic.version = 11 : i64} {
  func.func @_latent_kernel(%arg0: memref<2x2048xbf16, #tpu.memory_space<vmem>>, %arg1: memref<2048x16xbf16, #tpu.memory_space<vmem>>, %arg2: memref<1x16xf32, #tpu.memory_space<vmem>>, %arg3: memref<2x8xf32, #tpu.memory_space<vmem>>, %arg4: memref<8x2048xbf16, #tpu.memory_space<vmem>>, %arg5: memref<1x2048xf32, #tpu.memory_space<vmem>>, %arg6: memref<2x8xf32, #tpu.memory_space<vmem>>, %arg7: memref<2x8xf32, #tpu.memory_space<vmem>>, %arg8: memref<2x8xf32, #tpu.memory_space<vmem>>, %arg9: memref<2x2048xbf16, #tpu.memory_space<vmem>>) attributes {dimension_semantics = [], scalar_prefetch = 0 : i64, scratch_operands = 0 : i64, tpu.core_type = #tpu.core_type<tc>} {
    %c0 = arith.constant 0 : index
    %c0_0 = arith.constant 0 : index
    %0 = vector.load %arg0[%c0, %c0_0] : memref<2x2048xbf16, #tpu.memory_space<vmem>>, vector<2x2048xbf16>
    %c0_1 = arith.constant 0 : index
    %c0_2 = arith.constant 0 : index
    %1 = vector.load %arg1[%c0_1, %c0_2] : memref<2048x16xbf16, #tpu.memory_space<vmem>>, vector<2048x16xbf16>
    %cst = arith.constant dense<0.000000e+00> : vector<2x16xf32>
    %2 = tpu.matmul %0, %1, %cst {dimension_numbers = #tpu.dot_dimension_numbers<[1], [0], [0], [1], [0, 0, 1, 1], [], []>} : vector<2x2048xbf16>, vector<2048x16xbf16>, vector<2x16xf32> -> vector<2x16xf32>
    %c0_3 = arith.constant 0 : index
    %c0_4 = arith.constant 0 : index
    %3 = vector.load %arg2[%c0_3, %c0_4] : memref<1x16xf32, #tpu.memory_space<vmem>>, vector<1x16xf32>
    %4 = vector.broadcast %3 : vector<1x16xf32> to vector<2x16xf32>
    %5 = arith.addf %2, %4 : vector<2x16xf32>
    %6 = vector.extract_strided_slice %5 {offsets = [0, 0], sizes = [2, 8], strides = [1, 1]} : vector<2x16xf32> to vector<2x8xf32>
    %7 = vector.extract_strided_slice %5 {offsets = [0, 8], sizes = [2, 8], strides = [1, 1]} : vector<2x16xf32> to vector<2x8xf32>
    %8 = math.exp %7 : vector<2x8xf32>
    %c0_5 = arith.constant 0 : index
    %c0_6 = arith.constant 0 : index
    %9 = vector.load %arg3[%c0_5, %c0_6] : memref<2x8xf32, #tpu.memory_space<vmem>>, vector<2x8xf32>
    %10 = arith.mulf %8, %9 : vector<2x8xf32>
    %11 = arith.addf %6, %10 : vector<2x8xf32>
    %c0_7 = arith.constant 0 : index
    %c0_8 = arith.constant 0 : index
    %12 = vector.load %arg6[%c0_7, %c0_8] : memref<2x8xf32, #tpu.memory_space<vmem>>, vector<2x8xf32>
    tpu.vector_store %arg6[%c0_7, %c0_8], %6 {strides = array<i32>} : memref<2x8xf32, #tpu.memory_space<vmem>>, vector<2x8xf32>,
    %c0_9 = arith.constant 0 : index
    %c0_10 = arith.constant 0 : index
    %13 = vector.load %arg7[%c0_9, %c0_10] : memref<2x8xf32, #tpu.memory_space<vmem>>, vector<2x8xf32>
    tpu.vector_store %arg7[%c0_9, %c0_10], %7 {strides = array<i32>} : memref<2x8xf32, #tpu.memory_space<vmem>>, vector<2x8xf32>,
    %c0_11 = arith.constant 0 : index
    %c0_12 = arith.constant 0 : index
    %14 = vector.load %arg8[%c0_11, %c0_12] : memref<2x8xf32, #tpu.memory_space<vmem>>, vector<2x8xf32>
    tpu.vector_store %arg8[%c0_11, %c0_12], %11 {strides = array<i32>} : memref<2x8xf32, #tpu.memory_space<vmem>>, vector<2x8xf32>,
    %15 = arith.truncf %11 : vector<2x8xf32> to vector<2x8xbf16>
    %c0_13 = arith.constant 0 : index
    %c0_14 = arith.constant 0 : index
    %16 = vector.load %arg4[%c0_13, %c0_14] : memref<8x2048xbf16, #tpu.memory_space<vmem>>, vector<8x2048xbf16>
    %cst_15 = arith.constant dense<0.000000e+00> : vector<2x2048xf32>
    %17 = tpu.matmul %15, %16, %cst_15 {dimension_numbers = #tpu.dot_dimension_numbers<[1], [0], [0], [1], [0, 0, 1, 1], [], []>} : vector<2x8xbf16>, vector<8x2048xbf16>, vector<2x2048xf32> -> vector<2x2048xf32>
    %c0_16 = arith.constant 0 : index
    %c0_17 = arith.constant 0 : index
    %18 = vector.load %arg5[%c0_16, %c0_17] : memref<1x2048xf32, #tpu.memory_space<vmem>>, vector<1x2048xf32>
    %19 = vector.broadcast %18 : vector<1x2048xf32> to vector<2x2048xf32>
    %20 = arith.addf %17, %19 : vector<2x2048xf32>
    %21 = arith.truncf %20 : vector<2x2048xf32> to vector<2x2048xbf16>
    %c0_18 = arith.constant 0 : index
    %c0_19 = arith.constant 0 : index
    %22 = vector.load %arg9[%c0_18, %c0_19] : memref<2x2048xbf16, #tpu.memory_space<vmem>>, vector<2x2048xbf16>
    tpu.vector_store %arg9[%c0_18, %c0_19], %21 {strides = array<i32>} : memref<2x2048xbf16, #tpu.memory_space<vmem>>, vector<2x2048xbf16>,
    return
  }
}

module attributes {stable_mosaic.version = 11 : i64} {
  func.func @_mm_bias_act_kernel(%arg0: memref<50x512xbf16, #tpu.memory_space<vmem>>, %arg1: memref<512x512xbf16, #tpu.memory_space<vmem>>, %arg2: memref<1x512xf32, #tpu.memory_space<vmem>>, %arg3: memref<50x512xbf16, #tpu.memory_space<vmem>>) attributes {dimension_semantics = [], scalar_prefetch = 0 : i64, scratch_operands = 0 : i64, tpu.core_type = #tpu.core_type<tc>} {
    %c0 = arith.constant 0 : index
    %c0_0 = arith.constant 0 : index
    %0 = vector.load %arg0[%c0, %c0_0] : memref<50x512xbf16, #tpu.memory_space<vmem>>, vector<50x512xbf16>
    %c0_1 = arith.constant 0 : index
    %c0_2 = arith.constant 0 : index
    %1 = vector.load %arg1[%c0_1, %c0_2] : memref<512x512xbf16, #tpu.memory_space<vmem>>, vector<512x512xbf16>
    %cst = arith.constant dense<0.000000e+00> : vector<50x512xf32>
    %2 = tpu.matmul %0, %1, %cst {dimension_numbers = #tpu.dot_dimension_numbers<[1], [0], [0], [1], [0, 0, 1, 1], [], []>} : vector<50x512xbf16>, vector<512x512xbf16>, vector<50x512xf32> -> vector<50x512xf32>
    %c0_3 = arith.constant 0 : index
    %c0_4 = arith.constant 0 : index
    %3 = vector.load %arg2[%c0_3, %c0_4] : memref<1x512xf32, #tpu.memory_space<vmem>>, vector<1x512xf32>
    %4 = vector.broadcast %3 : vector<1x512xf32> to vector<50x512xf32>
    %5 = arith.addf %2, %4 : vector<50x512xf32>
    %cst_5 = arith.constant 0.000000e+00 : f32
    %6 = vector.broadcast %cst_5 : f32 to vector<50x512xf32>
    %7 = arith.maximumf %5, %6 : vector<50x512xf32>
    %8 = arith.truncf %7 : vector<50x512xf32> to vector<50x512xbf16>
    %c0_6 = arith.constant 0 : index
    %c0_7 = arith.constant 0 : index
    %9 = vector.load %arg3[%c0_6, %c0_7] : memref<50x512xbf16, #tpu.memory_space<vmem>>, vector<50x512xbf16>
    tpu.vector_store %arg3[%c0_6, %c0_7], %8 {strides = array<i32>} : memref<50x512xbf16, #tpu.memory_space<vmem>>, vector<50x512xbf16>,
    return
  }
}

module attributes {stable_mosaic.version = 11 : i64} {
  func.func @_mm_bias_act_kernel(%arg0: memref<162x512xbf16, #tpu.memory_space<vmem>>, %arg1: memref<512x256xbf16, #tpu.memory_space<vmem>>, %arg2: memref<1x256xf32, #tpu.memory_space<vmem>>, %arg3: memref<162x256xbf16, #tpu.memory_space<vmem>>) attributes {dimension_semantics = [], scalar_prefetch = 0 : i64, scratch_operands = 0 : i64, tpu.core_type = #tpu.core_type<tc>} {
    %c0 = arith.constant 0 : index
    %c0_0 = arith.constant 0 : index
    %0 = vector.load %arg0[%c0, %c0_0] : memref<162x512xbf16, #tpu.memory_space<vmem>>, vector<162x512xbf16>
    %c0_1 = arith.constant 0 : index
    %c0_2 = arith.constant 0 : index
    %1 = vector.load %arg1[%c0_1, %c0_2] : memref<512x256xbf16, #tpu.memory_space<vmem>>, vector<512x256xbf16>
    %cst = arith.constant dense<0.000000e+00> : vector<162x256xf32>
    %2 = tpu.matmul %0, %1, %cst {dimension_numbers = #tpu.dot_dimension_numbers<[1], [0], [0], [1], [0, 0, 1, 1], [], []>} : vector<162x512xbf16>, vector<512x256xbf16>, vector<162x256xf32> -> vector<162x256xf32>
    %c0_3 = arith.constant 0 : index
    %c0_4 = arith.constant 0 : index
    %3 = vector.load %arg2[%c0_3, %c0_4] : memref<1x256xf32, #tpu.memory_space<vmem>>, vector<1x256xf32>
    %4 = vector.broadcast %3 : vector<1x256xf32> to vector<162x256xf32>
    %5 = arith.addf %2, %4 : vector<162x256xf32>
    %cst_5 = arith.constant 0.000000e+00 : f32
    %6 = vector.broadcast %cst_5 : f32 to vector<162x256xf32>
    %7 = arith.maximumf %5, %6 : vector<162x256xf32>
    %8 = arith.truncf %7 : vector<162x256xf32> to vector<162x256xbf16>
    %c0_6 = arith.constant 0 : index
    %c0_7 = arith.constant 0 : index
    %9 = vector.load %arg3[%c0_6, %c0_7] : memref<162x256xbf16, #tpu.memory_space<vmem>>, vector<162x256xbf16>
    tpu.vector_store %arg3[%c0_6, %c0_7], %8 {strides = array<i32>} : memref<162x256xbf16, #tpu.memory_space<vmem>>, vector<162x256xbf16>,
    return
  }
}

module attributes {stable_mosaic.version = 11 : i64} {
  func.func @_mm_bias_act_kernel(%arg0: memref<578x256xbf16, #tpu.memory_space<vmem>>, %arg1: memref<256x128xbf16, #tpu.memory_space<vmem>>, %arg2: memref<1x128xf32, #tpu.memory_space<vmem>>, %arg3: memref<578x128xbf16, #tpu.memory_space<vmem>>) attributes {dimension_semantics = [], scalar_prefetch = 0 : i64, scratch_operands = 0 : i64, tpu.core_type = #tpu.core_type<tc>} {
    %c0 = arith.constant 0 : index
    %c0_0 = arith.constant 0 : index
    %0 = vector.load %arg0[%c0, %c0_0] : memref<578x256xbf16, #tpu.memory_space<vmem>>, vector<578x256xbf16>
    %c0_1 = arith.constant 0 : index
    %c0_2 = arith.constant 0 : index
    %1 = vector.load %arg1[%c0_1, %c0_2] : memref<256x128xbf16, #tpu.memory_space<vmem>>, vector<256x128xbf16>
    %cst = arith.constant dense<0.000000e+00> : vector<578x128xf32>
    %2 = tpu.matmul %0, %1, %cst {dimension_numbers = #tpu.dot_dimension_numbers<[1], [0], [0], [1], [0, 0, 1, 1], [], []>} : vector<578x256xbf16>, vector<256x128xbf16>, vector<578x128xf32> -> vector<578x128xf32>
    %c0_3 = arith.constant 0 : index
    %c0_4 = arith.constant 0 : index
    %3 = vector.load %arg2[%c0_3, %c0_4] : memref<1x128xf32, #tpu.memory_space<vmem>>, vector<1x128xf32>
    %4 = vector.broadcast %3 : vector<1x128xf32> to vector<578x128xf32>
    %5 = arith.addf %2, %4 : vector<578x128xf32>
    %cst_5 = arith.constant 0.000000e+00 : f32
    %6 = vector.broadcast %cst_5 : f32 to vector<578x128xf32>
    %7 = arith.maximumf %5, %6 : vector<578x128xf32>
    %8 = arith.truncf %7 : vector<578x128xf32> to vector<578x128xbf16>
    %c0_6 = arith.constant 0 : index
    %c0_7 = arith.constant 0 : index
    %9 = vector.load %arg3[%c0_6, %c0_7] : memref<578x128xbf16, #tpu.memory_space<vmem>>, vector<578x128xbf16>
    tpu.vector_store %arg3[%c0_6, %c0_7], %8 {strides = array<i32>} : memref<578x128xbf16, #tpu.memory_space<vmem>>, vector<578x128xbf16>,
    return
  }
}

module attributes {stable_mosaic.version = 11 : i64} {
  func.func @_mm_bias_act_kernel(%arg0: i32, %arg1: memref<1024x288xbf16, #tpu.memory_space<vmem>>, %arg2: memref<288x128xbf16, #tpu.memory_space<vmem>>, %arg3: memref<1x128xf32, #tpu.memory_space<vmem>>, %arg4: memref<1024x1xf32, #tpu.memory_space<vmem>>) attributes {dimension_semantics = [#tpu.dimension_semantics<parallel>], iteration_bounds = array<i64: 2>, scalar_prefetch = 0 : i64, scratch_operands = 0 : i64, tpu.core_type = #tpu.core_type<tc>, window_params = [{transform_indices = @transform_0, window_bounds = array<i64: 1024, 288>}, {pipeline_mode = #tpu.pipeline_mode<synchronous>, transform_indices = @transform_1, window_bounds = array<i64: 288, 128>}, {pipeline_mode = #tpu.pipeline_mode<synchronous>, transform_indices = @transform_2, window_bounds = array<i64: 1, 128>}, {transform_indices = @transform_3, window_bounds = array<i64: 1024, 1>}]} {
    %c0 = arith.constant 0 : index
    %c0_0 = arith.constant 0 : index
    %0 = vector.load %arg1[%c0, %c0_0] : memref<1024x288xbf16, #tpu.memory_space<vmem>>, vector<1024x288xbf16>
    %c0_1 = arith.constant 0 : index
    %c0_2 = arith.constant 0 : index
    %1 = vector.load %arg2[%c0_1, %c0_2] : memref<288x128xbf16, #tpu.memory_space<vmem>>, vector<288x128xbf16>
    %cst = arith.constant dense<0.000000e+00> : vector<1024x128xf32>
    %2 = tpu.matmul %0, %1, %cst {dimension_numbers = #tpu.dot_dimension_numbers<[1], [0], [0], [1], [0, 0, 1, 1], [], []>} : vector<1024x288xbf16>, vector<288x128xbf16>, vector<1024x128xf32> -> vector<1024x128xf32>
    %c0_3 = arith.constant 0 : index
    %c0_4 = arith.constant 0 : index
    %3 = vector.load %arg3[%c0_3, %c0_4] : memref<1x128xf32, #tpu.memory_space<vmem>>, vector<1x128xf32>
    %4 = vector.broadcast %3 : vector<1x128xf32> to vector<1024x128xf32>
    %5 = arith.addf %2, %4 : vector<1024x128xf32>
    %6 = vector.extract_strided_slice %5 {offsets = [0, 0], sizes = [1024, 1], strides = [1, 1]} : vector<1024x128xf32> to vector<1024x1xf32>
    %cst_5 = arith.constant 5.000000e-01 : f32
    %7 = vector.broadcast %cst_5 : f32 to vector<1024x1xf32>
    %8 = arith.mulf %7, %6 : vector<1024x1xf32>
    %9 = math.tanh %8 : vector<1024x1xf32>
    %cst_6 = arith.constant 5.000000e-01 : f32
    %10 = vector.broadcast %cst_6 : f32 to vector<1024x1xf32>
    %11 = arith.mulf %10, %9 : vector<1024x1xf32>
    %cst_7 = arith.constant 5.000000e-01 : f32
    %12 = vector.broadcast %cst_7 : f32 to vector<1024x1xf32>
    %13 = arith.addf %11, %12 : vector<1024x1xf32>
    %c0_8 = arith.constant 0 : index
    %c0_9 = arith.constant 0 : index
    %14 = vector.load %arg4[%c0_8, %c0_9] : memref<1024x1xf32, #tpu.memory_space<vmem>>, vector<1024x1xf32>
    tpu.vector_store %arg4[%c0_8, %c0_9], %13 {strides = array<i32>} : memref<1024x1xf32, #tpu.memory_space<vmem>>, vector<1024x1xf32>,
    return
  }
  func.func @transform_0(%arg0: i32) -> (i32, i32) {
    %c0_i32 = arith.constant 0 : i32
    %c0_i32_0 = arith.constant 0 : i32
    return %arg0, %c0_i32 : i32, i32
  }
  func.func @transform_1(%arg0: i32) -> (i32, i32) {
    %c0_i32 = arith.constant 0 : i32
    %c0_i32_0 = arith.constant 0 : i32
    %c0_i32_1 = arith.constant 0 : i32
    return %c0_i32, %c0_i32_0 : i32, i32
  }
  func.func @transform_2(%arg0: i32) -> (i32, i32) {
    %c0_i32 = arith.constant 0 : i32
    %c0_i32_0 = arith.constant 0 : i32
    %c0_i32_1 = arith.constant 0 : i32
    return %c0_i32, %c0_i32_0 : i32, i32
  }
  func.func @transform_3(%arg0: i32) -> (i32, i32) {
    %c0_i32 = arith.constant 0 : i32
    %c0_i32_0 = arith.constant 0 : i32
    return %arg0, %c0_i32 : i32, i32
  }
}

</mosaic_0001>

<llo_original>
// kernel: vae_forward.8
$region0: #{vae_forward.8}
  #allocation0 [shape = 'u32[]', space=smem, size = 0x4, offset = 0x4, fixed_abs, tag = 'smem constant byte address 0x4 - core index']
  #allocation1 [shape = 'u32[144,128]{1,0:T(1,128)}', space=vmem, size = 0x12000, scoped, tag = 'internal scratch']
  %s0 = inlined_call_operand.vmem [shape: bf16[512,9], index: 0, kind: input, shape index: {}]
  %s1 = inlined_call_operand.hbm [shape: bf16[9,32], index: 1, kind: input, shape index: {}]
  %s2 = inlined_call_operand.hbm [shape: f32[1,32], index: 2, kind: input, shape index: {}]
  %s3 = inlined_call_operand.vmem [shape: bf16[512,32], index: 3, kind: output, shape index: {}]
  %s4 = sld [smem:[#allocation0]]
  $region30: #{vae_forward.8} parent=0
    _
  %s6 = ssub.s32 1, %s4
  %s7 = scalar_select 0, %s6, %s4
  $region1: #{vae_forward.8} parent=0
    #allocation2 [shape = 'u8[4096]{0}', space=vmem, size = 0x1000, scoped, tag = 'input window, operand 1, single buffered']
    #allocation3 [shape = 's32[1]{0}', space=sflag, size = 0x4, scoped, tag = 'scoped memory for vae_forward.8']
    #allocation4 [shape = 'u8[512]{0}', space=vmem, size = 0x400, scoped, tag = 'input window, operand 2, single buffered']
    #allocation5 [shape = 's32[1]{0}', space=sflag, size = 0x4, scoped, tag = 'scoped memory for vae_forward.8']
    %8 = vsyncpa [#allocation3], 0
    %9 = vsyncpa [#allocation5], 0
    // Predicated region
    $region2: #{vae_forward.8} parent=1 // pred_check
      _
    $region3: #{vae_forward.8} parent=1 // pred_check_branch
      %11 = sbr.rel (0) target = $region5
    $region4: #{vae_forward.8} parent=1 // pred_region
      _
    $region5: #{vae_forward.8} parent=1 // pred_fallthru
      _
    // Predicated region
    $region6: #{vae_forward.8} parent=1 // pred_check
      _
    $region7: #{vae_forward.8} parent=1 // pred_check_branch
      %13 = sbr.rel (0) target = $region9
    $region8: #{vae_forward.8} parent=1 // pred_region
      %s15 = ssub.s32 128, 128
      %16 = vsyncadd [#allocation3], %s15
      %s17 = sshll.u32 [#allocation2], 4
      %s18 = int_to_ptr.vmem [resolvable:$true] %s17
      %23 = dma.hbm_to_vmem [thread:$0]  %s1, 128, %s18, [#allocation3], 64, 64, 4
    $region9: #{vae_forward.8} parent=1 // pred_fallthru
      _
    // Predicated region
    $region10: #{vae_forward.8} parent=1 // pred_check
      _
    $region11: #{vae_forward.8} parent=1 // pred_check_branch
      %25 = sbr.rel (0) target = $region13
    $region12: #{vae_forward.8} parent=1 // pred_region
      %s27 = ssub.s32 16, 16
      %28 = vsyncadd [#allocation5], %s27
      %s30 = sshll.u32 [#allocation4], 4
      %s31 = int_to_ptr.vmem [resolvable:$true] %s30
      %33 = dma.hbm_to_vmem [thread:$0]  %s2, 16, %s31, [#allocation5]
    $region13: #{vae_forward.8} parent=1 // pred_fallthru
      _
    // Predicated region
    $region14: #{vae_forward.8} parent=1 // pred_check
      _
    $region15: #{vae_forward.8} parent=1 // pred_check_branch
      %35 = sbr.rel (0) target = $region17
    $region16: #{vae_forward.8} parent=1 // pred_region
      %36 = dma.done [#allocation3], 128
    $region17: #{vae_forward.8} parent=1 // pred_fallthru
      _
    // Predicated region
    $region18: #{vae_forward.8} parent=1 // pred_check
      _
    $region19: #{vae_forward.8} parent=1 // pred_check_branch
      %38 = sbr.rel (0) target = $region21
    $region20: #{vae_forward.8} parent=1 // pred_region
      %39 = dma.done [#allocation5], 16
    $region21: #{vae_forward.8} parent=1 // pred_fallthru
      _
    %v41 = vld [vmem:[%s0] sm:$0xf]
    %v42 = vld [vmem:[%s0 + $0x4] sm:$0xf]
    %v43 = vld [vmem:[%s0 + $0x8] sm:$0xf]
    %v44 = vld [vmem:[%s0 + $0xc] sm:$0xf]
    %v45 = vld [vmem:[%s0 + $0x10] sm:$0xf]
    %v46 = vld [vmem:[%s0 + $0x14] sm:$0xf]
    %v47 = vld [vmem:[%s0 + $0x18] sm:$0xf]
    %v48 = vld [vmem:[%s0 + $0x1c] sm:$0xf]
    %v49 = vld [vmem:[%s0 + $0x20] sm:$0xf]
    %v50 = vld [vmem:[%s0 + $0x24] sm:$0xf]
    %v51 = vld [vmem:[%s0 + $0x28] sm:$0xf]
    %v52 = vld [vmem:[%s0 + $0x2c] sm:$0xf]
    %v53 = vld [vmem:[%s0 + $0x30] sm:$0xf]
    %v54 = vld [vmem:[%s0 + $0x34] sm:$0xf]
    %v55 = vld [vmem:[%s0 + $0x38] sm:$0xf]
    %v56 = vld [vmem:[%s0 + $0x3c] sm:$0xf]
    %v57 = vld [vmem:[%s0 + $0x40] sm:$0xf]
    %v58 = vld [vmem:[%s0 + $0x44] sm:$0xf]
    %v59 = vld [vmem:[%s0 + $0x48] sm:$0xf]
    %v60 = vld [vmem:[%s0 + $0x4c] sm:$0xf]
    %v61 = vld [vmem:[%s0 + $0x50] sm:$0xf]
    %v62 = vld [vmem:[%s0 + $0x54] sm:$0xf]
    %v63 = vld [vmem:[%s0 + $0x58] sm:$0xf]
    %v64 = vld [vmem:[%s0 + $0x5c] sm:$0xf]
    %v65 = vld [vmem:[%s0 + $0x60] sm:$0xf]
    %v66 = vld [vmem:[%s0 + $0x64] sm:$0xf]
    %v67 = vld [vmem:[%s0 + $0x68] sm:$0xf]
    %v68 = vld [vmem:[%s0 + $0x6c] sm:$0xf]
    %v69 = vld [vmem:[%s0 + $0x70] sm:$0xf]
    %v70 = vld [vmem:[%s0 + $0x74] sm:$0xf]
    %v71 = vld [vmem:[%s0 + $0x78] sm:$0xf]
    %v72 = vld [vmem:[%s0 + $0x7c] sm:$0xf]
    %v73 = vld [vmem:[%s0 + $0x80] sm:$0xf]
    %v74 = vld [vmem:[%s0 + $0x84] sm:$0xf]
    %v75 = vld [vmem:[%s0 + $0x88] sm:$0xf]
    %v76 = vld [vmem:[%s0 + $0x8c] sm:$0xf]
    %v77 = vld [vmem:[%s0 + $0x90] sm:$0xf]
    %v78 = vld [vmem:[%s0 + $0x94] sm:$0xf]
    %v79 = vld [vmem:[%s0 + $0x98] sm:$0xf]
    %v80 = vld [vmem:[%s0 + $0x9c] sm:$0xf]
    %v81 = vld [vmem:[%s0 + $0xa0] sm:$0xf]
    %v82 = vld [vmem:[%s0 + $0xa4] sm:$0xf]
    %v83 = vld [vmem:[%s0 + $0xa8] sm:$0xf]
    %v84 = vld [vmem:[%s0 + $0xac] sm:$0xf]
    %v85 = vld [vmem:[%s0 + $0xb0] sm:$0xf]
    %v86 = vld [vmem:[%s0 + $0xb4] sm:$0xf]
    %v87 = vld [vmem:[%s0 + $0xb8] sm:$0xf]
    %v88 = vld [vmem:[%s0 + $0xbc] sm:$0xf]
    %v89 = vld [vmem:[%s0 + $0xc0] sm:$0xf]
    %v90 = vld [vmem:[%s0 + $0xc4] sm:$0xf]
    %v91 = vld [vmem:[%s0 + $0xc8] sm:$0xf]
    %v92 = vld [vmem:[%s0 + $0xcc] sm:$0xf]
    %v93 = vld [vmem:[%s0 + $0xd0] sm:$0xf]
    %v94 = vld [vmem:[%s0 + $0xd4] sm:$0xf]
    %v95 = vld [vmem:[%s0 + $0xd8] sm:$0xf]
    %v96 = vld [vmem:[%s0 + $0xdc] sm:$0xf]
    %v97 = vld [vmem:[%s0 + $0xe0] sm:$0xf]
    %v98 = vld [vmem:[%s0 + $0xe4] sm:$0xf]
    %v99 = vld [vmem:[%s0 + $0xe8] sm:$0xf]
    %v100 = vld [vmem:[%s0 + $0xec] sm:$0xf]
    %v101 = vld [vmem:[%s0 + $0xf0] sm:$0xf]
    %v102 = vld [vmem:[%s0 + $0xf4] sm:$0xf]
    %v103 = vld [vmem:[%s0 + $0xf8] sm:$0xf]
    %v104 = vld [vmem:[%s0 + $0xfc] sm:$0xf]
    %v105 = vld [vmem:[#allocation2] sm:$0xf]
    %v106 = vld [vmem:[#allocation2 + $0x4] sm:$0x1]
    %v107 = vld [vmem:[#allocation4] sm:$0x1]
    %v109 = vlaneseq
    %v110 = vshrl.u32 %v109, 7
    %v111 = vsub.s32 0, %v110
    %v112 = vrot.slane %v107, %v111
    %v178 = vunpack.c.l.b16 %v41
    %v179 = vunpack.c.l.b16 %v42
    %v180 = vunpack.c.l.b16 %v43
    %v181 = vunpack.c.l.b16 %v44
    %v182 = vunpack.c.l.b16 %v45
    %v183 = vunpack.c.l.b16 %v46
    %v184 = vunpack.c.l.b16 %v47
    %v185 = vunpack.c.l.b16 %v48
    %v186 = vunpack.c.l.b16 %v49
    %v187 = vunpack.c.l.b16 %v50
    %v188 = vunpack.c.l.b16 %v51
    %v189 = vunpack.c.l.b16 %v52
    %v190 = vunpack.c.l.b16 %v53
    %v191 = vunpack.c.l.b16 %v54
    %v192 = vunpack.c.l.b16 %v55
    %v193 = vunpack.c.l.b16 %v56
    %v194 = vunpack.c.l.b16 %v57
    %v195 = vunpack.c.l.b16 %v58
    %v196 = vunpack.c.l.b16 %v59
    %v197 = vunpack.c.l.b16 %v60
    %v198 = vunpack.c.l.b16 %v61
    %v199 = vunpack.c.l.b16 %v62
    %v200 = vunpack.c.l.b16 %v63
    %v201 = vunpack.c.l.b16 %v64
    %v202 = vunpack.c.l.b16 %v65
    %v203 = vunpack.c.l.b16 %v66
    %v204 = vunpack.c.l.b16 %v67
    %v205 = vunpack.c.l.b16 %v68
    %v206 = vunpack.c.l.b16 %v69
    %v207 = vunpack.c.l.b16 %v70
    %v208 = vunpack.c.l.b16 %v71
    %v209 = vunpack.c.l.b16 %v72
    %v210 = vunpack.c.l.b16 %v73
    %v211 = vunpack.c.l.b16 %v74
    %v212 = vunpack.c.l.b16 %v75
    %v213 = vunpack.c.l.b16 %v76
    %v214 = vunpack.c.l.b16 %v77
    %v215 = vunpack.c.l.b16 %v78
    %v216 = vunpack.c.l.b16 %v79
    %v217 = vunpack.c.l.b16 %v80
    %v218 = vunpack.c.l.b16 %v81
    %v219 = vunpack.c.l.b16 %v82
    %v220 = vunpack.c.l.b16 %v83
    %v221 = vunpack.c.l.b16 %v84
    %v222 = vunpack.c.l.b16 %v85
    %v223 = vunpack.c.l.b16 %v86
    %v224 = vunpack.c.l.b16 %v87
    %v225 = vunpack.c.l.b16 %v88
    %v226 = vunpack.c.l.b16 %v89
    %v227 = vunpack.c.l.b16 %v90
    %v228 = vunpack.c.l.b16 %v91
    %v229 = vunpack.c.l.b16 %v92
    %v230 = vunpack.c.l.b16 %v93
    %v231 = vunpack.c.l.b16 %v94
    %v232 = vunpack.c.l.b16 %v95
    %v233 = vunpack.c.l.b16 %v96
    %v234 = vunpack.c.l.b16 %v97
    %v235 = vunpack.c.l.b16 %v98
    %v236 = vunpack.c.l.b16 %v99
    %v237 = vunpack.c.l.b16 %v100
    %v238 = vunpack.c.l.b16 %v101
    %v239 = vunpack.c.l.b16 %v102
    %v240 = vunpack.c.l.b16 %v103
    %v241 = vunpack.c.l.b16 %v104
    %v242 = vpack.c.b16 %v179, %v178
    %v243 = vpack.c.b16 %v181, %v180
    %v244 = vpack.c.b16 %v183, %v182
    %v245 = vpack.c.b16 %v185, %v184
    %v246 = vpack.c.b16 %v187, %v186
    %v247 = vpack.c.b16 %v189, %v188
    %v248 = vpack.c.b16 %v191, %v190
    %v249 = vpack.c.b16 %v193, %v192
    %v250 = vpack.c.b16 %v195, %v194
    %v251 = vpack.c.b16 %v197, %v196
    %v252 = vpack.c.b16 %v199, %v198
    %v253 = vpack.c.b16 %v201, %v200
    %v254 = vpack.c.b16 %v203, %v202
    %v255 = vpack.c.b16 %v205, %v204
    %v256 = vpack.c.b16 %v207, %v206
    %v257 = vpack.c.b16 %v209, %v208
    %v258 = vpack.c.b16 %v211, %v210
    %v259 = vpack.c.b16 %v213, %v212
    %v260 = vpack.c.b16 %v215, %v214
    %v261 = vpack.c.b16 %v217, %v216
    %v262 = vpack.c.b16 %v219, %v218
    %v263 = vpack.c.b16 %v221, %v220
    %v264 = vpack.c.b16 %v223, %v222
    %v265 = vpack.c.b16 %v225, %v224
    %v266 = vpack.c.b16 %v227, %v226
    %v267 = vpack.c.b16 %v229, %v228
    %v268 = vpack.c.b16 %v231, %v230
    %v269 = vpack.c.b16 %v233, %v232
    %v270 = vpack.c.b16 %v235, %v234
    %v271 = vpack.c.b16 %v237, %v236
    %v272 = vpack.c.b16 %v239, %v238
    %v273 = vpack.c.b16 %v241, %v240
    %v276 = vunpack.c.l.b16 %v105
    %v277 = vunpack.c.l.b16 %v106
    %v278 = vpack.c.b16 %v277, %v276
    %vm279 = vcmask 72704
    %v281 = vsel %vm279, %v242, 0
    %v284 = vsel %vm279, %v243, 0
    %v287 = vsel %vm279, %v244, 0
    %v290 = vsel %vm279, %v245, 0
    %v293 = vsel %vm279, %v246, 0
    %v296 = vsel %vm279, %v247, 0
    %v299 = vsel %vm279, %v248, 0
    %v302 = vsel %vm279, %v249, 0
    %v305 = vsel %vm279, %v250, 0
    %v308 = vsel %vm279, %v251, 0
    %v311 = vsel %vm279, %v252, 0
    %v314 = vsel %vm279, %v253, 0
    %v317 = vsel %vm279, %v254, 0
    %v320 = vsel %vm279, %v255, 0
    %v323 = vsel %vm279, %v256, 0
    %v326 = vsel %vm279, %v257, 0
    %v329 = vsel %vm279, %v258, 0
    %v332 = vsel %vm279, %v259, 0
    %v335 = vsel %vm279, %v260, 0
    %v338 = vsel %vm279, %v261, 0
    %v341 = vsel %vm279, %v262, 0
    %v344 = vsel %vm279, %v263, 0
    %v347 = vsel %vm279, %v264, 0
    %v350 = vsel %vm279, %v265, 0
    %v353 = vsel %vm279, %v266, 0
    %v356 = vsel %vm279, %v267, 0
    %v359 = vsel %vm279, %v268, 0
    %v362 = vsel %vm279, %v269, 0
    %v365 = vsel %vm279, %v270, 0
    %v368 = vsel %vm279, %v271, 0
    %v371 = vsel %vm279, %v272, 0
    %v374 = vsel %vm279, %v273, 0
    %vm376 = vcmask 1043456
    %vm377 = vcmask 1044480
    %v378 = vsel %vm376, 4294967295, 65535
    %v379 = vsel %vm377, %v378, 0
    %v381 = vand.u32 %v278, %v379
    %383 = vmatprep.subr.bf16.mxu0 0
    %384 = vmatpush1.bf16.msra.mxu0 0
    %385 = vmatprep.subr.bf16.mxu0 0
    %386 = vmatpush1.bf16.msra.mxu0 0
    %387 = vmatprep.subr.bf16.mxu0 0
    %388 = vmatpush1.bf16.msra.mxu0 0
    %389 = vmatprep.subr.bf16.mxu0 0
    %390 = vmatpush1.bf16.msra.mxu0 0
    %391 = vmatprep.subr.bf16.mxu0 0
    %392 = vmatpush1.bf16.msra.mxu0 0
    %393 = vmatprep.subr.bf16.mxu0 0
    %394 = vmatpush1.bf16.msra.mxu0 0
    %395 = vmatprep.subr.bf16.mxu0 0
    %396 = vmatpush1.bf16.msra.mxu0 0
    %397 = vmatprep.subr.bf16.mxu0 0
    %398 = vmatpush1.bf16.msra.mxu0 %v381
    %399 = vmatprep.subr.bf16.mxu0 0
    %400 = vmatpush2.bf16.msra.mxu0 0
    %401 = vmatprep.subr.bf16.mxu0 0
    %402 = vmatpush2.bf16.msra.mxu0 0
    %403 = vmatprep.subr.bf16.mxu0 0
    %404 = vmatpush2.bf16.msra.mxu0 0
    %405 = vmatprep.subr.bf16.mxu0 0
    %406 = vmatpush2.bf16.msra.mxu0 0
    %407 = vmatprep.subr.bf16.mxu0 0
    %408 = vmatpush2.bf16.msra.mxu0 0
    %409 = vmatprep.subr.bf16.mxu0 0
    %410 = vmatpush2.bf16.msra.mxu0 0
    %411 = vmatprep.subr.bf16.mxu0 0
    %412 = vmatpush2.bf16.msra.mxu0 0
    %413 = vmatprep.subr.bf16.mxu0 0
    %414 = vmatpush2.bf16.msra.mxu0 0
    %415 = vmatprep.mubr.bf16.mxu0 0
    %416 = vmatmul.mubr.bf16.gmra.mxu0 %v281
    %v417 = vpop.f32.mrf.mxu0
    %v418 = vadd.f32 %v112, %v417
    %v419 = vpop.f32.mrf.mxu0
    %v420 = vpop.f32.mrf.mxu0
    %v421 = vadd.f32 %v112, %v420
    %v422 = vpop.f32.mrf.mxu0
    %423 = vmatprep.mubr.bf16.mxu0 0
    %424 = vmatmul.mubr.bf16.gmra.mxu0 %v284
    %v425 = vpop.f32.mrf.mxu0
    %v426 = vadd.f32 %v112, %v425
    %v427 = vpop.f32.mrf.mxu0
    %v428 = vpop.f32.mrf.mxu0
    %v429 = vadd.f32 %v112, %v428
    %v430 = vpop.f32.mrf.mxu0
    %431 = vmatprep.mubr.bf16.mxu0 0
    %432 = vmatmul.mubr.bf16.gmra.mxu0 %v287
    %v433 = vpop.f32.mrf.mxu0
    %v434 = vadd.f32 %v112, %v433
    %v435 = vpop.f32.mrf.mxu0
    %v436 = vpop.f32.mrf.mxu0
    %v437 = vadd.f32 %v112, %v436
    %v438 = vpop.f32.mrf.mxu0
    %439 = vmatprep.mubr.bf16.mxu0 0
    %440 = vmatmul.mubr.bf16.gmra.mxu0 %v290
    %v441 = vpop.f32.mrf.mxu0
    %v442 = vadd.f32 %v112, %v441
    %v443 = vpop.f32.mrf.mxu0
    %v444 = vpop.f32.mrf.mxu0
    %v445 = vadd.f32 %v112, %v444
    %v446 = vpop.f32.mrf.mxu0
    %447 = vmatprep.mubr.bf16.mxu0 0
    %448 = vmatmul.mubr.bf16.gmra.mxu0 %v293
    %v449 = vpop.f32.mrf.mxu0
    %v450 = vadd.f32 %v112, %v449
    %v451 = vpop.f32.mrf.mxu0
    %v452 = vpop.f32.mrf.mxu0
    %v453 = vadd.f32 %v112, %v452
    %v454 = vpop.f32.mrf.mxu0
    %455 = vmatprep.mubr.bf16.mxu0 0
    %456 = vmatmul.mubr.bf16.gmra.mxu0 %v296
    %v457 = vpop.f32.mrf.mxu0
    %v458 = vadd.f32 %v112, %v457
    %v459 = vpop.f32.mrf.mxu0
    %v460 = vpop.f32.mrf.mxu0
    %v461 = vadd.f32 %v112, %v460
    %v462 = vpop.f32.mrf.mxu0
    %463 = vmatprep.mubr.bf16.mxu0 0
    %464 = vmatmul.mubr.bf16.gmra.mxu0 %v299
    %v465 = vpop.f32.mrf.mxu0
    %v466 = vadd.f32 %v112, %v465
    %v467 = vpop.f32.mrf.mxu0
    %v468 = vpop.f32.mrf.mxu0
    %v469 = vadd.f32 %v112, %v468
    %v470 = vpop.f32.mrf.mxu0
    %471 = vmatprep.mubr.bf16.mxu0 0
    %472 = vmatmul.mubr.bf16.gmra.mxu0 %v302
    %v473 = vpop.f32.mrf.mxu0
    %v474 = vadd.f32 %v112, %v473
    %v475 = vpop.f32.mrf.mxu0
    %v476 = vpop.f32.mrf.mxu0
    %v477 = vadd.f32 %v112, %v476
    %v478 = vpop.f32.mrf.mxu0
    %479 = vmatprep.mubr.bf16.mxu0 0
    %480 = vmatmul.mubr.bf16.gmra.mxu0 %v305
    %v481 = vpop.f32.mrf.mxu0
    %v482 = vadd.f32 %v112, %v481
    %v483 = vpop.f32.mrf.mxu0
    %v484 = vpop.f32.mrf.mxu0
    %v485 = vadd.f32 %v112, %v484
    %v486 = vpop.f32.mrf.mxu0
    %487 = vmatprep.mubr.bf16.mxu0 0
    %488 = vmatmul.mubr.bf16.gmra.mxu0 %v308
    %v489 = vpop.f32.mrf.mxu0
    %v490 = vadd.f32 %v112, %v489
    %v491 = vpop.f32.mrf.mxu0
    %v492 = vpop.f32.mrf.mxu0
    %v493 = vadd.f32 %v112, %v492
    %v494 = vpop.f32.mrf.mxu0
    %495 = vmatprep.mubr.bf16.mxu0 0
    %496 = vmatmul.mubr.bf16.gmra.mxu0 %v311
    %v497 = vpop.f32.mrf.mxu0
    %v498 = vadd.f32 %v112, %v497
    %v499 = vpop.f32.mrf.mxu0
    %v500 = vpop.f32.mrf.mxu0
    %v501 = vadd.f32 %v112, %v500
    %v502 = vpop.f32.mrf.mxu0
    %503 = vmatprep.mubr.bf16.mxu0 0
    %504 = vmatmul.mubr.bf16.gmra.mxu0 %v314
    %v505 = vpop.f32.mrf.mxu0
    %v506 = vadd.f32 %v112, %v505
    %v507 = vpop.f32.mrf.mxu0
    %v508 = vpop.f32.mrf.mxu0
    %v509 = vadd.f32 %v112, %v508
    %v510 = vpop.f32.mrf.mxu0
    %511 = vmatprep.mubr.bf16.mxu0 0
    %512 = vmatmul.mubr.bf16.gmra.mxu0 %v317
    %v513 = vpop.f32.mrf.mxu0
    %v514 = vadd.f32 %v112, %v513
    %v515 = vpop.f32.mrf.mxu0
    %v516 = vpop.f32.mrf.mxu0
    %v517 = vadd.f32 %v112, %v516
    %v518 = vpop.f32.mrf.mxu0
    %519 = vmatprep.mubr.bf16.mxu0 0
    %520 = vmatmul.mubr.bf16.gmra.mxu0 %v320
    %v521 = vpop.f32.mrf.mxu0
    %v522 = vadd.f32 %v112, %v521
    %v523 = vpop.f32.mrf.mxu0
    %v524 = vpop.f32.mrf.mxu0
    %v525 = vadd.f32 %v112, %v524
    %v526 = vpop.f32.mrf.mxu0
    %527 = vmatprep.mubr.bf16.mxu0 0
    %528 = vmatmul.mubr.bf16.gmra.mxu0 %v323
    %v529 = vpop.f32.mrf.mxu0
    %v530 = vadd.f32 %v112, %v529
    %v531 = vpop.f32.mrf.mxu0
    %v532 = vpop.f32.mrf.mxu0
    %v533 = vadd.f32 %v112, %v532
    %v534 = vpop.f32.mrf.mxu0
    %535 = vmatprep.mubr.bf16.mxu0 0
    %536 = vmatmul.mubr.bf16.gmra.mxu0 %v326
    %v537 = vpop.f32.mrf.mxu0
    %v538 = vadd.f32 %v112, %v537
    %v539 = vpop.f32.mrf.mxu0
    %v540 = vpop.f32.mrf.mxu0
    %v541 = vadd.f32 %v112, %v540
    %v542 = vpop.f32.mrf.mxu0
    %543 = vmatprep.mubr.bf16.mxu0 0
    %544 = vmatmul.mubr.bf16.gmra.mxu0 %v329
    %v545 = vpop.f32.mrf.mxu0
    %v546 = vadd.f32 %v112, %v545
    %v547 = vpop.f32.mrf.mxu0
    %v548 = vpop.f32.mrf.mxu0
    %v549 = vadd.f32 %v112, %v548
    %v550 = vpop.f32.mrf.mxu0
    %551 = vmatprep.mubr.bf16.mxu0 0
    %552 = vmatmul.mubr.bf16.gmra.mxu0 %v332
    %v553 = vpop.f32.mrf.mxu0
    %v554 = vadd.f32 %v112, %v553
    %v555 = vpop.f32.mrf.mxu0
    %v556 = vpop.f32.mrf.mxu0
    %v557 = vadd.f32 %v112, %v556
    %v558 = vpop.f32.mrf.mxu0
    %559 = vmatprep.mubr.bf16.mxu0 0
    %560 = vmatmul.mubr.bf16.gmra.mxu0 %v335
    %v561 = vpop.f32.mrf.mxu0
    %v562 = vadd.f32 %v112, %v561
    %v563 = vpop.f32.mrf.mxu0
    %v564 = vpop.f32.mrf.mxu0
    %v565 = vadd.f32 %v112, %v564
    %v566 = vpop.f32.mrf.mxu0
    %567 = vmatprep.mubr.bf16.mxu0 0
    %568 = vmatmul.mubr.bf16.gmra.mxu0 %v338
    %v569 = vpop.f32.mrf.mxu0
    %v570 = vadd.f32 %v112, %v569
    %v571 = vpop.f32.mrf.mxu0
    %v572 = vpop.f32.mrf.mxu0
    %v573 = vadd.f32 %v112, %v572
    %v574 = vpop.f32.mrf.mxu0
    %575 = vmatprep.mubr.bf16.mxu0 0
    %576 = vmatmul.mubr.bf16.gmra.mxu0 %v341
    %v577 = vpop.f32.mrf.mxu0
    %v578 = vadd.f32 %v112, %v577
    %v579 = vpop.f32.mrf.mxu0
    %v580 = vpop.f32.mrf.mxu0
    %v581 = vadd.f32 %v112, %v580
    %v582 = vpop.f32.mrf.mxu0
    %583 = vmatprep.mubr.bf16.mxu0 0
    %584 = vmatmul.mubr.bf16.gmra.mxu0 %v344
    %v585 = vpop.f32.mrf.mxu0
    %v586 = vadd.f32 %v112, %v585
    %v587 = vpop.f32.mrf.mxu0
    %v588 = vpop.f32.mrf.mxu0
    %v589 = vadd.f32 %v112, %v588
    %v590 = vpop.f32.mrf.mxu0
    %591 = vmatprep.mubr.bf16.mxu0 0
    %592 = vmatmul.mubr.bf16.gmra.mxu0 %v347
    %v593 = vpop.f32.mrf.mxu0
    %v594 = vadd.f32 %v112, %v593
    %v595 = vpop.f32.mrf.mxu0
    %v596 = vpop.f32.mrf.mxu0
    %v597 = vadd.f32 %v112, %v596
    %v598 = vpop.f32.mrf.mxu0
    %599 = vmatprep.mubr.bf16.mxu0 0
    %600 = vmatmul.mubr.bf16.gmra.mxu0 %v350
    %v601 = vpop.f32.mrf.mxu0
    %v602 = vadd.f32 %v112, %v601
    %v603 = vpop.f32.mrf.mxu0
    %v604 = vpop.f32.mrf.mxu0
    %v605 = vadd.f32 %v112, %v604
    %v606 = vpop.f32.mrf.mxu0
    %607 = vmatprep.mubr.bf16.mxu0 0
    %608 = vmatmul.mubr.bf16.gmra.mxu0 %v353
    %v609 = vpop.f32.mrf.mxu0
    %v610 = vadd.f32 %v112, %v609
    %v611 = vpop.f32.mrf.mxu0
    %v612 = vpop.f32.mrf.mxu0
    %v613 = vadd.f32 %v112, %v612
    %v614 = vpop.f32.mrf.mxu0
    %615 = vmatprep.mubr.bf16.mxu0 0
    %616 = vmatmul.mubr.bf16.gmra.mxu0 %v356
    %v617 = vpop.f32.mrf.mxu0
    %v618 = vadd.f32 %v112, %v617
    %v619 = vpop.f32.mrf.mxu0
    %v620 = vpop.f32.mrf.mxu0
    %v621 = vadd.f32 %v112, %v620
    %v622 = vpop.f32.mrf.mxu0
    %623 = vmatprep.mubr.bf16.mxu0 0
    %624 = vmatmul.mubr.bf16.gmra.mxu0 %v359
    %v625 = vpop.f32.mrf.mxu0
    %v626 = vadd.f32 %v112, %v625
    %v627 = vpop.f32.mrf.mxu0
    %v628 = vpop.f32.mrf.mxu0
    %v629 = vadd.f32 %v112, %v628
    %v630 = vpop.f32.mrf.mxu0
    %631 = vmatprep.mubr.bf16.mxu0 0
    %632 = vmatmul.mubr.bf16.gmra.mxu0 %v362
    %v633 = vpop.f32.mrf.mxu0
    %v634 = vadd.f32 %v112, %v633
    %v635 = vpop.f32.mrf.mxu0
    %v636 = vpop.f32.mrf.mxu0
    %v637 = vadd.f32 %v112, %v636
    %v638 = vpop.f32.mrf.mxu0
    %639 = vmatprep.mubr.bf16.mxu0 0
    %640 = vmatmul.mubr.bf16.gmra.mxu0 %v365
    %v641 = vpop.f32.mrf.mxu0
    %v642 = vadd.f32 %v112, %v641
    %v643 = vpop.f32.mrf.mxu0
    %v644 = vpop.f32.mrf.mxu0
    %v645 = vadd.f32 %v112, %v644
    %v646 = vpop.f32.mrf.mxu0
    %647 = vmatprep.mubr.bf16.mxu0 0
    %648 = vmatmul.mubr.bf16.gmra.mxu0 %v368
    %v649 = vpop.f32.mrf.mxu0
    %v650 = vadd.f32 %v112, %v649
    %v651 = vpop.f32.mrf.mxu0
    %v652 = vpop.f32.mrf.mxu0
    %v653 = vadd.f32 %v112, %v652
    %v654 = vpop.f32.mrf.mxu0
    %655 = vmatprep.mubr.bf16.mxu0 0
    %656 = vmatmul.mubr.bf16.gmra.mxu0 %v371
    %v657 = vpop.f32.mrf.mxu0
    %v658 = vadd.f32 %v112, %v657
    %v659 = vpop.f32.mrf.mxu0
    %v660 = vpop.f32.mrf.mxu0
    %v661 = vadd.f32 %v112, %v660
    %v662 = vpop.f32.mrf.mxu0
    %663 = vmatprep.mubr.bf16.mxu0 0
    %664 = vmatmul.mubr.bf16.gmra.mxu0 %v374
    %v665 = vpop.f32.mrf.mxu0
    %v666 = vadd.f32 %v112, %v665
    %v667 = vpop.f32.mrf.mxu0
    %v668 = vpop.f32.mrf.mxu0
    %v669 = vadd.f32 %v112, %v668
    %v670 = vpop.f32.mrf.mxu0
    %671 = vdwg.mxu0
    %v672 = vmax.f32 %v418, 0.0
    %v673 = vmax.f32 %v421, 0.0
    %v674 = vmax.f32 %v426, 0.0
    %v675 = vmax.f32 %v429, 0.0
    %v676 = vmax.f32 %v434, 0.0
    %v677 = vmax.f32 %v437, 0.0
    %v678 = vmax.f32 %v442, 0.0
    %v679 = vmax.f32 %v445, 0.0
    %v680 = vmax.f32 %v450, 0.0
    %v681 = vmax.f32 %v453, 0.0
    %v682 = vmax.f32 %v458, 0.0
    %v683 = vmax.f32 %v461, 0.0
    %v684 = vmax.f32 %v466, 0.0
    %v685 = vmax.f32 %v469, 0.0
    %v686 = vmax.f32 %v474, 0.0
    %v687 = vmax.f32 %v477, 0.0
    %v688 = vmax.f32 %v482, 0.0
    %v689 = vmax.f32 %v485, 0.0
    %v690 = vmax.f32 %v490, 0.0
    %v691 = vmax.f32 %v493, 0.0
    %v692 = vmax.f32 %v498, 0.0
    %v693 = vmax.f32 %v501, 0.0
    %v694 = vmax.f32 %v506, 0.0
    %v695 = vmax.f32 %v509, 0.0
    %v696 = vmax.f32 %v514, 0.0
    %v697 = vmax.f32 %v517, 0.0
    %v698 = vmax.f32 %v522, 0.0
    %v699 = vmax.f32 %v525, 0.0
    %v700 = vmax.f32 %v530, 0.0
    %v701 = vmax.f32 %v533, 0.0
    %v702 = vmax.f32 %v538, 0.0
    %v703 = vmax.f32 %v541, 0.0
    %v704 = vmax.f32 %v546, 0.0
    %v705 = vmax.f32 %v549, 0.0
    %v706 = vmax.f32 %v554, 0.0
    %v707 = vmax.f32 %v557, 0.0
    %v708 = vmax.f32 %v562, 0.0
    %v709 = vmax.f32 %v565, 0.0
    %v710 = vmax.f32 %v570, 0.0
    %v711 = vmax.f32 %v573, 0.0
    %v712 = vmax.f32 %v578, 0.0
    %v713 = vmax.f32 %v581, 0.0
    %v714 = vmax.f32 %v586, 0.0
    %v715 = vmax.f32 %v589, 0.0
    %v716 = vmax.f32 %v594, 0.0
    %v717 = vmax.f32 %v597, 0.0
    %v718 = vmax.f32 %v602, 0.0
    %v719 = vmax.f32 %v605, 0.0
    %v720 = vmax.f32 %v610, 0.0
    %v721 = vmax.f32 %v613, 0.0
    %v722 = vmax.f32 %v618, 0.0
    %v723 = vmax.f32 %v621, 0.0
    %v724 = vmax.f32 %v626, 0.0
    %v725 = vmax.f32 %v629, 0.0
    %v726 = vmax.f32 %v634, 0.0
    %v727 = vmax.f32 %v637, 0.0
    %v728 = vmax.f32 %v642, 0.0
    %v729 = vmax.f32 %v645, 0.0
    %v730 = vmax.f32 %v650, 0.0
    %v731 = vmax.f32 %v653, 0.0
    %v732 = vmax.f32 %v658, 0.0
    %v733 = vmax.f32 %v661, 0.0
    %v734 = vmax.f32 %v666, 0.0
    %v735 = vmax.f32 %v669, 0.0
    %v736 = vpack.c.bf16 %v673, %v672
    %v737 = vpack.c.bf16 %v675, %v674
    %v738 = vpack.c.bf16 %v677, %v676
    %v739 = vpack.c.bf16 %v679, %v678
    %v740 = vpack.c.bf16 %v681, %v680
    %v741 = vpack.c.bf16 %v683, %v682
    %v742 = vpack.c.bf16 %v685, %v684
    %v743 = vpack.c.bf16 %v687, %v686
    %v744 = vpack.c.bf16 %v689, %v688
    %v745 = vpack.c.bf16 %v691, %v690
    %v746 = vpack.c.bf16 %v693, %v692
    %v747 = vpack.c.bf16 %v695, %v694
    %v748 = vpack.c.bf16 %v697, %v696
    %v749 = vpack.c.bf16 %v699, %v698
    %v750 = vpack.c.bf16 %v701, %v700
    %v751 = vpack.c.bf16 %v703, %v702
    %v752 = vpack.c.bf16 %v705, %v704
    %v753 = vpack.c.bf16 %v707, %v706
    %v754 = vpack.c.bf16 %v709, %v708
    %v755 = vpack.c.bf16 %v711, %v710
    %v756 = vpack.c.bf16 %v713, %v712
    %v757 = vpack.c.bf16 %v715, %v714
    %v758 = vpack.c.bf16 %v717, %v716
    %v759 = vpack.c.bf16 %v719, %v718
    %v760 = vpack.c.bf16 %v721, %v720
    %v761 = vpack.c.bf16 %v723, %v722
    %v762 = vpack.c.bf16 %v725, %v724
    %v763 = vpack.c.bf16 %v727, %v726
    %v764 = vpack.c.bf16 %v729, %v728
    %v765 = vpack.c.bf16 %v731, %v730
    %v766 = vpack.c.bf16 %v733, %v732
    %v767 = vpack.c.bf16 %v735, %v734
    %v800 = vunpack.c.l.b16 %v736
    %v801 = vunpack.c.h.b16 %v736
    %v802 = vunpack.c.l.b16 %v737
    %v803 = vunpack.c.h.b16 %v737
    %v804 = vunpack.c.l.b16 %v738
    %v805 = vunpack.c.h.b16 %v738
    %v806 = vunpack.c.l.b16 %v739
    %v807 = vunpack.c.h.b16 %v739
    %v808 = vunpack.c.l.b16 %v740
    %v809 = vunpack.c.h.b16 %v740
    %v810 = vunpack.c.l.b16 %v741
    %v811 = vunpack.c.h.b16 %v741
    %v812 = vunpack.c.l.b16 %v742
    %v813 = vunpack.c.h.b16 %v742
    %v814 = vunpack.c.l.b16 %v743
    %v815 = vunpack.c.h.b16 %v743
    %v816 = vunpack.c.l.b16 %v744
    %v817 = vunpack.c.h.b16 %v744
    %v818 = vunpack.c.l.b16 %v745
    %v819 = vunpack.c.h.b16 %v745
    %v820 = vunpack.c.l.b16 %v746
    %v821 = vunpack.c.h.b16 %v746
    %v822 = vunpack.c.l.b16 %v747
    %v823 = vunpack.c.h.b16 %v747
    %v824 = vunpack.c.l.b16 %v748
    %v825 = vunpack.c.h.b16 %v748
    %v826 = vunpack.c.l.b16 %v749
    %v827 = vunpack.c.h.b16 %v749
    %v828 = vunpack.c.l.b16 %v750
    %v829 = vunpack.c.h.b16 %v750
    %v830 = vunpack.c.l.b16 %v751
    %v831 = vunpack.c.h.b16 %v751
    %v832 = vunpack.c.l.b16 %v752
    %v833 = vunpack.c.h.b16 %v752
    %v834 = vunpack.c.l.b16 %v753
    %v835 = vunpack.c.h.b16 %v753
    %v836 = vunpack.c.l.b16 %v754
    %v837 = vunpack.c.h.b16 %v754
    %v838 = vunpack.c.l.b16 %v755
    %v839 = vunpack.c.h.b16 %v755
    %v840 = vunpack.c.l.b16 %v756
    %v841 = vunpack.c.h.b16 %v756
    %v842 = vunpack.c.l.b16 %v757
    %v843 = vunpack.c.h.b16 %v757
    %v844 = vunpack.c.l.b16 %v758
    %v845 = vunpack.c.h.b16 %v758
    %v846 = vunpack.c.l.b16 %v759
    %v847 = vunpack.c.h.b16 %v759
    %v848 = vunpack.c.l.b16 %v760
    %v849 = vunpack.c.h.b16 %v760
    %v850 = vunpack.c.l.b16 %v761
    %v851 = vunpack.c.h.b16 %v761
    %v852 = vunpack.c.l.b16 %v762
    %v853 = vunpack.c.h.b16 %v762
    %v854 = vunpack.c.l.b16 %v763
    %v855 = vunpack.c.h.b16 %v763
    %v856 = vunpack.c.l.b16 %v764
    %v857 = vunpack.c.h.b16 %v764
    %v858 = vunpack.c.l.b16 %v765
    %v859 = vunpack.c.h.b16 %v765
    %v860 = vunpack.c.l.b16 %v766
    %v861 = vunpack.c.h.b16 %v766
    %v862 = vunpack.c.l.b16 %v767
    %v863 = vunpack.c.h.b16 %v767
    %v864 = vpack.c.b16 %v800, %v800
    %v865 = vpack.c.b16 %v801, %v801
    %v866 = vpack.c.b16 %v802, %v802
    %v867 = vpack.c.b16 %v803, %v803
    %v868 = vpack.c.b16 %v804, %v804
    %v869 = vpack.c.b16 %v805, %v805
    %v870 = vpack.c.b16 %v806, %v806
    %v871 = vpack.c.b16 %v807, %v807
    %v872 = vpack.c.b16 %v808, %v808
    %v873 = vpack.c.b16 %v809, %v809
    %v874 = vpack.c.b16 %v810, %v810
    %v875 = vpack.c.b16 %v811, %v811
    %v876 = vpack.c.b16 %v812, %v812
    %v877 = vpack.c.b16 %v813, %v813
    %v878 = vpack.c.b16 %v814, %v814
    %v879 = vpack.c.b16 %v815, %v815
    %v880 = vpack.c.b16 %v816, %v816
    %v881 = vpack.c.b16 %v817, %v817
    %v882 = vpack.c.b16 %v818, %v818
    %v883 = vpack.c.b16 %v819, %v819
    %v884 = vpack.c.b16 %v820, %v820
    %v885 = vpack.c.b16 %v821, %v821
    %v886 = vpack.c.b16 %v822, %v822
    %v887 = vpack.c.b16 %v823, %v823
    %v888 = vpack.c.b16 %v824, %v824
    %v889 = vpack.c.b16 %v825, %v825
    %v890 = vpack.c.b16 %v826, %v826
    %v891 = vpack.c.b16 %v827, %v827
    %v892 = vpack.c.b16 %v828, %v828
    %v893 = vpack.c.b16 %v829, %v829
    %v894 = vpack.c.b16 %v830, %v830
    %v895 = vpack.c.b16 %v831, %v831
    %v896 = vpack.c.b16 %v832, %v832
    %v897 = vpack.c.b16 %v833, %v833
    %v898 = vpack.c.b16 %v834, %v834
    %v899 = vpack.c.b16 %v835, %v835
    %v900 = vpack.c.b16 %v836, %v836
    %v901 = vpack.c.b16 %v837, %v837
    %v902 = vpack.c.b16 %v838, %v838
    %v903 = vpack.c.b16 %v839, %v839
    %v904 = vpack.c.b16 %v840, %v840
    %v905 = vpack.c.b16 %v841, %v841
    %v906 = vpack.c.b16 %v842, %v842
    %v907 = vpack.c.b16 %v843, %v843
    %v908 = vpack.c.b16 %v844, %v844
    %v909 = vpack.c.b16 %v845, %v845
    %v910 = vpack.c.b16 %v846, %v846
    %v911 = vpack.c.b16 %v847, %v847
    %v912 = vpack.c.b16 %v848, %v848
    %v913 = vpack.c.b16 %v849, %v849
    %v914 = vpack.c.b16 %v850, %v850
    %v915 = vpack.c.b16 %v851, %v851
    %v916 = vpack.c.b16 %v852, %v852
    %v917 = vpack.c.b16 %v853, %v853
    %v918 = vpack.c.b16 %v854, %v854
    %v919 = vpack.c.b16 %v855, %v855
    %v920 = vpack.c.b16 %v856, %v856
    %v921 = vpack.c.b16 %v857, %v857
    %v922 = vpack.c.b16 %v858, %v858
    %v923 = vpack.c.b16 %v859, %v859
    %v924 = vpack.c.b16 %v860, %v860
    %v925 = vpack.c.b16 %v861, %v861
    %v926 = vpack.c.b16 %v862, %v862
    %v927 = vpack.c.b16 %v863, %v863
    %vm992 = vcmask 257024
    %993 = vst.msk [vmem:[%s3] sm:$0xf] %vm992, %v864
    %994 = vst.msk [vmem:[%s3 + $0x4] sm:$0xf] %vm992, %v865
    %995 = vst.msk [vmem:[%s3 + $0x8] sm:$0xf] %vm992, %v866
    %996 = vst.msk [vmem:[%s3 + $0xc] sm:$0xf] %vm992, %v867
    %997 = vst.msk [vmem:[%s3 + $0x10] sm:$0xf] %vm992, %v868
    %998 = vst.msk [vmem:[%s3 + $0x14] sm:$0xf] %vm992, %v869
    %999 = vst.msk [vmem:[%s3 + $0x18] sm:$0xf] %vm992, %v870
    %1000 = vst.msk [vmem:[%s3 + $0x1c] sm:$0xf] %vm992, %v871
    %1001 = vst.msk [vmem:[%s3 + $0x20] sm:$0xf] %vm992, %v872
    %1002 = vst.msk [vmem:[%s3 + $0x24] sm:$0xf] %vm992, %v873
    %1003 = vst.msk [vmem:[%s3 + $0x28] sm:$0xf] %vm992, %v874
    %1004 = vst.msk [vmem:[%s3 + $0x2c] sm:$0xf] %vm992, %v875
    %1005 = vst.msk [vmem:[%s3 + $0x30] sm:$0xf] %vm992, %v876
    %1006 = vst.msk [vmem:[%s3 + $0x34] sm:$0xf] %vm992, %v877
    %1007 = vst.msk [vmem:[%s3 + $0x38] sm:$0xf] %vm992, %v878
    %1008 = vst.msk [vmem:[%s3 + $0x3c] sm:$0xf] %vm992, %v879
    %1009 = vst.msk [vmem:[%s3 + $0x40] sm:$0xf] %vm992, %v880
    %1010 = vst.msk [vmem:[%s3 + $0x44] sm:$0xf] %vm992, %v881
    %1011 = vst.msk [vmem:[%s3 + $0x48] sm:$0xf] %vm992, %v882
    %1012 = vst.msk [vmem:[%s3 + $0x4c] sm:$0xf] %vm992, %v883
    %1013 = vst.msk [vmem:[%s3 + $0x50] sm:$0xf] %vm992, %v884
    %1014 = vst.msk [vmem:[%s3 + $0x54] sm:$0xf] %vm992, %v885
    %1015 = vst.msk [vmem:[%s3 + $0x58] sm:$0xf] %vm992, %v886
    %1016 = vst.msk [vmem:[%s3 + $0x5c] sm:$0xf] %vm992, %v887
    %1017 = vst.msk [vmem:[%s3 + $0x60] sm:$0xf] %vm992, %v888
    %1018 = vst.msk [vmem:[%s3 + $0x64] sm:$0xf] %vm992, %v889
    %1019 = vst.msk [vmem:[%s3 + $0x68] sm:$0xf] %vm992, %v890
    %1020 = vst.msk [vmem:[%s3 + $0x6c] sm:$0xf] %vm992, %v891
    %1021 = vst.msk [vmem:[%s3 + $0x70] sm:$0xf] %vm992, %v892
    %1022 = vst.msk [vmem:[%s3 + $0x74] sm:$0xf] %vm992, %v893
    %1023 = vst.msk [vmem:[%s3 + $0x78] sm:$0xf] %vm992, %v894
    %1024 = vst.msk [vmem:[%s3 + $0x7c] sm:$0xf] %vm992, %v895
    %1025 = vst.msk [vmem:[%s3 + $0x80] sm:$0xf] %vm992, %v896
    %1026 = vst.msk [vmem:[%s3 + $0x84] sm:$0xf] %vm992, %v897
    %1027 = vst.msk [vmem:[%s3 + $0x88] sm:$0xf] %vm992, %v898
    %1028 = vst.msk [vmem:[%s3 + $0x8c] sm:$0xf] %vm992, %v899
    %1029 = vst.msk [vmem:[%s3 + $0x90] sm:$0xf] %vm992, %v900
    %1030 = vst.msk [vmem:[%s3 + $0x94] sm:$0xf] %vm992, %v901
    %1031 = vst.msk [vmem:[%s3 + $0x98] sm:$0xf] %vm992, %v902
    %1032 = vst.msk [vmem:[%s3 + $0x9c] sm:$0xf] %vm992, %v903
    %1033 = vst.msk [vmem:[%s3 + $0xa0] sm:$0xf] %vm992, %v904
    %1034 = vst.msk [vmem:[%s3 + $0xa4] sm:$0xf] %vm992, %v905
    %1035 = vst.msk [vmem:[%s3 + $0xa8] sm:$0xf] %vm992, %v906
    %1036 = vst.msk [vmem:[%s3 + $0xac] sm:$0xf] %vm992, %v907
    %1037 = vst.msk [vmem:[%s3 + $0xb0] sm:$0xf] %vm992, %v908
    %1038 = vst.msk [vmem:[%s3 + $0xb4] sm:$0xf] %vm992, %v909
    %1039 = vst.msk [vmem:[%s3 + $0xb8] sm:$0xf] %vm992, %v910
    %1040 = vst.msk [vmem:[%s3 + $0xbc] sm:$0xf] %vm992, %v911
    %1041 = vst.msk [vmem:[%s3 + $0xc0] sm:$0xf] %vm992, %v912
    %1042 = vst.msk [vmem:[%s3 + $0xc4] sm:$0xf] %vm992, %v913
    %1043 = vst.msk [vmem:[%s3 + $0xc8] sm:$0xf] %vm992, %v914
    %1044 = vst.msk [vmem:[%s3 + $0xcc] sm:$0xf] %vm992, %v915
    %1045 = vst.msk [vmem:[%s3 + $0xd0] sm:$0xf] %vm992, %v916
    %1046 = vst.msk [vmem:[%s3 + $0xd4] sm:$0xf] %vm992, %v917
    %1047 = vst.msk [vmem:[%s3 + $0xd8] sm:$0xf] %vm992, %v918
    %1048 = vst.msk [vmem:[%s3 + $0xdc] sm:$0xf] %vm992, %v919
    %1049 = vst.msk [vmem:[%s3 + $0xe0] sm:$0xf] %vm992, %v920
    %1050 = vst.msk [vmem:[%s3 + $0xe4] sm:$0xf] %vm992, %v921
    %1051 = vst.msk [vmem:[%s3 + $0xe8] sm:$0xf] %vm992, %v922
    %1052 = vst.msk [vmem:[%s3 + $0xec] sm:$0xf] %vm992, %v923
    %1053 = vst.msk [vmem:[%s3 + $0xf0] sm:$0xf] %vm992, %v924
    %1054 = vst.msk [vmem:[%s3 + $0xf4] sm:$0xf] %vm992, %v925
    %1055 = vst.msk [vmem:[%s3 + $0xf8] sm:$0xf] %vm992, %v926
    %1056 = vst.msk [vmem:[%s3 + $0xfc] sm:$0xf] %vm992, %v927
    // Predicated region
    $region22: #{vae_forward.8} parent=1 // pred_check
      _
    $region23: #{vae_forward.8} parent=1 // pred_check_branch
      %1058 = sbr.rel (0) target = $region25
    $region24: #{vae_forward.8} parent=1 // pred_region
      _
    $region25: #{vae_forward.8} parent=1 // pred_fallthru
      _
    // Predicated region
    $region26: #{vae_forward.8} parent=1 // pred_check
      _
    $region27: #{vae_forward.8} parent=1 // pred_check_branch
      %1060 = sbr.rel (0) target = $region29
    $region28: #{vae_forward.8} parent=1 // pred_region
      _
    $region29: #{vae_forward.8} parent=1 // pred_fallthru
      _
    %1061 = vsyncpa [#allocation3], 1
    %1062 = vsyncpa [#allocation5], 1

// kernel: vae_forward.9
$region0: #{vae_forward.9}
  #allocation0 [shape = 'u32[]', space=smem, size = 0x4, offset = 0x4, fixed_abs, tag = 'smem constant byte address 0x4 - core index']
  #allocation1 [shape = 'u32[144,128]{1,0:T(1,128)}', space=vmem, size = 0x12000, scoped, tag = 'internal scratch']
  %s0 = inlined_call_operand.vmem [shape: bf16[128,288], index: 0, kind: input, shape index: {}]
  %s1 = inlined_call_operand.vmem [shape: bf16[288,64], index: 1, kind: input, shape index: {}]
  %s2 = inlined_call_operand.vmem [shape: f32[1,64], index: 2, kind: input, shape index: {}]
  %s3 = inlined_call_operand.vmem [shape: bf16[128,64], index: 3, kind: output, shape index: {}]
  %s4 = sld [smem:[#allocation0]]
  $region22: #{vae_forward.9} parent=0
    _
  %s6 = ssub.s32 1, %s4
  %s7 = scalar_select 0, %s6, %s4
  // Predicated region
  $region2: #{vae_forward.9} parent=0 // pred_check
    _
  $region3: #{vae_forward.9} parent=0 // pred_check_branch
    %9 = sbr.rel (0) target = $region5
  $region4: #{vae_forward.9} parent=0 // pred_region
    _
  $region5: #{vae_forward.9} parent=0 // pred_fallthru
    _
  // Predicated region
  $region6: #{vae_forward.9} parent=0 // pred_check
    _
  $region7: #{vae_forward.9} parent=0 // pred_check_branch
    %11 = sbr.rel (0) target = $region9
  $region8: #{vae_forward.9} parent=0 // pred_region
    _
  $region9: #{vae_forward.9} parent=0 // pred_fallthru
    _
  // Predicated region
  $region10: #{vae_forward.9} parent=0 // pred_check
    _
  $region11: #{vae_forward.9} parent=0 // pred_check_branch
    %13 = sbr.rel (0) target = $region13
  $region12: #{vae_forward.9} parent=0 // pred_region
    _
  $region13: #{vae_forward.9} parent=0 // pred_fallthru
    _
  %v15 = vld [vmem:[%s0] sm:$0xff]
  %v16 = vld [vmem:[%s0 + $0x8] sm:$0xf]
  %v17 = vld [vmem:[%s0 + $0xc] sm:$0xff]
  %v18 = vld [vmem:[%s0 + $0x14] sm:$0xf]
  %v19 = vld [vmem:[%s0 + $0x18] sm:$0xff]
  %v20 = vld [vmem:[%s0 + $0x20] sm:$0xf]
  %v21 = vld [vmem:[%s0 + $0x24] sm:$0xff]
  %v22 = vld [vmem:[%s0 + $0x2c] sm:$0xf]
  %v23 = vld [vmem:[%s0 + $0x30] sm:$0xff]
  %v24 = vld [vmem:[%s0 + $0x38] sm:$0xf]
  %v25 = vld [vmem:[%s0 + $0x3c] sm:$0xff]
  %v26 = vld [vmem:[%s0 + $0x44] sm:$0xf]
  %v27 = vld [vmem:[%s0 + $0x48] sm:$0xff]
  %v28 = vld [vmem:[%s0 + $0x50] sm:$0xf]
  %v29 = vld [vmem:[%s0 + $0x54] sm:$0xff]
  %v30 = vld [vmem:[%s0 + $0x5c] sm:$0xf]
  %v31 = vld [vmem:[%s0 + $0x60] sm:$0xff]
  %v32 = vld [vmem:[%s0 + $0x68] sm:$0xf]
  %v33 = vld [vmem:[%s0 + $0x6c] sm:$0xff]
  %v34 = vld [vmem:[%s0 + $0x74] sm:$0xf]
  %v35 = vld [vmem:[%s0 + $0x78] sm:$0xff]
  %v36 = vld [vmem:[%s0 + $0x80] sm:$0xf]
  %v37 = vld [vmem:[%s0 + $0x84] sm:$0xff]
  %v38 = vld [vmem:[%s0 + $0x8c] sm:$0xf]
  %v39 = vld [vmem:[%s0 + $0x90] sm:$0xff]
  %v40 = vld [vmem:[%s0 + $0x98] sm:$0xf]
  %v41 = vld [vmem:[%s0 + $0x9c] sm:$0xff]
  %v42 = vld [vmem:[%s0 + $0xa4] sm:$0xf]
  %v43 = vld [vmem:[%s0 + $0xa8] sm:$0xff]
  %v44 = vld [vmem:[%s0 + $0xb0] sm:$0xf]
  %v45 = vld [vmem:[%s0 + $0xb4] sm:$0xff]
  %v46 = vld [vmem:[%s0 + $0xbc] sm:$0xf]
  %v47 = vld [vmem:[%s1] sm:$0xf]
  %v48 = vld [vmem:[%s1 + $0x4] sm:$0xf]
  %v49 = vld [vmem:[%s1 + $0x8] sm:$0xf]
  %v50 = vld [vmem:[%s1 + $0xc] sm:$0xf]
  %v51 = vld [vmem:[%s1 + $0x10] sm:$0xf]
  %v52 = vld [vmem:[%s1 + $0x14] sm:$0xf]
  %v53 = vld [vmem:[%s1 + $0x18] sm:$0xf]
  %v54 = vld [vmem:[%s1 + $0x1c] sm:$0xf]
  %v55 = vld [vmem:[%s1 + $0x20] sm:$0xf]
  %v56 = vld [vmem:[%s1 + $0x24] sm:$0xf]
  %v57 = vld [vmem:[%s1 + $0x28] sm:$0xf]
  %v58 = vld [vmem:[%s1 + $0x2c] sm:$0xf]
  %v59 = vld [vmem:[%s1 + $0x30] sm:$0xf]
  %v60 = vld [vmem:[%s1 + $0x34] sm:$0xf]
  %v61 = vld [vmem:[%s1 + $0x38] sm:$0xf]
  %v62 = vld [vmem:[%s1 + $0x3c] sm:$0xf]
  %v63 = vld [vmem:[%s1 + $0x40] sm:$0xf]
  %v64 = vld [vmem:[%s1 + $0x44] sm:$0xf]
  %v65 = vld [vmem:[%s1 + $0x48] sm:$0xf]
  %v66 = vld [vmem:[%s1 + $0x4c] sm:$0xf]
  %v67 = vld [vmem:[%s1 + $0x50] sm:$0xf]
  %v68 = vld [vmem:[%s1 + $0x54] sm:$0xf]
  %v69 = vld [vmem:[%s1 + $0x58] sm:$0xf]
  %v70 = vld [vmem:[%s1 + $0x5c] sm:$0xf]
  %v71 = vld [vmem:[%s1 + $0x60] sm:$0xf]
  %v72 = vld [vmem:[%s1 + $0x64] sm:$0xf]
  %v73 = vld [vmem:[%s1 + $0x68] sm:$0xf]
  %v74 = vld [vmem:[%s1 + $0x6c] sm:$0xf]
  %v75 = vld [vmem:[%s1 + $0x70] sm:$0xf]
  %v76 = vld [vmem:[%s1 + $0x74] sm:$0xf]
  %v77 = vld [vmem:[%s1 + $0x78] sm:$0xf]
  %v78 = vld [vmem:[%s1 + $0x7c] sm:$0xf]
  %v79 = vld [vmem:[%s1 + $0x80] sm:$0xf]
  %v80 = vld [vmem:[%s1 + $0x84] sm:$0xf]
  %v81 = vld [vmem:[%s1 + $0x88] sm:$0xf]
  %v82 = vld [vmem:[%s1 + $0x8c] sm:$0xf]
  %v83 = vld [vmem:[%s2] sm:$0x1]
  %v85 = vlaneseq
  %v86 = vshrl.u32 %v85, 7
  %v87 = vsub.s32 0, %v86
  %v88 = vrot.slane %v83, %v87
  %v122 = vunpack.c.l.b16 %v15
  %v123 = vunpack.c.h.b16 %v15
  %v124 = vunpack.c.l.b16 %v16
  %v125 = vunpack.c.l.b16 %v17
  %v126 = vunpack.c.h.b16 %v17
  %v127 = vunpack.c.l.b16 %v18
  %v128 = vunpack.c.l.b16 %v19
  %v129 = vunpack.c.h.b16 %v19
  %v130 = vunpack.c.l.b16 %v20
  %v131 = vunpack.c.l.b16 %v21
  %v132 = vunpack.c.h.b16 %v21
  %v133 = vunpack.c.l.b16 %v22
  %v134 = vunpack.c.l.b16 %v23
  %v135 = vunpack.c.h.b16 %v23
  %v136 = vunpack.c.l.b16 %v24
  %v137 = vunpack.c.l.b16 %v25
  %v138 = vunpack.c.h.b16 %v25
  %v139 = vunpack.c.l.b16 %v26
  %v140 = vunpack.c.l.b16 %v27
  %v141 = vunpack.c.h.b16 %v27
  %v142 = vunpack.c.l.b16 %v28
  %v143 = vunpack.c.l.b16 %v29
  %v144 = vunpack.c.h.b16 %v29
  %v145 = vunpack.c.l.b16 %v30
  %v146 = vunpack.c.l.b16 %v31
  %v147 = vunpack.c.h.b16 %v31
  %v148 = vunpack.c.l.b16 %v32
  %v149 = vunpack.c.l.b16 %v33
  %v150 = vunpack.c.h.b16 %v33
  %v151 = vunpack.c.l.b16 %v34
  %v152 = vunpack.c.l.b16 %v35
  %v153 = vunpack.c.h.b16 %v35
  %v154 = vunpack.c.l.b16 %v36
  %v155 = vunpack.c.l.b16 %v37
  %v156 = vunpack.c.h.b16 %v37
  %v157 = vunpack.c.l.b16 %v38
  %v158 = vunpack.c.l.b16 %v39
  %v159 = vunpack.c.h.b16 %v39
  %v160 = vunpack.c.l.b16 %v40
  %v161 = vunpack.c.l.b16 %v41
  %v162 = vunpack.c.h.b16 %v41
  %v163 = vunpack.c.l.b16 %v42
  %v164 = vunpack.c.l.b16 %v43
  %v165 = vunpack.c.h.b16 %v43
  %v166 = vunpack.c.l.b16 %v44
  %v167 = vunpack.c.l.b16 %v45
  %v168 = vunpack.c.h.b16 %v45
  %v169 = vunpack.c.l.b16 %v46
  %v170 = vpack.c.b16 %v125, %v122
  %v171 = vpack.c.b16 %v126, %v123
  %v172 = vpack.c.b16 %v127, %v124
  %v173 = vpack.c.b16 %v131, %v128
  %v174 = vpack.c.b16 %v132, %v129
  %v175 = vpack.c.b16 %v133, %v130
  %v176 = vpack.c.b16 %v137, %v134
  %v177 = vpack.c.b16 %v138, %v135
  %v178 = vpack.c.b16 %v139, %v136
  %v179 = vpack.c.b16 %v143, %v140
  %v180 = vpack.c.b16 %v144, %v141
  %v181 = vpack.c.b16 %v145, %v142
  %v182 = vpack.c.b16 %v149, %v146
  %v183 = vpack.c.b16 %v150, %v147
  %v184 = vpack.c.b16 %v151, %v148
  %v185 = vpack.c.b16 %v155, %v152
  %v186 = vpack.c.b16 %v156, %v153
  %v187 = vpack.c.b16 %v157, %v154
  %v188 = vpack.c.b16 %v161, %v158
  %v189 = vpack.c.b16 %v162, %v159
  %v190 = vpack.c.b16 %v163, %v160
  %v191 = vpack.c.b16 %v167, %v164
  %v192 = vpack.c.b16 %v168, %v165
  %v193 = vpack.c.b16 %v169, %v166
  %v246 = vunpack.c.l.b16 %v47
  %v247 = vunpack.c.l.b16 %v48
  %v248 = vunpack.c.l.b16 %v49
  %v249 = vunpack.c.l.b16 %v50
  %v250 = vunpack.c.l.b16 %v51
  %v251 = vunpack.c.l.b16 %v52
  %v252 = vunpack.c.l.b16 %v53
  %v253 = vunpack.c.l.b16 %v54
  %v254 = vunpack.c.l.b16 %v55
  %v255 = vunpack.c.l.b16 %v56
  %v256 = vunpack.c.l.b16 %v57
  %v257 = vunpack.c.l.b16 %v58
  %v258 = vunpack.c.l.b16 %v59
  %v259 = vunpack.c.l.b16 %v60
  %v260 = vunpack.c.l.b16 %v61
  %v261 = vunpack.c.l.b16 %v62
  %v262 = vunpack.c.l.b16 %v63
  %v263 = vunpack.c.l.b16 %v64
  %v264 = vunpack.c.l.b16 %v65
  %v265 = vunpack.c.l.b16 %v66
  %v266 = vunpack.c.l.b16 %v67
  %v267 = vunpack.c.l.b16 %v68
  %v268 = vunpack.c.l.b16 %v69
  %v269 = vunpack.c.l.b16 %v70
  %v270 = vunpack.c.l.b16 %v71
  %v271 = vunpack.c.l.b16 %v72
  %v272 = vunpack.c.l.b16 %v73
  %v273 = vunpack.c.l.b16 %v74
  %v274 = vunpack.c.l.b16 %v75
  %v275 = vunpack.c.l.b16 %v76
  %v276 = vunpack.c.l.b16 %v77
  %v277 = vunpack.c.l.b16 %v78
  %v278 = vunpack.c.l.b16 %v79
  %v279 = vunpack.c.l.b16 %v80
  %v280 = vunpack.c.l.b16 %v81
  %v281 = vunpack.c.l.b16 %v82
  %v282 = vpack.c.b16 %v247, %v246
  %v283 = vpack.c.b16 %v249, %v248
  %v284 = vpack.c.b16 %v251, %v250
  %v285 = vpack.c.b16 %v253, %v252
  %v286 = vpack.c.b16 %v255, %v254
  %v287 = vpack.c.b16 %v257, %v256
  %v288 = vpack.c.b16 %v259, %v258
  %v289 = vpack.c.b16 %v261, %v260
  %v290 = vpack.c.b16 %v263, %v262
  %v291 = vpack.c.b16 %v265, %v264
  %v292 = vpack.c.b16 %v267, %v266
  %v293 = vpack.c.b16 %v269, %v268
  %v294 = vpack.c.b16 %v271, %v270
  %v295 = vpack.c.b16 %v273, %v272
  %v296 = vpack.c.b16 %v275, %v274
  %v297 = vpack.c.b16 %v277, %v276
  %v298 = vpack.c.b16 %v279, %v278
  %v299 = vpack.c.b16 %v281, %v280
  %vm318 = vcmask 261120
  %v320 = vsel %vm318, %v172, 0
  %v323 = vsel %vm318, %v175, 0
  %v326 = vsel %vm318, %v178, 0
  %v329 = vsel %vm318, %v181, 0
  %v332 = vsel %vm318, %v184, 0
  %v335 = vsel %vm318, %v187, 0
  %v338 = vsel %vm318, %v190, 0
  %v341 = vsel %vm318, %v193, 0
  %343 = vmatprep.subr.bf16.mxu0 0
  %344 = vmatpush1.bf16.msra.mxu0 %v289
  %345 = vmatprep.subr.bf16.mxu0 0
  %346 = vmatpush1.bf16.msra.mxu0 %v288
  %347 = vmatprep.subr.bf16.mxu0 0
  %348 = vmatpush1.bf16.msra.mxu0 %v287
  %349 = vmatprep.subr.bf16.mxu0 0
  %350 = vmatpush1.bf16.msra.mxu0 %v286
  %351 = vmatprep.subr.bf16.mxu0 0
  %352 = vmatpush1.bf16.msra.mxu0 %v285
  %353 = vmatprep.subr.bf16.mxu0 0
  %354 = vmatpush1.bf16.msra.mxu0 %v284
  %355 = vmatprep.subr.bf16.mxu0 0
  %356 = vmatpush1.bf16.msra.mxu0 %v283
  %357 = vmatprep.subr.bf16.mxu0 0
  %358 = vmatpush1.bf16.msra.mxu0 %v282
  %359 = vmatprep.subr.bf16.mxu0 0
  %360 = vmatpush2.bf16.msra.mxu0 %v297
  %361 = vmatprep.subr.bf16.mxu0 0
  %362 = vmatpush2.bf16.msra.mxu0 %v296
  %363 = vmatprep.subr.bf16.mxu0 0
  %364 = vmatpush2.bf16.msra.mxu0 %v295
  %365 = vmatprep.subr.bf16.mxu0 0
  %366 = vmatpush2.bf16.msra.mxu0 %v294
  %367 = vmatprep.subr.bf16.mxu0 0
  %368 = vmatpush2.bf16.msra.mxu0 %v293
  %369 = vmatprep.subr.bf16.mxu0 0
  %370 = vmatpush2.bf16.msra.mxu0 %v292
  %371 = vmatprep.subr.bf16.mxu0 0
  %372 = vmatpush2.bf16.msra.mxu0 %v291
  %373 = vmatprep.subr.bf16.mxu0 0
  %374 = vmatpush2.bf16.msra.mxu0 %v290
  %375 = vmatprep.mubr.bf16.mxu0 %v171
  %376 = vmatmul.mubr.bf16.gmra.mxu0 %v170
  %v377 = vpop.f32.mrf.mxu0
  %v378 = vadd.f32 %v88, %v377
  %v379 = vpop.f32.mrf.mxu0
  %v380 = vpop.f32.mrf.mxu0
  %v381 = vadd.f32 %v88, %v380
  %v382 = vpop.f32.mrf.mxu0
  %383 = vmatprep.mubr.bf16.mxu0 %v174
  %384 = vmatmul.mubr.bf16.gmra.mxu0 %v173
  %v385 = vpop.f32.mrf.mxu0
  %v386 = vadd.f32 %v88, %v385
  %v387 = vpop.f32.mrf.mxu0
  %v388 = vpop.f32.mrf.mxu0
  %v389 = vadd.f32 %v88, %v388
  %v390 = vpop.f32.mrf.mxu0
  %391 = vmatprep.mubr.bf16.mxu0 %v177
  %392 = vmatmul.mubr.bf16.gmra.mxu0 %v176
  %v393 = vpop.f32.mrf.mxu0
  %v394 = vadd.f32 %v88, %v393
  %v395 = vpop.f32.mrf.mxu0
  %v396 = vpop.f32.mrf.mxu0
  %v397 = vadd.f32 %v88, %v396
  %v398 = vpop.f32.mrf.mxu0
  %399 = vmatprep.mubr.bf16.mxu0 %v180
  %400 = vmatmul.mubr.bf16.gmra.mxu0 %v179
  %v401 = vpop.f32.mrf.mxu0
  %v402 = vadd.f32 %v88, %v401
  %v403 = vpop.f32.mrf.mxu0
  %v404 = vpop.f32.mrf.mxu0
  %v405 = vadd.f32 %v88, %v404
  %v406 = vpop.f32.mrf.mxu0
  %407 = vmatprep.mubr.bf16.mxu0 %v183
  %408 = vmatmul.mubr.bf16.gmra.mxu0 %v182
  %v409 = vpop.f32.mrf.mxu0
  %v410 = vadd.f32 %v88, %v409
  %v411 = vpop.f32.mrf.mxu0
  %v412 = vpop.f32.mrf.mxu0
  %v413 = vadd.f32 %v88, %v412
  %v414 = vpop.f32.mrf.mxu0
  %415 = vmatprep.mubr.bf16.mxu0 %v186
  %416 = vmatmul.mubr.bf16.gmra.mxu0 %v185
  %v417 = vpop.f32.mrf.mxu0
  %v418 = vadd.f32 %v88, %v417
  %v419 = vpop.f32.mrf.mxu0
  %v420 = vpop.f32.mrf.mxu0
  %v421 = vadd.f32 %v88, %v420
  %v422 = vpop.f32.mrf.mxu0
  %423 = vmatprep.mubr.bf16.mxu0 %v189
  %424 = vmatmul.mubr.bf16.gmra.mxu0 %v188
  %v425 = vpop.f32.mrf.mxu0
  %v426 = vadd.f32 %v88, %v425
  %v427 = vpop.f32.mrf.mxu0
  %v428 = vpop.f32.mrf.mxu0
  %v429 = vadd.f32 %v88, %v428
  %v430 = vpop.f32.mrf.mxu0
  %431 = vmatprep.mubr.bf16.mxu0 %v192
  %432 = vmatmul.mubr.bf16.gmra.mxu0 %v191
  %v433 = vpop.f32.mrf.mxu0
  %v434 = vadd.f32 %v88, %v433
  %v435 = vpop.f32.mrf.mxu0
  %v436 = vpop.f32.mrf.mxu0
  %v437 = vadd.f32 %v88, %v436
  %v438 = vpop.f32.mrf.mxu0
  %439 = vdwg.mxu0
  %440 = vmatprep.subr.bf16.mxu0 0
  %441 = vmatpush1.bf16.msra.mxu0 0
  %442 = vmatprep.subr.bf16.mxu0 0
  %443 = vmatpush1.bf16.msra.mxu0 0
  %444 = vmatprep.subr.bf16.mxu0 0
  %445 = vmatpush1.bf16.msra.mxu0 0
  %446 = vmatprep.subr.bf16.mxu0 0
  %447 = vmatpush1.bf16.msra.mxu0 0
  %448 = vmatprep.subr.bf16.mxu0 0
  %449 = vmatpush1.bf16.msra.mxu0 0
  %450 = vmatprep.subr.bf16.mxu0 0
  %451 = vmatpush1.bf16.msra.mxu0 0
  %452 = vmatprep.subr.bf16.mxu0 0
  %453 = vmatpush1.bf16.msra.mxu0 %v299
  %454 = vmatprep.subr.bf16.mxu0 0
  %455 = vmatpush1.bf16.msra.mxu0 %v298
  %456 = vmatprep.subr.bf16.mxu0 0
  %457 = vmatpush2.bf16.msra.mxu0 0
  %458 = vmatprep.subr.bf16.mxu0 0
  %459 = vmatpush2.bf16.msra.mxu0 0
  %460 = vmatprep.subr.bf16.mxu0 0
  %461 = vmatpush2.bf16.msra.mxu0 0
  %462 = vmatprep.subr.bf16.mxu0 0
  %463 = vmatpush2.bf16.msra.mxu0 0
  %464 = vmatprep.subr.bf16.mxu0 0
  %465 = vmatpush2.bf16.msra.mxu0 0
  %466 = vmatprep.subr.bf16.mxu0 0
  %467 = vmatpush2.bf16.msra.mxu0 0
  %468 = vmatprep.subr.bf16.mxu0 0
  %469 = vmatpush2.bf16.msra.mxu0 0
  %470 = vmatprep.subr.bf16.mxu0 0
  %471 = vmatpush2.bf16.msra.mxu0 0
  %472 = vmatprep.mubr.bf16.mxu0 0
  %473 = vmatmul.mubr.bf16.gmra.mxu0 %v320
  %v474 = vpop.f32.mrf.mxu0
  %v475 = vadd.f32 %v378, %v474
  %v476 = vpop.f32.mrf.mxu0
  %v477 = vpop.f32.mrf.mxu0
  %v478 = vadd.f32 %v381, %v477
  %v479 = vpop.f32.mrf.mxu0
  %480 = vmatprep.mubr.bf16.mxu0 0
  %481 = vmatmul.mubr.bf16.gmra.mxu0 %v323
  %v482 = vpop.f32.mrf.mxu0
  %v483 = vadd.f32 %v386, %v482
  %v484 = vpop.f32.mrf.mxu0
  %v485 = vpop.f32.mrf.mxu0
  %v486 = vadd.f32 %v389, %v485
  %v487 = vpop.f32.mrf.mxu0
  %488 = vmatprep.mubr.bf16.mxu0 0
  %489 = vmatmul.mubr.bf16.gmra.mxu0 %v326
  %v490 = vpop.f32.mrf.mxu0
  %v491 = vadd.f32 %v394, %v490
  %v492 = vpop.f32.mrf.mxu0
  %v493 = vpop.f32.mrf.mxu0
  %v494 = vadd.f32 %v397, %v493
  %v495 = vpop.f32.mrf.mxu0
  %496 = vmatprep.mubr.bf16.mxu0 0
  %497 = vmatmul.mubr.bf16.gmra.mxu0 %v329
  %v498 = vpop.f32.mrf.mxu0
  %v499 = vadd.f32 %v402, %v498
  %v500 = vpop.f32.mrf.mxu0
  %v501 = vpop.f32.mrf.mxu0
  %v502 = vadd.f32 %v405, %v501
  %v503 = vpop.f32.mrf.mxu0
  %504 = vmatprep.mubr.bf16.mxu0 0
  %505 = vmatmul.mubr.bf16.gmra.mxu0 %v332
  %v506 = vpop.f32.mrf.mxu0
  %v507 = vadd.f32 %v410, %v506
  %v508 = vpop.f32.mrf.mxu0
  %v509 = vpop.f32.mrf.mxu0
  %v510 = vadd.f32 %v413, %v509
  %v511 = vpop.f32.mrf.mxu0
  %512 = vmatprep.mubr.bf16.mxu0 0
  %513 = vmatmul.mubr.bf16.gmra.mxu0 %v335
  %v514 = vpop.f32.mrf.mxu0
  %v515 = vadd.f32 %v418, %v514
  %v516 = vpop.f32.mrf.mxu0
  %v517 = vpop.f32.mrf.mxu0
  %v518 = vadd.f32 %v421, %v517
  %v519 = vpop.f32.mrf.mxu0
  %520 = vmatprep.mubr.bf16.mxu0 0
  %521 = vmatmul.mubr.bf16.gmra.mxu0 %v338
  %v522 = vpop.f32.mrf.mxu0
  %v523 = vadd.f32 %v426, %v522
  %v524 = vpop.f32.mrf.mxu0
  %v525 = vpop.f32.mrf.mxu0
  %v526 = vadd.f32 %v429, %v525
  %v527 = vpop.f32.mrf.mxu0
  %528 = vmatprep.mubr.bf16.mxu0 0
  %529 = vmatmul.mubr.bf16.gmra.mxu0 %v341
  %v530 = vpop.f32.mrf.mxu0
  %v531 = vadd.f32 %v434, %v530
  %v532 = vpop.f32.mrf.mxu0
  %v533 = vpop.f32.mrf.mxu0
  %v534 = vadd.f32 %v437, %v533
  %v535 = vpop.f32.mrf.mxu0
  %536 = vdwg.mxu0
  %v537 = vmax.f32 %v475, 0.0
  %v538 = vmax.f32 %v478, 0.0
  %v539 = vmax.f32 %v483, 0.0
  %v540 = vmax.f32 %v486, 0.0
  %v541 = vmax.f32 %v491, 0.0
  %v542 = vmax.f32 %v494, 0.0
  %v543 = vmax.f32 %v499, 0.0
  %v544 = vmax.f32 %v502, 0.0
  %v545 = vmax.f32 %v507, 0.0
  %v546 = vmax.f32 %v510, 0.0
  %v547 = vmax.f32 %v515, 0.0
  %v548 = vmax.f32 %v518, 0.0
  %v549 = vmax.f32 %v523, 0.0
  %v550 = vmax.f32 %v526, 0.0
  %v551 = vmax.f32 %v531, 0.0
  %v552 = vmax.f32 %v534, 0.0
  %v553 = vpack.c.bf16 %v538, %v537
  %v554 = vpack.c.bf16 %v540, %v539
  %v555 = vpack.c.bf16 %v542, %v541
  %v556 = vpack.c.bf16 %v544, %v543
  %v557 = vpack.c.bf16 %v546, %v545
  %v558 = vpack.c.bf16 %v548, %v547
  %v559 = vpack.c.bf16 %v550, %v549
  %v560 = vpack.c.bf16 %v552, %v551
  %v569 = vunpack.c.l.b16 %v553
  %v570 = vunpack.c.h.b16 %v553
  %v571 = vunpack.c.l.b16 %v554
  %v572 = vunpack.c.h.b16 %v554
  %v573 = vunpack.c.l.b16 %v555
  %v574 = vunpack.c.h.b16 %v555
  %v575 = vunpack.c.l.b16 %v556
  %v576 = vunpack.c.h.b16 %v556
  %v577 = vunpack.c.l.b16 %v557
  %v578 = vunpack.c.h.b16 %v557
  %v579 = vunpack.c.l.b16 %v558
  %v580 = vunpack.c.h.b16 %v558
  %v581 = vunpack.c.l.b16 %v559
  %v582 = vunpack.c.h.b16 %v559
  %v583 = vunpack.c.l.b16 %v560
  %v584 = vunpack.c.h.b16 %v560
  %v585 = vpack.c.b16 %v569, %v569
  %v586 = vpack.c.b16 %v570, %v570
  %v587 = vpack.c.b16 %v571, %v571
  %v588 = vpack.c.b16 %v572, %v572
  %v589 = vpack.c.b16 %v573, %v573
  %v590 = vpack.c.b16 %v574, %v574
  %v591 = vpack.c.b16 %v575, %v575
  %v592 = vpack.c.b16 %v576, %v576
  %v593 = vpack.c.b16 %v577, %v577
  %v594 = vpack.c.b16 %v578, %v578
  %v595 = vpack.c.b16 %v579, %v579
  %v596 = vpack.c.b16 %v580, %v580
  %v597 = vpack.c.b16 %v581, %v581
  %v598 = vpack.c.b16 %v582, %v582
  %v599 = vpack.c.b16 %v583, %v583
  %v600 = vpack.c.b16 %v584, %v584
  %vm617 = vcmask 519168
  %618 = vst.msk [vmem:[%s3] sm:$0xf] %vm617, %v585
  %619 = vst.msk [vmem:[%s3 + $0x4] sm:$0xf] %vm617, %v586
  %620 = vst.msk [vmem:[%s3 + $0x8] sm:$0xf] %vm617, %v587
  %621 = vst.msk [vmem:[%s3 + $0xc] sm:$0xf] %vm617, %v588
  %622 = vst.msk [vmem:[%s3 + $0x10] sm:$0xf] %vm617, %v589
  %623 = vst.msk [vmem:[%s3 + $0x14] sm:$0xf] %vm617, %v590
  %624 = vst.msk [vmem:[%s3 + $0x18] sm:$0xf] %vm617, %v591
  %625 = vst.msk [vmem:[%s3 + $0x1c] sm:$0xf] %vm617, %v592
  %626 = vst.msk [vmem:[%s3 + $0x20] sm:$0xf] %vm617, %v593
  %627 = vst.msk [vmem:[%s3 + $0x24] sm:$0xf] %vm617, %v594
  %628 = vst.msk [vmem:[%s3 + $0x28] sm:$0xf] %vm617, %v595
  %629 = vst.msk [vmem:[%s3 + $0x2c] sm:$0xf] %vm617, %v596
  %630 = vst.msk [vmem:[%s3 + $0x30] sm:$0xf] %vm617, %v597
  %631 = vst.msk [vmem:[%s3 + $0x34] sm:$0xf] %vm617, %v598
  %632 = vst.msk [vmem:[%s3 + $0x38] sm:$0xf] %vm617, %v599
  %633 = vst.msk [vmem:[%s3 + $0x3c] sm:$0xf] %vm617, %v600
  // Predicated region
  $region14: #{vae_forward.9} parent=0 // pred_check
    _
  $region15: #{vae_forward.9} parent=0 // pred_check_branch
    %635 = sbr.rel (0) target = $region17
  $region16: #{vae_forward.9} parent=0 // pred_region
    _
  $region17: #{vae_forward.9} parent=0 // pred_fallthru
    _
  // Predicated region
  $region18: #{vae_forward.9} parent=0 // pred_check
    _
  $region19: #{vae_forward.9} parent=0 // pred_check_branch
    %637 = sbr.rel (0) target = $region21
  $region20: #{vae_forward.9} parent=0 // pred_region
    _
  $region21: #{vae_forward.9} parent=0 // pred_fallthru
    _

// kernel: vae_forward.10
$region0: #{vae_forward.10}
  #allocation0 [shape = 'u32[]', space=smem, size = 0x4, offset = 0x4, fixed_abs, tag = 'smem constant byte address 0x4 - core index']
  #allocation1 [shape = 'u32[144,128]{1,0:T(1,128)}', space=vmem, size = 0x12000, scoped, tag = 'internal scratch']
  %s0 = inlined_call_operand.vmem [shape: bf16[32,576], index: 0, kind: input, shape index: {}]
  %s1 = inlined_call_operand.vmem [shape: bf16[576,128], index: 1, kind: input, shape index: {}]
  %s2 = inlined_call_operand.vmem [shape: f32[1,128], index: 2, kind: input, shape index: {}]
  %s3 = inlined_call_operand.vmem [shape: bf16[32,128], index: 3, kind: output, shape index: {}]
  %s4 = sld [smem:[#allocation0]]
  $region22: #{vae_forward.10} parent=0
    _
  %s6 = ssub.s32 1, %s4
  %s7 = scalar_select 0, %s6, %s4
  // Predicated region
  $region2: #{vae_forward.10} parent=0 // pred_check
    _
  $region3: #{vae_forward.10} parent=0 // pred_check_branch
    %9 = sbr.rel (0) target = $region5
  $region4: #{vae_forward.10} parent=0 // pred_region
    _
  $region5: #{vae_forward.10} parent=0 // pred_fallthru
    _
  // Predicated region
  $region6: #{vae_forward.10} parent=0 // pred_check
    _
  $region7: #{vae_forward.10} parent=0 // pred_check_branch
    %11 = sbr.rel (0) target = $region9
  $region8: #{vae_forward.10} parent=0 // pred_region
    _
  $region9: #{vae_forward.10} parent=0 // pred_fallthru
    _
  // Predicated region
  $region10: #{vae_forward.10} parent=0 // pred_check
    _
  $region11: #{vae_forward.10} parent=0 // pred_check_branch
    %13 = sbr.rel (0) target = $region13
  $region12: #{vae_forward.10} parent=0 // pred_region
    _
  $region13: #{vae_forward.10} parent=0 // pred_fallthru
    _
  %v15 = vld [vmem:[%s0] sm:$0xff]
  %v16 = vld [vmem:[%s0 + $0x8] sm:$0xff]
  %v17 = vld [vmem:[%s0 + $0x10] sm:$0xf]
  %v18 = vld [vmem:[%s0 + $0x14] sm:$0xff]
  %v19 = vld [vmem:[%s0 + $0x1c] sm:$0xff]
  %v20 = vld [vmem:[%s0 + $0x24] sm:$0xf]
  %v21 = vld [vmem:[%s0 + $0x28] sm:$0xff]
  %v22 = vld [vmem:[%s0 + $0x30] sm:$0xff]
  %v23 = vld [vmem:[%s0 + $0x38] sm:$0xf]
  %v24 = vld [vmem:[%s0 + $0x3c] sm:$0xff]
  %v25 = vld [vmem:[%s0 + $0x44] sm:$0xff]
  %v26 = vld [vmem:[%s0 + $0x4c] sm:$0xf]
  %v27 = vld [vmem:[%s1] sm:$0xf]
  %v28 = vld [vmem:[%s1 + $0x4] sm:$0xf]
  %v29 = vld [vmem:[%s1 + $0x8] sm:$0xf]
  %v30 = vld [vmem:[%s1 + $0xc] sm:$0xf]
  %v31 = vld [vmem:[%s1 + $0x10] sm:$0xf]
  %v32 = vld [vmem:[%s1 + $0x14] sm:$0xf]
  %v33 = vld [vmem:[%s1 + $0x18] sm:$0xf]
  %v34 = vld [vmem:[%s1 + $0x1c] sm:$0xf]
  %v35 = vld [vmem:[%s1 + $0x20] sm:$0xf]
  %v36 = vld [vmem:[%s1 + $0x24] sm:$0xf]
  %v37 = vld [vmem:[%s1 + $0x28] sm:$0xf]
  %v38 = vld [vmem:[%s1 + $0x2c] sm:$0xf]
  %v39 = vld [vmem:[%s1 + $0x30] sm:$0xf]
  %v40 = vld [vmem:[%s1 + $0x34] sm:$0xf]
  %v41 = vld [vmem:[%s1 + $0x38] sm:$0xf]
  %v42 = vld [vmem:[%s1 + $0x3c] sm:$0xf]
  %v43 = vld [vmem:[%s1 + $0x40] sm:$0xf]
  %v44 = vld [vmem:[%s1 + $0x44] sm:$0xf]
  %v45 = vld [vmem:[%s1 + $0x48] sm:$0xf]
  %v46 = vld [vmem:[%s1 + $0x4c] sm:$0xf]
  %v47 = vld [vmem:[%s1 + $0x50] sm:$0xf]
  %v48 = vld [vmem:[%s1 + $0x54] sm:$0xf]
  %v49 = vld [vmem:[%s1 + $0x58] sm:$0xf]
  %v50 = vld [vmem:[%s1 + $0x5c] sm:$0xf]
  %v51 = vld [vmem:[%s1 + $0x60] sm:$0xf]
  %v52 = vld [vmem:[%s1 + $0x64] sm:$0xf]
  %v53 = vld [vmem:[%s1 + $0x68] sm:$0xf]
  %v54 = vld [vmem:[%s1 + $0x6c] sm:$0xf]
  %v55 = vld [vmem:[%s1 + $0x70] sm:$0xf]
  %v56 = vld [vmem:[%s1 + $0x74] sm:$0xf]
  %v57 = vld [vmem:[%s1 + $0x78] sm:$0xf]
  %v58 = vld [vmem:[%s1 + $0x7c] sm:$0xf]
  %v59 = vld [vmem:[%s1 + $0x80] sm:$0xf]
  %v60 = vld [vmem:[%s1 + $0x84] sm:$0xf]
  %v61 = vld [vmem:[%s1 + $0x88] sm:$0xf]
  %v62 = vld [vmem:[%s1 + $0x8c] sm:$0xf]
  %v63 = vld [vmem:[%s1 + $0x90] sm:$0xf]
  %v64 = vld [vmem:[%s1 + $0x94] sm:$0xf]
  %v65 = vld [vmem:[%s1 + $0x98] sm:$0xf]
  %v66 = vld [vmem:[%s1 + $0x9c] sm:$0xf]
  %v67 = vld [vmem:[%s1 + $0xa0] sm:$0xf]
  %v68 = vld [vmem:[%s1 + $0xa4] sm:$0xf]
  %v69 = vld [vmem:[%s1 + $0xa8] sm:$0xf]
  %v70 = vld [vmem:[%s1 + $0xac] sm:$0xf]
  %v71 = vld [vmem:[%s1 + $0xb0] sm:$0xf]
  %v72 = vld [vmem:[%s1 + $0xb4] sm:$0xf]
  %v73 = vld [vmem:[%s1 + $0xb8] sm:$0xf]
  %v74 = vld [vmem:[%s1 + $0xbc] sm:$0xf]
  %v75 = vld [vmem:[%s1 + $0xc0] sm:$0xf]
  %v76 = vld [vmem:[%s1 + $0xc4] sm:$0xf]
  %v77 = vld [vmem:[%s1 + $0xc8] sm:$0xf]
  %v78 = vld [vmem:[%s1 + $0xcc] sm:$0xf]
  %v79 = vld [vmem:[%s1 + $0xd0] sm:$0xf]
  %v80 = vld [vmem:[%s1 + $0xd4] sm:$0xf]
  %v81 = vld [vmem:[%s1 + $0xd8] sm:$0xf]
  %v82 = vld [vmem:[%s1 + $0xdc] sm:$0xf]
  %v83 = vld [vmem:[%s1 + $0xe0] sm:$0xf]
  %v84 = vld [vmem:[%s1 + $0xe4] sm:$0xf]
  %v85 = vld [vmem:[%s1 + $0xe8] sm:$0xf]
  %v86 = vld [vmem:[%s1 + $0xec] sm:$0xf]
  %v87 = vld [vmem:[%s1 + $0xf0] sm:$0xf]
  %v88 = vld [vmem:[%s1 + $0xf4] sm:$0xf]
  %v89 = vld [vmem:[%s1 + $0xf8] sm:$0xf]
  %v90 = vld [vmem:[%s1 + $0xfc] sm:$0xf]
  %v91 = vld [vmem:[%s1 + $0x100] sm:$0xf]
  %v92 = vld [vmem:[%s1 + $0x104] sm:$0xf]
  %v93 = vld [vmem:[%s1 + $0x108] sm:$0xf]
  %v94 = vld [vmem:[%s1 + $0x10c] sm:$0xf]
  %v95 = vld [vmem:[%s1 + $0x110] sm:$0xf]
  %v96 = vld [vmem:[%s1 + $0x114] sm:$0xf]
  %v97 = vld [vmem:[%s1 + $0x118] sm:$0xf]
  %v98 = vld [vmem:[%s1 + $0x11c] sm:$0xf]
  %v99 = vld [vmem:[%s2] sm:$0x1]
  %v101 = vlaneseq
  %v102 = vshrl.u32 %v101, 7
  %v103 = vsub.s32 0, %v102
  %v104 = vrot.slane %v99, %v103
  %v118 = vunpack.c.l.b16 %v15
  %v119 = vunpack.c.h.b16 %v15
  %v120 = vunpack.c.l.b16 %v16
  %v121 = vunpack.c.h.b16 %v16
  %v122 = vunpack.c.l.b16 %v17
  %v123 = vunpack.c.l.b16 %v18
  %v124 = vunpack.c.h.b16 %v18
  %v125 = vunpack.c.l.b16 %v19
  %v126 = vunpack.c.h.b16 %v19
  %v127 = vunpack.c.l.b16 %v20
  %v128 = vunpack.c.l.b16 %v21
  %v129 = vunpack.c.h.b16 %v21
  %v130 = vunpack.c.l.b16 %v22
  %v131 = vunpack.c.h.b16 %v22
  %v132 = vunpack.c.l.b16 %v23
  %v133 = vunpack.c.l.b16 %v24
  %v134 = vunpack.c.h.b16 %v24
  %v135 = vunpack.c.l.b16 %v25
  %v136 = vunpack.c.h.b16 %v25
  %v137 = vunpack.c.l.b16 %v26
  %v138 = vpack.c.b16 %v123, %v118
  %v139 = vpack.c.b16 %v124, %v119
  %v140 = vpack.c.b16 %v125, %v120
  %v141 = vpack.c.b16 %v126, %v121
  %v142 = vpack.c.b16 %v127, %v122
  %v143 = vpack.c.b16 %v133, %v128
  %v144 = vpack.c.b16 %v134, %v129
  %v145 = vpack.c.b16 %v135, %v130
  %v146 = vpack.c.b16 %v136, %v131
  %v147 = vpack.c.b16 %v137, %v132
  %v228 = vunpack.c.l.b16 %v27
  %v229 = vunpack.c.l.b16 %v28
  %v230 = vunpack.c.l.b16 %v29
  %v231 = vunpack.c.l.b16 %v30
  %v232 = vunpack.c.l.b16 %v31
  %v233 = vunpack.c.l.b16 %v32
  %v234 = vunpack.c.l.b16 %v33
  %v235 = vunpack.c.l.b16 %v34
  %v236 = vunpack.c.l.b16 %v35
  %v237 = vunpack.c.l.b16 %v36
  %v238 = vunpack.c.l.b16 %v37
  %v239 = vunpack.c.l.b16 %v38
  %v240 = vunpack.c.l.b16 %v39
  %v241 = vunpack.c.l.b16 %v40
  %v242 = vunpack.c.l.b16 %v41
  %v243 = vunpack.c.l.b16 %v42
  %v244 = vunpack.c.l.b16 %v43
  %v245 = vunpack.c.l.b16 %v44
  %v246 = vunpack.c.l.b16 %v45
  %v247 = vunpack.c.l.b16 %v46
  %v248 = vunpack.c.l.b16 %v47
  %v249 = vunpack.c.l.b16 %v48
  %v250 = vunpack.c.l.b16 %v49
  %v251 = vunpack.c.l.b16 %v50
  %v252 = vunpack.c.l.b16 %v51
  %v253 = vunpack.c.l.b16 %v52
  %v254 = vunpack.c.l.b16 %v53
  %v255 = vunpack.c.l.b16 %v54
  %v256 = vunpack.c.l.b16 %v55
  %v257 = vunpack.c.l.b16 %v56
  %v258 = vunpack.c.l.b16 %v57
  %v259 = vunpack.c.l.b16 %v58
  %v260 = vunpack.c.l.b16 %v59
  %v261 = vunpack.c.l.b16 %v60
  %v262 = vunpack.c.l.b16 %v61
  %v263 = vunpack.c.l.b16 %v62
  %v264 = vunpack.c.l.b16 %v63
  %v265 = vunpack.c.l.b16 %v64
  %v266 = vunpack.c.l.b16 %v65
  %v267 = vunpack.c.l.b16 %v66
  %v268 = vunpack.c.l.b16 %v67
  %v269 = vunpack.c.l.b16 %v68
  %v270 = vunpack.c.l.b16 %v69
  %v271 = vunpack.c.l.b16 %v70
  %v272 = vunpack.c.l.b16 %v71
  %v273 = vunpack.c.l.b16 %v72
  %v274 = vunpack.c.l.b16 %v73
  %v275 = vunpack.c.l.b16 %v74
  %v276 = vunpack.c.l.b16 %v75
  %v277 = vunpack.c.l.b16 %v76
  %v278 = vunpack.c.l.b16 %v77
  %v279 = vunpack.c.l.b16 %v78
  %v280 = vunpack.c.l.b16 %v79
  %v281 = vunpack.c.l.b16 %v80
  %v282 = vunpack.c.l.b16 %v81
  %v283 = vunpack.c.l.b16 %v82
  %v284 = vunpack.c.l.b16 %v83
  %v285 = vunpack.c.l.b16 %v84
  %v286 = vunpack.c.l.b16 %v85
  %v287 = vunpack.c.l.b16 %v86
  %v288 = vunpack.c.l.b16 %v87
  %v289 = vunpack.c.l.b16 %v88
  %v290 = vunpack.c.l.b16 %v89
  %v291 = vunpack.c.l.b16 %v90
  %v292 = vunpack.c.l.b16 %v91
  %v293 = vunpack.c.l.b16 %v92
  %v294 = vunpack.c.l.b16 %v93
  %v295 = vunpack.c.l.b16 %v94
  %v296 = vunpack.c.l.b16 %v95
  %v297 = vunpack.c.l.b16 %v96
  %v298 = vunpack.c.l.b16 %v97
  %v299 = vunpack.c.l.b16 %v98
  %v300 = vpack.c.b16 %v229, %v228
  %v301 = vpack.c.b16 %v231, %v230
  %v302 = vpack.c.b16 %v233, %v232
  %v303 = vpack.c.b16 %v235, %v234
  %v304 = vpack.c.b16 %v237, %v236
  %v305 = vpack.c.b16 %v239, %v238
  %v306 = vpack.c.b16 %v241, %v240
  %v307 = vpack.c.b16 %v243, %v242
  %v308 = vpack.c.b16 %v245, %v244
  %v309 = vpack.c.b16 %v247, %v246
  %v310 = vpack.c.b16 %v249, %v248
  %v311 = vpack.c.b16 %v251, %v250
  %v312 = vpack.c.b16 %v253, %v252
  %v313 = vpack.c.b16 %v255, %v254
  %v314 = vpack.c.b16 %v257, %v256
  %v315 = vpack.c.b16 %v259, %v258
  %v316 = vpack.c.b16 %v261, %v260
  %v317 = vpack.c.b16 %v263, %v262
  %v318 = vpack.c.b16 %v265, %v264
  %v319 = vpack.c.b16 %v267, %v266
  %v320 = vpack.c.b16 %v269, %v268
  %v321 = vpack.c.b16 %v271, %v270
  %v322 = vpack.c.b16 %v273, %v272
  %v323 = vpack.c.b16 %v275, %v274
  %v324 = vpack.c.b16 %v277, %v276
  %v325 = vpack.c.b16 %v279, %v278
  %v326 = vpack.c.b16 %v281, %v280
  %v327 = vpack.c.b16 %v283, %v282
  %v328 = vpack.c.b16 %v285, %v284
  %v329 = vpack.c.b16 %v287, %v286
  %v330 = vpack.c.b16 %v289, %v288
  %v331 = vpack.c.b16 %v291, %v290
  %v332 = vpack.c.b16 %v293, %v292
  %v333 = vpack.c.b16 %v295, %v294
  %v334 = vpack.c.b16 %v297, %v296
  %v335 = vpack.c.b16 %v299, %v298
  %vm372 = vcmask 523264
  %v374 = vsel %vm372, %v142, 0
  %v377 = vsel %vm372, %v147, 0
  %379 = vmatprep.subr.bf16.mxu0 0
  %380 = vmatpush1.bf16.msra.mxu0 %v307
  %381 = vmatprep.subr.bf16.mxu0 0
  %382 = vmatpush1.bf16.msra.mxu0 %v306
  %383 = vmatprep.subr.bf16.mxu0 0
  %384 = vmatpush1.bf16.msra.mxu0 %v305
  %385 = vmatprep.subr.bf16.mxu0 0
  %386 = vmatpush1.bf16.msra.mxu0 %v304
  %387 = vmatprep.subr.bf16.mxu0 0
  %388 = vmatpush1.bf16.msra.mxu0 %v303
  %389 = vmatprep.subr.bf16.mxu0 0
  %390 = vmatpush1.bf16.msra.mxu0 %v302
  %391 = vmatprep.subr.bf16.mxu0 0
  %392 = vmatpush1.bf16.msra.mxu0 %v301
  %393 = vmatprep.subr.bf16.mxu0 0
  %394 = vmatpush1.bf16.msra.mxu0 %v300
  %395 = vmatprep.subr.bf16.mxu0 0
  %396 = vmatpush2.bf16.msra.mxu0 %v315
  %397 = vmatprep.subr.bf16.mxu0 0
  %398 = vmatpush2.bf16.msra.mxu0 %v314
  %399 = vmatprep.subr.bf16.mxu0 0
  %400 = vmatpush2.bf16.msra.mxu0 %v313
  %401 = vmatprep.subr.bf16.mxu0 0
  %402 = vmatpush2.bf16.msra.mxu0 %v312
  %403 = vmatprep.subr.bf16.mxu0 0
  %404 = vmatpush2.bf16.msra.mxu0 %v311
  %405 = vmatprep.subr.bf16.mxu0 0
  %406 = vmatpush2.bf16.msra.mxu0 %v310
  %407 = vmatprep.subr.bf16.mxu0 0
  %408 = vmatpush2.bf16.msra.mxu0 %v309
  %409 = vmatprep.subr.bf16.mxu0 0
  %410 = vmatpush2.bf16.msra.mxu0 %v308
  %411 = vmatprep.mubr.bf16.mxu0 %v139
  %412 = vmatmul.mubr.bf16.gmra.mxu0 %v138
  %v413 = vpop.f32.mrf.mxu0
  %v414 = vadd.f32 %v104, %v413
  %v415 = vpop.f32.mrf.mxu0
  %v416 = vpop.f32.mrf.mxu0
  %v417 = vadd.f32 %v104, %v416
  %v418 = vpop.f32.mrf.mxu0
  %419 = vmatprep.mubr.bf16.mxu0 %v144
  %420 = vmatmul.mubr.bf16.gmra.mxu0 %v143
  %v421 = vpop.f32.mrf.mxu0
  %v422 = vadd.f32 %v104, %v421
  %v423 = vpop.f32.mrf.mxu0
  %v424 = vpop.f32.mrf.mxu0
  %v425 = vadd.f32 %v104, %v424
  %v426 = vpop.f32.mrf.mxu0
  %427 = vdwg.mxu0
  %428 = vmatprep.subr.bf16.mxu0 0
  %429 = vmatpush1.bf16.msra.mxu0 %v323
  %430 = vmatprep.subr.bf16.mxu0 0
  %431 = vmatpush1.bf16.msra.mxu0 %v322
  %432 = vmatprep.subr.bf16.mxu0 0
  %433 = vmatpush1.bf16.msra.mxu0 %v321
  %434 = vmatprep.subr.bf16.mxu0 0
  %435 = vmatpush1.bf16.msra.mxu0 %v320
  %436 = vmatprep.subr.bf16.mxu0 0
  %437 = vmatpush1.bf16.msra.mxu0 %v319
  %438 = vmatprep.subr.bf16.mxu0 0
  %439 = vmatpush1.bf16.msra.mxu0 %v318
  %440 = vmatprep.subr.bf16.mxu0 0
  %441 = vmatpush1.bf16.msra.mxu0 %v317
  %442 = vmatprep.subr.bf16.mxu0 0
  %443 = vmatpush1.bf16.msra.mxu0 %v316
  %444 = vmatprep.subr.bf16.mxu0 0
  %445 = vmatpush2.bf16.msra.mxu0 %v331
  %446 = vmatprep.subr.bf16.mxu0 0
  %447 = vmatpush2.bf16.msra.mxu0 %v330
  %448 = vmatprep.subr.bf16.mxu0 0
  %449 = vmatpush2.bf16.msra.mxu0 %v329
  %450 = vmatprep.subr.bf16.mxu0 0
  %451 = vmatpush2.bf16.msra.mxu0 %v328
  %452 = vmatprep.subr.bf16.mxu0 0
  %453 = vmatpush2.bf16.msra.mxu0 %v327
  %454 = vmatprep.subr.bf16.mxu0 0
  %455 = vmatpush2.bf16.msra.mxu0 %v326
  %456 = vmatprep.subr.bf16.mxu0 0
  %457 = vmatpush2.bf16.msra.mxu0 %v325
  %458 = vmatprep.subr.bf16.mxu0 0
  %459 = vmatpush2.bf16.msra.mxu0 %v324
  %460 = vmatprep.mubr.bf16.mxu0 %v141
  %461 = vmatmul.mubr.bf16.gmra.mxu0 %v140
  %v462 = vpop.f32.mrf.mxu0
  %v463 = vadd.f32 %v414, %v462
  %v464 = vpop.f32.mrf.mxu0
  %v465 = vpop.f32.mrf.mxu0
  %v466 = vadd.f32 %v417, %v465
  %v467 = vpop.f32.mrf.mxu0
  %468 = vmatprep.mubr.bf16.mxu0 %v146
  %469 = vmatmul.mubr.bf16.gmra.mxu0 %v145
  %v470 = vpop.f32.mrf.mxu0
  %v471 = vadd.f32 %v422, %v470
  %v472 = vpop.f32.mrf.mxu0
  %v473 = vpop.f32.mrf.mxu0
  %v474 = vadd.f32 %v425, %v473
  %v475 = vpop.f32.mrf.mxu0
  %476 = vdwg.mxu0
  %477 = vmatprep.subr.bf16.mxu0 0
  %478 = vmatpush1.bf16.msra.mxu0 0
  %479 = vmatprep.subr.bf16.mxu0 0
  %480 = vmatpush1.bf16.msra.mxu0 0
  %481 = vmatprep.subr.bf16.mxu0 0
  %482 = vmatpush1.bf16.msra.mxu0 0
  %483 = vmatprep.subr.bf16.mxu0 0
  %484 = vmatpush1.bf16.msra.mxu0 0
  %485 = vmatprep.subr.bf16.mxu0 0
  %486 = vmatpush1.bf16.msra.mxu0 %v335
  %487 = vmatprep.subr.bf16.mxu0 0
  %488 = vmatpush1.bf16.msra.mxu0 %v334
  %489 = vmatprep.subr.bf16.mxu0 0
  %490 = vmatpush1.bf16.msra.mxu0 %v333
  %491 = vmatprep.subr.bf16.mxu0 0
  %492 = vmatpush1.bf16.msra.mxu0 %v332
  %493 = vmatprep.subr.bf16.mxu0 0
  %494 = vmatpush2.bf16.msra.mxu0 0
  %495 = vmatprep.subr.bf16.mxu0 0
  %496 = vmatpush2.bf16.msra.mxu0 0
  %497 = vmatprep.subr.bf16.mxu0 0
  %498 = vmatpush2.bf16.msra.mxu0 0
  %499 = vmatprep.subr.bf16.mxu0 0
  %500 = vmatpush2.bf16.msra.mxu0 0
  %501 = vmatprep.subr.bf16.mxu0 0
  %502 = vmatpush2.bf16.msra.mxu0 0
  %503 = vmatprep.subr.bf16.mxu0 0
  %504 = vmatpush2.bf16.msra.mxu0 0
  %505 = vmatprep.subr.bf16.mxu0 0
  %506 = vmatpush2.bf16.msra.mxu0 0
  %507 = vmatprep.subr.bf16.mxu0 0
  %508 = vmatpush2.bf16.msra.mxu0 0
  %509 = vmatprep.mubr.bf16.mxu0 0
  %510 = vmatmul.mubr.bf16.gmra.mxu0 %v374
  %v511 = vpop.f32.mrf.mxu0
  %v512 = vadd.f32 %v463, %v511
  %v513 = vpop.f32.mrf.mxu0
  %v514 = vpop.f32.mrf.mxu0
  %v515 = vadd.f32 %v466, %v514
  %v516 = vpop.f32.mrf.mxu0
  %517 = vmatprep.mubr.bf16.mxu0 0
  %518 = vmatmul.mubr.bf16.gmra.mxu0 %v377
  %v519 = vpop.f32.mrf.mxu0
  %v520 = vadd.f32 %v471, %v519
  %v521 = vpop.f32.mrf.mxu0
  %v522 = vpop.f32.mrf.mxu0
  %v523 = vadd.f32 %v474, %v522
  %v524 = vpop.f32.mrf.mxu0
  %525 = vdwg.mxu0
  %v526 = vmax.f32 %v512, 0.0
  %v527 = vmax.f32 %v515, 0.0
  %v528 = vmax.f32 %v520, 0.0
  %v529 = vmax.f32 %v523, 0.0
  %v530 = vpack.c.bf16 %v527, %v526
  %v531 = vpack.c.bf16 %v529, %v528
  %v534 = vunpack.c.l.b16 %v530
  %v535 = vunpack.c.h.b16 %v530
  %v536 = vunpack.c.l.b16 %v531
  %v537 = vunpack.c.h.b16 %v531
  %v538 = vpack.c.b16 %v534, %v534
  %v539 = vpack.c.b16 %v535, %v535
  %v540 = vpack.c.b16 %v536, %v536
  %v541 = vpack.c.b16 %v537, %v537
  %546 = vst [vmem:[%s3] sm:$0xf] %v538
  %547 = vst [vmem:[%s3 + $0x4] sm:$0xf] %v539
  %548 = vst [vmem:[%s3 + $0x8] sm:$0xf] %v540
  %549 = vst [vmem:[%s3 + $0xc] sm:$0xf] %v541
  // Predicated region
  $region14: #{vae_forward.10} parent=0 // pred_check
    _
  $region15: #{vae_forward.10} parent=0 // pred_check_branch
    %551 = sbr.rel (0) target = $region17
  $region16: #{vae_forward.10} parent=0 // pred_region
    _
  $region17: #{vae_forward.10} parent=0 // pred_fallthru
    _
  // Predicated region
  $region18: #{vae_forward.10} parent=0 // pred_check
    _
  $region19: #{vae_forward.10} parent=0 // pred_check_branch
    %553 = sbr.rel (0) target = $region21
  $region20: #{vae_forward.10} parent=0 // pred_region
    _
  $region21: #{vae_forward.10} parent=0 // pred_fallthru
    _

// kernel: vae_forward.11
$region0: #{vae_forward.11}
  #allocation0 [shape = 'u32[]', space=smem, size = 0x4, offset = 0x4, fixed_abs, tag = 'smem constant byte address 0x4 - core index']
  #allocation1 [shape = 'u32[144,128]{1,0:T(1,128)}', space=vmem, size = 0x12000, scoped, tag = 'internal scratch']
  %s0 = inlined_call_operand.vmem [shape: bf16[2,2048], index: 0, kind: input, shape index: {}]
  %s1 = inlined_call_operand.vmem [shape: bf16[2048,16], index: 1, kind: input, shape index: {}]
  %s2 = inlined_call_operand.vmem [shape: f32[1,16], index: 2, kind: input, shape index: {}]
  %s3 = inlined_call_operand.vmem [shape: f32[2,8], index: 3, kind: input, shape index: {}]
  %s4 = inlined_call_operand.vmem [shape: bf16[8,2048], index: 4, kind: input, shape index: {}]
  %s5 = inlined_call_operand.vmem [shape: f32[1,2048], index: 5, kind: input, shape index: {}]
  %s6 = inlined_call_operand.hbm [shape: f32[2,8], index: 6, kind: output, shape index: {0}]
  %s7 = inlined_call_operand.hbm [shape: f32[2,8], index: 7, kind: output, shape index: {1}]
  %s8 = inlined_call_operand.hbm [shape: f32[2,8], index: 8, kind: output, shape index: {2}]
  %s9 = inlined_call_operand.vmem [shape: bf16[2,2048], index: 9, kind: output, shape index: {3}]
  %10 = xla_tuple %s6, %s7, %s8, %s9
  %s11 = sld [smem:[#allocation0]]
  $region58: #{vae_forward.11} parent=0
    _
  %s13 = ssub.s32 1, %s11
  %s14 = scalar_select 0, %s13, %s11
  $region1: #{vae_forward.11} parent=0
    #allocation2 [shape = 'u8[1024]{0}', space=vmem, size = 0x400, scoped, tag = 'output window, operand 0, single buffered']
    #allocation3 [shape = 's32[1]{0}', space=sflag, size = 0x4, scoped, tag = 'scoped memory for vae_forward.11']
    #allocation4 [shape = 'u8[1024]{0}', space=vmem, size = 0x400, scoped, tag = 'output window, operand 1, single buffered']
    #allocation5 [shape = 's32[1]{0}', space=sflag, size = 0x4, scoped, tag = 'scoped memory for vae_forward.11']
    #allocation6 [shape = 'u8[1024]{0}', space=vmem, size = 0x400, scoped, tag = 'output window, operand 2, single buffered']
    %15 = vsyncpa [#allocation3], 0
    %16 = vsyncpa [#allocation5], 0
    // Predicated region
    $region2: #{vae_forward.11} parent=1 // pred_check
      _
    $region3: #{vae_forward.11} parent=1 // pred_check_branch
      %18 = sbr.rel (0) target = $region5
    $region4: #{vae_forward.11} parent=1 // pred_region
      _
    $region5: #{vae_forward.11} parent=1 // pred_fallthru
      _
    // Predicated region
    $region6: #{vae_forward.11} parent=1 // pred_check
      _
    $region7: #{vae_forward.11} parent=1 // pred_check_branch
      %20 = sbr.rel (0) target = $region9
    $region8: #{vae_forward.11} parent=1 // pred_region
      _
    $region9: #{vae_forward.11} parent=1 // pred_fallthru
      _
    // Predicated region
    $region10: #{vae_forward.11} parent=1 // pred_check
      _
    $region11: #{vae_forward.11} parent=1 // pred_check_branch
      %22 = sbr.rel (0) target = $region13
    $region12: #{vae_forward.11} parent=1 // pred_region
      _
    $region13: #{vae_forward.11} parent=1 // pred_fallthru
      _
    // Predicated region
    $region14: #{vae_forward.11} parent=1 // pred_check
      _
    $region15: #{vae_forward.11} parent=1 // pred_check_branch
      %24 = sbr.rel (0) target = $region17
    $region16: #{vae_forward.11} parent=1 // pred_region
      _
    $region17: #{vae_forward.11} parent=1 // pred_fallthru
      _
    // Predicated region
    $region18: #{vae_forward.11} parent=1 // pred_check
      _
    $region19: #{vae_forward.11} parent=1 // pred_check_branch
      %26 = sbr.rel (0) target = $region21
    $region20: #{vae_forward.11} parent=1 // pred_region
      _
    $region21: #{vae_forward.11} parent=1 // pred_fallthru
      _
    // Predicated region
    $region22: #{vae_forward.11} parent=1 // pred_check
      _
    $region23: #{vae_forward.11} parent=1 // pred_check_branch
      %28 = sbr.rel (0) target = $region25
    $region24: #{vae_forward.11} parent=1 // pred_region
      _
    $region25: #{vae_forward.11} parent=1 // pred_fallthru
      _
    %v30 = vld [vmem:[%s0] sm:$0xff]
    %v31 = vld [vmem:[%s0 + $0x8] sm:$0xff]
    %v32 = vld [vmem:[%s1] sm:$0xf]
    %v33 = vld [vmem:[%s1 + $0x4] sm:$0xf]
    %v34 = vld [vmem:[%s1 + $0x8] sm:$0xf]
    %v35 = vld [vmem:[%s1 + $0xc] sm:$0xf]
    %v36 = vld [vmem:[%s1 + $0x10] sm:$0xf]
    %v37 = vld [vmem:[%s1 + $0x14] sm:$0xf]
    %v38 = vld [vmem:[%s1 + $0x18] sm:$0xf]
    %v39 = vld [vmem:[%s1 + $0x1c] sm:$0xf]
    %v40 = vld [vmem:[%s1 + $0x20] sm:$0xf]
    %v41 = vld [vmem:[%s1 + $0x24] sm:$0xf]
    %v42 = vld [vmem:[%s1 + $0x28] sm:$0xf]
    %v43 = vld [vmem:[%s1 + $0x2c] sm:$0xf]
    %v44 = vld [vmem:[%s1 + $0x30] sm:$0xf]
    %v45 = vld [vmem:[%s1 + $0x34] sm:$0xf]
    %v46 = vld [vmem:[%s1 + $0x38] sm:$0xf]
    %v47 = vld [vmem:[%s1 + $0x3c] sm:$0xf]
    %v48 = vld [vmem:[%s1 + $0x40] sm:$0xf]
    %v49 = vld [vmem:[%s1 + $0x44] sm:$0xf]
    %v50 = vld [vmem:[%s1 + $0x48] sm:$0xf]
    %v51 = vld [vmem:[%s1 + $0x4c] sm:$0xf]
    %v52 = vld [vmem:[%s1 + $0x50] sm:$0xf]
    %v53 = vld [vmem:[%s1 + $0x54] sm:$0xf]
    %v54 = vld [vmem:[%s1 + $0x58] sm:$0xf]
    %v55 = vld [vmem:[%s1 + $0x5c] sm:$0xf]
    %v56 = vld [vmem:[%s1 + $0x60] sm:$0xf]
    %v57 = vld [vmem:[%s1 + $0x64] sm:$0xf]
    %v58 = vld [vmem:[%s1 + $0x68] sm:$0xf]
    %v59 = vld [vmem:[%s1 + $0x6c] sm:$0xf]
    %v60 = vld [vmem:[%s1 + $0x70] sm:$0xf]
    %v61 = vld [vmem:[%s1 + $0x74] sm:$0xf]
    %v62 = vld [vmem:[%s1 + $0x78] sm:$0xf]
    %v63 = vld [vmem:[%s1 + $0x7c] sm:$0xf]
    %v64 = vld [vmem:[%s1 + $0x80] sm:$0xf]
    %v65 = vld [vmem:[%s1 + $0x84] sm:$0xf]
    %v66 = vld [vmem:[%s1 + $0x88] sm:$0xf]
    %v67 = vld [vmem:[%s1 + $0x8c] sm:$0xf]
    %v68 = vld [vmem:[%s1 + $0x90] sm:$0xf]
    %v69 = vld [vmem:[%s1 + $0x94] sm:$0xf]
    %v70 = vld [vmem:[%s1 + $0x98] sm:$0xf]
    %v71 = vld [vmem:[%s1 + $0x9c] sm:$0xf]
    %v72 = vld [vmem:[%s1 + $0xa0] sm:$0xf]
    %v73 = vld [vmem:[%s1 + $0xa4] sm:$0xf]
    %v74 = vld [vmem:[%s1 + $0xa8] sm:$0xf]
    %v75 = vld [vmem:[%s1 + $0xac] sm:$0xf]
    %v76 = vld [vmem:[%s1 + $0xb0] sm:$0xf]
    %v77 = vld [vmem:[%s1 + $0xb4] sm:$0xf]
    %v78 = vld [vmem:[%s1 + $0xb8] sm:$0xf]
    %v79 = vld [vmem:[%s1 + $0xbc] sm:$0xf]
    %v80 = vld [vmem:[%s1 + $0xc0] sm:$0xf]
    %v81 = vld [vmem:[%s1 + $0xc4] sm:$0xf]
    %v82 = vld [vmem:[%s1 + $0xc8] sm:$0xf]
    %v83 = vld [vmem:[%s1 + $0xcc] sm:$0xf]
    %v84 = vld [vmem:[%s1 + $0xd0] sm:$0xf]
    %v85 = vld [vmem:[%s1 + $0xd4] sm:$0xf]
    %v86 = vld [vmem:[%s1 + $0xd8] sm:$0xf]
    %v87 = vld [vmem:[%s1 + $0xdc] sm:$0xf]
    %v88 = vld [vmem:[%s1 + $0xe0] sm:$0xf]
    %v89 = vld [vmem:[%s1 + $0xe4] sm:$0xf]
    %v90 = vld [vmem:[%s1 + $0xe8] sm:$0xf]
    %v91 = vld [vmem:[%s1 + $0xec] sm:$0xf]
    %v92 = vld [vmem:[%s1 + $0xf0] sm:$0xf]
    %v93 = vld [vmem:[%s1 + $0xf4] sm:$0xf]
    %v94 = vld [vmem:[%s1 + $0xf8] sm:$0xf]
    %v95 = vld [vmem:[%s1 + $0xfc] sm:$0xf]
    %v96 = vld [vmem:[%s1 + $0x100] sm:$0xf]
    %v97 = vld [vmem:[%s1 + $0x104] sm:$0xf]
    %v98 = vld [vmem:[%s1 + $0x108] sm:$0xf]
    %v99 = vld [vmem:[%s1 + $0x10c] sm:$0xf]
    %v100 = vld [vmem:[%s1 + $0x110] sm:$0xf]
    %v101 = vld [vmem:[%s1 + $0x114] sm:$0xf]
    %v102 = vld [vmem:[%s1 + $0x118] sm:$0xf]
    %v103 = vld [vmem:[%s1 + $0x11c] sm:$0xf]
    %v104 = vld [vmem:[%s1 + $0x120] sm:$0xf]
    %v105 = vld [vmem:[%s1 + $0x124] sm:$0xf]
    %v106 = vld [vmem:[%s1 + $0x128] sm:$0xf]
    %v107 = vld [vmem:[%s1 + $0x12c] sm:$0xf]
    %v108 = vld [vmem:[%s1 + $0x130] sm:$0xf]
    %v109 = vld [vmem:[%s1 + $0x134] sm:$0xf]
    %v110 = vld [vmem:[%s1 + $0x138] sm:$0xf]
    %v111 = vld [vmem:[%s1 + $0x13c] sm:$0xf]
    %v112 = vld [vmem:[%s1 + $0x140] sm:$0xf]
    %v113 = vld [vmem:[%s1 + $0x144] sm:$0xf]
    %v114 = vld [vmem:[%s1 + $0x148] sm:$0xf]
    %v115 = vld [vmem:[%s1 + $0x14c] sm:$0xf]
    %v116 = vld [vmem:[%s1 + $0x150] sm:$0xf]
    %v117 = vld [vmem:[%s1 + $0x154] sm:$0xf]
    %v118 = vld [vmem:[%s1 + $0x158] sm:$0xf]
    %v119 = vld [vmem:[%s1 + $0x15c] sm:$0xf]
    %v120 = vld [vmem:[%s1 + $0x160] sm:$0xf]
    %v121 = vld [vmem:[%s1 + $0x164] sm:$0xf]
    %v122 = vld [vmem:[%s1 + $0x168] sm:$0xf]
    %v123 = vld [vmem:[%s1 + $0x16c] sm:$0xf]
    %v124 = vld [vmem:[%s1 + $0x170] sm:$0xf]
    %v125 = vld [vmem:[%s1 + $0x174] sm:$0xf]
    %v126 = vld [vmem:[%s1 + $0x178] sm:$0xf]
    %v127 = vld [vmem:[%s1 + $0x17c] sm:$0xf]
    %v128 = vld [vmem:[%s1 + $0x180] sm:$0xf]
    %v129 = vld [vmem:[%s1 + $0x184] sm:$0xf]
    %v130 = vld [vmem:[%s1 + $0x188] sm:$0xf]
    %v131 = vld [vmem:[%s1 + $0x18c] sm:$0xf]
    %v132 = vld [vmem:[%s1 + $0x190] sm:$0xf]
    %v133 = vld [vmem:[%s1 + $0x194] sm:$0xf]
    %v134 = vld [vmem:[%s1 + $0x198] sm:$0xf]
    %v135 = vld [vmem:[%s1 + $0x19c] sm:$0xf]
    %v136 = vld [vmem:[%s1 + $0x1a0] sm:$0xf]
    %v137 = vld [vmem:[%s1 + $0x1a4] sm:$0xf]
    %v138 = vld [vmem:[%s1 + $0x1a8] sm:$0xf]
    %v139 = vld [vmem:[%s1 + $0x1ac] sm:$0xf]
    %v140 = vld [vmem:[%s1 + $0x1b0] sm:$0xf]
    %v141 = vld [vmem:[%s1 + $0x1b4] sm:$0xf]
    %v142 = vld [vmem:[%s1 + $0x1b8] sm:$0xf]
    %v143 = vld [vmem:[%s1 + $0x1bc] sm:$0xf]
    %v144 = vld [vmem:[%s1 + $0x1c0] sm:$0xf]
    %v145 = vld [vmem:[%s1 + $0x1c4] sm:$0xf]
    %v146 = vld [vmem:[%s1 + $0x1c8] sm:$0xf]
    %v147 = vld [vmem:[%s1 + $0x1cc] sm:$0xf]
    %v148 = vld [vmem:[%s1 + $0x1d0] sm:$0xf]
    %v149 = vld [vmem:[%s1 + $0x1d4] sm:$0xf]
    %v150 = vld [vmem:[%s1 + $0x1d8] sm:$0xf]
    %v151 = vld [vmem:[%s1 + $0x1dc] sm:$0xf]
    %v152 = vld [vmem:[%s1 + $0x1e0] sm:$0xf]
    %v153 = vld [vmem:[%s1 + $0x1e4] sm:$0xf]
    %v154 = vld [vmem:[%s1 + $0x1e8] sm:$0xf]
    %v155 = vld [vmem:[%s1 + $0x1ec] sm:$0xf]
    %v156 = vld [vmem:[%s1 + $0x1f0] sm:$0xf]
    %v157 = vld [vmem:[%s1 + $0x1f4] sm:$0xf]
    %v158 = vld [vmem:[%s1 + $0x1f8] sm:$0xf]
    %v159 = vld [vmem:[%s1 + $0x1fc] sm:$0xf]
    %v160 = vld [vmem:[%s1 + $0x200] sm:$0xf]
    %v161 = vld [vmem:[%s1 + $0x204] sm:$0xf]
    %v162 = vld [vmem:[%s1 + $0x208] sm:$0xf]
    %v163 = vld [vmem:[%s1 + $0x20c] sm:$0xf]
    %v164 = vld [vmem:[%s1 + $0x210] sm:$0xf]
    %v165 = vld [vmem:[%s1 + $0x214] sm:$0xf]
    %v166 = vld [vmem:[%s1 + $0x218] sm:$0xf]
    %v167 = vld [vmem:[%s1 + $0x21c] sm:$0xf]
    %v168 = vld [vmem:[%s1 + $0x220] sm:$0xf]
    %v169 = vld [vmem:[%s1 + $0x224] sm:$0xf]
    %v170 = vld [vmem:[%s1 + $0x228] sm:$0xf]
    %v171 = vld [vmem:[%s1 + $0x22c] sm:$0xf]
    %v172 = vld [vmem:[%s1 + $0x230] sm:$0xf]
    %v173 = vld [vmem:[%s1 + $0x234] sm:$0xf]
    %v174 = vld [vmem:[%s1 + $0x238] sm:$0xf]
    %v175 = vld [vmem:[%s1 + $0x23c] sm:$0xf]
    %v176 = vld [vmem:[%s1 + $0x240] sm:$0xf]
    %v177 = vld [vmem:[%s1 + $0x244] sm:$0xf]
    %v178 = vld [vmem:[%s1 + $0x248] sm:$0xf]
    %v179 = vld [vmem:[%s1 + $0x24c] sm:$0xf]
    %v180 = vld [vmem:[%s1 + $0x250] sm:$0xf]
    %v181 = vld [vmem:[%s1 + $0x254] sm:$0xf]
    %v182 = vld [vmem:[%s1 + $0x258] sm:$0xf]
    %v183 = vld [vmem:[%s1 + $0x25c] sm:$0xf]
    %v184 = vld [vmem:[%s1 + $0x260] sm:$0xf]
    %v185 = vld [vmem:[%s1 + $0x264] sm:$0xf]
    %v186 = vld [vmem:[%s1 + $0x268] sm:$0xf]
    %v187 = vld [vmem:[%s1 + $0x26c] sm:$0xf]
    %v188 = vld [vmem:[%s1 + $0x270] sm:$0xf]
    %v189 = vld [vmem:[%s1 + $0x274] sm:$0xf]
    %v190 = vld [vmem:[%s1 + $0x278] sm:$0xf]
    %v191 = vld [vmem:[%s1 + $0x27c] sm:$0xf]
    %v192 = vld [vmem:[%s1 + $0x280] sm:$0xf]
    %v193 = vld [vmem:[%s1 + $0x284] sm:$0xf]
    %v194 = vld [vmem:[%s1 + $0x288] sm:$0xf]
    %v195 = vld [vmem:[%s1 + $0x28c] sm:$0xf]
    %v196 = vld [vmem:[%s1 + $0x290] sm:$0xf]
    %v197 = vld [vmem:[%s1 + $0x294] sm:$0xf]
    %v198 = vld [vmem:[%s1 + $0x298] sm:$0xf]
    %v199 = vld [vmem:[%s1 + $0x29c] sm:$0xf]
    %v200 = vld [vmem:[%s1 + $0x2a0] sm:$0xf]
    %v201 = vld [vmem:[%s1 + $0x2a4] sm:$0xf]
    %v202 = vld [vmem:[%s1 + $0x2a8] sm:$0xf]
    %v203 = vld [vmem:[%s1 + $0x2ac] sm:$0xf]
    %v204 = vld [vmem:[%s1 + $0x2b0] sm:$0xf]
    %v205 = vld [vmem:[%s1 + $0x2b4] sm:$0xf]
    %v206 = vld [vmem:[%s1 + $0x2b8] sm:$0xf]
    %v207 = vld [vmem:[%s1 + $0x2bc] sm:$0xf]
    %v208 = vld [vmem:[%s1 + $0x2c0] sm:$0xf]
    %v209 = vld [vmem:[%s1 + $0x2c4] sm:$0xf]
    %v210 = vld [vmem:[%s1 + $0x2c8] sm:$0xf]
    %v211 = vld [vmem:[%s1 + $0x2cc] sm:$0xf]
    %v212 = vld [vmem:[%s1 + $0x2d0] sm:$0xf]
    %v213 = vld [vmem:[%s1 + $0x2d4] sm:$0xf]
    %v214 = vld [vmem:[%s1 + $0x2d8] sm:$0xf]
    %v215 = vld [vmem:[%s1 + $0x2dc] sm:$0xf]
    %v216 = vld [vmem:[%s1 + $0x2e0] sm:$0xf]
    %v217 = vld [vmem:[%s1 + $0x2e4] sm:$0xf]
    %v218 = vld [vmem:[%s1 + $0x2e8] sm:$0xf]
    %v219 = vld [vmem:[%s1 + $0x2ec] sm:$0xf]
    %v220 = vld [vmem:[%s1 + $0x2f0] sm:$0xf]
    %v221 = vld [vmem:[%s1 + $0x2f4] sm:$0xf]
    %v222 = vld [vmem:[%s1 + $0x2f8] sm:$0xf]
    %v223 = vld [vmem:[%s1 + $0x2fc] sm:$0xf]
    %v224 = vld [vmem:[%s1 + $0x300] sm:$0xf]
    %v225 = vld [vmem:[%s1 + $0x304] sm:$0xf]
    %v226 = vld [vmem:[%s1 + $0x308] sm:$0xf]
    %v227 = vld [vmem:[%s1 + $0x30c] sm:$0xf]
    %v228 = vld [vmem:[%s1 + $0x310] sm:$0xf]
    %v229 = vld [vmem:[%s1 + $0x314] sm:$0xf]
    %v230 = vld [vmem:[%s1 + $0x318] sm:$0xf]
    %v231 = vld [vmem:[%s1 + $0x31c] sm:$0xf]
    %v232 = vld [vmem:[%s1 + $0x320] sm:$0xf]
    %v233 = vld [vmem:[%s1 + $0x324] sm:$0xf]
    %v234 = vld [vmem:[%s1 + $0x328] sm:$0xf]
    %v235 = vld [vmem:[%s1 + $0x32c] sm:$0xf]
    %v236 = vld [vmem:[%s1 + $0x330] sm:$0xf]
    %v237 = vld [vmem:[%s1 + $0x334] sm:$0xf]
    %v238 = vld [vmem:[%s1 + $0x338] sm:$0xf]
    %v239 = vld [vmem:[%s1 + $0x33c] sm:$0xf]
    %v240 = vld [vmem:[%s1 + $0x340] sm:$0xf]
    %v241 = vld [vmem:[%s1 + $0x344] sm:$0xf]
    %v242 = vld [vmem:[%s1 + $0x348] sm:$0xf]
    %v243 = vld [vmem:[%s1 + $0x34c] sm:$0xf]
    %v244 = vld [vmem:[%s1 + $0x350] sm:$0xf]
    %v245 = vld [vmem:[%s1 + $0x354] sm:$0xf]
    %v246 = vld [vmem:[%s1 + $0x358] sm:$0xf]
    %v247 = vld [vmem:[%s1 + $0x35c] sm:$0xf]
    %v248 = vld [vmem:[%s1 + $0x360] sm:$0xf]
    %v249 = vld [vmem:[%s1 + $0x364] sm:$0xf]
    %v250 = vld [vmem:[%s1 + $0x368] sm:$0xf]
    %v251 = vld [vmem:[%s1 + $0x36c] sm:$0xf]
    %v252 = vld [vmem:[%s1 + $0x370] sm:$0xf]
    %v253 = vld [vmem:[%s1 + $0x374] sm:$0xf]
    %v254 = vld [vmem:[%s1 + $0x378] sm:$0xf]
    %v255 = vld [vmem:[%s1 + $0x37c] sm:$0xf]
    %v256 = vld [vmem:[%s1 + $0x380] sm:$0xf]
    %v257 = vld [vmem:[%s1 + $0x384] sm:$0xf]
    %v258 = vld [vmem:[%s1 + $0x388] sm:$0xf]
    %v259 = vld [vmem:[%s1 + $0x38c] sm:$0xf]
    %v260 = vld [vmem:[%s1 + $0x390] sm:$0xf]
    %v261 = vld [vmem:[%s1 + $0x394] sm:$0xf]
    %v262 = vld [vmem:[%s1 + $0x398] sm:$0xf]
    %v263 = vld [vmem:[%s1 + $0x39c] sm:$0xf]
    %v264 = vld [vmem:[%s1 + $0x3a0] sm:$0xf]
    %v265 = vld [vmem:[%s1 + $0x3a4] sm:$0xf]
    %v266 = vld [vmem:[%s1 + $0x3a8] sm:$0xf]
    %v267 = vld [vmem:[%s1 + $0x3ac] sm:$0xf]
    %v268 = vld [vmem:[%s1 + $0x3b0] sm:$0xf]
    %v269 = vld [vmem:[%s1 + $0x3b4] sm:$0xf]
    %v270 = vld [vmem:[%s1 + $0x3b8] sm:$0xf]
    %v271 = vld [vmem:[%s1 + $0x3bc] sm:$0xf]
    %v272 = vld [vmem:[%s1 + $0x3c0] sm:$0xf]
    %v273 = vld [vmem:[%s1 + $0x3c4] sm:$0xf]
    %v274 = vld [vmem:[%s1 + $0x3c8] sm:$0xf]
    %v275 = vld [vmem:[%s1 + $0x3cc] sm:$0xf]
    %v276 = vld [vmem:[%s1 + $0x3d0] sm:$0xf]
    %v277 = vld [vmem:[%s1 + $0x3d4] sm:$0xf]
    %v278 = vld [vmem:[%s1 + $0x3d8] sm:$0xf]
    %v279 = vld [vmem:[%s1 + $0x3dc] sm:$0xf]
    %v280 = vld [vmem:[%s1 + $0x3e0] sm:$0xf]
    %v281 = vld [vmem:[%s1 + $0x3e4] sm:$0xf]
    %v282 = vld [vmem:[%s1 + $0x3e8] sm:$0xf]
    %v283 = vld [vmem:[%s1 + $0x3ec] sm:$0xf]
    %v284 = vld [vmem:[%s1 + $0x3f0] sm:$0xf]
    %v285 = vld [vmem:[%s1 + $0x3f4] sm:$0xf]
    %v286 = vld [vmem:[%s1 + $0x3f8] sm:$0xf]
    %v287 = vld [vmem:[%s1 + $0x3fc] sm:$0xf]
    %v288 = vld [vmem:[%s2] sm:$0x1]
    %v290 = vlaneseq
    %v291 = vshrl.u32 %v290, 7
    %v292 = vsub.s32 0, %v291
    %v293 = vrot.slane %v288, %v292
    %v297 = vcombine.high %v30, %v30
    %v299 = vunpack.c.l.s4 1966171168
    %v300 = vunpack.c.0.s8 %v299
    %v301 = vlaneseq
    %v302 = vshrl.u32 %v301, 7
    %v303 = vsub.s32 %v300, %v302
    %v304 = vrot.slane %v30, %v303
    %v306 = vunpack.c.l.s4 1966171168
    %v307 = vunpack.c.0.s8 %v306
    %v308 = vlaneseq
    %v309 = vshrl.u32 %v308, 7
    %v310 = vsub.s32 %v307, %v309
    %v311 = vrot.slane %v297, %v310
    %v312 = vcombine.high %v304, %v304
    %v313 = vcombine.high %v311, %v311
    %v315 = vunpack.c.l.s4 1966171168
    %v316 = vunpack.c.0.s8 %v315
    %v317 = vlaneseq
    %v318 = vshrl.u32 %v317, 7
    %v319 = vsub.s32 %v316, %v318
    %v320 = vrot.slane %v304, %v319
    %v322 = vunpack.c.l.s4 1966171168
    %v323 = vunpack.c.0.s8 %v322
    %v324 = vlaneseq
    %v325 = vshrl.u32 %v324, 7
    %v326 = vsub.s32 %v323, %v325
    %v327 = vrot.slane %v311, %v326
    %v329 = vunpack.c.l.s4 1966171168
    %v330 = vunpack.c.0.s8 %v329
    %v331 = vlaneseq
    %v332 = vshrl.u32 %v331, 7
    %v333 = vsub.s32 %v330, %v332
    %v334 = vrot.slane %v312, %v333
    %v336 = vunpack.c.l.s4 1966171168
    %v337 = vunpack.c.0.s8 %v336
    %v338 = vlaneseq
    %v339 = vshrl.u32 %v338, 7
    %v340 = vsub.s32 %v337, %v339
    %v341 = vrot.slane %v313, %v340
    %v342 = vcombine.high %v320, %v320
    %v343 = vcombine.high %v327, %v327
    %v344 = vcombine.high %v334, %v334
    %v345 = vcombine.high %v341, %v341
    %v346 = vcombine.high %v31, %v31
    %v348 = vunpack.c.l.s4 1966171168
    %v349 = vunpack.c.0.s8 %v348
    %v350 = vlaneseq
    %v351 = vshrl.u32 %v350, 7
    %v352 = vsub.s32 %v349, %v351
    %v353 = vrot.slane %v31, %v352
    %v355 = vunpack.c.l.s4 1966171168
    %v356 = vunpack.c.0.s8 %v355
    %v357 = vlaneseq
    %v358 = vshrl.u32 %v357, 7
    %v359 = vsub.s32 %v356, %v358
    %v360 = vrot.slane %v346, %v359
    %v361 = vcombine.high %v353, %v353
    %v362 = vcombine.high %v360, %v360
    %v364 = vunpack.c.l.s4 1966171168
    %v365 = vunpack.c.0.s8 %v364
    %v366 = vlaneseq
    %v367 = vshrl.u32 %v366, 7
    %v368 = vsub.s32 %v365, %v367
    %v369 = vrot.slane %v353, %v368
    %v371 = vunpack.c.l.s4 1966171168
    %v372 = vunpack.c.0.s8 %v371
    %v373 = vlaneseq
    %v374 = vshrl.u32 %v373, 7
    %v375 = vsub.s32 %v372, %v374
    %v376 = vrot.slane %v360, %v375
    %v378 = vunpack.c.l.s4 1966171168
    %v379 = vunpack.c.0.s8 %v378
    %v380 = vlaneseq
    %v381 = vshrl.u32 %v380, 7
    %v382 = vsub.s32 %v379, %v381
    %v383 = vrot.slane %v361, %v382
    %v385 = vunpack.c.l.s4 1966171168
    %v386 = vunpack.c.0.s8 %v385
    %v387 = vlaneseq
    %v388 = vshrl.u32 %v387, 7
    %v389 = vsub.s32 %v386, %v388
    %v390 = vrot.slane %v362, %v389
    %v391 = vcombine.high %v369, %v369
    %v392 = vcombine.high %v376, %v376
    %v393 = vcombine.high %v383, %v383
    %v394 = vcombine.high %v390, %v390
    %v667 = vunpack.c.l.b16 %v32
    %v668 = vunpack.c.l.b16 %v33
    %v669 = vunpack.c.l.b16 %v34
    %v670 = vunpack.c.l.b16 %v35
    %v671 = vunpack.c.l.b16 %v36
    %v672 = vunpack.c.l.b16 %v37
    %v673 = vunpack.c.l.b16 %v38
    %v674 = vunpack.c.l.b16 %v39
    %v675 = vunpack.c.l.b16 %v40
    %v676 = vunpack.c.l.b16 %v41
    %v677 = vunpack.c.l.b16 %v42
    %v678 = vunpack.c.l.b16 %v43
    %v679 = vunpack.c.l.b16 %v44
    %v680 = vunpack.c.l.b16 %v45
    %v681 = vunpack.c.l.b16 %v46
    %v682 = vunpack.c.l.b16 %v47
    %v683 = vunpack.c.l.b16 %v48
    %v684 = vunpack.c.l.b16 %v49
    %v685 = vunpack.c.l.b16 %v50
    %v686 = vunpack.c.l.b16 %v51
    %v687 = vunpack.c.l.b16 %v52
    %v688 = vunpack.c.l.b16 %v53
    %v689 = vunpack.c.l.b16 %v54
    %v690 = vunpack.c.l.b16 %v55
    %v691 = vunpack.c.l.b16 %v56
    %v692 = vunpack.c.l.b16 %v57
    %v693 = vunpack.c.l.b16 %v58
    %v694 = vunpack.c.l.b16 %v59
    %v695 = vunpack.c.l.b16 %v60
    %v696 = vunpack.c.l.b16 %v61
    %v697 = vunpack.c.l.b16 %v62
    %v698 = vunpack.c.l.b16 %v63
    %v699 = vunpack.c.l.b16 %v64
    %v700 = vunpack.c.l.b16 %v65
    %v701 = vunpack.c.l.b16 %v66
    %v702 = vunpack.c.l.b16 %v67
    %v703 = vunpack.c.l.b16 %v68
    %v704 = vunpack.c.l.b16 %v69
    %v705 = vunpack.c.l.b16 %v70
    %v706 = vunpack.c.l.b16 %v71
    %v707 = vunpack.c.l.b16 %v72
    %v708 = vunpack.c.l.b16 %v73
    %v709 = vunpack.c.l.b16 %v74
    %v710 = vunpack.c.l.b16 %v75
    %v711 = vunpack.c.l.b16 %v76
    %v712 = vunpack.c.l.b16 %v77
    %v713 = vunpack.c.l.b16 %v78
    %v714 = vunpack.c.l.b16 %v79
    %v715 = vunpack.c.l.b16 %v80
    %v716 = vunpack.c.l.b16 %v81
    %v717 = vunpack.c.l.b16 %v82
    %v718 = vunpack.c.l.b16 %v83
    %v719 = vunpack.c.l.b16 %v84
    %v720 = vunpack.c.l.b16 %v85
    %v721 = vunpack.c.l.b16 %v86
    %v722 = vunpack.c.l.b16 %v87
    %v723 = vunpack.c.l.b16 %v88
    %v724 = vunpack.c.l.b16 %v89
    %v725 = vunpack.c.l.b16 %v90
    %v726 = vunpack.c.l.b16 %v91
    %v727 = vunpack.c.l.b16 %v92
    %v728 = vunpack.c.l.b16 %v93
    %v729 = vunpack.c.l.b16 %v94
    %v730 = vunpack.c.l.b16 %v95
    %v731 = vunpack.c.l.b16 %v96
    %v732 = vunpack.c.l.b16 %v97
    %v733 = vunpack.c.l.b16 %v98
    %v734 = vunpack.c.l.b16 %v99
    %v735 = vunpack.c.l.b16 %v100
    %v736 = vunpack.c.l.b16 %v101
    %v737 = vunpack.c.l.b16 %v102
    %v738 = vunpack.c.l.b16 %v103
    %v739 = vunpack.c.l.b16 %v104
    %v740 = vunpack.c.l.b16 %v105
    %v741 = vunpack.c.l.b16 %v106
    %v742 = vunpack.c.l.b16 %v107
    %v743 = vunpack.c.l.b16 %v108
    %v744 = vunpack.c.l.b16 %v109
    %v745 = vunpack.c.l.b16 %v110
    %v746 = vunpack.c.l.b16 %v111
    %v747 = vunpack.c.l.b16 %v112
    %v748 = vunpack.c.l.b16 %v113
    %v749 = vunpack.c.l.b16 %v114
    %v750 = vunpack.c.l.b16 %v115
    %v751 = vunpack.c.l.b16 %v116
    %v752 = vunpack.c.l.b16 %v117
    %v753 = vunpack.c.l.b16 %v118
    %v754 = vunpack.c.l.b16 %v119
    %v755 = vunpack.c.l.b16 %v120
    %v756 = vunpack.c.l.b16 %v121
    %v757 = vunpack.c.l.b16 %v122
    %v758 = vunpack.c.l.b16 %v123
    %v759 = vunpack.c.l.b16 %v124
    %v760 = vunpack.c.l.b16 %v125
    %v761 = vunpack.c.l.b16 %v126
    %v762 = vunpack.c.l.b16 %v127
    %v763 = vunpack.c.l.b16 %v128
    %v764 = vunpack.c.l.b16 %v129
    %v765 = vunpack.c.l.b16 %v130
    %v766 = vunpack.c.l.b16 %v131
    %v767 = vunpack.c.l.b16 %v132
    %v768 = vunpack.c.l.b16 %v133
    %v769 = vunpack.c.l.b16 %v134
    %v770 = vunpack.c.l.b16 %v135
    %v771 = vunpack.c.l.b16 %v136
    %v772 = vunpack.c.l.b16 %v137
    %v773 = vunpack.c.l.b16 %v138
    %v774 = vunpack.c.l.b16 %v139
    %v775 = vunpack.c.l.b16 %v140
    %v776 = vunpack.c.l.b16 %v141
    %v777 = vunpack.c.l.b16 %v142
    %v778 = vunpack.c.l.b16 %v143
    %v779 = vunpack.c.l.b16 %v144
    %v780 = vunpack.c.l.b16 %v145
    %v781 = vunpack.c.l.b16 %v146
    %v782 = vunpack.c.l.b16 %v147
    %v783 = vunpack.c.l.b16 %v148
    %v784 = vunpack.c.l.b16 %v149
    %v785 = vunpack.c.l.b16 %v150
    %v786 = vunpack.c.l.b16 %v151
    %v787 = vunpack.c.l.b16 %v152
    %v788 = vunpack.c.l.b16 %v153
    %v789 = vunpack.c.l.b16 %v154
    %v790 = vunpack.c.l.b16 %v155
    %v791 = vunpack.c.l.b16 %v156
    %v792 = vunpack.c.l.b16 %v157
    %v793 = vunpack.c.l.b16 %v158
    %v794 = vunpack.c.l.b16 %v159
    %v795 = vunpack.c.l.b16 %v160
    %v796 = vunpack.c.l.b16 %v161
    %v797 = vunpack.c.l.b16 %v162
    %v798 = vunpack.c.l.b16 %v163
    %v799 = vunpack.c.l.b16 %v164
    %v800 = vunpack.c.l.b16 %v165
    %v801 = vunpack.c.l.b16 %v166
    %v802 = vunpack.c.l.b16 %v167
    %v803 = vunpack.c.l.b16 %v168
    %v804 = vunpack.c.l.b16 %v169
    %v805 = vunpack.c.l.b16 %v170
    %v806 = vunpack.c.l.b16 %v171
    %v807 = vunpack.c.l.b16 %v172
    %v808 = vunpack.c.l.b16 %v173
    %v809 = vunpack.c.l.b16 %v174
    %v810 = vunpack.c.l.b16 %v175
    %v811 = vunpack.c.l.b16 %v176
    %v812 = vunpack.c.l.b16 %v177
    %v813 = vunpack.c.l.b16 %v178
    %v814 = vunpack.c.l.b16 %v179
    %v815 = vunpack.c.l.b16 %v180
    %v816 = vunpack.c.l.b16 %v181
    %v817 = vunpack.c.l.b16 %v182
    %v818 = vunpack.c.l.b16 %v183
    %v819 = vunpack.c.l.b16 %v184
    %v820 = vunpack.c.l.b16 %v185
    %v821 = vunpack.c.l.b16 %v186
    %v822 = vunpack.c.l.b16 %v187
    %v823 = vunpack.c.l.b16 %v188
    %v824 = vunpack.c.l.b16 %v189
    %v825 = vunpack.c.l.b16 %v190
    %v826 = vunpack.c.l.b16 %v191
    %v827 = vunpack.c.l.b16 %v192
    %v828 = vunpack.c.l.b16 %v193
    %v829 = vunpack.c.l.b16 %v194
    %v830 = vunpack.c.l.b16 %v195
    %v831 = vunpack.c.l.b16 %v196
    %v832 = vunpack.c.l.b16 %v197
    %v833 = vunpack.c.l.b16 %v198
    %v834 = vunpack.c.l.b16 %v199
    %v835 = vunpack.c.l.b16 %v200
    %v836 = vunpack.c.l.b16 %v201
    %v837 = vunpack.c.l.b16 %v202
    %v838 = vunpack.c.l.b16 %v203
    %v839 = vunpack.c.l.b16 %v204
    %v840 = vunpack.c.l.b16 %v205
    %v841 = vunpack.c.l.b16 %v206
    %v842 = vunpack.c.l.b16 %v207
    %v843 = vunpack.c.l.b16 %v208
    %v844 = vunpack.c.l.b16 %v209
    %v845 = vunpack.c.l.b16 %v210
    %v846 = vunpack.c.l.b16 %v211
    %v847 = vunpack.c.l.b16 %v212
    %v848 = vunpack.c.l.b16 %v213
    %v849 = vunpack.c.l.b16 %v214
    %v850 = vunpack.c.l.b16 %v215
    %v851 = vunpack.c.l.b16 %v216
    %v852 = vunpack.c.l.b16 %v217
    %v853 = vunpack.c.l.b16 %v218
    %v854 = vunpack.c.l.b16 %v219
    %v855 = vunpack.c.l.b16 %v220
    %v856 = vunpack.c.l.b16 %v221
    %v857 = vunpack.c.l.b16 %v222
    %v858 = vunpack.c.l.b16 %v223
    %v859 = vunpack.c.l.b16 %v224
    %v860 = vunpack.c.l.b16 %v225
    %v861 = vunpack.c.l.b16 %v226
    %v862 = vunpack.c.l.b16 %v227
    %v863 = vunpack.c.l.b16 %v228
    %v864 = vunpack.c.l.b16 %v229
    %v865 = vunpack.c.l.b16 %v230
    %v866 = vunpack.c.l.b16 %v231
    %v867 = vunpack.c.l.b16 %v232
    %v868 = vunpack.c.l.b16 %v233
    %v869 = vunpack.c.l.b16 %v234
    %v870 = vunpack.c.l.b16 %v235
    %v871 = vunpack.c.l.b16 %v236
    %v872 = vunpack.c.l.b16 %v237
    %v873 = vunpack.c.l.b16 %v238
    %v874 = vunpack.c.l.b16 %v239
    %v875 = vunpack.c.l.b16 %v240
    %v876 = vunpack.c.l.b16 %v241
    %v877 = vunpack.c.l.b16 %v242
    %v878 = vunpack.c.l.b16 %v243
    %v879 = vunpack.c.l.b16 %v244
    %v880 = vunpack.c.l.b16 %v245
    %v881 = vunpack.c.l.b16 %v246
    %v882 = vunpack.c.l.b16 %v247
    %v883 = vunpack.c.l.b16 %v248
    %v884 = vunpack.c.l.b16 %v249
    %v885 = vunpack.c.l.b16 %v250
    %v886 = vunpack.c.l.b16 %v251
    %v887 = vunpack.c.l.b16 %v252
    %v888 = vunpack.c.l.b16 %v253
    %v889 = vunpack.c.l.b16 %v254
    %v890 = vunpack.c.l.b16 %v255
    %v891 = vunpack.c.l.b16 %v256
    %v892 = vunpack.c.l.b16 %v257
    %v893 = vunpack.c.l.b16 %v258
    %v894 = vunpack.c.l.b16 %v259
    %v895 = vunpack.c.l.b16 %v260
    %v896 = vunpack.c.l.b16 %v261
    %v897 = vunpack.c.l.b16 %v262
    %v898 = vunpack.c.l.b16 %v263
    %v899 = vunpack.c.l.b16 %v264
    %v900 = vunpack.c.l.b16 %v265
    %v901 = vunpack.c.l.b16 %v266
    %v902 = vunpack.c.l.b16 %v267
    %v903 = vunpack.c.l.b16 %v268
    %v904 = vunpack.c.l.b16 %v269
    %v905 = vunpack.c.l.b16 %v270
    %v906 = vunpack.c.l.b16 %v271
    %v907 = vunpack.c.l.b16 %v272
    %v908 = vunpack.c.l.b16 %v273
    %v909 = vunpack.c.l.b16 %v274
    %v910 = vunpack.c.l.b16 %v275
    %v911 = vunpack.c.l.b16 %v276
    %v912 = vunpack.c.l.b16 %v277
    %v913 = vunpack.c.l.b16 %v278
    %v914 = vunpack.c.l.b16 %v279
    %v915 = vunpack.c.l.b16 %v280
    %v916 = vunpack.c.l.b16 %v281
    %v917 = vunpack.c.l.b16 %v282
    %v918 = vunpack.c.l.b16 %v283
    %v919 = vunpack.c.l.b16 %v284
    %v920 = vunpack.c.l.b16 %v285
    %v921 = vunpack.c.l.b16 %v286
    %v922 = vunpack.c.l.b16 %v287
    %v923 = vpack.c.b16 %v668, %v667
    %v924 = vpack.c.b16 %v670, %v669
    %v925 = vpack.c.b16 %v672, %v671
    %v926 = vpack.c.b16 %v674, %v673
    %v927 = vpack.c.b16 %v676, %v675
    %v928 = vpack.c.b16 %v678, %v677
    %v929 = vpack.c.b16 %v680, %v679
    %v930 = vpack.c.b16 %v682, %v681
    %v931 = vpack.c.b16 %v684, %v683
    %v932 = vpack.c.b16 %v686, %v685
    %v933 = vpack.c.b16 %v688, %v687
    %v934 = vpack.c.b16 %v690, %v689
    %v935 = vpack.c.b16 %v692, %v691
    %v936 = vpack.c.b16 %v694, %v693
    %v937 = vpack.c.b16 %v696, %v695
    %v938 = vpack.c.b16 %v698, %v697
    %v939 = vpack.c.b16 %v700, %v699
    %v940 = vpack.c.b16 %v702, %v701
    %v941 = vpack.c.b16 %v704, %v703
    %v942 = vpack.c.b16 %v706, %v705
    %v943 = vpack.c.b16 %v708, %v707
    %v944 = vpack.c.b16 %v710, %v709
    %v945 = vpack.c.b16 %v712, %v711
    %v946 = vpack.c.b16 %v714, %v713
    %v947 = vpack.c.b16 %v716, %v715
    %v948 = vpack.c.b16 %v718, %v717
    %v949 = vpack.c.b16 %v720, %v719
    %v950 = vpack.c.b16 %v722, %v721
    %v951 = vpack.c.b16 %v724, %v723
    %v952 = vpack.c.b16 %v726, %v725
    %v953 = vpack.c.b16 %v728, %v727
    %v954 = vpack.c.b16 %v730, %v729
    %v955 = vpack.c.b16 %v732, %v731
    %v956 = vpack.c.b16 %v734, %v733
    %v957 = vpack.c.b16 %v736, %v735
    %v958 = vpack.c.b16 %v738, %v737
    %v959 = vpack.c.b16 %v740, %v739
    %v960 = vpack.c.b16 %v742, %v741
    %v961 = vpack.c.b16 %v744, %v743
    %v962 = vpack.c.b16 %v746, %v745
    %v963 = vpack.c.b16 %v748, %v747
    %v964 = vpack.c.b16 %v750, %v749
    %v965 = vpack.c.b16 %v752, %v751
    %v966 = vpack.c.b16 %v754, %v753
    %v967 = vpack.c.b16 %v756, %v755
    %v968 = vpack.c.b16 %v758, %v757
    %v969 = vpack.c.b16 %v760, %v759
    %v970 = vpack.c.b16 %v762, %v761
    %v971 = vpack.c.b16 %v764, %v763
    %v972 = vpack.c.b16 %v766, %v765
    %v973 = vpack.c.b16 %v768, %v767
    %v974 = vpack.c.b16 %v770, %v769
    %v975 = vpack.c.b16 %v772, %v771
    %v976 = vpack.c.b16 %v774, %v773
    %v977 = vpack.c.b16 %v776, %v775
    %v978 = vpack.c.b16 %v778, %v777
    %v979 = vpack.c.b16 %v780, %v779
    %v980 = vpack.c.b16 %v782, %v781
    %v981 = vpack.c.b16 %v784, %v783
    %v982 = vpack.c.b16 %v786, %v785
    %v983 = vpack.c.b16 %v788, %v787
    %v984 = vpack.c.b16 %v790, %v789
    %v985 = vpack.c.b16 %v792, %v791
    %v986 = vpack.c.b16 %v794, %v793
    %v987 = vpack.c.b16 %v796, %v795
    %v988 = vpack.c.b16 %v798, %v797
    %v989 = vpack.c.b16 %v800, %v799
    %v990 = vpack.c.b16 %v802, %v801
    %v991 = vpack.c.b16 %v804, %v803
    %v992 = vpack.c.b16 %v806, %v805
    %v993 = vpack.c.b16 %v808, %v807
    %v994 = vpack.c.b16 %v810, %v809
    %v995 = vpack.c.b16 %v812, %v811
    %v996 = vpack.c.b16 %v814, %v813
    %v997 = vpack.c.b16 %v816, %v815
    %v998 = vpack.c.b16 %v818, %v817
    %v999 = vpack.c.b16 %v820, %v819
    %v1000 = vpack.c.b16 %v822, %v821
    %v1001 = vpack.c.b16 %v824, %v823
    %v1002 = vpack.c.b16 %v826, %v825
    %v1003 = vpack.c.b16 %v828, %v827
    %v1004 = vpack.c.b16 %v830, %v829
    %v1005 = vpack.c.b16 %v832, %v831
    %v1006 = vpack.c.b16 %v834, %v833
    %v1007 = vpack.c.b16 %v836, %v835
    %v1008 = vpack.c.b16 %v838, %v837
    %v1009 = vpack.c.b16 %v840, %v839
    %v1010 = vpack.c.b16 %v842, %v841
    %v1011 = vpack.c.b16 %v844, %v843
    %v1012 = vpack.c.b16 %v846, %v845
    %v1013 = vpack.c.b16 %v848, %v847
    %v1014 = vpack.c.b16 %v850, %v849
    %v1015 = vpack.c.b16 %v852, %v851
    %v1016 = vpack.c.b16 %v854, %v853
    %v1017 = vpack.c.b16 %v856, %v855
    %v1018 = vpack.c.b16 %v858, %v857
    %v1019 = vpack.c.b16 %v860, %v859
    %v1020 = vpack.c.b16 %v862, %v861
    %v1021 = vpack.c.b16 %v864, %v863
    %v1022 = vpack.c.b16 %v866, %v865
    %v1023 = vpack.c.b16 %v868, %v867
    %v1024 = vpack.c.b16 %v870, %v869
    %v1025 = vpack.c.b16 %v872, %v871
    %v1026 = vpack.c.b16 %v874, %v873
    %v1027 = vpack.c.b16 %v876, %v875
    %v1028 = vpack.c.b16 %v878, %v877
    %v1029 = vpack.c.b16 %v880, %v879
    %v1030 = vpack.c.b16 %v882, %v881
    %v1031 = vpack.c.b16 %v884, %v883
    %v1032 = vpack.c.b16 %v886, %v885
    %v1033 = vpack.c.b16 %v888, %v887
    %v1034 = vpack.c.b16 %v890, %v889
    %v1035 = vpack.c.b16 %v892, %v891
    %v1036 = vpack.c.b16 %v894, %v893
    %v1037 = vpack.c.b16 %v896, %v895
    %v1038 = vpack.c.b16 %v898, %v897
    %v1039 = vpack.c.b16 %v900, %v899
    %v1040 = vpack.c.b16 %v902, %v901
    %v1041 = vpack.c.b16 %v904, %v903
    %v1042 = vpack.c.b16 %v906, %v905
    %v1043 = vpack.c.b16 %v908, %v907
    %v1044 = vpack.c.b16 %v910, %v909
    %v1045 = vpack.c.b16 %v912, %v911
    %v1046 = vpack.c.b16 %v914, %v913
    %v1047 = vpack.c.b16 %v916, %v915
    %v1048 = vpack.c.b16 %v918, %v917
    %v1049 = vpack.c.b16 %v920, %v919
    %v1050 = vpack.c.b16 %v922, %v921
    %1179 = vmatprep.subr.bf16.mxu0 0
    %1180 = vmatpush1.bf16.msra.mxu0 %v930
    %1181 = vmatprep.subr.bf16.mxu0 0
    %1182 = vmatpush1.bf16.msra.mxu0 %v929
    %1183 = vmatprep.subr.bf16.mxu0 0
    %1184 = vmatpush1.bf16.msra.mxu0 %v928
    %1185 = vmatprep.subr.bf16.mxu0 0
    %1186 = vmatpush1.bf16.msra.mxu0 %v927
    %1187 = vmatprep.subr.bf16.mxu0 0
    %1188 = vmatpush1.bf16.msra.mxu0 %v926
    %1189 = vmatprep.subr.bf16.mxu0 0
    %1190 = vmatpush1.bf16.msra.mxu0 %v925
    %1191 = vmatprep.subr.bf16.mxu0 0
    %1192 = vmatpush1.bf16.msra.mxu0 %v924
    %1193 = vmatprep.subr.bf16.mxu0 0
    %1194 = vmatpush1.bf16.msra.mxu0 %v923
    %1195 = vmatprep.subr.bf16.mxu0 0
    %1196 = vmatpush2.bf16.msra.mxu0 %v938
    %1197 = vmatprep.subr.bf16.mxu0 0
    %1198 = vmatpush2.bf16.msra.mxu0 %v937
    %1199 = vmatprep.subr.bf16.mxu0 0
    %1200 = vmatpush2.bf16.msra.mxu0 %v936
    %1201 = vmatprep.subr.bf16.mxu0 0
    %1202 = vmatpush2.bf16.msra.mxu0 %v935
    %1203 = vmatprep.subr.bf16.mxu0 0
    %1204 = vmatpush2.bf16.msra.mxu0 %v934
    %1205 = vmatprep.subr.bf16.mxu0 0
    %1206 = vmatpush2.bf16.msra.mxu0 %v933
    %1207 = vmatprep.subr.bf16.mxu0 0
    %1208 = vmatpush2.bf16.msra.mxu0 %v932
    %1209 = vmatprep.subr.bf16.mxu0 0
    %1210 = vmatpush2.bf16.msra.mxu0 %v931
    %1211 = vmatprep.mubr.bf16.mxu0 %v334
    %1212 = vmatmul.mubr.bf16.gmra.mxu0 %v320
    %v1213 = vpop.f32.mrf.mxu0
    %v1214 = vadd.f32 %v293, %v1213
    %v1215 = vpop.f32.mrf.mxu0
    %v1216 = vpop.f32.mrf.mxu0
    %v1217 = vpop.f32.mrf.mxu0
    %1218 = vdwg.mxu0
    %1219 = vmatprep.subr.bf16.mxu0 0
    %1220 = vmatpush1.bf16.msra.mxu0 %v946
    %1221 = vmatprep.subr.bf16.mxu0 0
    %1222 = vmatpush1.bf16.msra.mxu0 %v945
    %1223 = vmatprep.subr.bf16.mxu0 0
    %1224 = vmatpush1.bf16.msra.mxu0 %v944
    %1225 = vmatprep.subr.bf16.mxu0 0
    %1226 = vmatpush1.bf16.msra.mxu0 %v943
    %1227 = vmatprep.subr.bf16.mxu0 0
    %1228 = vmatpush1.bf16.msra.mxu0 %v942
    %1229 = vmatprep.subr.bf16.mxu0 0
    %1230 = vmatpush1.bf16.msra.mxu0 %v941
    %1231 = vmatprep.subr.bf16.mxu0 0
    %1232 = vmatpush1.bf16.msra.mxu0 %v940
    %1233 = vmatprep.subr.bf16.mxu0 0
    %1234 = vmatpush1.bf16.msra.mxu0 %v939
    %1235 = vmatprep.subr.bf16.mxu0 0
    %1236 = vmatpush2.bf16.msra.mxu0 %v954
    %1237 = vmatprep.subr.bf16.mxu0 0
    %1238 = vmatpush2.bf16.msra.mxu0 %v953
    %1239 = vmatprep.subr.bf16.mxu0 0
    %1240 = vmatpush2.bf16.msra.mxu0 %v952
    %1241 = vmatprep.subr.bf16.mxu0 0
    %1242 = vmatpush2.bf16.msra.mxu0 %v951
    %1243 = vmatprep.subr.bf16.mxu0 0
    %1244 = vmatpush2.bf16.msra.mxu0 %v950
    %1245 = vmatprep.subr.bf16.mxu0 0
    %1246 = vmatpush2.bf16.msra.mxu0 %v949
    %1247 = vmatprep.subr.bf16.mxu0 0
    %1248 = vmatpush2.bf16.msra.mxu0 %v948
    %1249 = vmatprep.subr.bf16.mxu0 0
    %1250 = vmatpush2.bf16.msra.mxu0 %v947
    %1251 = vmatprep.mubr.bf16.mxu0 %v344
    %1252 = vmatmul.mubr.bf16.gmra.mxu0 %v342
    %v1253 = vpop.f32.mrf.mxu0
    %v1254 = vadd.f32 %v1214, %v1253
    %v1255 = vpop.f32.mrf.mxu0
    %v1256 = vpop.f32.mrf.mxu0
    %v1257 = vpop.f32.mrf.mxu0
    %1258 = vdwg.mxu0
    %1259 = vmatprep.subr.bf16.mxu0 0
    %1260 = vmatpush1.bf16.msra.mxu0 %v962
    %1261 = vmatprep.subr.bf16.mxu0 0
    %1262 = vmatpush1.bf16.msra.mxu0 %v961
    %1263 = vmatprep.subr.bf16.mxu0 0
    %1264 = vmatpush1.bf16.msra.mxu0 %v960
    %1265 = vmatprep.subr.bf16.mxu0 0
    %1266 = vmatpush1.bf16.msra.mxu0 %v959
    %1267 = vmatprep.subr.bf16.mxu0 0
    %1268 = vmatpush1.bf16.msra.mxu0 %v958
    %1269 = vmatprep.subr.bf16.mxu0 0
    %1270 = vmatpush1.bf16.msra.mxu0 %v957
    %1271 = vmatprep.subr.bf16.mxu0 0
    %1272 = vmatpush1.bf16.msra.mxu0 %v956
    %1273 = vmatprep.subr.bf16.mxu0 0
    %1274 = vmatpush1.bf16.msra.mxu0 %v955
    %1275 = vmatprep.subr.bf16.mxu0 0
    %1276 = vmatpush2.bf16.msra.mxu0 %v970
    %1277 = vmatprep.subr.bf16.mxu0 0
    %1278 = vmatpush2.bf16.msra.mxu0 %v969
    %1279 = vmatprep.subr.bf16.mxu0 0
    %1280 = vmatpush2.bf16.msra.mxu0 %v968
    %1281 = vmatprep.subr.bf16.mxu0 0
    %1282 = vmatpush2.bf16.msra.mxu0 %v967
    %1283 = vmatprep.subr.bf16.mxu0 0
    %1284 = vmatpush2.bf16.msra.mxu0 %v966
    %1285 = vmatprep.subr.bf16.mxu0 0
    %1286 = vmatpush2.bf16.msra.mxu0 %v965
    %1287 = vmatprep.subr.bf16.mxu0 0
    %1288 = vmatpush2.bf16.msra.mxu0 %v964
    %1289 = vmatprep.subr.bf16.mxu0 0
    %1290 = vmatpush2.bf16.msra.mxu0 %v963
    %1291 = vmatprep.mubr.bf16.mxu0 %v341
    %1292 = vmatmul.mubr.bf16.gmra.mxu0 %v327
    %v1293 = vpop.f32.mrf.mxu0
    %v1294 = vadd.f32 %v1254, %v1293
    %v1295 = vpop.f32.mrf.mxu0
    %v1296 = vpop.f32.mrf.mxu0
    %v1297 = vpop.f32.mrf.mxu0
    %1298 = vdwg.mxu0
    %1299 = vmatprep.subr.bf16.mxu0 0
    %1300 = vmatpush1.bf16.msra.mxu0 %v978
    %1301 = vmatprep.subr.bf16.mxu0 0
    %1302 = vmatpush1.bf16.msra.mxu0 %v977
    %1303 = vmatprep.subr.bf16.mxu0 0
    %1304 = vmatpush1.bf16.msra.mxu0 %v976
    %1305 = vmatprep.subr.bf16.mxu0 0
    %1306 = vmatpush1.bf16.msra.mxu0 %v975
    %1307 = vmatprep.subr.bf16.mxu0 0
    %1308 = vmatpush1.bf16.msra.mxu0 %v974
    %1309 = vmatprep.subr.bf16.mxu0 0
    %1310 = vmatpush1.bf16.msra.mxu0 %v973
    %1311 = vmatprep.subr.bf16.mxu0 0
    %1312 = vmatpush1.bf16.msra.mxu0 %v972
    %1313 = vmatprep.subr.bf16.mxu0 0
    %1314 = vmatpush1.bf16.msra.mxu0 %v971
    %1315 = vmatprep.subr.bf16.mxu0 0
    %1316 = vmatpush2.bf16.msra.mxu0 %v986
    %1317 = vmatprep.subr.bf16.mxu0 0
    %1318 = vmatpush2.bf16.msra.mxu0 %v985
    %1319 = vmatprep.subr.bf16.mxu0 0
    %1320 = vmatpush2.bf16.msra.mxu0 %v984
    %1321 = vmatprep.subr.bf16.mxu0 0
    %1322 = vmatpush2.bf16.msra.mxu0 %v983
    %1323 = vmatprep.subr.bf16.mxu0 0
    %1324 = vmatpush2.bf16.msra.mxu0 %v982
    %1325 = vmatprep.subr.bf16.mxu0 0
    %1326 = vmatpush2.bf16.msra.mxu0 %v981
    %1327 = vmatprep.subr.bf16.mxu0 0
    %1328 = vmatpush2.bf16.msra.mxu0 %v980
    %1329 = vmatprep.subr.bf16.mxu0 0
    %1330 = vmatpush2.bf16.msra.mxu0 %v979
    %1331 = vmatprep.mubr.bf16.mxu0 %v345
    %1332 = vmatmul.mubr.bf16.gmra.mxu0 %v343
    %v1333 = vpop.f32.mrf.mxu0
    %v1334 = vadd.f32 %v1294, %v1333
    %v1335 = vpop.f32.mrf.mxu0
    %v1336 = vpop.f32.mrf.mxu0
    %v1337 = vpop.f32.mrf.mxu0
    %1338 = vdwg.mxu0
    %1339 = vmatprep.subr.bf16.mxu0 0
    %1340 = vmatpush1.bf16.msra.mxu0 %v994
    %1341 = vmatprep.subr.bf16.mxu0 0
    %1342 = vmatpush1.bf16.msra.mxu0 %v993
    %1343 = vmatprep.subr.bf16.mxu0 0
    %1344 = vmatpush1.bf16.msra.mxu0 %v992
    %1345 = vmatprep.subr.bf16.mxu0 0
    %1346 = vmatpush1.bf16.msra.mxu0 %v991
    %1347 = vmatprep.subr.bf16.mxu0 0
    %1348 = vmatpush1.bf16.msra.mxu0 %v990
    %1349 = vmatprep.subr.bf16.mxu0 0
    %1350 = vmatpush1.bf16.msra.mxu0 %v989
    %1351 = vmatprep.subr.bf16.mxu0 0
    %1352 = vmatpush1.bf16.msra.mxu0 %v988
    %1353 = vmatprep.subr.bf16.mxu0 0
    %1354 = vmatpush1.bf16.msra.mxu0 %v987
    %1355 = vmatprep.subr.bf16.mxu0 0
    %1356 = vmatpush2.bf16.msra.mxu0 %v1002
    %1357 = vmatprep.subr.bf16.mxu0 0
    %1358 = vmatpush2.bf16.msra.mxu0 %v1001
    %1359 = vmatprep.subr.bf16.mxu0 0
    %1360 = vmatpush2.bf16.msra.mxu0 %v1000
    %1361 = vmatprep.subr.bf16.mxu0 0
    %1362 = vmatpush2.bf16.msra.mxu0 %v999
    %1363 = vmatprep.subr.bf16.mxu0 0
    %1364 = vmatpush2.bf16.msra.mxu0 %v998
    %1365 = vmatprep.subr.bf16.mxu0 0
    %1366 = vmatpush2.bf16.msra.mxu0 %v997
    %1367 = vmatprep.subr.bf16.mxu0 0
    %1368 = vmatpush2.bf16.msra.mxu0 %v996
    %1369 = vmatprep.subr.bf16.mxu0 0
    %1370 = vmatpush2.bf16.msra.mxu0 %v995
    %1371 = vmatprep.mubr.bf16.mxu0 %v383
    %1372 = vmatmul.mubr.bf16.gmra.mxu0 %v369
    %v1373 = vpop.f32.mrf.mxu0
    %v1374 = vadd.f32 %v1334, %v1373
    %v1375 = vpop.f32.mrf.mxu0
    %v1376 = vpop.f32.mrf.mxu0
    %v1377 = vpop.f32.mrf.mxu0
    %1378 = vdwg.mxu0
    %1379 = vmatprep.subr.bf16.mxu0 0
    %1380 = vmatpush1.bf16.msra.mxu0 %v1010
    %1381 = vmatprep.subr.bf16.mxu0 0
    %1382 = vmatpush1.bf16.msra.mxu0 %v1009
    %1383 = vmatprep.subr.bf16.mxu0 0
    %1384 = vmatpush1.bf16.msra.mxu0 %v1008
    %1385 = vmatprep.subr.bf16.mxu0 0
    %1386 = vmatpush1.bf16.msra.mxu0 %v1007
    %1387 = vmatprep.subr.bf16.mxu0 0
    %1388 = vmatpush1.bf16.msra.mxu0 %v1006
    %1389 = vmatprep.subr.bf16.mxu0 0
    %1390 = vmatpush1.bf16.msra.mxu0 %v1005
    %1391 = vmatprep.subr.bf16.mxu0 0
    %1392 = vmatpush1.bf16.msra.mxu0 %v1004
    %1393 = vmatprep.subr.bf16.mxu0 0
    %1394 = vmatpush1.bf16.msra.mxu0 %v1003
    %1395 = vmatprep.subr.bf16.mxu0 0
    %1396 = vmatpush2.bf16.msra.mxu0 %v1018
    %1397 = vmatprep.subr.bf16.mxu0 0
    %1398 = vmatpush2.bf16.msra.mxu0 %v1017
    %1399 = vmatprep.subr.bf16.mxu0 0
    %1400 = vmatpush2.bf16.msra.mxu0 %v1016
    %1401 = vmatprep.subr.bf16.mxu0 0
    %1402 = vmatpush2.bf16.msra.mxu0 %v1015
    %1403 = vmatprep.subr.bf16.mxu0 0
    %1404 = vmatpush2.bf16.msra.mxu0 %v1014
    %1405 = vmatprep.subr.bf16.mxu0 0
    %1406 = vmatpush2.bf16.msra.mxu0 %v1013
    %1407 = vmatprep.subr.bf16.mxu0 0
    %1408 = vmatpush2.bf16.msra.mxu0 %v1012
    %1409 = vmatprep.subr.bf16.mxu0 0
    %1410 = vmatpush2.bf16.msra.mxu0 %v1011
    %1411 = vmatprep.mubr.bf16.mxu0 %v393
    %1412 = vmatmul.mubr.bf16.gmra.mxu0 %v391
    %v1413 = vpop.f32.mrf.mxu0
    %v1414 = vadd.f32 %v1374, %v1413
    %v1415 = vpop.f32.mrf.mxu0
    %v1416 = vpop.f32.mrf.mxu0
    %v1417 = vpop.f32.mrf.mxu0
    %1418 = vdwg.mxu0
    %1419 = vmatprep.subr.bf16.mxu0 0
    %1420 = vmatpush1.bf16.msra.mxu0 %v1026
    %1421 = vmatprep.subr.bf16.mxu0 0
    %1422 = vmatpush1.bf16.msra.mxu0 %v1025
    %1423 = vmatprep.subr.bf16.mxu0 0
    %1424 = vmatpush1.bf16.msra.mxu0 %v1024
    %1425 = vmatprep.subr.bf16.mxu0 0
    %1426 = vmatpush1.bf16.msra.mxu0 %v1023
    %1427 = vmatprep.subr.bf16.mxu0 0
    %1428 = vmatpush1.bf16.msra.mxu0 %v1022
    %1429 = vmatprep.subr.bf16.mxu0 0
    %1430 = vmatpush1.bf16.msra.mxu0 %v1021
    %1431 = vmatprep.subr.bf16.mxu0 0
    %1432 = vmatpush1.bf16.msra.mxu0 %v1020
    %1433 = vmatprep.subr.bf16.mxu0 0
    %1434 = vmatpush1.bf16.msra.mxu0 %v1019
    %1435 = vmatprep.subr.bf16.mxu0 0
    %1436 = vmatpush2.bf16.msra.mxu0 %v1034
    %1437 = vmatprep.subr.bf16.mxu0 0
    %1438 = vmatpush2.bf16.msra.mxu0 %v1033
    %1439 = vmatprep.subr.bf16.mxu0 0
    %1440 = vmatpush2.bf16.msra.mxu0 %v1032
    %1441 = vmatprep.subr.bf16.mxu0 0
    %1442 = vmatpush2.bf16.msra.mxu0 %v1031
    %1443 = vmatprep.subr.bf16.mxu0 0
    %1444 = vmatpush2.bf16.msra.mxu0 %v1030
    %1445 = vmatprep.subr.bf16.mxu0 0
    %1446 = vmatpush2.bf16.msra.mxu0 %v1029
    %1447 = vmatprep.subr.bf16.mxu0 0
    %1448 = vmatpush2.bf16.msra.mxu0 %v1028
    %1449 = vmatprep.subr.bf16.mxu0 0
    %1450 = vmatpush2.bf16.msra.mxu0 %v1027
    %1451 = vmatprep.mubr.bf16.mxu0 %v390
    %1452 = vmatmul.mubr.bf16.gmra.mxu0 %v376
    %v1453 = vpop.f32.mrf.mxu0
    %v1454 = vadd.f32 %v1414, %v1453
    %v1455 = vpop.f32.mrf.mxu0
    %v1456 = vpop.f32.mrf.mxu0
    %v1457 = vpop.f32.mrf.mxu0
    %1458 = vdwg.mxu0
    %1459 = vmatprep.subr.bf16.mxu0 0
    %1460 = vmatpush1.bf16.msra.mxu0 %v1042
    %1461 = vmatprep.subr.bf16.mxu0 0
    %1462 = vmatpush1.bf16.msra.mxu0 %v1041
    %1463 = vmatprep.subr.bf16.mxu0 0
    %1464 = vmatpush1.bf16.msra.mxu0 %v1040
    %1465 = vmatprep.subr.bf16.mxu0 0
    %1466 = vmatpush1.bf16.msra.mxu0 %v1039
    %1467 = vmatprep.subr.bf16.mxu0 0
    %1468 = vmatpush1.bf16.msra.mxu0 %v1038
    %1469 = vmatprep.subr.bf16.mxu0 0
    %1470 = vmatpush1.bf16.msra.mxu0 %v1037
    %1471 = vmatprep.subr.bf16.mxu0 0
    %1472 = vmatpush1.bf16.msra.mxu0 %v1036
    %1473 = vmatprep.subr.bf16.mxu0 0
    %1474 = vmatpush1.bf16.msra.mxu0 %v1035
    %1475 = vmatprep.subr.bf16.mxu0 0
    %1476 = vmatpush2.bf16.msra.mxu0 %v1050
    %1477 = vmatprep.subr.bf16.mxu0 0
    %1478 = vmatpush2.bf16.msra.mxu0 %v1049
    %1479 = vmatprep.subr.bf16.mxu0 0
    %1480 = vmatpush2.bf16.msra.mxu0 %v1048
    %1481 = vmatprep.subr.bf16.mxu0 0
    %1482 = vmatpush2.bf16.msra.mxu0 %v1047
    %1483 = vmatprep.subr.bf16.mxu0 0
    %1484 = vmatpush2.bf16.msra.mxu0 %v1046
    %1485 = vmatprep.subr.bf16.mxu0 0
    %1486 = vmatpush2.bf16.msra.mxu0 %v1045
    %1487 = vmatprep.subr.bf16.mxu0 0
    %1488 = vmatpush2.bf16.msra.mxu0 %v1044
    %1489 = vmatprep.subr.bf16.mxu0 0
    %1490 = vmatpush2.bf16.msra.mxu0 %v1043
    %1491 = vmatprep.mubr.bf16.mxu0 %v394
    %1492 = vmatmul.mubr.bf16.gmra.mxu0 %v392
    %v1493 = vpop.f32.mrf.mxu0
    %v1494 = vadd.f32 %v1454, %v1493
    %v1495 = vpop.f32.mrf.mxu0
    %v1496 = vpop.f32.mrf.mxu0
    %v1497 = vpop.f32.mrf.mxu0
    %1498 = vdwg.mxu0
    %v1499 = vmul.f32 %v1494, 1.442695
    %v1500 = vpow.pop %v1499
    %v1501 = vld [vmem:[%s3] sm:$0x3]
    %1503 = vrot.lane.b32.xlu0 %v1501, 8
    %v1504 = vpop.permute.xlu0 %1503
    %v1506 = vmul.f32 %v1500, %v1504
    %1508 = vrot.lane.b32.xlu0 %v1506, 120
    %v1509 = vpop.permute.xlu0 %1508
    %v1511 = vadd.f32 %v1494, %v1509
    %vm1512 = vcmask 58368
    %1513 = vst.msk [vmem:[#allocation2] sm:$0x3] %vm1512, %v1494
    %1515 = vrot.lane.b32.xlu0 %v1494, 120
    %v1516 = vpop.permute.xlu0 %1515
    %1518 = vst.msk [vmem:[#allocation4] sm:$0x3] %vm1512, %v1516
    %1519 = vst.msk [vmem:[#allocation6] sm:$0x3] %vm1512, %v1511
    %v1520 = vpack.c.bf16 %v1511, %v1511
    %v1521 = vld [vmem:[%s4] sm:$0xff]
    %v1522 = vld [vmem:[%s4 + $0x8] sm:$0xff]
    %v1523 = vld [vmem:[%s4 + $0x10] sm:$0xff]
    %v1524 = vld [vmem:[%s4 + $0x18] sm:$0xff]
    %v1525 = vld [vmem:[%s4 + $0x20] sm:$0xff]
    %v1526 = vld [vmem:[%s4 + $0x28] sm:$0xff]
    %v1527 = vld [vmem:[%s4 + $0x30] sm:$0xff]
    %v1528 = vld [vmem:[%s4 + $0x38] sm:$0xff]
    %v1529 = vld [vmem:[%s5] sm:$0xff]
    %v1530 = vld [vmem:[%s5 + $0x8] sm:$0xff]
    %v1533 = vlaneseq
    %v1534 = vshrl.u32 %v1533, 7
    %v1535 = vsub.s32 0, %v1534
    %v1536 = vrot.slane %v1529, %v1535
    %v1537 = vlaneseq
    %v1538 = vshrl.u32 %v1537, 7
    %v1539 = vsub.s32 1, %v1538
    %v1540 = vrot.slane %v1529, %v1539
    %v1541 = vlaneseq
    %v1542 = vshrl.u32 %v1541, 7
    %v1543 = vsub.s32 2, %v1542
    %v1544 = vrot.slane %v1529, %v1543
    %v1545 = vlaneseq
    %v1546 = vshrl.u32 %v1545, 7
    %v1547 = vsub.s32 3, %v1546
    %v1548 = vrot.slane %v1529, %v1547
    %v1549 = vlaneseq
    %v1550 = vshrl.u32 %v1549, 7
    %v1551 = vsub.s32 4, %v1550
    %v1552 = vrot.slane %v1529, %v1551
    %v1553 = vlaneseq
    %v1554 = vshrl.u32 %v1553, 7
    %v1555 = vsub.s32 5, %v1554
    %v1556 = vrot.slane %v1529, %v1555
    %v1557 = vlaneseq
    %v1558 = vshrl.u32 %v1557, 7
    %v1559 = vsub.s32 6, %v1558
    %v1560 = vrot.slane %v1529, %v1559
    %v1561 = vlaneseq
    %v1562 = vshrl.u32 %v1561, 7
    %v1563 = vsub.s32 7, %v1562
    %v1564 = vrot.slane %v1529, %v1563
    %v1565 = vlaneseq
    %v1566 = vshrl.u32 %v1565, 7
    %v1567 = vsub.s32 0, %v1566
    %v1568 = vrot.slane %v1530, %v1567
    %v1569 = vlaneseq
    %v1570 = vshrl.u32 %v1569, 7
    %v1571 = vsub.s32 1, %v1570
    %v1572 = vrot.slane %v1530, %v1571
    %v1573 = vlaneseq
    %v1574 = vshrl.u32 %v1573, 7
    %v1575 = vsub.s32 2, %v1574
    %v1576 = vrot.slane %v1530, %v1575
    %v1577 = vlaneseq
    %v1578 = vshrl.u32 %v1577, 7
    %v1579 = vsub.s32 3, %v1578
    %v1580 = vrot.slane %v1530, %v1579
    %v1581 = vlaneseq
    %v1582 = vshrl.u32 %v1581, 7
    %v1583 = vsub.s32 4, %v1582
    %v1584 = vrot.slane %v1530, %v1583
    %v1585 = vlaneseq
    %v1586 = vshrl.u32 %v1585, 7
    %v1587 = vsub.s32 5, %v1586
    %v1588 = vrot.slane %v1530, %v1587
    %v1589 = vlaneseq
    %v1590 = vshrl.u32 %v1589, 7
    %v1591 = vsub.s32 6, %v1590
    %v1592 = vrot.slane %v1530, %v1591
    %v1593 = vlaneseq
    %v1594 = vshrl.u32 %v1593, 7
    %v1595 = vsub.s32 7, %v1594
    %v1596 = vrot.slane %v1530, %v1595
    %v1621 = vunpack.c.l.b16 %v1521
    %v1622 = vunpack.c.h.b16 %v1521
    %v1623 = vunpack.c.l.b16 %v1522
    %v1624 = vunpack.c.h.b16 %v1522
    %v1625 = vunpack.c.l.b16 %v1523
    %v1626 = vunpack.c.h.b16 %v1523
    %v1627 = vunpack.c.l.b16 %v1524
    %v1628 = vunpack.c.h.b16 %v1524
    %v1629 = vunpack.c.l.b16 %v1525
    %v1630 = vunpack.c.h.b16 %v1525
    %v1631 = vunpack.c.l.b16 %v1526
    %v1632 = vunpack.c.h.b16 %v1526
    %v1633 = vunpack.c.l.b16 %v1527
    %v1634 = vunpack.c.h.b16 %v1527
    %v1635 = vunpack.c.l.b16 %v1528
    %v1636 = vunpack.c.h.b16 %v1528
    %v1637 = vpack.c.b16 %v1621, %v1621
    %v1638 = vpack.c.b16 %v1622, %v1622
    %v1639 = vpack.c.b16 %v1623, %v1623
    %v1640 = vpack.c.b16 %v1624, %v1624
    %v1641 = vpack.c.b16 %v1625, %v1625
    %v1642 = vpack.c.b16 %v1626, %v1626
    %v1643 = vpack.c.b16 %v1627, %v1627
    %v1644 = vpack.c.b16 %v1628, %v1628
    %v1645 = vpack.c.b16 %v1629, %v1629
    %v1646 = vpack.c.b16 %v1630, %v1630
    %v1647 = vpack.c.b16 %v1631, %v1631
    %v1648 = vpack.c.b16 %v1632, %v1632
    %v1649 = vpack.c.b16 %v1633, %v1633
    %v1650 = vpack.c.b16 %v1634, %v1634
    %v1651 = vpack.c.b16 %v1635, %v1635
    %v1652 = vpack.c.b16 %v1636, %v1636
    %vm1653 = vcmask 64512
    %v1655 = vsel %vm1653, %v1520, 0
    %vm1657 = vcmask 1043456
    %v1659 = vsel %vm1657, %v1637, 0
    %v1662 = vsel %vm1657, %v1638, 0
    %v1665 = vsel %vm1657, %v1639, 0
    %v1668 = vsel %vm1657, %v1640, 0
    %v1671 = vsel %vm1657, %v1641, 0
    %v1674 = vsel %vm1657, %v1642, 0
    %v1677 = vsel %vm1657, %v1643, 0
    %v1680 = vsel %vm1657, %v1644, 0
    %v1683 = vsel %vm1657, %v1645, 0
    %v1686 = vsel %vm1657, %v1646, 0
    %v1689 = vsel %vm1657, %v1647, 0
    %v1692 = vsel %vm1657, %v1648, 0
    %v1695 = vsel %vm1657, %v1649, 0
    %v1698 = vsel %vm1657, %v1650, 0
    %v1701 = vsel %vm1657, %v1651, 0
    %v1704 = vsel %vm1657, %v1652, 0
    %1706 = vmatprep.subr.bf16.mxu0 0
    %1707 = vmatpush1.bf16.msra.mxu0 0
    %1708 = vmatprep.subr.bf16.mxu0 0
    %1709 = vmatpush1.bf16.msra.mxu0 0
    %1710 = vmatprep.subr.bf16.mxu0 0
    %1711 = vmatpush1.bf16.msra.mxu0 0
    %1712 = vmatprep.subr.bf16.mxu0 0
    %1713 = vmatpush1.bf16.msra.mxu0 0
    %1714 = vmatprep.subr.bf16.mxu0 0
    %1715 = vmatpush1.bf16.msra.mxu0 0
    %1716 = vmatprep.subr.bf16.mxu0 0
    %1717 = vmatpush1.bf16.msra.mxu0 0
    %1718 = vmatprep.subr.bf16.mxu0 0
    %1719 = vmatpush1.bf16.msra.mxu0 0
    %1720 = vmatprep.subr.bf16.mxu0 %v1662
    %1721 = vmatpush1.bf16.msra.mxu0 %v1659
    %1722 = vmatprep.subr.bf16.mxu0 0
    %1723 = vmatpush2.bf16.msra.mxu0 0
    %1724 = vmatprep.subr.bf16.mxu0 0
    %1725 = vmatpush2.bf16.msra.mxu0 0
    %1726 = vmatprep.subr.bf16.mxu0 0
    %1727 = vmatpush2.bf16.msra.mxu0 0
    %1728 = vmatprep.subr.bf16.mxu0 0
    %1729 = vmatpush2.bf16.msra.mxu0 0
    %1730 = vmatprep.subr.bf16.mxu0 0
    %1731 = vmatpush2.bf16.msra.mxu0 0
    %1732 = vmatprep.subr.bf16.mxu0 0
    %1733 = vmatpush2.bf16.msra.mxu0 0
    %1734 = vmatprep.subr.bf16.mxu0 0
    %1735 = vmatpush2.bf16.msra.mxu0 0
    %1736 = vmatprep.subr.bf16.mxu0 0
    %1737 = vmatpush2.bf16.msra.mxu0 0
    %1738 = vmatprep.mubr.bf16.mxu0 0
    %1739 = vmatmul.mubr.bf16.gmra.mxu0 %v1655
    %v1740 = vpop.f32.mrf.mxu0
    %v1741 = vadd.f32 %v1536, %v1740
    %v1742 = vpop.f32.mrf.mxu0
    %v1743 = vadd.f32 %v1540, %v1742
    %v1744 = vpop.f32.mrf.mxu0
    %v1745 = vpop.f32.mrf.mxu0
    %1746 = vdwg.mxu0
    %1747 = vmatprep.subr.bf16.mxu0 0
    %1748 = vmatpush1.bf16.msra.mxu0 0
    %1749 = vmatprep.subr.bf16.mxu0 0
    %1750 = vmatpush1.bf16.msra.mxu0 0
    %1751 = vmatprep.subr.bf16.mxu0 0
    %1752 = vmatpush1.bf16.msra.mxu0 0
    %1753 = vmatprep.subr.bf16.mxu0 0
    %1754 = vmatpush1.bf16.msra.mxu0 0
    %1755 = vmatprep.subr.bf16.mxu0 0
    %1756 = vmatpush1.bf16.msra.mxu0 0
    %1757 = vmatprep.subr.bf16.mxu0 0
    %1758 = vmatpush1.bf16.msra.mxu0 0
    %1759 = vmatprep.subr.bf16.mxu0 0
    %1760 = vmatpush1.bf16.msra.mxu0 0
    %1761 = vmatprep.subr.bf16.mxu0 %v1668
    %1762 = vmatpush1.bf16.msra.mxu0 %v1665
    %1763 = vmatprep.subr.bf16.mxu0 0
    %1764 = vmatpush2.bf16.msra.mxu0 0
    %1765 = vmatprep.subr.bf16.mxu0 0
    %1766 = vmatpush2.bf16.msra.mxu0 0
    %1767 = vmatprep.subr.bf16.mxu0 0
    %1768 = vmatpush2.bf16.msra.mxu0 0
    %1769 = vmatprep.subr.bf16.mxu0 0
    %1770 = vmatpush2.bf16.msra.mxu0 0
    %1771 = vmatprep.subr.bf16.mxu0 0
    %1772 = vmatpush2.bf16.msra.mxu0 0
    %1773 = vmatprep.subr.bf16.mxu0 0
    %1774 = vmatpush2.bf16.msra.mxu0 0
    %1775 = vmatprep.subr.bf16.mxu0 0
    %1776 = vmatpush2.bf16.msra.mxu0 0
    %1777 = vmatprep.subr.bf16.mxu0 0
    %1778 = vmatpush2.bf16.msra.mxu0 0
    %1779 = vmatprep.mubr.bf16.mxu0 0
    %1780 = vmatmul.mubr.bf16.gmra.mxu0 %v1655
    %v1781 = vpop.f32.mrf.mxu0
    %v1782 = vadd.f32 %v1544, %v1781
    %v1783 = vpop.f32.mrf.mxu0
    %v1784 = vadd.f32 %v1548, %v1783
    %v1785 = vpop.f32.mrf.mxu0
    %v1786 = vpop.f32.mrf.mxu0
    %1787 = vdwg.mxu0
    %1788 = vmatprep.subr.bf16.mxu0 0
    %1789 = vmatpush1.bf16.msra.mxu0 0
    %1790 = vmatprep.subr.bf16.mxu0 0
    %1791 = vmatpush1.bf16.msra.mxu0 0
    %1792 = vmatprep.subr.bf16.mxu0 0
    %1793 = vmatpush1.bf16.msra.mxu0 0
    %1794 = vmatprep.subr.bf16.mxu0 0
    %1795 = vmatpush1.bf16.msra.mxu0 0
    %1796 = vmatprep.subr.bf16.mxu0 0
    %1797 = vmatpush1.bf16.msra.mxu0 0
    %1798 = vmatprep.subr.bf16.mxu0 0
    %1799 = vmatpush1.bf16.msra.mxu0 0
    %1800 = vmatprep.subr.bf16.mxu0 0
    %1801 = vmatpush1.bf16.msra.mxu0 0
    %1802 = vmatprep.subr.bf16.mxu0 %v1674
    %1803 = vmatpush1.bf16.msra.mxu0 %v1671
    %1804 = vmatprep.subr.bf16.mxu0 0
    %1805 = vmatpush2.bf16.msra.mxu0 0
    %1806 = vmatprep.subr.bf16.mxu0 0
    %1807 = vmatpush2.bf16.msra.mxu0 0
    %1808 = vmatprep.subr.bf16.mxu0 0
    %1809 = vmatpush2.bf16.msra.mxu0 0
    %1810 = vmatprep.subr.bf16.mxu0 0
    %1811 = vmatpush2.bf16.msra.mxu0 0
    %1812 = vmatprep.subr.bf16.mxu0 0
    %1813 = vmatpush2.bf16.msra.mxu0 0
    %1814 = vmatprep.subr.bf16.mxu0 0
    %1815 = vmatpush2.bf16.msra.mxu0 0
    %1816 = vmatprep.subr.bf16.mxu0 0
    %1817 = vmatpush2.bf16.msra.mxu0 0
    %1818 = vmatprep.subr.bf16.mxu0 0
    %1819 = vmatpush2.bf16.msra.mxu0 0
    %1820 = vmatprep.mubr.bf16.mxu0 0
    %1821 = vmatmul.mubr.bf16.gmra.mxu0 %v1655
    %v1822 = vpop.f32.mrf.mxu0
    %v1823 = vadd.f32 %v1552, %v1822
    %v1824 = vpop.f32.mrf.mxu0
    %v1825 = vadd.f32 %v1556, %v1824
    %v1826 = vpop.f32.mrf.mxu0
    %v1827 = vpop.f32.mrf.mxu0
    %1828 = vdwg.mxu0
    %1829 = vmatprep.subr.bf16.mxu0 0
    %1830 = vmatpush1.bf16.msra.mxu0 0
    %1831 = vmatprep.subr.bf16.mxu0 0
    %1832 = vmatpush1.bf16.msra.mxu0 0
    %1833 = vmatprep.subr.bf16.mxu0 0
    %1834 = vmatpush1.bf16.msra.mxu0 0
    %1835 = vmatprep.subr.bf16.mxu0 0
    %1836 = vmatpush1.bf16.msra.mxu0 0
    %1837 = vmatprep.subr.bf16.mxu0 0
    %1838 = vmatpush1.bf16.msra.mxu0 0
    %1839 = vmatprep.subr.bf16.mxu0 0
    %1840 = vmatpush1.bf16.msra.mxu0 0
    %1841 = vmatprep.subr.bf16.mxu0 0
    %1842 = vmatpush1.bf16.msra.mxu0 0
    %1843 = vmatprep.subr.bf16.mxu0 %v1680
    %1844 = vmatpush1.bf16.msra.mxu0 %v1677
    %1845 = vmatprep.subr.bf16.mxu0 0
    %1846 = vmatpush2.bf16.msra.mxu0 0
    %1847 = vmatprep.subr.bf16.mxu0 0
    %1848 = vmatpush2.bf16.msra.mxu0 0
    %1849 = vmatprep.subr.bf16.mxu0 0
    %1850 = vmatpush2.bf16.msra.mxu0 0
    %1851 = vmatprep.subr.bf16.mxu0 0
    %1852 = vmatpush2.bf16.msra.mxu0 0
    %1853 = vmatprep.subr.bf16.mxu0 0
    %1854 = vmatpush2.bf16.msra.mxu0 0
    %1855 = vmatprep.subr.bf16.mxu0 0
    %1856 = vmatpush2.bf16.msra.mxu0 0
    %1857 = vmatprep.subr.bf16.mxu0 0
    %1858 = vmatpush2.bf16.msra.mxu0 0
    %1859 = vmatprep.subr.bf16.mxu0 0
    %1860 = vmatpush2.bf16.msra.mxu0 0
    %1861 = vmatprep.mubr.bf16.mxu0 0
    %1862 = vmatmul.mubr.bf16.gmra.mxu0 %v1655
    %v1863 = vpop.f32.mrf.mxu0
    %v1864 = vadd.f32 %v1560, %v1863
    %v1865 = vpop.f32.mrf.mxu0
    %v1866 = vadd.f32 %v1564, %v1865
    %v1867 = vpop.f32.mrf.mxu0
    %v1868 = vpop.f32.mrf.mxu0
    %1869 = vdwg.mxu0
    %1870 = vmatprep.subr.bf16.mxu0 0
    %1871 = vmatpush1.bf16.msra.mxu0 0
    %1872 = vmatprep.subr.bf16.mxu0 0
    %1873 = vmatpush1.bf16.msra.mxu0 0
    %1874 = vmatprep.subr.bf16.mxu0 0
    %1875 = vmatpush1.bf16.msra.mxu0 0
    %1876 = vmatprep.subr.bf16.mxu0 0
    %1877 = vmatpush1.bf16.msra.mxu0 0
    %1878 = vmatprep.subr.bf16.mxu0 0
    %1879 = vmatpush1.bf16.msra.mxu0 0
    %1880 = vmatprep.subr.bf16.mxu0 0
    %1881 = vmatpush1.bf16.msra.mxu0 0
    %1882 = vmatprep.subr.bf16.mxu0 0
    %1883 = vmatpush1.bf16.msra.mxu0 0
    %1884 = vmatprep.subr.bf16.mxu0 %v1686
    %1885 = vmatpush1.bf16.msra.mxu0 %v1683
    %1886 = vmatprep.subr.bf16.mxu0 0
    %1887 = vmatpush2.bf16.msra.mxu0 0
    %1888 = vmatprep.subr.bf16.mxu0 0
    %1889 = vmatpush2.bf16.msra.mxu0 0
    %1890 = vmatprep.subr.bf16.mxu0 0
    %1891 = vmatpush2.bf16.msra.mxu0 0
    %1892 = vmatprep.subr.bf16.mxu0 0
    %1893 = vmatpush2.bf16.msra.mxu0 0
    %1894 = vmatprep.subr.bf16.mxu0 0
    %1895 = vmatpush2.bf16.msra.mxu0 0
    %1896 = vmatprep.subr.bf16.mxu0 0
    %1897 = vmatpush2.bf16.msra.mxu0 0
    %1898 = vmatprep.subr.bf16.mxu0 0
    %1899 = vmatpush2.bf16.msra.mxu0 0
    %1900 = vmatprep.subr.bf16.mxu0 0
    %1901 = vmatpush2.bf16.msra.mxu0 0
    %1902 = vmatprep.mubr.bf16.mxu0 0
    %1903 = vmatmul.mubr.bf16.gmra.mxu0 %v1655
    %v1904 = vpop.f32.mrf.mxu0
    %v1905 = vadd.f32 %v1568, %v1904
    %v1906 = vpop.f32.mrf.mxu0
    %v1907 = vadd.f32 %v1572, %v1906
    %v1908 = vpop.f32.mrf.mxu0
    %v1909 = vpop.f32.mrf.mxu0
    %1910 = vdwg.mxu0
    %1911 = vmatprep.subr.bf16.mxu0 0
    %1912 = vmatpush1.bf16.msra.mxu0 0
    %1913 = vmatprep.subr.bf16.mxu0 0
    %1914 = vmatpush1.bf16.msra.mxu0 0
    %1915 = vmatprep.subr.bf16.mxu0 0
    %1916 = vmatpush1.bf16.msra.mxu0 0
    %1917 = vmatprep.subr.bf16.mxu0 0
    %1918 = vmatpush1.bf16.msra.mxu0 0
    %1919 = vmatprep.subr.bf16.mxu0 0
    %1920 = vmatpush1.bf16.msra.mxu0 0
    %1921 = vmatprep.subr.bf16.mxu0 0
    %1922 = vmatpush1.bf16.msra.mxu0 0
    %1923 = vmatprep.subr.bf16.mxu0 0
    %1924 = vmatpush1.bf16.msra.mxu0 0
    %1925 = vmatprep.subr.bf16.mxu0 %v1692
    %1926 = vmatpush1.bf16.msra.mxu0 %v1689
    %1927 = vmatprep.subr.bf16.mxu0 0
    %1928 = vmatpush2.bf16.msra.mxu0 0
    %1929 = vmatprep.subr.bf16.mxu0 0
    %1930 = vmatpush2.bf16.msra.mxu0 0
    %1931 = vmatprep.subr.bf16.mxu0 0
    %1932 = vmatpush2.bf16.msra.mxu0 0
    %1933 = vmatprep.subr.bf16.mxu0 0
    %1934 = vmatpush2.bf16.msra.mxu0 0
    %1935 = vmatprep.subr.bf16.mxu0 0
    %1936 = vmatpush2.bf16.msra.mxu0 0
    %1937 = vmatprep.subr.bf16.mxu0 0
    %1938 = vmatpush2.bf16.msra.mxu0 0
    %1939 = vmatprep.subr.bf16.mxu0 0
    %1940 = vmatpush2.bf16.msra.mxu0 0
    %1941 = vmatprep.subr.bf16.mxu0 0
    %1942 = vmatpush2.bf16.msra.mxu0 0
    %1943 = vmatprep.mubr.bf16.mxu0 0
    %1944 = vmatmul.mubr.bf16.gmra.mxu0 %v1655
    %v1945 = vpop.f32.mrf.mxu0
    %v1946 = vadd.f32 %v1576, %v1945
    %v1947 = vpop.f32.mrf.mxu0
    %v1948 = vadd.f32 %v1580, %v1947
    %v1949 = vpop.f32.mrf.mxu0
    %v1950 = vpop.f32.mrf.mxu0
    %1951 = vdwg.mxu0
    %1952 = vmatprep.subr.bf16.mxu0 0
    %1953 = vmatpush1.bf16.msra.mxu0 0
    %1954 = vmatprep.subr.bf16.mxu0 0
    %1955 = vmatpush1.bf16.msra.mxu0 0
    %1956 = vmatprep.subr.bf16.mxu0 0
    %1957 = vmatpush1.bf16.msra.mxu0 0
    %1958 = vmatprep.subr.bf16.mxu0 0
    %1959 = vmatpush1.bf16.msra.mxu0 0
    %1960 = vmatprep.subr.bf16.mxu0 0
    %1961 = vmatpush1.bf16.msra.mxu0 0
    %1962 = vmatprep.subr.bf16.mxu0 0
    %1963 = vmatpush1.bf16.msra.mxu0 0
    %1964 = vmatprep.subr.bf16.mxu0 0
    %1965 = vmatpush1.bf16.msra.mxu0 0
    %1966 = vmatprep.subr.bf16.mxu0 %v1698
    %1967 = vmatpush1.bf16.msra.mxu0 %v1695
    %1968 = vmatprep.subr.bf16.mxu0 0
    %1969 = vmatpush2.bf16.msra.mxu0 0
    %1970 = vmatprep.subr.bf16.mxu0 0
    %1971 = vmatpush2.bf16.msra.mxu0 0
    %1972 = vmatprep.subr.bf16.mxu0 0
    %1973 = vmatpush2.bf16.msra.mxu0 0
    %1974 = vmatprep.subr.bf16.mxu0 0
    %1975 = vmatpush2.bf16.msra.mxu0 0
    %1976 = vmatprep.subr.bf16.mxu0 0
    %1977 = vmatpush2.bf16.msra.mxu0 0
    %1978 = vmatprep.subr.bf16.mxu0 0
    %1979 = vmatpush2.bf16.msra.mxu0 0
    %1980 = vmatprep.subr.bf16.mxu0 0
    %1981 = vmatpush2.bf16.msra.mxu0 0
    %1982 = vmatprep.subr.bf16.mxu0 0
    %1983 = vmatpush2.bf16.msra.mxu0 0
    %1984 = vmatprep.mubr.bf16.mxu0 0
    %1985 = vmatmul.mubr.bf16.gmra.mxu0 %v1655
    %v1986 = vpop.f32.mrf.mxu0
    %v1987 = vadd.f32 %v1584, %v1986
    %v1988 = vpop.f32.mrf.mxu0
    %v1989 = vadd.f32 %v1588, %v1988
    %v1990 = vpop.f32.mrf.mxu0
    %v1991 = vpop.f32.mrf.mxu0
    %1992 = vdwg.mxu0
    %1993 = vmatprep.subr.bf16.mxu0 0
    %1994 = vmatpush1.bf16.msra.mxu0 0
    %1995 = vmatprep.subr.bf16.mxu0 0
    %1996 = vmatpush1.bf16.msra.mxu0 0
    %1997 = vmatprep.subr.bf16.mxu0 0
    %1998 = vmatpush1.bf16.msra.mxu0 0
    %1999 = vmatprep.subr.bf16.mxu0 0
    %2000 = vmatpush1.bf16.msra.mxu0 0
    %2001 = vmatprep.subr.bf16.mxu0 0
    %2002 = vmatpush1.bf16.msra.mxu0 0
    %2003 = vmatprep.subr.bf16.mxu0 0
    %2004 = vmatpush1.bf16.msra.mxu0 0
    %2005 = vmatprep.subr.bf16.mxu0 0
    %2006 = vmatpush1.bf16.msra.mxu0 0
    %2007 = vmatprep.subr.bf16.mxu0 %v1704
    %2008 = vmatpush1.bf16.msra.mxu0 %v1701
    %2009 = vmatprep.subr.bf16.mxu0 0
    %2010 = vmatpush2.bf16.msra.mxu0 0
    %2011 = vmatprep.subr.bf16.mxu0 0
    %2012 = vmatpush2.bf16.msra.mxu0 0
    %2013 = vmatprep.subr.bf16.mxu0 0
    %2014 = vmatpush2.bf16.msra.mxu0 0
    %2015 = vmatprep.subr.bf16.mxu0 0
    %2016 = vmatpush2.bf16.msra.mxu0 0
    %2017 = vmatprep.subr.bf16.mxu0 0
    %2018 = vmatpush2.bf16.msra.mxu0 0
    %2019 = vmatprep.subr.bf16.mxu0 0
    %2020 = vmatpush2.bf16.msra.mxu0 0
    %2021 = vmatprep.subr.bf16.mxu0 0
    %2022 = vmatpush2.bf16.msra.mxu0 0
    %2023 = vmatprep.subr.bf16.mxu0 0
    %2024 = vmatpush2.bf16.msra.mxu0 0
    %2025 = vmatprep.mubr.bf16.mxu0 0
    %2026 = vmatmul.mubr.bf16.gmra.mxu0 %v1655
    %v2027 = vpop.f32.mrf.mxu0
    %v2028 = vadd.f32 %v1592, %v2027
    %v2029 = vpop.f32.mrf.mxu0
    %v2030 = vadd.f32 %v1596, %v2029
    %v2031 = vpop.f32.mrf.mxu0
    %v2032 = vpop.f32.mrf.mxu0
    %2033 = vdwg.mxu0
    %v2034 = vpack.c.bf16 %v1741, %v1741
    %v2035 = vpack.c.bf16 %v1743, %v1743
    %v2036 = vpack.c.bf16 %v1782, %v1782
    %v2037 = vpack.c.bf16 %v1784, %v1784
    %v2038 = vpack.c.bf16 %v1823, %v1823
    %v2039 = vpack.c.bf16 %v1825, %v1825
    %v2040 = vpack.c.bf16 %v1864, %v1864
    %v2041 = vpack.c.bf16 %v1866, %v1866
    %v2042 = vpack.c.bf16 %v1905, %v1905
    %v2043 = vpack.c.bf16 %v1907, %v1907
    %v2044 = vpack.c.bf16 %v1946, %v1946
    %v2045 = vpack.c.bf16 %v1948, %v1948
    %v2046 = vpack.c.bf16 %v1987, %v1987
    %v2047 = vpack.c.bf16 %v1989, %v1989
    %v2048 = vpack.c.bf16 %v2028, %v2028
    %v2049 = vpack.c.bf16 %v2030, %v2030
    %v2066 = vcombine.low %v2034, %v2035
    %v2067 = vcombine.low %v2036, %v2037
    %v2068 = vcombine.low %v2038, %v2039
    %v2069 = vcombine.low %v2040, %v2041
    %v2071 = vunpack.c.l.s4 1966171168
    %v2072 = vunpack.c.0.s8 %v2071
    %v2073 = vlaneseq
    %v2074 = vshrl.u32 %v2073, 7
    %v2075 = vsub.s32 %v2072, %v2074
    %v2076 = vrot.slane %v2066, %v2075
    %v2078 = vunpack.c.l.s4 1966171168
    %v2079 = vunpack.c.0.s8 %v2078
    %v2080 = vlaneseq
    %v2081 = vshrl.u32 %v2080, 7
    %v2082 = vsub.s32 %v2079, %v2081
    %v2083 = vrot.slane %v2067, %v2082
    %v2085 = vunpack.c.l.s4 1966171168
    %v2086 = vunpack.c.0.s8 %v2085
    %v2087 = vlaneseq
    %v2088 = vshrl.u32 %v2087, 7
    %v2089 = vsub.s32 %v2086, %v2088
    %v2090 = vrot.slane %v2068, %v2089
    %v2092 = vunpack.c.l.s4 1966171168
    %v2093 = vunpack.c.0.s8 %v2092
    %v2094 = vlaneseq
    %v2095 = vshrl.u32 %v2094, 7
    %v2096 = vsub.s32 %v2093, %v2095
    %v2097 = vrot.slane %v2069, %v2096
    %v2098 = vcombine.low %v2076, %v2083
    %v2099 = vcombine.low %v2090, %v2097
    %v2101 = vunpack.c.l.s4 1966171168
    %v2102 = vunpack.c.0.s8 %v2101
    %v2103 = vlaneseq
    %v2104 = vshrl.u32 %v2103, 7
    %v2105 = vsub.s32 %v2102, %v2104
    %v2106 = vrot.slane %v2098, %v2105
    %v2108 = vunpack.c.l.s4 1966171168
    %v2109 = vunpack.c.0.s8 %v2108
    %v2110 = vlaneseq
    %v2111 = vshrl.u32 %v2110, 7
    %v2112 = vsub.s32 %v2109, %v2111
    %v2113 = vrot.slane %v2099, %v2112
    %v2114 = vcombine.low %v2106, %v2113
    %v2115 = vcombine.low %v2042, %v2043
    %v2116 = vcombine.low %v2044, %v2045
    %v2117 = vcombine.low %v2046, %v2047
    %v2118 = vcombine.low %v2048, %v2049
    %v2120 = vunpack.c.l.s4 1966171168
    %v2121 = vunpack.c.0.s8 %v2120
    %v2122 = vlaneseq
    %v2123 = vshrl.u32 %v2122, 7
    %v2124 = vsub.s32 %v2121, %v2123
    %v2125 = vrot.slane %v2115, %v2124
    %v2127 = vunpack.c.l.s4 1966171168
    %v2128 = vunpack.c.0.s8 %v2127
    %v2129 = vlaneseq
    %v2130 = vshrl.u32 %v2129, 7
    %v2131 = vsub.s32 %v2128, %v2130
    %v2132 = vrot.slane %v2116, %v2131
    %v2134 = vunpack.c.l.s4 1966171168
    %v2135 = vunpack.c.0.s8 %v2134
    %v2136 = vlaneseq
    %v2137 = vshrl.u32 %v2136, 7
    %v2138 = vsub.s32 %v2135, %v2137
    %v2139 = vrot.slane %v2117, %v2138
    %v2141 = vunpack.c.l.s4 1966171168
    %v2142 = vunpack.c.0.s8 %v2141
    %v2143 = vlaneseq
    %v2144 = vshrl.u32 %v2143, 7
    %v2145 = vsub.s32 %v2142, %v2144
    %v2146 = vrot.slane %v2118, %v2145
    %v2147 = vcombine.low %v2125, %v2132
    %v2148 = vcombine.low %v2139, %v2146
    %v2150 = vunpack.c.l.s4 1966171168
    %v2151 = vunpack.c.0.s8 %v2150
    %v2152 = vlaneseq
    %v2153 = vshrl.u32 %v2152, 7
    %v2154 = vsub.s32 %v2151, %v2153
    %v2155 = vrot.slane %v2147, %v2154
    %v2157 = vunpack.c.l.s4 1966171168
    %v2158 = vunpack.c.0.s8 %v2157
    %v2159 = vlaneseq
    %v2160 = vshrl.u32 %v2159, 7
    %v2161 = vsub.s32 %v2158, %v2160
    %v2162 = vrot.slane %v2148, %v2161
    %v2163 = vcombine.low %v2155, %v2162
    %2166 = vst [vmem:[%s9] sm:$0xff] %v2114
    %2167 = vst [vmem:[%s9 + $0x8] sm:$0xff] %v2163
    // Predicated region
    $region26: #{vae_forward.11} parent=1 // pred_check
      _
    $region27: #{vae_forward.11} parent=1 // pred_check_branch
      %2169 = sbr.rel (0) target = $region29
    $region28: #{vae_forward.11} parent=1 // pred_region
      %s2171 = ssub.s32 32, 32
      %2172 = vsyncadd [#allocation3], %s2171
      %s2174 = sshll.u32 [#allocation2], 4
      %s2175 = int_to_ptr.vmem [resolvable:$true] %s2174
      %2177 = dma.vmem_to_hbm [thread:$0]  %s2175, 32, %s6, [#allocation3]
    $region29: #{vae_forward.11} parent=1 // pred_fallthru
      _
    // Predicated region
    $region30: #{vae_forward.11} parent=1 // pred_check
      _
    $region31: #{vae_forward.11} parent=1 // pred_check_branch
      %2179 = sbr.rel (0) target = $region33
    $region32: #{vae_forward.11} parent=1 // pred_region
      %s2181 = ssub.s32 32, 32
      %2182 = vsyncadd [#allocation5], %s2181
      %s2184 = sshll.u32 [#allocation4], 4
      %s2185 = int_to_ptr.vmem [resolvable:$true] %s2184
      %2187 = dma.vmem_to_hbm [thread:$0]  %s2185, 32, %s7, [#allocation5]
    $region33: #{vae_forward.11} parent=1 // pred_fallthru
      _
    // Predicated region
    $region34: #{vae_forward.11} parent=1 // pred_check
      _
    $region35: #{vae_forward.11} parent=1 // pred_check_branch
      %2189 = sbr.rel (0) target = $region37
    $region36: #{vae_forward.11} parent=1 // pred_region
      %s2191 = ssub.s32 32, 32
      %2192 = vsyncadd [#allocation5], %s2191
      %s2194 = sshll.u32 [#allocation6], 4
      %s2195 = int_to_ptr.vmem [resolvable:$true] %s2194
      %2197 = dma.vmem_to_hbm [thread:$0]  %s2195, 32, %s8, [#allocation5]
    $region37: #{vae_forward.11} parent=1 // pred_fallthru
      _
    // Predicated region
    $region38: #{vae_forward.11} parent=1 // pred_check
      _
    $region39: #{vae_forward.11} parent=1 // pred_check_branch
      %2199 = sbr.rel (0) target = $region41
    $region40: #{vae_forward.11} parent=1 // pred_region
      _
    $region41: #{vae_forward.11} parent=1 // pred_fallthru
      _
    // Predicated region
    $region42: #{vae_forward.11} parent=1 // pred_check
      _
    $region43: #{vae_forward.11} parent=1 // pred_check_branch
      %2201 = sbr.rel (0) target = $region45
    $region44: #{vae_forward.11} parent=1 // pred_region
      %2202 = dma.done [#allocation3], 32
    $region45: #{vae_forward.11} parent=1 // pred_fallthru
      _
    // Predicated region
    $region46: #{vae_forward.11} parent=1 // pred_check
      _
    $region47: #{vae_forward.11} parent=1 // pred_check_branch
      %2204 = sbr.rel (0) target = $region49
    $region48: #{vae_forward.11} parent=1 // pred_region
      %2205 = dma.done [#allocation5], 32
    $region49: #{vae_forward.11} parent=1 // pred_fallthru
      _
    // Predicated region
    $region50: #{vae_forward.11} parent=1 // pred_check
      _
    $region51: #{vae_forward.11} parent=1 // pred_check_branch
      %2207 = sbr.rel (0) target = $region53
    $region52: #{vae_forward.11} parent=1 // pred_region
      %2208 = dma.done [#allocation5], 32
    $region53: #{vae_forward.11} parent=1 // pred_fallthru
      _
    // Predicated region
    $region54: #{vae_forward.11} parent=1 // pred_check
      _
    $region55: #{vae_forward.11} parent=1 // pred_check_branch
      %2210 = sbr.rel (0) target = $region57
    $region56: #{vae_forward.11} parent=1 // pred_region
      _
    $region57: #{vae_forward.11} parent=1 // pred_fallthru
      _
    %2211 = vsyncpa [#allocation3], 1
    %2212 = vsyncpa [#allocation5], 1

// kernel: vae_forward.12
$region0: #{vae_forward.12}
  #allocation0 [shape = 'u32[]', space=smem, size = 0x4, offset = 0x4, fixed_abs, tag = 'smem constant byte address 0x4 - core index']
  #allocation1 [shape = 'u32[144,128]{1,0:T(1,128)}', space=vmem, size = 0x12000, scoped, tag = 'internal scratch']
  %s0 = inlined_call_operand.vmem [shape: bf16[50,512], index: 0, kind: input, shape index: {}]
  %s1 = inlined_call_operand.vmem [shape: bf16[512,512], index: 1, kind: input, shape index: {}]
  %s2 = inlined_call_operand.vmem [shape: f32[1,512], index: 2, kind: input, shape index: {}]
  %s3 = inlined_call_operand.vmem [shape: bf16[50,512], index: 3, kind: output, shape index: {}]
  %s4 = sld [smem:[#allocation0]]
  $region22: #{vae_forward.12} parent=0
    _
  %s6 = ssub.s32 1, %s4
  %s7 = scalar_select 0, %s6, %s4
  // Predicated region
  $region2: #{vae_forward.12} parent=0 // pred_check
    _
  $region3: #{vae_forward.12} parent=0 // pred_check_branch
    %9 = sbr.rel (0) target = $region5
  $region4: #{vae_forward.12} parent=0 // pred_region
    _
  $region5: #{vae_forward.12} parent=0 // pred_fallthru
    _
  // Predicated region
  $region6: #{vae_forward.12} parent=0 // pred_check
    _
  $region7: #{vae_forward.12} parent=0 // pred_check_branch
    %11 = sbr.rel (0) target = $region9
  $region8: #{vae_forward.12} parent=0 // pred_region
    _
  $region9: #{vae_forward.12} parent=0 // pred_fallthru
    _
  // Predicated region
  $region10: #{vae_forward.12} parent=0 // pred_check
    _
  $region11: #{vae_forward.12} parent=0 // pred_check_branch
    %13 = sbr.rel (0) target = $region13
  $region12: #{vae_forward.12} parent=0 // pred_region
    _
  $region13: #{vae_forward.12} parent=0 // pred_fallthru
    _
  %v14 = vld [vmem:[%s0] sm:$0xff]
  %v15 = vld [vmem:[%s0 + $0x8] sm:$0xff]
  %v16 = vld [vmem:[%s0 + $0x10] sm:$0xff]
  %v17 = vld [vmem:[%s0 + $0x18] sm:$0xff]
  %v18 = vld [vmem:[%s0 + $0x20] sm:$0xff]
  %v19 = vld [vmem:[%s0 + $0x28] sm:$0xff]
  %v20 = vld [vmem:[%s0 + $0x30] sm:$0xff]
  %v21 = vld [vmem:[%s0 + $0x38] sm:$0xff]
  %v22 = vld [vmem:[%s0 + $0x40] sm:$0xff]
  %v23 = vld [vmem:[%s0 + $0x48] sm:$0xff]
  %v24 = vld [vmem:[%s0 + $0x50] sm:$0xff]
  %v25 = vld [vmem:[%s0 + $0x58] sm:$0xff]
  %v26 = vld [vmem:[%s0 + $0x60] sm:$0x11]
  %v27 = vld [vmem:[%s0 + $0x68] sm:$0x11]
  %v28 = vld [vmem:[%s1] sm:$0xff]
  %v29 = vld [vmem:[%s1 + $0x8] sm:$0xff]
  %v30 = vld [vmem:[%s1 + $0x10] sm:$0xff]
  %v31 = vld [vmem:[%s1 + $0x18] sm:$0xff]
  %v32 = vld [vmem:[%s1 + $0x20] sm:$0xff]
  %v33 = vld [vmem:[%s1 + $0x28] sm:$0xff]
  %v34 = vld [vmem:[%s1 + $0x30] sm:$0xff]
  %v35 = vld [vmem:[%s1 + $0x38] sm:$0xff]
  %v36 = vld [vmem:[%s1 + $0x40] sm:$0xff]
  %v37 = vld [vmem:[%s1 + $0x48] sm:$0xff]
  %v38 = vld [vmem:[%s1 + $0x50] sm:$0xff]
  %v39 = vld [vmem:[%s1 + $0x58] sm:$0xff]
  %v40 = vld [vmem:[%s1 + $0x60] sm:$0xff]
  %v41 = vld [vmem:[%s1 + $0x68] sm:$0xff]
  %v42 = vld [vmem:[%s1 + $0x70] sm:$0xff]
  %v43 = vld [vmem:[%s1 + $0x78] sm:$0xff]
  %v44 = vld [vmem:[%s1 + $0x80] sm:$0xff]
  %v45 = vld [vmem:[%s1 + $0x88] sm:$0xff]
  %v46 = vld [vmem:[%s1 + $0x90] sm:$0xff]
  %v47 = vld [vmem:[%s1 + $0x98] sm:$0xff]
  %v48 = vld [vmem:[%s1 + $0xa0] sm:$0xff]
  %v49 = vld [vmem:[%s1 + $0xa8] sm:$0xff]
  %v50 = vld [vmem:[%s1 + $0xb0] sm:$0xff]
  %v51 = vld [vmem:[%s1 + $0xb8] sm:$0xff]
  %v52 = vld [vmem:[%s1 + $0xc0] sm:$0xff]
  %v53 = vld [vmem:[%s1 + $0xc8] sm:$0xff]
  %v54 = vld [vmem:[%s1 + $0xd0] sm:$0xff]
  %v55 = vld [vmem:[%s1 + $0xd8] sm:$0xff]
  %v56 = vld [vmem:[%s1 + $0xe0] sm:$0xff]
  %v57 = vld [vmem:[%s1 + $0xe8] sm:$0xff]
  %v58 = vld [vmem:[%s1 + $0xf0] sm:$0xff]
  %v59 = vld [vmem:[%s1 + $0xf8] sm:$0xff]
  %v60 = vld [vmem:[%s1 + $0x100] sm:$0xff]
  %v61 = vld [vmem:[%s1 + $0x108] sm:$0xff]
  %v62 = vld [vmem:[%s1 + $0x110] sm:$0xff]
  %v63 = vld [vmem:[%s1 + $0x118] sm:$0xff]
  %v64 = vld [vmem:[%s1 + $0x120] sm:$0xff]
  %v65 = vld [vmem:[%s1 + $0x128] sm:$0xff]
  %v66 = vld [vmem:[%s1 + $0x130] sm:$0xff]
  %v67 = vld [vmem:[%s1 + $0x138] sm:$0xff]
  %v68 = vld [vmem:[%s1 + $0x140] sm:$0xff]
  %v69 = vld [vmem:[%s1 + $0x148] sm:$0xff]
  %v70 = vld [vmem:[%s1 + $0x150] sm:$0xff]
  %v71 = vld [vmem:[%s1 + $0x158] sm:$0xff]
  %v72 = vld [vmem:[%s1 + $0x160] sm:$0xff]
  %v73 = vld [vmem:[%s1 + $0x168] sm:$0xff]
  %v74 = vld [vmem:[%s1 + $0x170] sm:$0xff]
  %v75 = vld [vmem:[%s1 + $0x178] sm:$0xff]
  %v76 = vld [vmem:[%s1 + $0x180] sm:$0xff]
  %v77 = vld [vmem:[%s1 + $0x188] sm:$0xff]
  %v78 = vld [vmem:[%s1 + $0x190] sm:$0xff]
  %v79 = vld [vmem:[%s1 + $0x198] sm:$0xff]
  %v80 = vld [vmem:[%s1 + $0x1a0] sm:$0xff]
  %v81 = vld [vmem:[%s1 + $0x1a8] sm:$0xff]
  %v82 = vld [vmem:[%s1 + $0x1b0] sm:$0xff]
  %v83 = vld [vmem:[%s1 + $0x1b8] sm:$0xff]
  %v84 = vld [vmem:[%s1 + $0x1c0] sm:$0xff]
  %v85 = vld [vmem:[%s1 + $0x1c8] sm:$0xff]
  %v86 = vld [vmem:[%s1 + $0x1d0] sm:$0xff]
  %v87 = vld [vmem:[%s1 + $0x1d8] sm:$0xff]
  %v88 = vld [vmem:[%s1 + $0x1e0] sm:$0xff]
  %v89 = vld [vmem:[%s1 + $0x1e8] sm:$0xff]
  %v90 = vld [vmem:[%s1 + $0x1f0] sm:$0xff]
  %v91 = vld [vmem:[%s1 + $0x1f8] sm:$0xff]
  %v92 = vld [vmem:[%s1 + $0x200] sm:$0xff]
  %v93 = vld [vmem:[%s1 + $0x208] sm:$0xff]
  %v94 = vld [vmem:[%s1 + $0x210] sm:$0xff]
  %v95 = vld [vmem:[%s1 + $0x218] sm:$0xff]
  %v96 = vld [vmem:[%s1 + $0x220] sm:$0xff]
  %v97 = vld [vmem:[%s1 + $0x228] sm:$0xff]
  %v98 = vld [vmem:[%s1 + $0x230] sm:$0xff]
  %v99 = vld [vmem:[%s1 + $0x238] sm:$0xff]
  %v100 = vld [vmem:[%s1 + $0x240] sm:$0xff]
  %v101 = vld [vmem:[%s1 + $0x248] sm:$0xff]
  %v102 = vld [vmem:[%s1 + $0x250] sm:$0xff]
  %v103 = vld [vmem:[%s1 + $0x258] sm:$0xff]
  %v104 = vld [vmem:[%s1 + $0x260] sm:$0xff]
  %v105 = vld [vmem:[%s1 + $0x268] sm:$0xff]
  %v106 = vld [vmem:[%s1 + $0x270] sm:$0xff]
  %v107 = vld [vmem:[%s1 + $0x278] sm:$0xff]
  %v108 = vld [vmem:[%s1 + $0x280] sm:$0xff]
  %v109 = vld [vmem:[%s1 + $0x288] sm:$0xff]
  %v110 = vld [vmem:[%s1 + $0x290] sm:$0xff]
  %v111 = vld [vmem:[%s1 + $0x298] sm:$0xff]
  %v112 = vld [vmem:[%s1 + $0x2a0] sm:$0xff]
  %v113 = vld [vmem:[%s1 + $0x2a8] sm:$0xff]
  %v114 = vld [vmem:[%s1 + $0x2b0] sm:$0xff]
  %v115 = vld [vmem:[%s1 + $0x2b8] sm:$0xff]
  %v116 = vld [vmem:[%s1 + $0x2c0] sm:$0xff]
  %v117 = vld [vmem:[%s1 + $0x2c8] sm:$0xff]
  %v118 = vld [vmem:[%s1 + $0x2d0] sm:$0xff]
  %v119 = vld [vmem:[%s1 + $0x2d8] sm:$0xff]
  %v120 = vld [vmem:[%s1 + $0x2e0] sm:$0xff]
  %v121 = vld [vmem:[%s1 + $0x2e8] sm:$0xff]
  %v122 = vld [vmem:[%s1 + $0x2f0] sm:$0xff]
  %v123 = vld [vmem:[%s1 + $0x2f8] sm:$0xff]
  %v124 = vld [vmem:[%s1 + $0x300] sm:$0xff]
  %v125 = vld [vmem:[%s1 + $0x308] sm:$0xff]
  %v126 = vld [vmem:[%s1 + $0x310] sm:$0xff]
  %v127 = vld [vmem:[%s1 + $0x318] sm:$0xff]
  %v128 = vld [vmem:[%s1 + $0x320] sm:$0xff]
  %v129 = vld [vmem:[%s1 + $0x328] sm:$0xff]
  %v130 = vld [vmem:[%s1 + $0x330] sm:$0xff]
  %v131 = vld [vmem:[%s1 + $0x338] sm:$0xff]
  %v132 = vld [vmem:[%s1 + $0x340] sm:$0xff]
  %v133 = vld [vmem:[%s1 + $0x348] sm:$0xff]
  %v134 = vld [vmem:[%s1 + $0x350] sm:$0xff]
  %v135 = vld [vmem:[%s1 + $0x358] sm:$0xff]
  %v136 = vld [vmem:[%s1 + $0x360] sm:$0xff]
  %v137 = vld [vmem:[%s1 + $0x368] sm:$0xff]
  %v138 = vld [vmem:[%s1 + $0x370] sm:$0xff]
  %v139 = vld [vmem:[%s1 + $0x378] sm:$0xff]
  %v140 = vld [vmem:[%s1 + $0x380] sm:$0xff]
  %v141 = vld [vmem:[%s1 + $0x388] sm:$0xff]
  %v142 = vld [vmem:[%s1 + $0x390] sm:$0xff]
  %v143 = vld [vmem:[%s1 + $0x398] sm:$0xff]
  %v144 = vld [vmem:[%s1 + $0x3a0] sm:$0xff]
  %v145 = vld [vmem:[%s1 + $0x3a8] sm:$0xff]
  %v146 = vld [vmem:[%s1 + $0x3b0] sm:$0xff]
  %v147 = vld [vmem:[%s1 + $0x3b8] sm:$0xff]
  %v148 = vld [vmem:[%s1 + $0x3c0] sm:$0xff]
  %v149 = vld [vmem:[%s1 + $0x3c8] sm:$0xff]
  %v150 = vld [vmem:[%s1 + $0x3d0] sm:$0xff]
  %v151 = vld [vmem:[%s1 + $0x3d8] sm:$0xff]
  %v152 = vld [vmem:[%s1 + $0x3e0] sm:$0xff]
  %v153 = vld [vmem:[%s1 + $0x3e8] sm:$0xff]
  %v154 = vld [vmem:[%s1 + $0x3f0] sm:$0xff]
  %v155 = vld [vmem:[%s1 + $0x3f8] sm:$0xff]
  %v156 = vld [vmem:[%s2] sm:$0xf]
  %v158 = vlaneseq
  %v159 = vshrl.u32 %v158, 7
  %v160 = vsub.s32 0, %v159
  %v161 = vrot.slane %v156, %v160
  %v162 = vlaneseq
  %v163 = vshrl.u32 %v162, 7
  %v164 = vsub.s32 1, %v163
  %v165 = vrot.slane %v156, %v164
  %v166 = vlaneseq
  %v167 = vshrl.u32 %v166, 7
  %v168 = vsub.s32 2, %v167
  %v169 = vrot.slane %v156, %v168
  %v170 = vlaneseq
  %v171 = vshrl.u32 %v170, 7
  %v172 = vsub.s32 3, %v171
  %v173 = vrot.slane %v156, %v172
  %v192 = vunpack.c.l.b16 %v14
  %v193 = vunpack.c.h.b16 %v14
  %v194 = vunpack.c.l.b16 %v15
  %v195 = vunpack.c.h.b16 %v15
  %v196 = vunpack.c.l.b16 %v16
  %v197 = vunpack.c.h.b16 %v16
  %v198 = vunpack.c.l.b16 %v17
  %v199 = vunpack.c.h.b16 %v17
  %v200 = vunpack.c.l.b16 %v18
  %v201 = vunpack.c.h.b16 %v18
  %v202 = vunpack.c.l.b16 %v19
  %v203 = vunpack.c.h.b16 %v19
  %v204 = vunpack.c.l.b16 %v20
  %v205 = vunpack.c.h.b16 %v20
  %v206 = vunpack.c.l.b16 %v21
  %v207 = vunpack.c.h.b16 %v21
  %v208 = vunpack.c.l.b16 %v22
  %v209 = vunpack.c.h.b16 %v22
  %v210 = vunpack.c.l.b16 %v23
  %v211 = vunpack.c.h.b16 %v23
  %v212 = vunpack.c.l.b16 %v24
  %v213 = vunpack.c.h.b16 %v24
  %v214 = vunpack.c.l.b16 %v25
  %v215 = vunpack.c.h.b16 %v25
  %v216 = vunpack.c.l.b16 %v26
  %v217 = vunpack.c.h.b16 %v26
  %v218 = vunpack.c.l.b16 %v27
  %v219 = vunpack.c.h.b16 %v27
  %v220 = vpack.c.b16 %v196, %v192
  %v221 = vpack.c.b16 %v197, %v193
  %v222 = vpack.c.b16 %v198, %v194
  %v223 = vpack.c.b16 %v199, %v195
  %v224 = vpack.c.b16 %v204, %v200
  %v225 = vpack.c.b16 %v205, %v201
  %v226 = vpack.c.b16 %v206, %v202
  %v227 = vpack.c.b16 %v207, %v203
  %v228 = vpack.c.b16 %v212, %v208
  %v229 = vpack.c.b16 %v213, %v209
  %v230 = vpack.c.b16 %v214, %v210
  %v231 = vpack.c.b16 %v215, %v211
  %v232 = vpack.c.b16 %v216, %v216
  %v233 = vpack.c.b16 %v217, %v217
  %v234 = vpack.c.b16 %v218, %v218
  %v235 = vpack.c.b16 %v219, %v219
  %v380 = vunpack.c.l.b16 %v28
  %v381 = vunpack.c.h.b16 %v28
  %v382 = vunpack.c.l.b16 %v29
  %v383 = vunpack.c.h.b16 %v29
  %v384 = vunpack.c.l.b16 %v30
  %v385 = vunpack.c.h.b16 %v30
  %v386 = vunpack.c.l.b16 %v31
  %v387 = vunpack.c.h.b16 %v31
  %v388 = vunpack.c.l.b16 %v32
  %v389 = vunpack.c.h.b16 %v32
  %v390 = vunpack.c.l.b16 %v33
  %v391 = vunpack.c.h.b16 %v33
  %v392 = vunpack.c.l.b16 %v34
  %v393 = vunpack.c.h.b16 %v34
  %v394 = vunpack.c.l.b16 %v35
  %v395 = vunpack.c.h.b16 %v35
  %v396 = vunpack.c.l.b16 %v36
  %v397 = vunpack.c.h.b16 %v36
  %v398 = vunpack.c.l.b16 %v37
  %v399 = vunpack.c.h.b16 %v37
  %v400 = vunpack.c.l.b16 %v38
  %v401 = vunpack.c.h.b16 %v38
  %v402 = vunpack.c.l.b16 %v39
  %v403 = vunpack.c.h.b16 %v39
  %v404 = vunpack.c.l.b16 %v40
  %v405 = vunpack.c.h.b16 %v40
  %v406 = vunpack.c.l.b16 %v41
  %v407 = vunpack.c.h.b16 %v41
  %v408 = vunpack.c.l.b16 %v42
  %v409 = vunpack.c.h.b16 %v42
  %v410 = vunpack.c.l.b16 %v43
  %v411 = vunpack.c.h.b16 %v43
  %v412 = vunpack.c.l.b16 %v44
  %v413 = vunpack.c.h.b16 %v44
  %v414 = vunpack.c.l.b16 %v45
  %v415 = vunpack.c.h.b16 %v45
  %v416 = vunpack.c.l.b16 %v46
  %v417 = vunpack.c.h.b16 %v46
  %v418 = vunpack.c.l.b16 %v47
  %v419 = vunpack.c.h.b16 %v47
  %v420 = vunpack.c.l.b16 %v48
  %v421 = vunpack.c.h.b16 %v48
  %v422 = vunpack.c.l.b16 %v49
  %v423 = vunpack.c.h.b16 %v49
  %v424 = vunpack.c.l.b16 %v50
  %v425 = vunpack.c.h.b16 %v50
  %v426 = vunpack.c.l.b16 %v51
  %v427 = vunpack.c.h.b16 %v51
  %v428 = vunpack.c.l.b16 %v52
  %v429 = vunpack.c.h.b16 %v52
  %v430 = vunpack.c.l.b16 %v53
  %v431 = vunpack.c.h.b16 %v53
  %v432 = vunpack.c.l.b16 %v54
  %v433 = vunpack.c.h.b16 %v54
  %v434 = vunpack.c.l.b16 %v55
  %v435 = vunpack.c.h.b16 %v55
  %v436 = vunpack.c.l.b16 %v56
  %v437 = vunpack.c.h.b16 %v56
  %v438 = vunpack.c.l.b16 %v57
  %v439 = vunpack.c.h.b16 %v57
  %v440 = vunpack.c.l.b16 %v58
  %v441 = vunpack.c.h.b16 %v58
  %v442 = vunpack.c.l.b16 %v59
  %v443 = vunpack.c.h.b16 %v59
  %v444 = vunpack.c.l.b16 %v60
  %v445 = vunpack.c.h.b16 %v60
  %v446 = vunpack.c.l.b16 %v61
  %v447 = vunpack.c.h.b16 %v61
  %v448 = vunpack.c.l.b16 %v62
  %v449 = vunpack.c.h.b16 %v62
  %v450 = vunpack.c.l.b16 %v63
  %v451 = vunpack.c.h.b16 %v63
  %v452 = vunpack.c.l.b16 %v64
  %v453 = vunpack.c.h.b16 %v64
  %v454 = vunpack.c.l.b16 %v65
  %v455 = vunpack.c.h.b16 %v65
  %v456 = vunpack.c.l.b16 %v66
  %v457 = vunpack.c.h.b16 %v66
  %v458 = vunpack.c.l.b16 %v67
  %v459 = vunpack.c.h.b16 %v67
  %v460 = vunpack.c.l.b16 %v68
  %v461 = vunpack.c.h.b16 %v68
  %v462 = vunpack.c.l.b16 %v69
  %v463 = vunpack.c.h.b16 %v69
  %v464 = vunpack.c.l.b16 %v70
  %v465 = vunpack.c.h.b16 %v70
  %v466 = vunpack.c.l.b16 %v71
  %v467 = vunpack.c.h.b16 %v71
  %v468 = vunpack.c.l.b16 %v72
  %v469 = vunpack.c.h.b16 %v72
  %v470 = vunpack.c.l.b16 %v73
  %v471 = vunpack.c.h.b16 %v73
  %v472 = vunpack.c.l.b16 %v74
  %v473 = vunpack.c.h.b16 %v74
  %v474 = vunpack.c.l.b16 %v75
  %v475 = vunpack.c.h.b16 %v75
  %v476 = vunpack.c.l.b16 %v76
  %v477 = vunpack.c.h.b16 %v76
  %v478 = vunpack.c.l.b16 %v77
  %v479 = vunpack.c.h.b16 %v77
  %v480 = vunpack.c.l.b16 %v78
  %v481 = vunpack.c.h.b16 %v78
  %v482 = vunpack.c.l.b16 %v79
  %v483 = vunpack.c.h.b16 %v79
  %v484 = vunpack.c.l.b16 %v80
  %v485 = vunpack.c.h.b16 %v80
  %v486 = vunpack.c.l.b16 %v81
  %v487 = vunpack.c.h.b16 %v81
  %v488 = vunpack.c.l.b16 %v82
  %v489 = vunpack.c.h.b16 %v82
  %v490 = vunpack.c.l.b16 %v83
  %v491 = vunpack.c.h.b16 %v83
  %v492 = vunpack.c.l.b16 %v84
  %v493 = vunpack.c.h.b16 %v84
  %v494 = vunpack.c.l.b16 %v85
  %v495 = vunpack.c.h.b16 %v85
  %v496 = vunpack.c.l.b16 %v86
  %v497 = vunpack.c.h.b16 %v86
  %v498 = vunpack.c.l.b16 %v87
  %v499 = vunpack.c.h.b16 %v87
  %v500 = vunpack.c.l.b16 %v88
  %v501 = vunpack.c.h.b16 %v88
  %v502 = vunpack.c.l.b16 %v89
  %v503 = vunpack.c.h.b16 %v89
  %v504 = vunpack.c.l.b16 %v90
  %v505 = vunpack.c.h.b16 %v90
  %v506 = vunpack.c.l.b16 %v91
  %v507 = vunpack.c.h.b16 %v91
  %v508 = vunpack.c.l.b16 %v92
  %v509 = vunpack.c.h.b16 %v92
  %v510 = vunpack.c.l.b16 %v93
  %v511 = vunpack.c.h.b16 %v93
  %v512 = vunpack.c.l.b16 %v94
  %v513 = vunpack.c.h.b16 %v94
  %v514 = vunpack.c.l.b16 %v95
  %v515 = vunpack.c.h.b16 %v95
  %v516 = vunpack.c.l.b16 %v96
  %v517 = vunpack.c.h.b16 %v96
  %v518 = vunpack.c.l.b16 %v97
  %v519 = vunpack.c.h.b16 %v97
  %v520 = vunpack.c.l.b16 %v98
  %v521 = vunpack.c.h.b16 %v98
  %v522 = vunpack.c.l.b16 %v99
  %v523 = vunpack.c.h.b16 %v99
  %v524 = vunpack.c.l.b16 %v100
  %v525 = vunpack.c.h.b16 %v100
  %v526 = vunpack.c.l.b16 %v101
  %v527 = vunpack.c.h.b16 %v101
  %v528 = vunpack.c.l.b16 %v102
  %v529 = vunpack.c.h.b16 %v102
  %v530 = vunpack.c.l.b16 %v103
  %v531 = vunpack.c.h.b16 %v103
  %v532 = vunpack.c.l.b16 %v104
  %v533 = vunpack.c.h.b16 %v104
  %v534 = vunpack.c.l.b16 %v105
  %v535 = vunpack.c.h.b16 %v105
  %v536 = vunpack.c.l.b16 %v106
  %v537 = vunpack.c.h.b16 %v106
  %v538 = vunpack.c.l.b16 %v107
  %v539 = vunpack.c.h.b16 %v107
  %v540 = vunpack.c.l.b16 %v108
  %v541 = vunpack.c.h.b16 %v108
  %v542 = vunpack.c.l.b16 %v109
  %v543 = vunpack.c.h.b16 %v109
  %v544 = vunpack.c.l.b16 %v110
  %v545 = vunpack.c.h.b16 %v110
  %v546 = vunpack.c.l.b16 %v111
  %v547 = vunpack.c.h.b16 %v111
  %v548 = vunpack.c.l.b16 %v112
  %v549 = vunpack.c.h.b16 %v112
  %v550 = vunpack.c.l.b16 %v113
  %v551 = vunpack.c.h.b16 %v113
  %v552 = vunpack.c.l.b16 %v114
  %v553 = vunpack.c.h.b16 %v114
  %v554 = vunpack.c.l.b16 %v115
  %v555 = vunpack.c.h.b16 %v115
  %v556 = vunpack.c.l.b16 %v116
  %v557 = vunpack.c.h.b16 %v116
  %v558 = vunpack.c.l.b16 %v117
  %v559 = vunpack.c.h.b16 %v117
  %v560 = vunpack.c.l.b16 %v118
  %v561 = vunpack.c.h.b16 %v118
  %v562 = vunpack.c.l.b16 %v119
  %v563 = vunpack.c.h.b16 %v119
  %v564 = vunpack.c.l.b16 %v120
  %v565 = vunpack.c.h.b16 %v120
  %v566 = vunpack.c.l.b16 %v121
  %v567 = vunpack.c.h.b16 %v121
  %v568 = vunpack.c.l.b16 %v122
  %v569 = vunpack.c.h.b16 %v122
  %v570 = vunpack.c.l.b16 %v123
  %v571 = vunpack.c.h.b16 %v123
  %v572 = vunpack.c.l.b16 %v124
  %v573 = vunpack.c.h.b16 %v124
  %v574 = vunpack.c.l.b16 %v125
  %v575 = vunpack.c.h.b16 %v125
  %v576 = vunpack.c.l.b16 %v126
  %v577 = vunpack.c.h.b16 %v126
  %v578 = vunpack.c.l.b16 %v127
  %v579 = vunpack.c.h.b16 %v127
  %v580 = vunpack.c.l.b16 %v128
  %v581 = vunpack.c.h.b16 %v128
  %v582 = vunpack.c.l.b16 %v129
  %v583 = vunpack.c.h.b16 %v129
  %v584 = vunpack.c.l.b16 %v130
  %v585 = vunpack.c.h.b16 %v130
  %v586 = vunpack.c.l.b16 %v131
  %v587 = vunpack.c.h.b16 %v131
  %v588 = vunpack.c.l.b16 %v132
  %v589 = vunpack.c.h.b16 %v132
  %v590 = vunpack.c.l.b16 %v133
  %v591 = vunpack.c.h.b16 %v133
  %v592 = vunpack.c.l.b16 %v134
  %v593 = vunpack.c.h.b16 %v134
  %v594 = vunpack.c.l.b16 %v135
  %v595 = vunpack.c.h.b16 %v135
  %v596 = vunpack.c.l.b16 %v136
  %v597 = vunpack.c.h.b16 %v136
  %v598 = vunpack.c.l.b16 %v137
  %v599 = vunpack.c.h.b16 %v137
  %v600 = vunpack.c.l.b16 %v138
  %v601 = vunpack.c.h.b16 %v138
  %v602 = vunpack.c.l.b16 %v139
  %v603 = vunpack.c.h.b16 %v139
  %v604 = vunpack.c.l.b16 %v140
  %v605 = vunpack.c.h.b16 %v140
  %v606 = vunpack.c.l.b16 %v141
  %v607 = vunpack.c.h.b16 %v141
  %v608 = vunpack.c.l.b16 %v142
  %v609 = vunpack.c.h.b16 %v142
  %v610 = vunpack.c.l.b16 %v143
  %v611 = vunpack.c.h.b16 %v143
  %v612 = vunpack.c.l.b16 %v144
  %v613 = vunpack.c.h.b16 %v144
  %v614 = vunpack.c.l.b16 %v145
  %v615 = vunpack.c.h.b16 %v145
  %v616 = vunpack.c.l.b16 %v146
  %v617 = vunpack.c.h.b16 %v146
  %v618 = vunpack.c.l.b16 %v147
  %v619 = vunpack.c.h.b16 %v147
  %v620 = vunpack.c.l.b16 %v148
  %v621 = vunpack.c.h.b16 %v148
  %v622 = vunpack.c.l.b16 %v149
  %v623 = vunpack.c.h.b16 %v149
  %v624 = vunpack.c.l.b16 %v150
  %v625 = vunpack.c.h.b16 %v150
  %v626 = vunpack.c.l.b16 %v151
  %v627 = vunpack.c.h.b16 %v151
  %v628 = vunpack.c.l.b16 %v152
  %v629 = vunpack.c.h.b16 %v152
  %v630 = vunpack.c.l.b16 %v153
  %v631 = vunpack.c.h.b16 %v153
  %v632 = vunpack.c.l.b16 %v154
  %v633 = vunpack.c.h.b16 %v154
  %v634 = vunpack.c.l.b16 %v155
  %v635 = vunpack.c.h.b16 %v155
  %v636 = vpack.c.b16 %v384, %v380
  %v637 = vpack.c.b16 %v385, %v381
  %v638 = vpack.c.b16 %v386, %v382
  %v639 = vpack.c.b16 %v387, %v383
  %v640 = vpack.c.b16 %v392, %v388
  %v641 = vpack.c.b16 %v393, %v389
  %v642 = vpack.c.b16 %v394, %v390
  %v643 = vpack.c.b16 %v395, %v391
  %v644 = vpack.c.b16 %v400, %v396
  %v645 = vpack.c.b16 %v401, %v397
  %v646 = vpack.c.b16 %v402, %v398
  %v647 = vpack.c.b16 %v403, %v399
  %v648 = vpack.c.b16 %v408, %v404
  %v649 = vpack.c.b16 %v409, %v405
  %v650 = vpack.c.b16 %v410, %v406
  %v651 = vpack.c.b16 %v411, %v407
  %v652 = vpack.c.b16 %v416, %v412
  %v653 = vpack.c.b16 %v417, %v413
  %v654 = vpack.c.b16 %v418, %v414
  %v655 = vpack.c.b16 %v419, %v415
  %v656 = vpack.c.b16 %v424, %v420
  %v657 = vpack.c.b16 %v425, %v421
  %v658 = vpack.c.b16 %v426, %v422
  %v659 = vpack.c.b16 %v427, %v423
  %v660 = vpack.c.b16 %v432, %v428
  %v661 = vpack.c.b16 %v433, %v429
  %v662 = vpack.c.b16 %v434, %v430
  %v663 = vpack.c.b16 %v435, %v431
  %v664 = vpack.c.b16 %v440, %v436
  %v665 = vpack.c.b16 %v441, %v437
  %v666 = vpack.c.b16 %v442, %v438
  %v667 = vpack.c.b16 %v443, %v439
  %v668 = vpack.c.b16 %v448, %v444
  %v669 = vpack.c.b16 %v449, %v445
  %v670 = vpack.c.b16 %v450, %v446
  %v671 = vpack.c.b16 %v451, %v447
  %v672 = vpack.c.b16 %v456, %v452
  %v673 = vpack.c.b16 %v457, %v453
  %v674 = vpack.c.b16 %v458, %v454
  %v675 = vpack.c.b16 %v459, %v455
  %v676 = vpack.c.b16 %v464, %v460
  %v677 = vpack.c.b16 %v465, %v461
  %v678 = vpack.c.b16 %v466, %v462
  %v679 = vpack.c.b16 %v467, %v463
  %v680 = vpack.c.b16 %v472, %v468
  %v681 = vpack.c.b16 %v473, %v469
  %v682 = vpack.c.b16 %v474, %v470
  %v683 = vpack.c.b16 %v475, %v471
  %v684 = vpack.c.b16 %v480, %v476
  %v685 = vpack.c.b16 %v481, %v477
  %v686 = vpack.c.b16 %v482, %v478
  %v687 = vpack.c.b16 %v483, %v479
  %v688 = vpack.c.b16 %v488, %v484
  %v689 = vpack.c.b16 %v489, %v485
  %v690 = vpack.c.b16 %v490, %v486
  %v691 = vpack.c.b16 %v491, %v487
  %v692 = vpack.c.b16 %v496, %v492
  %v693 = vpack.c.b16 %v497, %v493
  %v694 = vpack.c.b16 %v498, %v494
  %v695 = vpack.c.b16 %v499, %v495
  %v696 = vpack.c.b16 %v504, %v500
  %v697 = vpack.c.b16 %v505, %v501
  %v698 = vpack.c.b16 %v506, %v502
  %v699 = vpack.c.b16 %v507, %v503
  %v700 = vpack.c.b16 %v512, %v508
  %v701 = vpack.c.b16 %v513, %v509
  %v702 = vpack.c.b16 %v514, %v510
  %v703 = vpack.c.b16 %v515, %v511
  %v704 = vpack.c.b16 %v520, %v516
  %v705 = vpack.c.b16 %v521, %v517
  %v706 = vpack.c.b16 %v522, %v518
  %v707 = vpack.c.b16 %v523, %v519
  %v708 = vpack.c.b16 %v528, %v524
  %v709 = vpack.c.b16 %v529, %v525
  %v710 = vpack.c.b16 %v530, %v526
  %v711 = vpack.c.b16 %v531, %v527
  %v712 = vpack.c.b16 %v536, %v532
  %v713 = vpack.c.b16 %v537, %v533
  %v714 = vpack.c.b16 %v538, %v534
  %v715 = vpack.c.b16 %v539, %v535
  %v716 = vpack.c.b16 %v544, %v540
  %v717 = vpack.c.b16 %v545, %v541
  %v718 = vpack.c.b16 %v546, %v542
  %v719 = vpack.c.b16 %v547, %v543
  %v720 = vpack.c.b16 %v552, %v548
  %v721 = vpack.c.b16 %v553, %v549
  %v722 = vpack.c.b16 %v554, %v550
  %v723 = vpack.c.b16 %v555, %v551
  %v724 = vpack.c.b16 %v560, %v556
  %v725 = vpack.c.b16 %v561, %v557
  %v726 = vpack.c.b16 %v562, %v558
  %v727 = vpack.c.b16 %v563, %v559
  %v728 = vpack.c.b16 %v568, %v564
  %v729 = vpack.c.b16 %v569, %v565
  %v730 = vpack.c.b16 %v570, %v566
  %v731 = vpack.c.b16 %v571, %v567
  %v732 = vpack.c.b16 %v576, %v572
  %v733 = vpack.c.b16 %v577, %v573
  %v734 = vpack.c.b16 %v578, %v574
  %v735 = vpack.c.b16 %v579, %v575
  %v736 = vpack.c.b16 %v584, %v580
  %v737 = vpack.c.b16 %v585, %v581
  %v738 = vpack.c.b16 %v586, %v582
  %v739 = vpack.c.b16 %v587, %v583
  %v740 = vpack.c.b16 %v592, %v588
  %v741 = vpack.c.b16 %v593, %v589
  %v742 = vpack.c.b16 %v594, %v590
  %v743 = vpack.c.b16 %v595, %v591
  %v744 = vpack.c.b16 %v600, %v596
  %v745 = vpack.c.b16 %v601, %v597
  %v746 = vpack.c.b16 %v602, %v598
  %v747 = vpack.c.b16 %v603, %v599
  %v748 = vpack.c.b16 %v608, %v604
  %v749 = vpack.c.b16 %v609, %v605
  %v750 = vpack.c.b16 %v610, %v606
  %v751 = vpack.c.b16 %v611, %v607
  %v752 = vpack.c.b16 %v616, %v612
  %v753 = vpack.c.b16 %v617, %v613
  %v754 = vpack.c.b16 %v618, %v614
  %v755 = vpack.c.b16 %v619, %v615
  %v756 = vpack.c.b16 %v624, %v620
  %v757 = vpack.c.b16 %v625, %v621
  %v758 = vpack.c.b16 %v626, %v622
  %v759 = vpack.c.b16 %v627, %v623
  %v760 = vpack.c.b16 %v632, %v628
  %v761 = vpack.c.b16 %v633, %v629
  %v762 = vpack.c.b16 %v634, %v630
  %v763 = vpack.c.b16 %v635, %v631
  %892 = vmatprep.subr.bf16.mxu0 %v665
  %893 = vmatpush1.bf16.msra.mxu0 %v664
  %894 = vmatprep.subr.bf16.mxu0 %v661
  %895 = vmatpush1.bf16.msra.mxu0 %v660
  %896 = vmatprep.subr.bf16.mxu0 %v657
  %897 = vmatpush1.bf16.msra.mxu0 %v656
  %898 = vmatprep.subr.bf16.mxu0 %v653
  %899 = vmatpush1.bf16.msra.mxu0 %v652
  %900 = vmatprep.subr.bf16.mxu0 %v649
  %901 = vmatpush1.bf16.msra.mxu0 %v648
  %902 = vmatprep.subr.bf16.mxu0 %v645
  %903 = vmatpush1.bf16.msra.mxu0 %v644
  %904 = vmatprep.subr.bf16.mxu0 %v641
  %905 = vmatpush1.bf16.msra.mxu0 %v640
  %906 = vmatprep.subr.bf16.mxu0 %v637
  %907 = vmatpush1.bf16.msra.mxu0 %v636
  %908 = vmatprep.subr.bf16.mxu0 %v697
  %909 = vmatpush2.bf16.msra.mxu0 %v696
  %910 = vmatprep.subr.bf16.mxu0 %v693
  %911 = vmatpush2.bf16.msra.mxu0 %v692
  %912 = vmatprep.subr.bf16.mxu0 %v689
  %913 = vmatpush2.bf16.msra.mxu0 %v688
  %914 = vmatprep.subr.bf16.mxu0 %v685
  %915 = vmatpush2.bf16.msra.mxu0 %v684
  %916 = vmatprep.subr.bf16.mxu0 %v681
  %917 = vmatpush2.bf16.msra.mxu0 %v680
  %918 = vmatprep.subr.bf16.mxu0 %v677
  %919 = vmatpush2.bf16.msra.mxu0 %v676
  %920 = vmatprep.subr.bf16.mxu0 %v673
  %921 = vmatpush2.bf16.msra.mxu0 %v672
  %922 = vmatprep.subr.bf16.mxu0 %v669
  %923 = vmatpush2.bf16.msra.mxu0 %v668
  %924 = vmatprep.mubr.bf16.mxu0 %v221
  %925 = vmatmul.mubr.bf16.gmra.mxu0 %v220
  %v926 = vpop.f32.mrf.mxu0
  %v927 = vadd.f32 %v161, %v926
  %v928 = vpop.f32.mrf.mxu0
  %v929 = vadd.f32 %v165, %v928
  %v930 = vpop.f32.mrf.mxu0
  %v931 = vadd.f32 %v161, %v930
  %v932 = vpop.f32.mrf.mxu0
  %v933 = vadd.f32 %v165, %v932
  %934 = vmatprep.mubr.bf16.mxu0 %v225
  %935 = vmatmul.mubr.bf16.gmra.mxu0 %v224
  %v936 = vpop.f32.mrf.mxu0
  %v937 = vadd.f32 %v161, %v936
  %v938 = vpop.f32.mrf.mxu0
  %v939 = vadd.f32 %v165, %v938
  %v940 = vpop.f32.mrf.mxu0
  %v941 = vadd.f32 %v161, %v940
  %v942 = vpop.f32.mrf.mxu0
  %v943 = vadd.f32 %v165, %v942
  %944 = vmatprep.mubr.bf16.mxu0 %v229
  %945 = vmatmul.mubr.bf16.gmra.mxu0 %v228
  %v946 = vpop.f32.mrf.mxu0
  %v947 = vadd.f32 %v161, %v946
  %v948 = vpop.f32.mrf.mxu0
  %v949 = vadd.f32 %v165, %v948
  %v950 = vpop.f32.mrf.mxu0
  %v951 = vadd.f32 %v161, %v950
  %v952 = vpop.f32.mrf.mxu0
  %v953 = vadd.f32 %v165, %v952
  %954 = vmatprep.mubr.bf16.mxu0 %v233
  %955 = vmatmul.mubr.bf16.gmra.mxu0 %v232
  %v956 = vpop.f32.mrf.mxu0
  %v957 = vadd.f32 %v161, %v956
  %v958 = vpop.f32.mrf.mxu0
  %v959 = vadd.f32 %v165, %v958
  %v960 = vpop.f32.mrf.mxu0
  %v961 = vpop.f32.mrf.mxu0
  %962 = vdwg.mxu0
  %963 = vmatprep.subr.bf16.mxu0 %v729
  %964 = vmatpush1.bf16.msra.mxu0 %v728
  %965 = vmatprep.subr.bf16.mxu0 %v725
  %966 = vmatpush1.bf16.msra.mxu0 %v724
  %967 = vmatprep.subr.bf16.mxu0 %v721
  %968 = vmatpush1.bf16.msra.mxu0 %v720
  %969 = vmatprep.subr.bf16.mxu0 %v717
  %970 = vmatpush1.bf16.msra.mxu0 %v716
  %971 = vmatprep.subr.bf16.mxu0 %v713
  %972 = vmatpush1.bf16.msra.mxu0 %v712
  %973 = vmatprep.subr.bf16.mxu0 %v709
  %974 = vmatpush1.bf16.msra.mxu0 %v708
  %975 = vmatprep.subr.bf16.mxu0 %v705
  %976 = vmatpush1.bf16.msra.mxu0 %v704
  %977 = vmatprep.subr.bf16.mxu0 %v701
  %978 = vmatpush1.bf16.msra.mxu0 %v700
  %979 = vmatprep.subr.bf16.mxu0 %v761
  %980 = vmatpush2.bf16.msra.mxu0 %v760
  %981 = vmatprep.subr.bf16.mxu0 %v757
  %982 = vmatpush2.bf16.msra.mxu0 %v756
  %983 = vmatprep.subr.bf16.mxu0 %v753
  %984 = vmatpush2.bf16.msra.mxu0 %v752
  %985 = vmatprep.subr.bf16.mxu0 %v749
  %986 = vmatpush2.bf16.msra.mxu0 %v748
  %987 = vmatprep.subr.bf16.mxu0 %v745
  %988 = vmatpush2.bf16.msra.mxu0 %v744
  %989 = vmatprep.subr.bf16.mxu0 %v741
  %990 = vmatpush2.bf16.msra.mxu0 %v740
  %991 = vmatprep.subr.bf16.mxu0 %v737
  %992 = vmatpush2.bf16.msra.mxu0 %v736
  %993 = vmatprep.subr.bf16.mxu0 %v733
  %994 = vmatpush2.bf16.msra.mxu0 %v732
  %995 = vmatprep.mubr.bf16.mxu0 %v223
  %996 = vmatmul.mubr.bf16.gmra.mxu0 %v222
  %v997 = vpop.f32.mrf.mxu0
  %v998 = vadd.f32 %v927, %v997
  %v999 = vpop.f32.mrf.mxu0
  %v1000 = vadd.f32 %v929, %v999
  %v1001 = vpop.f32.mrf.mxu0
  %v1002 = vadd.f32 %v931, %v1001
  %v1003 = vpop.f32.mrf.mxu0
  %v1004 = vadd.f32 %v933, %v1003
  %1005 = vmatprep.mubr.bf16.mxu0 %v227
  %1006 = vmatmul.mubr.bf16.gmra.mxu0 %v226
  %v1007 = vpop.f32.mrf.mxu0
  %v1008 = vadd.f32 %v937, %v1007
  %v1009 = vpop.f32.mrf.mxu0
  %v1010 = vadd.f32 %v939, %v1009
  %v1011 = vpop.f32.mrf.mxu0
  %v1012 = vadd.f32 %v941, %v1011
  %v1013 = vpop.f32.mrf.mxu0
  %v1014 = vadd.f32 %v943, %v1013
  %1015 = vmatprep.mubr.bf16.mxu0 %v231
  %1016 = vmatmul.mubr.bf16.gmra.mxu0 %v230
  %v1017 = vpop.f32.mrf.mxu0
  %v1018 = vadd.f32 %v947, %v1017
  %v1019 = vpop.f32.mrf.mxu0
  %v1020 = vadd.f32 %v949, %v1019
  %v1021 = vpop.f32.mrf.mxu0
  %v1022 = vadd.f32 %v951, %v1021
  %v1023 = vpop.f32.mrf.mxu0
  %v1024 = vadd.f32 %v953, %v1023
  %1025 = vmatprep.mubr.bf16.mxu0 %v235
  %1026 = vmatmul.mubr.bf16.gmra.mxu0 %v234
  %v1027 = vpop.f32.mrf.mxu0
  %v1028 = vadd.f32 %v957, %v1027
  %v1029 = vpop.f32.mrf.mxu0
  %v1030 = vadd.f32 %v959, %v1029
  %v1031 = vpop.f32.mrf.mxu0
  %v1032 = vpop.f32.mrf.mxu0
  %1033 = vdwg.mxu0
  %1034 = vmatprep.subr.bf16.mxu0 %v667
  %1035 = vmatpush1.bf16.msra.mxu0 %v666
  %1036 = vmatprep.subr.bf16.mxu0 %v663
  %1037 = vmatpush1.bf16.msra.mxu0 %v662
  %1038 = vmatprep.subr.bf16.mxu0 %v659
  %1039 = vmatpush1.bf16.msra.mxu0 %v658
  %1040 = vmatprep.subr.bf16.mxu0 %v655
  %1041 = vmatpush1.bf16.msra.mxu0 %v654
  %1042 = vmatprep.subr.bf16.mxu0 %v651
  %1043 = vmatpush1.bf16.msra.mxu0 %v650
  %1044 = vmatprep.subr.bf16.mxu0 %v647
  %1045 = vmatpush1.bf16.msra.mxu0 %v646
  %1046 = vmatprep.subr.bf16.mxu0 %v643
  %1047 = vmatpush1.bf16.msra.mxu0 %v642
  %1048 = vmatprep.subr.bf16.mxu0 %v639
  %1049 = vmatpush1.bf16.msra.mxu0 %v638
  %1050 = vmatprep.subr.bf16.mxu0 %v699
  %1051 = vmatpush2.bf16.msra.mxu0 %v698
  %1052 = vmatprep.subr.bf16.mxu0 %v695
  %1053 = vmatpush2.bf16.msra.mxu0 %v694
  %1054 = vmatprep.subr.bf16.mxu0 %v691
  %1055 = vmatpush2.bf16.msra.mxu0 %v690
  %1056 = vmatprep.subr.bf16.mxu0 %v687
  %1057 = vmatpush2.bf16.msra.mxu0 %v686
  %1058 = vmatprep.subr.bf16.mxu0 %v683
  %1059 = vmatpush2.bf16.msra.mxu0 %v682
  %1060 = vmatprep.subr.bf16.mxu0 %v679
  %1061 = vmatpush2.bf16.msra.mxu0 %v678
  %1062 = vmatprep.subr.bf16.mxu0 %v675
  %1063 = vmatpush2.bf16.msra.mxu0 %v674
  %1064 = vmatprep.subr.bf16.mxu0 %v671
  %1065 = vmatpush2.bf16.msra.mxu0 %v670
  %1066 = vmatprep.mubr.bf16.mxu0 %v221
  %1067 = vmatmul.mubr.bf16.gmra.mxu0 %v220
  %v1068 = vpop.f32.mrf.mxu0
  %v1069 = vadd.f32 %v169, %v1068
  %v1070 = vpop.f32.mrf.mxu0
  %v1071 = vadd.f32 %v173, %v1070
  %v1072 = vpop.f32.mrf.mxu0
  %v1073 = vadd.f32 %v169, %v1072
  %v1074 = vpop.f32.mrf.mxu0
  %v1075 = vadd.f32 %v173, %v1074
  %1076 = vmatprep.mubr.bf16.mxu0 %v225
  %1077 = vmatmul.mubr.bf16.gmra.mxu0 %v224
  %v1078 = vpop.f32.mrf.mxu0
  %v1079 = vadd.f32 %v169, %v1078
  %v1080 = vpop.f32.mrf.mxu0
  %v1081 = vadd.f32 %v173, %v1080
  %v1082 = vpop.f32.mrf.mxu0
  %v1083 = vadd.f32 %v169, %v1082
  %v1084 = vpop.f32.mrf.mxu0
  %v1085 = vadd.f32 %v173, %v1084
  %1086 = vmatprep.mubr.bf16.mxu0 %v229
  %1087 = vmatmul.mubr.bf16.gmra.mxu0 %v228
  %v1088 = vpop.f32.mrf.mxu0
  %v1089 = vadd.f32 %v169, %v1088
  %v1090 = vpop.f32.mrf.mxu0
  %v1091 = vadd.f32 %v173, %v1090
  %v1092 = vpop.f32.mrf.mxu0
  %v1093 = vadd.f32 %v169, %v1092
  %v1094 = vpop.f32.mrf.mxu0
  %v1095 = vadd.f32 %v173, %v1094
  %1096 = vmatprep.mubr.bf16.mxu0 %v233
  %1097 = vmatmul.mubr.bf16.gmra.mxu0 %v232
  %v1098 = vpop.f32.mrf.mxu0
  %v1099 = vadd.f32 %v169, %v1098
  %v1100 = vpop.f32.mrf.mxu0
  %v1101 = vadd.f32 %v173, %v1100
  %v1102 = vpop.f32.mrf.mxu0
  %v1103 = vpop.f32.mrf.mxu0
  %1104 = vdwg.mxu0
  %1105 = vmatprep.subr.bf16.mxu0 %v731
  %1106 = vmatpush1.bf16.msra.mxu0 %v730
  %1107 = vmatprep.subr.bf16.mxu0 %v727
  %1108 = vmatpush1.bf16.msra.mxu0 %v726
  %1109 = vmatprep.subr.bf16.mxu0 %v723
  %1110 = vmatpush1.bf16.msra.mxu0 %v722
  %1111 = vmatprep.subr.bf16.mxu0 %v719
  %1112 = vmatpush1.bf16.msra.mxu0 %v718
  %1113 = vmatprep.subr.bf16.mxu0 %v715
  %1114 = vmatpush1.bf16.msra.mxu0 %v714
  %1115 = vmatprep.subr.bf16.mxu0 %v711
  %1116 = vmatpush1.bf16.msra.mxu0 %v710
  %1117 = vmatprep.subr.bf16.mxu0 %v707
  %1118 = vmatpush1.bf16.msra.mxu0 %v706
  %1119 = vmatprep.subr.bf16.mxu0 %v703
  %1120 = vmatpush1.bf16.msra.mxu0 %v702
  %1121 = vmatprep.subr.bf16.mxu0 %v763
  %1122 = vmatpush2.bf16.msra.mxu0 %v762
  %1123 = vmatprep.subr.bf16.mxu0 %v759
  %1124 = vmatpush2.bf16.msra.mxu0 %v758
  %1125 = vmatprep.subr.bf16.mxu0 %v755
  %1126 = vmatpush2.bf16.msra.mxu0 %v754
  %1127 = vmatprep.subr.bf16.mxu0 %v751
  %1128 = vmatpush2.bf16.msra.mxu0 %v750
  %1129 = vmatprep.subr.bf16.mxu0 %v747
  %1130 = vmatpush2.bf16.msra.mxu0 %v746
  %1131 = vmatprep.subr.bf16.mxu0 %v743
  %1132 = vmatpush2.bf16.msra.mxu0 %v742
  %1133 = vmatprep.subr.bf16.mxu0 %v739
  %1134 = vmatpush2.bf16.msra.mxu0 %v738
  %1135 = vmatprep.subr.bf16.mxu0 %v735
  %1136 = vmatpush2.bf16.msra.mxu0 %v734
  %1137 = vmatprep.mubr.bf16.mxu0 %v223
  %1138 = vmatmul.mubr.bf16.gmra.mxu0 %v222
  %v1139 = vpop.f32.mrf.mxu0
  %v1140 = vadd.f32 %v1069, %v1139
  %v1141 = vpop.f32.mrf.mxu0
  %v1142 = vadd.f32 %v1071, %v1141
  %v1143 = vpop.f32.mrf.mxu0
  %v1144 = vadd.f32 %v1073, %v1143
  %v1145 = vpop.f32.mrf.mxu0
  %v1146 = vadd.f32 %v1075, %v1145
  %1147 = vmatprep.mubr.bf16.mxu0 %v227
  %1148 = vmatmul.mubr.bf16.gmra.mxu0 %v226
  %v1149 = vpop.f32.mrf.mxu0
  %v1150 = vadd.f32 %v1079, %v1149
  %v1151 = vpop.f32.mrf.mxu0
  %v1152 = vadd.f32 %v1081, %v1151
  %v1153 = vpop.f32.mrf.mxu0
  %v1154 = vadd.f32 %v1083, %v1153
  %v1155 = vpop.f32.mrf.mxu0
  %v1156 = vadd.f32 %v1085, %v1155
  %1157 = vmatprep.mubr.bf16.mxu0 %v231
  %1158 = vmatmul.mubr.bf16.gmra.mxu0 %v230
  %v1159 = vpop.f32.mrf.mxu0
  %v1160 = vadd.f32 %v1089, %v1159
  %v1161 = vpop.f32.mrf.mxu0
  %v1162 = vadd.f32 %v1091, %v1161
  %v1163 = vpop.f32.mrf.mxu0
  %v1164 = vadd.f32 %v1093, %v1163
  %v1165 = vpop.f32.mrf.mxu0
  %v1166 = vadd.f32 %v1095, %v1165
  %1167 = vmatprep.mubr.bf16.mxu0 %v235
  %1168 = vmatmul.mubr.bf16.gmra.mxu0 %v234
  %v1169 = vpop.f32.mrf.mxu0
  %v1170 = vadd.f32 %v1099, %v1169
  %v1171 = vpop.f32.mrf.mxu0
  %v1172 = vadd.f32 %v1101, %v1171
  %v1173 = vpop.f32.mrf.mxu0
  %v1174 = vpop.f32.mrf.mxu0
  %1175 = vdwg.mxu0
  %v1176 = vmax.f32 %v998, 0.0
  %v1177 = vmax.f32 %v1000, 0.0
  %v1178 = vmax.f32 %v1140, 0.0
  %v1179 = vmax.f32 %v1142, 0.0
  %v1180 = vmax.f32 %v1002, 0.0
  %v1181 = vmax.f32 %v1004, 0.0
  %v1182 = vmax.f32 %v1144, 0.0
  %v1183 = vmax.f32 %v1146, 0.0
  %v1184 = vmax.f32 %v1008, 0.0
  %v1185 = vmax.f32 %v1010, 0.0
  %v1186 = vmax.f32 %v1150, 0.0
  %v1187 = vmax.f32 %v1152, 0.0
  %v1188 = vmax.f32 %v1012, 0.0
  %v1189 = vmax.f32 %v1014, 0.0
  %v1190 = vmax.f32 %v1154, 0.0
  %v1191 = vmax.f32 %v1156, 0.0
  %v1192 = vmax.f32 %v1018, 0.0
  %v1193 = vmax.f32 %v1020, 0.0
  %v1194 = vmax.f32 %v1160, 0.0
  %v1195 = vmax.f32 %v1162, 0.0
  %v1196 = vmax.f32 %v1022, 0.0
  %v1197 = vmax.f32 %v1024, 0.0
  %v1198 = vmax.f32 %v1164, 0.0
  %v1199 = vmax.f32 %v1166, 0.0
  %v1200 = vmax.f32 %v1028, 0.0
  %v1201 = vmax.f32 %v1030, 0.0
  %v1202 = vmax.f32 %v1170, 0.0
  %v1203 = vmax.f32 %v1172, 0.0
  %v1204 = vpack.c.bf16 %v1180, %v1176
  %v1205 = vpack.c.bf16 %v1181, %v1177
  %v1206 = vpack.c.bf16 %v1182, %v1178
  %v1207 = vpack.c.bf16 %v1183, %v1179
  %v1208 = vpack.c.bf16 %v1188, %v1184
  %v1209 = vpack.c.bf16 %v1189, %v1185
  %v1210 = vpack.c.bf16 %v1190, %v1186
  %v1211 = vpack.c.bf16 %v1191, %v1187
  %v1212 = vpack.c.bf16 %v1196, %v1192
  %v1213 = vpack.c.bf16 %v1197, %v1193
  %v1214 = vpack.c.bf16 %v1198, %v1194
  %v1215 = vpack.c.bf16 %v1199, %v1195
  %v1216 = vpack.c.bf16 %v1200, %v1200
  %v1217 = vpack.c.bf16 %v1201, %v1201
  %v1218 = vpack.c.bf16 %v1202, %v1202
  %v1219 = vpack.c.bf16 %v1203, %v1203
  %v1236 = vunpack.c.l.b16 %v1204
  %v1237 = vunpack.c.l.b16 %v1205
  %v1238 = vunpack.c.l.b16 %v1206
  %v1239 = vunpack.c.l.b16 %v1207
  %v1240 = vunpack.c.h.b16 %v1204
  %v1241 = vunpack.c.h.b16 %v1205
  %v1242 = vunpack.c.h.b16 %v1206
  %v1243 = vunpack.c.h.b16 %v1207
  %v1244 = vunpack.c.l.b16 %v1208
  %v1245 = vunpack.c.l.b16 %v1209
  %v1246 = vunpack.c.l.b16 %v1210
  %v1247 = vunpack.c.l.b16 %v1211
  %v1248 = vunpack.c.h.b16 %v1208
  %v1249 = vunpack.c.h.b16 %v1209
  %v1250 = vunpack.c.h.b16 %v1210
  %v1251 = vunpack.c.h.b16 %v1211
  %v1252 = vunpack.c.l.b16 %v1212
  %v1253 = vunpack.c.l.b16 %v1213
  %v1254 = vunpack.c.l.b16 %v1214
  %v1255 = vunpack.c.l.b16 %v1215
  %v1256 = vunpack.c.h.b16 %v1212
  %v1257 = vunpack.c.h.b16 %v1213
  %v1258 = vunpack.c.h.b16 %v1214
  %v1259 = vunpack.c.h.b16 %v1215
  %v1260 = vunpack.c.l.b16 %v1216
  %v1261 = vunpack.c.l.b16 %v1217
  %v1262 = vunpack.c.l.b16 %v1218
  %v1263 = vunpack.c.l.b16 %v1219
  %v1264 = vpack.c.b16 %v1237, %v1236
  %v1265 = vpack.c.b16 %v1239, %v1238
  %v1266 = vpack.c.b16 %v1241, %v1240
  %v1267 = vpack.c.b16 %v1243, %v1242
  %v1268 = vpack.c.b16 %v1245, %v1244
  %v1269 = vpack.c.b16 %v1247, %v1246
  %v1270 = vpack.c.b16 %v1249, %v1248
  %v1271 = vpack.c.b16 %v1251, %v1250
  %v1272 = vpack.c.b16 %v1253, %v1252
  %v1273 = vpack.c.b16 %v1255, %v1254
  %v1274 = vpack.c.b16 %v1257, %v1256
  %v1275 = vpack.c.b16 %v1259, %v1258
  %v1276 = vpack.c.b16 %v1261, %v1260
  %v1277 = vpack.c.b16 %v1263, %v1262
  %1292 = vst [vmem:[%s3] sm:$0xff] %v1264
  %1293 = vst [vmem:[%s3 + $0x8] sm:$0xff] %v1265
  %1294 = vst [vmem:[%s3 + $0x10] sm:$0xff] %v1266
  %1295 = vst [vmem:[%s3 + $0x18] sm:$0xff] %v1267
  %1296 = vst [vmem:[%s3 + $0x20] sm:$0xff] %v1268
  %1297 = vst [vmem:[%s3 + $0x28] sm:$0xff] %v1269
  %1298 = vst [vmem:[%s3 + $0x30] sm:$0xff] %v1270
  %1299 = vst [vmem:[%s3 + $0x38] sm:$0xff] %v1271
  %1300 = vst [vmem:[%s3 + $0x40] sm:$0xff] %v1272
  %1301 = vst [vmem:[%s3 + $0x48] sm:$0xff] %v1273
  %1302 = vst [vmem:[%s3 + $0x50] sm:$0xff] %v1274
  %1303 = vst [vmem:[%s3 + $0x58] sm:$0xff] %v1275
  %1304 = vst [vmem:[%s3 + $0x60] sm:$0x11] %v1276
  %1305 = vst [vmem:[%s3 + $0x68] sm:$0x11] %v1277
  // Predicated region
  $region14: #{vae_forward.12} parent=0 // pred_check
    _
  $region15: #{vae_forward.12} parent=0 // pred_check_branch
    %1307 = sbr.rel (0) target = $region17
  $region16: #{vae_forward.12} parent=0 // pred_region
    _
  $region17: #{vae_forward.12} parent=0 // pred_fallthru
    _
  // Predicated region
  $region18: #{vae_forward.12} parent=0 // pred_check
    _
  $region19: #{vae_forward.12} parent=0 // pred_check_branch
    %1309 = sbr.rel (0) target = $region21
  $region20: #{vae_forward.12} parent=0 // pred_region
    _
  $region21: #{vae_forward.12} parent=0 // pred_fallthru
    _

// kernel: vae_forward.13
$region0: #{vae_forward.13}
  #allocation0 [shape = 'u32[]', space=smem, size = 0x4, offset = 0x4, fixed_abs, tag = 'smem constant byte address 0x4 - core index']
  #allocation1 [shape = 'u32[144,128]{1,0:T(1,128)}', space=vmem, size = 0x12000, scoped, tag = 'internal scratch']
  %s0 = inlined_call_operand.vmem [shape: bf16[162,512], index: 0, kind: input, shape index: {}]
  %s1 = inlined_call_operand.vmem [shape: bf16[512,256], index: 1, kind: input, shape index: {}]
  %s2 = inlined_call_operand.vmem [shape: f32[1,256], index: 2, kind: input, shape index: {}]
  %s3 = inlined_call_operand.vmem [shape: bf16[162,256], index: 3, kind: output, shape index: {}]
  %s4 = sld [smem:[#allocation0]]
  $region22: #{vae_forward.13} parent=0
    _
  %s6 = ssub.s32 1, %s4
  %s7 = scalar_select 0, %s6, %s4
  // Predicated region
  $region2: #{vae_forward.13} parent=0 // pred_check
    _
  $region3: #{vae_forward.13} parent=0 // pred_check_branch
    %9 = sbr.rel (0) target = $region5
  $region4: #{vae_forward.13} parent=0 // pred_region
    _
  $region5: #{vae_forward.13} parent=0 // pred_fallthru
    _
  // Predicated region
  $region6: #{vae_forward.13} parent=0 // pred_check
    _
  $region7: #{vae_forward.13} parent=0 // pred_check_branch
    %11 = sbr.rel (0) target = $region9
  $region8: #{vae_forward.13} parent=0 // pred_region
    _
  $region9: #{vae_forward.13} parent=0 // pred_fallthru
    _
  // Predicated region
  $region10: #{vae_forward.13} parent=0 // pred_check
    _
  $region11: #{vae_forward.13} parent=0 // pred_check_branch
    %13 = sbr.rel (0) target = $region13
  $region12: #{vae_forward.13} parent=0 // pred_region
    _
  $region13: #{vae_forward.13} parent=0 // pred_fallthru
    _
  %v14 = vld [vmem:[%s0] sm:$0xff]
  %v15 = vld [vmem:[%s0 + $0x8] sm:$0xff]
  %v16 = vld [vmem:[%s0 + $0x10] sm:$0xff]
  %v17 = vld [vmem:[%s0 + $0x18] sm:$0xff]
  %v18 = vld [vmem:[%s0 + $0x20] sm:$0xff]
  %v19 = vld [vmem:[%s0 + $0x28] sm:$0xff]
  %v20 = vld [vmem:[%s0 + $0x30] sm:$0xff]
  %v21 = vld [vmem:[%s0 + $0x38] sm:$0xff]
  %v22 = vld [vmem:[%s0 + $0x40] sm:$0xff]
  %v23 = vld [vmem:[%s0 + $0x48] sm:$0xff]
  %v24 = vld [vmem:[%s0 + $0x50] sm:$0xff]
  %v25 = vld [vmem:[%s0 + $0x58] sm:$0xff]
  %v26 = vld [vmem:[%s0 + $0x60] sm:$0xff]
  %v27 = vld [vmem:[%s0 + $0x68] sm:$0xff]
  %v28 = vld [vmem:[%s0 + $0x70] sm:$0xff]
  %v29 = vld [vmem:[%s0 + $0x78] sm:$0xff]
  %v30 = vld [vmem:[%s0 + $0x80] sm:$0xff]
  %v31 = vld [vmem:[%s0 + $0x88] sm:$0xff]
  %v32 = vld [vmem:[%s0 + $0x90] sm:$0xff]
  %v33 = vld [vmem:[%s0 + $0x98] sm:$0xff]
  %v34 = vld [vmem:[%s0 + $0xa0] sm:$0xff]
  %v35 = vld [vmem:[%s0 + $0xa8] sm:$0xff]
  %v36 = vld [vmem:[%s0 + $0xb0] sm:$0xff]
  %v37 = vld [vmem:[%s0 + $0xb8] sm:$0xff]
  %v38 = vld [vmem:[%s0 + $0xc0] sm:$0xff]
  %v39 = vld [vmem:[%s0 + $0xc8] sm:$0xff]
  %v40 = vld [vmem:[%s0 + $0xd0] sm:$0xff]
  %v41 = vld [vmem:[%s0 + $0xd8] sm:$0xff]
  %v42 = vld [vmem:[%s0 + $0xe0] sm:$0xff]
  %v43 = vld [vmem:[%s0 + $0xe8] sm:$0xff]
  %v44 = vld [vmem:[%s0 + $0xf0] sm:$0xff]
  %v45 = vld [vmem:[%s0 + $0xf8] sm:$0xff]
  %v46 = vld [vmem:[%s0 + $0x100] sm:$0xff]
  %v47 = vld [vmem:[%s0 + $0x108] sm:$0xff]
  %v48 = vld [vmem:[%s0 + $0x110] sm:$0xff]
  %v49 = vld [vmem:[%s0 + $0x118] sm:$0xff]
  %v50 = vld [vmem:[%s0 + $0x120] sm:$0xff]
  %v51 = vld [vmem:[%s0 + $0x128] sm:$0xff]
  %v52 = vld [vmem:[%s0 + $0x130] sm:$0xff]
  %v53 = vld [vmem:[%s0 + $0x138] sm:$0xff]
  %v54 = vld [vmem:[%s0 + $0x140] sm:$0x11]
  %v55 = vld [vmem:[%s0 + $0x148] sm:$0x11]
  %v56 = vld [vmem:[%s1] sm:$0xff]
  %v57 = vld [vmem:[%s1 + $0x8] sm:$0xff]
  %v58 = vld [vmem:[%s1 + $0x10] sm:$0xff]
  %v59 = vld [vmem:[%s1 + $0x18] sm:$0xff]
  %v60 = vld [vmem:[%s1 + $0x20] sm:$0xff]
  %v61 = vld [vmem:[%s1 + $0x28] sm:$0xff]
  %v62 = vld [vmem:[%s1 + $0x30] sm:$0xff]
  %v63 = vld [vmem:[%s1 + $0x38] sm:$0xff]
  %v64 = vld [vmem:[%s1 + $0x40] sm:$0xff]
  %v65 = vld [vmem:[%s1 + $0x48] sm:$0xff]
  %v66 = vld [vmem:[%s1 + $0x50] sm:$0xff]
  %v67 = vld [vmem:[%s1 + $0x58] sm:$0xff]
  %v68 = vld [vmem:[%s1 + $0x60] sm:$0xff]
  %v69 = vld [vmem:[%s1 + $0x68] sm:$0xff]
  %v70 = vld [vmem:[%s1 + $0x70] sm:$0xff]
  %v71 = vld [vmem:[%s1 + $0x78] sm:$0xff]
  %v72 = vld [vmem:[%s1 + $0x80] sm:$0xff]
  %v73 = vld [vmem:[%s1 + $0x88] sm:$0xff]
  %v74 = vld [vmem:[%s1 + $0x90] sm:$0xff]
  %v75 = vld [vmem:[%s1 + $0x98] sm:$0xff]
  %v76 = vld [vmem:[%s1 + $0xa0] sm:$0xff]
  %v77 = vld [vmem:[%s1 + $0xa8] sm:$0xff]
  %v78 = vld [vmem:[%s1 + $0xb0] sm:$0xff]
  %v79 = vld [vmem:[%s1 + $0xb8] sm:$0xff]
  %v80 = vld [vmem:[%s1 + $0xc0] sm:$0xff]
  %v81 = vld [vmem:[%s1 + $0xc8] sm:$0xff]
  %v82 = vld [vmem:[%s1 + $0xd0] sm:$0xff]
  %v83 = vld [vmem:[%s1 + $0xd8] sm:$0xff]
  %v84 = vld [vmem:[%s1 + $0xe0] sm:$0xff]
  %v85 = vld [vmem:[%s1 + $0xe8] sm:$0xff]
  %v86 = vld [vmem:[%s1 + $0xf0] sm:$0xff]
  %v87 = vld [vmem:[%s1 + $0xf8] sm:$0xff]
  %v88 = vld [vmem:[%s1 + $0x100] sm:$0xff]
  %v89 = vld [vmem:[%s1 + $0x108] sm:$0xff]
  %v90 = vld [vmem:[%s1 + $0x110] sm:$0xff]
  %v91 = vld [vmem:[%s1 + $0x118] sm:$0xff]
  %v92 = vld [vmem:[%s1 + $0x120] sm:$0xff]
  %v93 = vld [vmem:[%s1 + $0x128] sm:$0xff]
  %v94 = vld [vmem:[%s1 + $0x130] sm:$0xff]
  %v95 = vld [vmem:[%s1 + $0x138] sm:$0xff]
  %v96 = vld [vmem:[%s1 + $0x140] sm:$0xff]
  %v97 = vld [vmem:[%s1 + $0x148] sm:$0xff]
  %v98 = vld [vmem:[%s1 + $0x150] sm:$0xff]
  %v99 = vld [vmem:[%s1 + $0x158] sm:$0xff]
  %v100 = vld [vmem:[%s1 + $0x160] sm:$0xff]
  %v101 = vld [vmem:[%s1 + $0x168] sm:$0xff]
  %v102 = vld [vmem:[%s1 + $0x170] sm:$0xff]
  %v103 = vld [vmem:[%s1 + $0x178] sm:$0xff]
  %v104 = vld [vmem:[%s1 + $0x180] sm:$0xff]
  %v105 = vld [vmem:[%s1 + $0x188] sm:$0xff]
  %v106 = vld [vmem:[%s1 + $0x190] sm:$0xff]
  %v107 = vld [vmem:[%s1 + $0x198] sm:$0xff]
  %v108 = vld [vmem:[%s1 + $0x1a0] sm:$0xff]
  %v109 = vld [vmem:[%s1 + $0x1a8] sm:$0xff]
  %v110 = vld [vmem:[%s1 + $0x1b0] sm:$0xff]
  %v111 = vld [vmem:[%s1 + $0x1b8] sm:$0xff]
  %v112 = vld [vmem:[%s1 + $0x1c0] sm:$0xff]
  %v113 = vld [vmem:[%s1 + $0x1c8] sm:$0xff]
  %v114 = vld [vmem:[%s1 + $0x1d0] sm:$0xff]
  %v115 = vld [vmem:[%s1 + $0x1d8] sm:$0xff]
  %v116 = vld [vmem:[%s1 + $0x1e0] sm:$0xff]
  %v117 = vld [vmem:[%s1 + $0x1e8] sm:$0xff]
  %v118 = vld [vmem:[%s1 + $0x1f0] sm:$0xff]
  %v119 = vld [vmem:[%s1 + $0x1f8] sm:$0xff]
  %v120 = vld [vmem:[%s2] sm:$0x3]
  %v122 = vlaneseq
  %v123 = vshrl.u32 %v122, 7
  %v124 = vsub.s32 0, %v123
  %v125 = vrot.slane %v120, %v124
  %v126 = vlaneseq
  %v127 = vshrl.u32 %v126, 7
  %v128 = vsub.s32 1, %v127
  %v129 = vrot.slane %v120, %v128
  %v174 = vunpack.c.l.b16 %v14
  %v175 = vunpack.c.h.b16 %v14
  %v176 = vunpack.c.l.b16 %v15
  %v177 = vunpack.c.h.b16 %v15
  %v178 = vunpack.c.l.b16 %v16
  %v179 = vunpack.c.h.b16 %v16
  %v180 = vunpack.c.l.b16 %v17
  %v181 = vunpack.c.h.b16 %v17
  %v182 = vunpack.c.l.b16 %v18
  %v183 = vunpack.c.h.b16 %v18
  %v184 = vunpack.c.l.b16 %v19
  %v185 = vunpack.c.h.b16 %v19
  %v186 = vunpack.c.l.b16 %v20
  %v187 = vunpack.c.h.b16 %v20
  %v188 = vunpack.c.l.b16 %v21
  %v189 = vunpack.c.h.b16 %v21
  %v190 = vunpack.c.l.b16 %v22
  %v191 = vunpack.c.h.b16 %v22
  %v192 = vunpack.c.l.b16 %v23
  %v193 = vunpack.c.h.b16 %v23
  %v194 = vunpack.c.l.b16 %v24
  %v195 = vunpack.c.h.b16 %v24
  %v196 = vunpack.c.l.b16 %v25
  %v197 = vunpack.c.h.b16 %v25
  %v198 = vunpack.c.l.b16 %v26
  %v199 = vunpack.c.h.b16 %v26
  %v200 = vunpack.c.l.b16 %v27
  %v201 = vunpack.c.h.b16 %v27
  %v202 = vunpack.c.l.b16 %v28
  %v203 = vunpack.c.h.b16 %v28
  %v204 = vunpack.c.l.b16 %v29
  %v205 = vunpack.c.h.b16 %v29
  %v206 = vunpack.c.l.b16 %v30
  %v207 = vunpack.c.h.b16 %v30
  %v208 = vunpack.c.l.b16 %v31
  %v209 = vunpack.c.h.b16 %v31
  %v210 = vunpack.c.l.b16 %v32
  %v211 = vunpack.c.h.b16 %v32
  %v212 = vunpack.c.l.b16 %v33
  %v213 = vunpack.c.h.b16 %v33
  %v214 = vunpack.c.l.b16 %v34
  %v215 = vunpack.c.h.b16 %v34
  %v216 = vunpack.c.l.b16 %v35
  %v217 = vunpack.c.h.b16 %v35
  %v218 = vunpack.c.l.b16 %v36
  %v219 = vunpack.c.h.b16 %v36
  %v220 = vunpack.c.l.b16 %v37
  %v221 = vunpack.c.h.b16 %v37
  %v222 = vunpack.c.l.b16 %v38
  %v223 = vunpack.c.h.b16 %v38
  %v224 = vunpack.c.l.b16 %v39
  %v225 = vunpack.c.h.b16 %v39
  %v226 = vunpack.c.l.b16 %v40
  %v227 = vunpack.c.h.b16 %v40
  %v228 = vunpack.c.l.b16 %v41
  %v229 = vunpack.c.h.b16 %v41
  %v230 = vunpack.c.l.b16 %v42
  %v231 = vunpack.c.h.b16 %v42
  %v232 = vunpack.c.l.b16 %v43
  %v233 = vunpack.c.h.b16 %v43
  %v234 = vunpack.c.l.b16 %v44
  %v235 = vunpack.c.h.b16 %v44
  %v236 = vunpack.c.l.b16 %v45
  %v237 = vunpack.c.h.b16 %v45
  %v238 = vunpack.c.l.b16 %v46
  %v239 = vunpack.c.h.b16 %v46
  %v240 = vunpack.c.l.b16 %v47
  %v241 = vunpack.c.h.b16 %v47
  %v242 = vunpack.c.l.b16 %v48
  %v243 = vunpack.c.h.b16 %v48
  %v244 = vunpack.c.l.b16 %v49
  %v245 = vunpack.c.h.b16 %v49
  %v246 = vunpack.c.l.b16 %v50
  %v247 = vunpack.c.h.b16 %v50
  %v248 = vunpack.c.l.b16 %v51
  %v249 = vunpack.c.h.b16 %v51
  %v250 = vunpack.c.l.b16 %v52
  %v251 = vunpack.c.h.b16 %v52
  %v252 = vunpack.c.l.b16 %v53
  %v253 = vunpack.c.h.b16 %v53
  %v254 = vunpack.c.l.b16 %v54
  %v255 = vunpack.c.h.b16 %v54
  %v256 = vunpack.c.l.b16 %v55
  %v257 = vunpack.c.h.b16 %v55
  %v258 = vpack.c.b16 %v178, %v174
  %v259 = vpack.c.b16 %v179, %v175
  %v260 = vpack.c.b16 %v180, %v176
  %v261 = vpack.c.b16 %v181, %v177
  %v262 = vpack.c.b16 %v186, %v182
  %v263 = vpack.c.b16 %v187, %v183
  %v264 = vpack.c.b16 %v188, %v184
  %v265 = vpack.c.b16 %v189, %v185
  %v266 = vpack.c.b16 %v194, %v190
  %v267 = vpack.c.b16 %v195, %v191
  %v268 = vpack.c.b16 %v196, %v192
  %v269 = vpack.c.b16 %v197, %v193
  %v270 = vpack.c.b16 %v202, %v198
  %v271 = vpack.c.b16 %v203, %v199
  %v272 = vpack.c.b16 %v204, %v200
  %v273 = vpack.c.b16 %v205, %v201
  %v274 = vpack.c.b16 %v210, %v206
  %v275 = vpack.c.b16 %v211, %v207
  %v276 = vpack.c.b16 %v212, %v208
  %v277 = vpack.c.b16 %v213, %v209
  %v278 = vpack.c.b16 %v218, %v214
  %v279 = vpack.c.b16 %v219, %v215
  %v280 = vpack.c.b16 %v220, %v216
  %v281 = vpack.c.b16 %v221, %v217
  %v282 = vpack.c.b16 %v226, %v222
  %v283 = vpack.c.b16 %v227, %v223
  %v284 = vpack.c.b16 %v228, %v224
  %v285 = vpack.c.b16 %v229, %v225
  %v286 = vpack.c.b16 %v234, %v230
  %v287 = vpack.c.b16 %v235, %v231
  %v288 = vpack.c.b16 %v236, %v232
  %v289 = vpack.c.b16 %v237, %v233
  %v290 = vpack.c.b16 %v242, %v238
  %v291 = vpack.c.b16 %v243, %v239
  %v292 = vpack.c.b16 %v244, %v240
  %v293 = vpack.c.b16 %v245, %v241
  %v294 = vpack.c.b16 %v250, %v246
  %v295 = vpack.c.b16 %v251, %v247
  %v296 = vpack.c.b16 %v252, %v248
  %v297 = vpack.c.b16 %v253, %v249
  %v298 = vpack.c.b16 %v254, %v254
  %v299 = vpack.c.b16 %v255, %v255
  %v300 = vpack.c.b16 %v256, %v256
  %v301 = vpack.c.b16 %v257, %v257
  %v410 = vunpack.c.l.b16 %v56
  %v411 = vunpack.c.h.b16 %v56
  %v412 = vunpack.c.l.b16 %v57
  %v413 = vunpack.c.h.b16 %v57
  %v414 = vunpack.c.l.b16 %v58
  %v415 = vunpack.c.h.b16 %v58
  %v416 = vunpack.c.l.b16 %v59
  %v417 = vunpack.c.h.b16 %v59
  %v418 = vunpack.c.l.b16 %v60
  %v419 = vunpack.c.h.b16 %v60
  %v420 = vunpack.c.l.b16 %v61
  %v421 = vunpack.c.h.b16 %v61
  %v422 = vunpack.c.l.b16 %v62
  %v423 = vunpack.c.h.b16 %v62
  %v424 = vunpack.c.l.b16 %v63
  %v425 = vunpack.c.h.b16 %v63
  %v426 = vunpack.c.l.b16 %v64
  %v427 = vunpack.c.h.b16 %v64
  %v428 = vunpack.c.l.b16 %v65
  %v429 = vunpack.c.h.b16 %v65
  %v430 = vunpack.c.l.b16 %v66
  %v431 = vunpack.c.h.b16 %v66
  %v432 = vunpack.c.l.b16 %v67
  %v433 = vunpack.c.h.b16 %v67
  %v434 = vunpack.c.l.b16 %v68
  %v435 = vunpack.c.h.b16 %v68
  %v436 = vunpack.c.l.b16 %v69
  %v437 = vunpack.c.h.b16 %v69
  %v438 = vunpack.c.l.b16 %v70
  %v439 = vunpack.c.h.b16 %v70
  %v440 = vunpack.c.l.b16 %v71
  %v441 = vunpack.c.h.b16 %v71
  %v442 = vunpack.c.l.b16 %v72
  %v443 = vunpack.c.h.b16 %v72
  %v444 = vunpack.c.l.b16 %v73
  %v445 = vunpack.c.h.b16 %v73
  %v446 = vunpack.c.l.b16 %v74
  %v447 = vunpack.c.h.b16 %v74
  %v448 = vunpack.c.l.b16 %v75
  %v449 = vunpack.c.h.b16 %v75
  %v450 = vunpack.c.l.b16 %v76
  %v451 = vunpack.c.h.b16 %v76
  %v452 = vunpack.c.l.b16 %v77
  %v453 = vunpack.c.h.b16 %v77
  %v454 = vunpack.c.l.b16 %v78
  %v455 = vunpack.c.h.b16 %v78
  %v456 = vunpack.c.l.b16 %v79
  %v457 = vunpack.c.h.b16 %v79
  %v458 = vunpack.c.l.b16 %v80
  %v459 = vunpack.c.h.b16 %v80
  %v460 = vunpack.c.l.b16 %v81
  %v461 = vunpack.c.h.b16 %v81
  %v462 = vunpack.c.l.b16 %v82
  %v463 = vunpack.c.h.b16 %v82
  %v464 = vunpack.c.l.b16 %v83
  %v465 = vunpack.c.h.b16 %v83
  %v466 = vunpack.c.l.b16 %v84
  %v467 = vunpack.c.h.b16 %v84
  %v468 = vunpack.c.l.b16 %v85
  %v469 = vunpack.c.h.b16 %v85
  %v470 = vunpack.c.l.b16 %v86
  %v471 = vunpack.c.h.b16 %v86
  %v472 = vunpack.c.l.b16 %v87
  %v473 = vunpack.c.h.b16 %v87
  %v474 = vunpack.c.l.b16 %v88
  %v475 = vunpack.c.h.b16 %v88
  %v476 = vunpack.c.l.b16 %v89
  %v477 = vunpack.c.h.b16 %v89
  %v478 = vunpack.c.l.b16 %v90
  %v479 = vunpack.c.h.b16 %v90
  %v480 = vunpack.c.l.b16 %v91
  %v481 = vunpack.c.h.b16 %v91
  %v482 = vunpack.c.l.b16 %v92
  %v483 = vunpack.c.h.b16 %v92
  %v484 = vunpack.c.l.b16 %v93
  %v485 = vunpack.c.h.b16 %v93
  %v486 = vunpack.c.l.b16 %v94
  %v487 = vunpack.c.h.b16 %v94
  %v488 = vunpack.c.l.b16 %v95
  %v489 = vunpack.c.h.b16 %v95
  %v490 = vunpack.c.l.b16 %v96
  %v491 = vunpack.c.h.b16 %v96
  %v492 = vunpack.c.l.b16 %v97
  %v493 = vunpack.c.h.b16 %v97
  %v494 = vunpack.c.l.b16 %v98
  %v495 = vunpack.c.h.b16 %v98
  %v496 = vunpack.c.l.b16 %v99
  %v497 = vunpack.c.h.b16 %v99
  %v498 = vunpack.c.l.b16 %v100
  %v499 = vunpack.c.h.b16 %v100
  %v500 = vunpack.c.l.b16 %v101
  %v501 = vunpack.c.h.b16 %v101
  %v502 = vunpack.c.l.b16 %v102
  %v503 = vunpack.c.h.b16 %v102
  %v504 = vunpack.c.l.b16 %v103
  %v505 = vunpack.c.h.b16 %v103
  %v506 = vunpack.c.l.b16 %v104
  %v507 = vunpack.c.h.b16 %v104
  %v508 = vunpack.c.l.b16 %v105
  %v509 = vunpack.c.h.b16 %v105
  %v510 = vunpack.c.l.b16 %v106
  %v511 = vunpack.c.h.b16 %v106
  %v512 = vunpack.c.l.b16 %v107
  %v513 = vunpack.c.h.b16 %v107
  %v514 = vunpack.c.l.b16 %v108
  %v515 = vunpack.c.h.b16 %v108
  %v516 = vunpack.c.l.b16 %v109
  %v517 = vunpack.c.h.b16 %v109
  %v518 = vunpack.c.l.b16 %v110
  %v519 = vunpack.c.h.b16 %v110
  %v520 = vunpack.c.l.b16 %v111
  %v521 = vunpack.c.h.b16 %v111
  %v522 = vunpack.c.l.b16 %v112
  %v523 = vunpack.c.h.b16 %v112
  %v524 = vunpack.c.l.b16 %v113
  %v525 = vunpack.c.h.b16 %v113
  %v526 = vunpack.c.l.b16 %v114
  %v527 = vunpack.c.h.b16 %v114
  %v528 = vunpack.c.l.b16 %v115
  %v529 = vunpack.c.h.b16 %v115
  %v530 = vunpack.c.l.b16 %v116
  %v531 = vunpack.c.h.b16 %v116
  %v532 = vunpack.c.l.b16 %v117
  %v533 = vunpack.c.h.b16 %v117
  %v534 = vunpack.c.l.b16 %v118
  %v535 = vunpack.c.h.b16 %v118
  %v536 = vunpack.c.l.b16 %v119
  %v537 = vunpack.c.h.b16 %v119
  %v538 = vpack.c.b16 %v412, %v410
  %v539 = vpack.c.b16 %v413, %v411
  %v540 = vpack.c.b16 %v416, %v414
  %v541 = vpack.c.b16 %v417, %v415
  %v542 = vpack.c.b16 %v420, %v418
  %v543 = vpack.c.b16 %v421, %v419
  %v544 = vpack.c.b16 %v424, %v422
  %v545 = vpack.c.b16 %v425, %v423
  %v546 = vpack.c.b16 %v428, %v426
  %v547 = vpack.c.b16 %v429, %v427
  %v548 = vpack.c.b16 %v432, %v430
  %v549 = vpack.c.b16 %v433, %v431
  %v550 = vpack.c.b16 %v436, %v434
  %v551 = vpack.c.b16 %v437, %v435
  %v552 = vpack.c.b16 %v440, %v438
  %v553 = vpack.c.b16 %v441, %v439
  %v554 = vpack.c.b16 %v444, %v442
  %v555 = vpack.c.b16 %v445, %v443
  %v556 = vpack.c.b16 %v448, %v446
  %v557 = vpack.c.b16 %v449, %v447
  %v558 = vpack.c.b16 %v452, %v450
  %v559 = vpack.c.b16 %v453, %v451
  %v560 = vpack.c.b16 %v456, %v454
  %v561 = vpack.c.b16 %v457, %v455
  %v562 = vpack.c.b16 %v460, %v458
  %v563 = vpack.c.b16 %v461, %v459
  %v564 = vpack.c.b16 %v464, %v462
  %v565 = vpack.c.b16 %v465, %v463
  %v566 = vpack.c.b16 %v468, %v466
  %v567 = vpack.c.b16 %v469, %v467
  %v568 = vpack.c.b16 %v472, %v470
  %v569 = vpack.c.b16 %v473, %v471
  %v570 = vpack.c.b16 %v476, %v474
  %v571 = vpack.c.b16 %v477, %v475
  %v572 = vpack.c.b16 %v480, %v478
  %v573 = vpack.c.b16 %v481, %v479
  %v574 = vpack.c.b16 %v484, %v482
  %v575 = vpack.c.b16 %v485, %v483
  %v576 = vpack.c.b16 %v488, %v486
  %v577 = vpack.c.b16 %v489, %v487
  %v578 = vpack.c.b16 %v492, %v490
  %v579 = vpack.c.b16 %v493, %v491
  %v580 = vpack.c.b16 %v496, %v494
  %v581 = vpack.c.b16 %v497, %v495
  %v582 = vpack.c.b16 %v500, %v498
  %v583 = vpack.c.b16 %v501, %v499
  %v584 = vpack.c.b16 %v504, %v502
  %v585 = vpack.c.b16 %v505, %v503
  %v586 = vpack.c.b16 %v508, %v506
  %v587 = vpack.c.b16 %v509, %v507
  %v588 = vpack.c.b16 %v512, %v510
  %v589 = vpack.c.b16 %v513, %v511
  %v590 = vpack.c.b16 %v516, %v514
  %v591 = vpack.c.b16 %v517, %v515
  %v592 = vpack.c.b16 %v520, %v518
  %v593 = vpack.c.b16 %v521, %v519
  %v594 = vpack.c.b16 %v524, %v522
  %v595 = vpack.c.b16 %v525, %v523
  %v596 = vpack.c.b16 %v528, %v526
  %v597 = vpack.c.b16 %v529, %v527
  %v598 = vpack.c.b16 %v532, %v530
  %v599 = vpack.c.b16 %v533, %v531
  %v600 = vpack.c.b16 %v536, %v534
  %v601 = vpack.c.b16 %v537, %v535
  %666 = vmatprep.subr.bf16.mxu0 %v553
  %667 = vmatpush1.bf16.msra.mxu0 %v552
  %668 = vmatprep.subr.bf16.mxu0 %v551
  %669 = vmatpush1.bf16.msra.mxu0 %v550
  %670 = vmatprep.subr.bf16.mxu0 %v549
  %671 = vmatpush1.bf16.msra.mxu0 %v548
  %672 = vmatprep.subr.bf16.mxu0 %v547
  %673 = vmatpush1.bf16.msra.mxu0 %v546
  %674 = vmatprep.subr.bf16.mxu0 %v545
  %675 = vmatpush1.bf16.msra.mxu0 %v544
  %676 = vmatprep.subr.bf16.mxu0 %v543
  %677 = vmatpush1.bf16.msra.mxu0 %v542
  %678 = vmatprep.subr.bf16.mxu0 %v541
  %679 = vmatpush1.bf16.msra.mxu0 %v540
  %680 = vmatprep.subr.bf16.mxu0 %v539
  %681 = vmatpush1.bf16.msra.mxu0 %v538
  %682 = vmatprep.subr.bf16.mxu0 %v569
  %683 = vmatpush2.bf16.msra.mxu0 %v568
  %684 = vmatprep.subr.bf16.mxu0 %v567
  %685 = vmatpush2.bf16.msra.mxu0 %v566
  %686 = vmatprep.subr.bf16.mxu0 %v565
  %687 = vmatpush2.bf16.msra.mxu0 %v564
  %688 = vmatprep.subr.bf16.mxu0 %v563
  %689 = vmatpush2.bf16.msra.mxu0 %v562
  %690 = vmatprep.subr.bf16.mxu0 %v561
  %691 = vmatpush2.bf16.msra.mxu0 %v560
  %692 = vmatprep.subr.bf16.mxu0 %v559
  %693 = vmatpush2.bf16.msra.mxu0 %v558
  %694 = vmatprep.subr.bf16.mxu0 %v557
  %695 = vmatpush2.bf16.msra.mxu0 %v556
  %696 = vmatprep.subr.bf16.mxu0 %v555
  %697 = vmatpush2.bf16.msra.mxu0 %v554
  %698 = vmatprep.mubr.bf16.mxu0 %v259
  %699 = vmatmul.mubr.bf16.gmra.mxu0 %v258
  %v700 = vpop.f32.mrf.mxu0
  %v701 = vadd.f32 %v125, %v700
  %v702 = vpop.f32.mrf.mxu0
  %v703 = vadd.f32 %v129, %v702
  %v704 = vpop.f32.mrf.mxu0
  %v705 = vadd.f32 %v125, %v704
  %v706 = vpop.f32.mrf.mxu0
  %v707 = vadd.f32 %v129, %v706
  %708 = vmatprep.mubr.bf16.mxu0 %v263
  %709 = vmatmul.mubr.bf16.gmra.mxu0 %v262
  %v710 = vpop.f32.mrf.mxu0
  %v711 = vadd.f32 %v125, %v710
  %v712 = vpop.f32.mrf.mxu0
  %v713 = vadd.f32 %v129, %v712
  %v714 = vpop.f32.mrf.mxu0
  %v715 = vadd.f32 %v125, %v714
  %v716 = vpop.f32.mrf.mxu0
  %v717 = vadd.f32 %v129, %v716
  %718 = vmatprep.mubr.bf16.mxu0 %v267
  %719 = vmatmul.mubr.bf16.gmra.mxu0 %v266
  %v720 = vpop.f32.mrf.mxu0
  %v721 = vadd.f32 %v125, %v720
  %v722 = vpop.f32.mrf.mxu0
  %v723 = vadd.f32 %v129, %v722
  %v724 = vpop.f32.mrf.mxu0
  %v725 = vadd.f32 %v125, %v724
  %v726 = vpop.f32.mrf.mxu0
  %v727 = vadd.f32 %v129, %v726
  %728 = vmatprep.mubr.bf16.mxu0 %v271
  %729 = vmatmul.mubr.bf16.gmra.mxu0 %v270
  %v730 = vpop.f32.mrf.mxu0
  %v731 = vadd.f32 %v125, %v730
  %v732 = vpop.f32.mrf.mxu0
  %v733 = vadd.f32 %v129, %v732
  %v734 = vpop.f32.mrf.mxu0
  %v735 = vadd.f32 %v125, %v734
  %v736 = vpop.f32.mrf.mxu0
  %v737 = vadd.f32 %v129, %v736
  %738 = vmatprep.mubr.bf16.mxu0 %v275
  %739 = vmatmul.mubr.bf16.gmra.mxu0 %v274
  %v740 = vpop.f32.mrf.mxu0
  %v741 = vadd.f32 %v125, %v740
  %v742 = vpop.f32.mrf.mxu0
  %v743 = vadd.f32 %v129, %v742
  %v744 = vpop.f32.mrf.mxu0
  %v745 = vadd.f32 %v125, %v744
  %v746 = vpop.f32.mrf.mxu0
  %v747 = vadd.f32 %v129, %v746
  %748 = vmatprep.mubr.bf16.mxu0 %v279
  %749 = vmatmul.mubr.bf16.gmra.mxu0 %v278
  %v750 = vpop.f32.mrf.mxu0
  %v751 = vadd.f32 %v125, %v750
  %v752 = vpop.f32.mrf.mxu0
  %v753 = vadd.f32 %v129, %v752
  %v754 = vpop.f32.mrf.mxu0
  %v755 = vadd.f32 %v125, %v754
  %v756 = vpop.f32.mrf.mxu0
  %v757 = vadd.f32 %v129, %v756
  %758 = vmatprep.mubr.bf16.mxu0 %v283
  %759 = vmatmul.mubr.bf16.gmra.mxu0 %v282
  %v760 = vpop.f32.mrf.mxu0
  %v761 = vadd.f32 %v125, %v760
  %v762 = vpop.f32.mrf.mxu0
  %v763 = vadd.f32 %v129, %v762
  %v764 = vpop.f32.mrf.mxu0
  %v765 = vadd.f32 %v125, %v764
  %v766 = vpop.f32.mrf.mxu0
  %v767 = vadd.f32 %v129, %v766
  %768 = vmatprep.mubr.bf16.mxu0 %v287
  %769 = vmatmul.mubr.bf16.gmra.mxu0 %v286
  %v770 = vpop.f32.mrf.mxu0
  %v771 = vadd.f32 %v125, %v770
  %v772 = vpop.f32.mrf.mxu0
  %v773 = vadd.f32 %v129, %v772
  %v774 = vpop.f32.mrf.mxu0
  %v775 = vadd.f32 %v125, %v774
  %v776 = vpop.f32.mrf.mxu0
  %v777 = vadd.f32 %v129, %v776
  %778 = vmatprep.mubr.bf16.mxu0 %v291
  %779 = vmatmul.mubr.bf16.gmra.mxu0 %v290
  %v780 = vpop.f32.mrf.mxu0
  %v781 = vadd.f32 %v125, %v780
  %v782 = vpop.f32.mrf.mxu0
  %v783 = vadd.f32 %v129, %v782
  %v784 = vpop.f32.mrf.mxu0
  %v785 = vadd.f32 %v125, %v784
  %v786 = vpop.f32.mrf.mxu0
  %v787 = vadd.f32 %v129, %v786
  %788 = vmatprep.mubr.bf16.mxu0 %v295
  %789 = vmatmul.mubr.bf16.gmra.mxu0 %v294
  %v790 = vpop.f32.mrf.mxu0
  %v791 = vadd.f32 %v125, %v790
  %v792 = vpop.f32.mrf.mxu0
  %v793 = vadd.f32 %v129, %v792
  %v794 = vpop.f32.mrf.mxu0
  %v795 = vadd.f32 %v125, %v794
  %v796 = vpop.f32.mrf.mxu0
  %v797 = vadd.f32 %v129, %v796
  %798 = vmatprep.mubr.bf16.mxu0 %v299
  %799 = vmatmul.mubr.bf16.gmra.mxu0 %v298
  %v800 = vpop.f32.mrf.mxu0
  %v801 = vadd.f32 %v125, %v800
  %v802 = vpop.f32.mrf.mxu0
  %v803 = vadd.f32 %v129, %v802
  %v804 = vpop.f32.mrf.mxu0
  %v805 = vpop.f32.mrf.mxu0
  %806 = vdwg.mxu0
  %807 = vmatprep.subr.bf16.mxu0 %v585
  %808 = vmatpush1.bf16.msra.mxu0 %v584
  %809 = vmatprep.subr.bf16.mxu0 %v583
  %810 = vmatpush1.bf16.msra.mxu0 %v582
  %811 = vmatprep.subr.bf16.mxu0 %v581
  %812 = vmatpush1.bf16.msra.mxu0 %v580
  %813 = vmatprep.subr.bf16.mxu0 %v579
  %814 = vmatpush1.bf16.msra.mxu0 %v578
  %815 = vmatprep.subr.bf16.mxu0 %v577
  %816 = vmatpush1.bf16.msra.mxu0 %v576
  %817 = vmatprep.subr.bf16.mxu0 %v575
  %818 = vmatpush1.bf16.msra.mxu0 %v574
  %819 = vmatprep.subr.bf16.mxu0 %v573
  %820 = vmatpush1.bf16.msra.mxu0 %v572
  %821 = vmatprep.subr.bf16.mxu0 %v571
  %822 = vmatpush1.bf16.msra.mxu0 %v570
  %823 = vmatprep.subr.bf16.mxu0 %v601
  %824 = vmatpush2.bf16.msra.mxu0 %v600
  %825 = vmatprep.subr.bf16.mxu0 %v599
  %826 = vmatpush2.bf16.msra.mxu0 %v598
  %827 = vmatprep.subr.bf16.mxu0 %v597
  %828 = vmatpush2.bf16.msra.mxu0 %v596
  %829 = vmatprep.subr.bf16.mxu0 %v595
  %830 = vmatpush2.bf16.msra.mxu0 %v594
  %831 = vmatprep.subr.bf16.mxu0 %v593
  %832 = vmatpush2.bf16.msra.mxu0 %v592
  %833 = vmatprep.subr.bf16.mxu0 %v591
  %834 = vmatpush2.bf16.msra.mxu0 %v590
  %835 = vmatprep.subr.bf16.mxu0 %v589
  %836 = vmatpush2.bf16.msra.mxu0 %v588
  %837 = vmatprep.subr.bf16.mxu0 %v587
  %838 = vmatpush2.bf16.msra.mxu0 %v586
  %839 = vmatprep.mubr.bf16.mxu0 %v261
  %840 = vmatmul.mubr.bf16.gmra.mxu0 %v260
  %v841 = vpop.f32.mrf.mxu0
  %v842 = vadd.f32 %v701, %v841
  %v843 = vpop.f32.mrf.mxu0
  %v844 = vadd.f32 %v703, %v843
  %v845 = vpop.f32.mrf.mxu0
  %v846 = vadd.f32 %v705, %v845
  %v847 = vpop.f32.mrf.mxu0
  %v848 = vadd.f32 %v707, %v847
  %849 = vmatprep.mubr.bf16.mxu0 %v265
  %850 = vmatmul.mubr.bf16.gmra.mxu0 %v264
  %v851 = vpop.f32.mrf.mxu0
  %v852 = vadd.f32 %v711, %v851
  %v853 = vpop.f32.mrf.mxu0
  %v854 = vadd.f32 %v713, %v853
  %v855 = vpop.f32.mrf.mxu0
  %v856 = vadd.f32 %v715, %v855
  %v857 = vpop.f32.mrf.mxu0
  %v858 = vadd.f32 %v717, %v857
  %859 = vmatprep.mubr.bf16.mxu0 %v269
  %860 = vmatmul.mubr.bf16.gmra.mxu0 %v268
  %v861 = vpop.f32.mrf.mxu0
  %v862 = vadd.f32 %v721, %v861
  %v863 = vpop.f32.mrf.mxu0
  %v864 = vadd.f32 %v723, %v863
  %v865 = vpop.f32.mrf.mxu0
  %v866 = vadd.f32 %v725, %v865
  %v867 = vpop.f32.mrf.mxu0
  %v868 = vadd.f32 %v727, %v867
  %869 = vmatprep.mubr.bf16.mxu0 %v273
  %870 = vmatmul.mubr.bf16.gmra.mxu0 %v272
  %v871 = vpop.f32.mrf.mxu0
  %v872 = vadd.f32 %v731, %v871
  %v873 = vpop.f32.mrf.mxu0
  %v874 = vadd.f32 %v733, %v873
  %v875 = vpop.f32.mrf.mxu0
  %v876 = vadd.f32 %v735, %v875
  %v877 = vpop.f32.mrf.mxu0
  %v878 = vadd.f32 %v737, %v877
  %879 = vmatprep.mubr.bf16.mxu0 %v277
  %880 = vmatmul.mubr.bf16.gmra.mxu0 %v276
  %v881 = vpop.f32.mrf.mxu0
  %v882 = vadd.f32 %v741, %v881
  %v883 = vpop.f32.mrf.mxu0
  %v884 = vadd.f32 %v743, %v883
  %v885 = vpop.f32.mrf.mxu0
  %v886 = vadd.f32 %v745, %v885
  %v887 = vpop.f32.mrf.mxu0
  %v888 = vadd.f32 %v747, %v887
  %889 = vmatprep.mubr.bf16.mxu0 %v281
  %890 = vmatmul.mubr.bf16.gmra.mxu0 %v280
  %v891 = vpop.f32.mrf.mxu0
  %v892 = vadd.f32 %v751, %v891
  %v893 = vpop.f32.mrf.mxu0
  %v894 = vadd.f32 %v753, %v893
  %v895 = vpop.f32.mrf.mxu0
  %v896 = vadd.f32 %v755, %v895
  %v897 = vpop.f32.mrf.mxu0
  %v898 = vadd.f32 %v757, %v897
  %899 = vmatprep.mubr.bf16.mxu0 %v285
  %900 = vmatmul.mubr.bf16.gmra.mxu0 %v284
  %v901 = vpop.f32.mrf.mxu0
  %v902 = vadd.f32 %v761, %v901
  %v903 = vpop.f32.mrf.mxu0
  %v904 = vadd.f32 %v763, %v903
  %v905 = vpop.f32.mrf.mxu0
  %v906 = vadd.f32 %v765, %v905
  %v907 = vpop.f32.mrf.mxu0
  %v908 = vadd.f32 %v767, %v907
  %909 = vmatprep.mubr.bf16.mxu0 %v289
  %910 = vmatmul.mubr.bf16.gmra.mxu0 %v288
  %v911 = vpop.f32.mrf.mxu0
  %v912 = vadd.f32 %v771, %v911
  %v913 = vpop.f32.mrf.mxu0
  %v914 = vadd.f32 %v773, %v913
  %v915 = vpop.f32.mrf.mxu0
  %v916 = vadd.f32 %v775, %v915
  %v917 = vpop.f32.mrf.mxu0
  %v918 = vadd.f32 %v777, %v917
  %919 = vmatprep.mubr.bf16.mxu0 %v293
  %920 = vmatmul.mubr.bf16.gmra.mxu0 %v292
  %v921 = vpop.f32.mrf.mxu0
  %v922 = vadd.f32 %v781, %v921
  %v923 = vpop.f32.mrf.mxu0
  %v924 = vadd.f32 %v783, %v923
  %v925 = vpop.f32.mrf.mxu0
  %v926 = vadd.f32 %v785, %v925
  %v927 = vpop.f32.mrf.mxu0
  %v928 = vadd.f32 %v787, %v927
  %929 = vmatprep.mubr.bf16.mxu0 %v297
  %930 = vmatmul.mubr.bf16.gmra.mxu0 %v296
  %v931 = vpop.f32.mrf.mxu0
  %v932 = vadd.f32 %v791, %v931
  %v933 = vpop.f32.mrf.mxu0
  %v934 = vadd.f32 %v793, %v933
  %v935 = vpop.f32.mrf.mxu0
  %v936 = vadd.f32 %v795, %v935
  %v937 = vpop.f32.mrf.mxu0
  %v938 = vadd.f32 %v797, %v937
  %939 = vmatprep.mubr.bf16.mxu0 %v301
  %940 = vmatmul.mubr.bf16.gmra.mxu0 %v300
  %v941 = vpop.f32.mrf.mxu0
  %v942 = vadd.f32 %v801, %v941
  %v943 = vpop.f32.mrf.mxu0
  %v944 = vadd.f32 %v803, %v943
  %v945 = vpop.f32.mrf.mxu0
  %v946 = vpop.f32.mrf.mxu0
  %947 = vdwg.mxu0
  %v948 = vmax.f32 %v842, 0.0
  %v949 = vmax.f32 %v844, 0.0
  %v950 = vmax.f32 %v846, 0.0
  %v951 = vmax.f32 %v848, 0.0
  %v952 = vmax.f32 %v852, 0.0
  %v953 = vmax.f32 %v854, 0.0
  %v954 = vmax.f32 %v856, 0.0
  %v955 = vmax.f32 %v858, 0.0
  %v956 = vmax.f32 %v862, 0.0
  %v957 = vmax.f32 %v864, 0.0
  %v958 = vmax.f32 %v866, 0.0
  %v959 = vmax.f32 %v868, 0.0
  %v960 = vmax.f32 %v872, 0.0
  %v961 = vmax.f32 %v874, 0.0
  %v962 = vmax.f32 %v876, 0.0
  %v963 = vmax.f32 %v878, 0.0
  %v964 = vmax.f32 %v882, 0.0
  %v965 = vmax.f32 %v884, 0.0
  %v966 = vmax.f32 %v886, 0.0
  %v967 = vmax.f32 %v888, 0.0
  %v968 = vmax.f32 %v892, 0.0
  %v969 = vmax.f32 %v894, 0.0
  %v970 = vmax.f32 %v896, 0.0
  %v971 = vmax.f32 %v898, 0.0
  %v972 = vmax.f32 %v902, 0.0
  %v973 = vmax.f32 %v904, 0.0
  %v974 = vmax.f32 %v906, 0.0
  %v975 = vmax.f32 %v908, 0.0
  %v976 = vmax.f32 %v912, 0.0
  %v977 = vmax.f32 %v914, 0.0
  %v978 = vmax.f32 %v916, 0.0
  %v979 = vmax.f32 %v918, 0.0
  %v980 = vmax.f32 %v922, 0.0
  %v981 = vmax.f32 %v924, 0.0
  %v982 = vmax.f32 %v926, 0.0
  %v983 = vmax.f32 %v928, 0.0
  %v984 = vmax.f32 %v932, 0.0
  %v985 = vmax.f32 %v934, 0.0
  %v986 = vmax.f32 %v936, 0.0
  %v987 = vmax.f32 %v938, 0.0
  %v988 = vmax.f32 %v942, 0.0
  %v989 = vmax.f32 %v944, 0.0
  %v990 = vpack.c.bf16 %v950, %v948
  %v991 = vpack.c.bf16 %v951, %v949
  %v992 = vpack.c.bf16 %v954, %v952
  %v993 = vpack.c.bf16 %v955, %v953
  %v994 = vpack.c.bf16 %v958, %v956
  %v995 = vpack.c.bf16 %v959, %v957
  %v996 = vpack.c.bf16 %v962, %v960
  %v997 = vpack.c.bf16 %v963, %v961
  %v998 = vpack.c.bf16 %v966, %v964
  %v999 = vpack.c.bf16 %v967, %v965
  %v1000 = vpack.c.bf16 %v970, %v968
  %v1001 = vpack.c.bf16 %v971, %v969
  %v1002 = vpack.c.bf16 %v974, %v972
  %v1003 = vpack.c.bf16 %v975, %v973
  %v1004 = vpack.c.bf16 %v978, %v976
  %v1005 = vpack.c.bf16 %v979, %v977
  %v1006 = vpack.c.bf16 %v982, %v980
  %v1007 = vpack.c.bf16 %v983, %v981
  %v1008 = vpack.c.bf16 %v986, %v984
  %v1009 = vpack.c.bf16 %v987, %v985
  %v1010 = vpack.c.bf16 %v988, %v988
  %v1011 = vpack.c.bf16 %v989, %v989
  %v1034 = vunpack.c.l.b16 %v990
  %v1035 = vunpack.c.l.b16 %v991
  %v1036 = vunpack.c.h.b16 %v990
  %v1037 = vunpack.c.h.b16 %v991
  %v1038 = vunpack.c.l.b16 %v992
  %v1039 = vunpack.c.l.b16 %v993
  %v1040 = vunpack.c.h.b16 %v992
  %v1041 = vunpack.c.h.b16 %v993
  %v1042 = vunpack.c.l.b16 %v994
  %v1043 = vunpack.c.l.b16 %v995
  %v1044 = vunpack.c.h.b16 %v994
  %v1045 = vunpack.c.h.b16 %v995
  %v1046 = vunpack.c.l.b16 %v996
  %v1047 = vunpack.c.l.b16 %v997
  %v1048 = vunpack.c.h.b16 %v996
  %v1049 = vunpack.c.h.b16 %v997
  %v1050 = vunpack.c.l.b16 %v998
  %v1051 = vunpack.c.l.b16 %v999
  %v1052 = vunpack.c.h.b16 %v998
  %v1053 = vunpack.c.h.b16 %v999
  %v1054 = vunpack.c.l.b16 %v1000
  %v1055 = vunpack.c.l.b16 %v1001
  %v1056 = vunpack.c.h.b16 %v1000
  %v1057 = vunpack.c.h.b16 %v1001
  %v1058 = vunpack.c.l.b16 %v1002
  %v1059 = vunpack.c.l.b16 %v1003
  %v1060 = vunpack.c.h.b16 %v1002
  %v1061 = vunpack.c.h.b16 %v1003
  %v1062 = vunpack.c.l.b16 %v1004
  %v1063 = vunpack.c.l.b16 %v1005
  %v1064 = vunpack.c.h.b16 %v1004
  %v1065 = vunpack.c.h.b16 %v1005
  %v1066 = vunpack.c.l.b16 %v1006
  %v1067 = vunpack.c.l.b16 %v1007
  %v1068 = vunpack.c.h.b16 %v1006
  %v1069 = vunpack.c.h.b16 %v1007
  %v1070 = vunpack.c.l.b16 %v1008
  %v1071 = vunpack.c.l.b16 %v1009
  %v1072 = vunpack.c.h.b16 %v1008
  %v1073 = vunpack.c.h.b16 %v1009
  %v1074 = vunpack.c.l.b16 %v1010
  %v1075 = vunpack.c.l.b16 %v1011
  %v1076 = vpack.c.b16 %v1035, %v1034
  %v1077 = vpack.c.b16 %v1037, %v1036
  %v1078 = vpack.c.b16 %v1039, %v1038
  %v1079 = vpack.c.b16 %v1041, %v1040
  %v1080 = vpack.c.b16 %v1043, %v1042
  %v1081 = vpack.c.b16 %v1045, %v1044
  %v1082 = vpack.c.b16 %v1047, %v1046
  %v1083 = vpack.c.b16 %v1049, %v1048
  %v1084 = vpack.c.b16 %v1051, %v1050
  %v1085 = vpack.c.b16 %v1053, %v1052
  %v1086 = vpack.c.b16 %v1055, %v1054
  %v1087 = vpack.c.b16 %v1057, %v1056
  %v1088 = vpack.c.b16 %v1059, %v1058
  %v1089 = vpack.c.b16 %v1061, %v1060
  %v1090 = vpack.c.b16 %v1063, %v1062
  %v1091 = vpack.c.b16 %v1065, %v1064
  %v1092 = vpack.c.b16 %v1067, %v1066
  %v1093 = vpack.c.b16 %v1069, %v1068
  %v1094 = vpack.c.b16 %v1071, %v1070
  %v1095 = vpack.c.b16 %v1073, %v1072
  %v1096 = vpack.c.b16 %v1075, %v1074
  %1118 = vst [vmem:[%s3] sm:$0xff] %v1076
  %1119 = vst [vmem:[%s3 + $0x8] sm:$0xff] %v1077
  %1120 = vst [vmem:[%s3 + $0x10] sm:$0xff] %v1078
  %1121 = vst [vmem:[%s3 + $0x18] sm:$0xff] %v1079
  %1122 = vst [vmem:[%s3 + $0x20] sm:$0xff] %v1080
  %1123 = vst [vmem:[%s3 + $0x28] sm:$0xff] %v1081
  %1124 = vst [vmem:[%s3 + $0x30] sm:$0xff] %v1082
  %1125 = vst [vmem:[%s3 + $0x38] sm:$0xff] %v1083
  %1126 = vst [vmem:[%s3 + $0x40] sm:$0xff] %v1084
  %1127 = vst [vmem:[%s3 + $0x48] sm:$0xff] %v1085
  %1128 = vst [vmem:[%s3 + $0x50] sm:$0xff] %v1086
  %1129 = vst [vmem:[%s3 + $0x58] sm:$0xff] %v1087
  %1130 = vst [vmem:[%s3 + $0x60] sm:$0xff] %v1088
  %1131 = vst [vmem:[%s3 + $0x68] sm:$0xff] %v1089
  %1132 = vst [vmem:[%s3 + $0x70] sm:$0xff] %v1090
  %1133 = vst [vmem:[%s3 + $0x78] sm:$0xff] %v1091
  %1134 = vst [vmem:[%s3 + $0x80] sm:$0xff] %v1092
  %1135 = vst [vmem:[%s3 + $0x88] sm:$0xff] %v1093
  %1136 = vst [vmem:[%s3 + $0x90] sm:$0xff] %v1094
  %1137 = vst [vmem:[%s3 + $0x98] sm:$0xff] %v1095
  %1138 = vst [vmem:[%s3 + $0xa0] sm:$0x11] %v1096
  // Predicated region
  $region14: #{vae_forward.13} parent=0 // pred_check
    _
  $region15: #{vae_forward.13} parent=0 // pred_check_branch
    %1140 = sbr.rel (0) target = $region17
  $region16: #{vae_forward.13} parent=0 // pred_region
    _
  $region17: #{vae_forward.13} parent=0 // pred_fallthru
    _
  // Predicated region
  $region18: #{vae_forward.13} parent=0 // pred_check
    _
  $region19: #{vae_forward.13} parent=0 // pred_check_branch
    %1142 = sbr.rel (0) target = $region21
  $region20: #{vae_forward.13} parent=0 // pred_region
    _
  $region21: #{vae_forward.13} parent=0 // pred_fallthru
    _

// kernel: vae_forward.14
$region0: #{vae_forward.14}
  #allocation0 [shape = 'u32[]', space=smem, size = 0x4, offset = 0x4, fixed_abs, tag = 'smem constant byte address 0x4 - core index']
  #allocation1 [shape = 'u32[144,128]{1,0:T(1,128)}', space=vmem, size = 0x12000, scoped, tag = 'internal scratch']
  %s0 = inlined_call_operand.vmem [shape: bf16[578,256], index: 0, kind: input, shape index: {}]
  %s1 = inlined_call_operand.vmem [shape: bf16[256,128], index: 1, kind: input, shape index: {}]
  %s2 = inlined_call_operand.vmem [shape: f32[1,128], index: 2, kind: input, shape index: {}]
  %s3 = inlined_call_operand.vmem [shape: bf16[578,128], index: 3, kind: output, shape index: {}]
  %s4 = sld [smem:[#allocation0]]
  $region22: #{vae_forward.14} parent=0
    _
  %s6 = ssub.s32 1, %s4
  %s7 = scalar_select 0, %s6, %s4
  // Predicated region
  $region2: #{vae_forward.14} parent=0 // pred_check
    _
  $region3: #{vae_forward.14} parent=0 // pred_check_branch
    %9 = sbr.rel (0) target = $region5
  $region4: #{vae_forward.14} parent=0 // pred_region
    _
  $region5: #{vae_forward.14} parent=0 // pred_fallthru
    _
  // Predicated region
  $region6: #{vae_forward.14} parent=0 // pred_check
    _
  $region7: #{vae_forward.14} parent=0 // pred_check_branch
    %11 = sbr.rel (0) target = $region9
  $region8: #{vae_forward.14} parent=0 // pred_region
    _
  $region9: #{vae_forward.14} parent=0 // pred_fallthru
    _
  // Predicated region
  $region10: #{vae_forward.14} parent=0 // pred_check
    _
  $region11: #{vae_forward.14} parent=0 // pred_check_branch
    %13 = sbr.rel (0) target = $region13
  $region12: #{vae_forward.14} parent=0 // pred_region
    _
  $region13: #{vae_forward.14} parent=0 // pred_fallthru
    _
  %v15 = vld [vmem:[%s0] sm:$0xff]
  %v16 = vld [vmem:[%s0 + $0x8] sm:$0xff]
  %v17 = vld [vmem:[%s0 + $0x10] sm:$0xff]
  %v18 = vld [vmem:[%s0 + $0x18] sm:$0xff]
  %v19 = vld [vmem:[%s0 + $0x20] sm:$0xff]
  %v20 = vld [vmem:[%s0 + $0x28] sm:$0xff]
  %v21 = vld [vmem:[%s0 + $0x30] sm:$0xff]
  %v22 = vld [vmem:[%s0 + $0x38] sm:$0xff]
  %v23 = vld [vmem:[%s0 + $0x40] sm:$0xff]
  %v24 = vld [vmem:[%s0 + $0x48] sm:$0xff]
  %v25 = vld [vmem:[%s0 + $0x50] sm:$0xff]
  %v26 = vld [vmem:[%s0 + $0x58] sm:$0xff]
  %v27 = vld [vmem:[%s0 + $0x60] sm:$0xff]
  %v28 = vld [vmem:[%s0 + $0x68] sm:$0xff]
  %v29 = vld [vmem:[%s0 + $0x70] sm:$0xff]
  %v30 = vld [vmem:[%s0 + $0x78] sm:$0xff]
  %v31 = vld [vmem:[%s0 + $0x80] sm:$0xff]
  %v32 = vld [vmem:[%s0 + $0x88] sm:$0xff]
  %v33 = vld [vmem:[%s0 + $0x90] sm:$0xff]
  %v34 = vld [vmem:[%s0 + $0x98] sm:$0xff]
  %v35 = vld [vmem:[%s0 + $0xa0] sm:$0xff]
  %v36 = vld [vmem:[%s0 + $0xa8] sm:$0xff]
  %v37 = vld [vmem:[%s0 + $0xb0] sm:$0xff]
  %v38 = vld [vmem:[%s0 + $0xb8] sm:$0xff]
  %v39 = vld [vmem:[%s0 + $0xc0] sm:$0xff]
  %v40 = vld [vmem:[%s0 + $0xc8] sm:$0xff]
  %v41 = vld [vmem:[%s0 + $0xd0] sm:$0xff]
  %v42 = vld [vmem:[%s0 + $0xd8] sm:$0xff]
  %v43 = vld [vmem:[%s0 + $0xe0] sm:$0xff]
  %v44 = vld [vmem:[%s0 + $0xe8] sm:$0xff]
  %v45 = vld [vmem:[%s0 + $0xf0] sm:$0xff]
  %v46 = vld [vmem:[%s0 + $0xf8] sm:$0xff]
  %v47 = vld [vmem:[%s0 + $0x100] sm:$0xff]
  %v48 = vld [vmem:[%s0 + $0x108] sm:$0xff]
  %v49 = vld [vmem:[%s0 + $0x110] sm:$0xff]
  %v50 = vld [vmem:[%s0 + $0x118] sm:$0xff]
  %v51 = vld [vmem:[%s0 + $0x120] sm:$0xff]
  %v52 = vld [vmem:[%s0 + $0x128] sm:$0xff]
  %v53 = vld [vmem:[%s0 + $0x130] sm:$0xff]
  %v54 = vld [vmem:[%s0 + $0x138] sm:$0xff]
  %v55 = vld [vmem:[%s0 + $0x140] sm:$0xff]
  %v56 = vld [vmem:[%s0 + $0x148] sm:$0xff]
  %v57 = vld [vmem:[%s0 + $0x150] sm:$0xff]
  %v58 = vld [vmem:[%s0 + $0x158] sm:$0xff]
  %v59 = vld [vmem:[%s0 + $0x160] sm:$0xff]
  %v60 = vld [vmem:[%s0 + $0x168] sm:$0xff]
  %v61 = vld [vmem:[%s0 + $0x170] sm:$0xff]
  %v62 = vld [vmem:[%s0 + $0x178] sm:$0xff]
  %v63 = vld [vmem:[%s0 + $0x180] sm:$0xff]
  %v64 = vld [vmem:[%s0 + $0x188] sm:$0xff]
  %v65 = vld [vmem:[%s0 + $0x190] sm:$0xff]
  %v66 = vld [vmem:[%s0 + $0x198] sm:$0xff]
  %v67 = vld [vmem:[%s0 + $0x1a0] sm:$0xff]
  %v68 = vld [vmem:[%s0 + $0x1a8] sm:$0xff]
  %v69 = vld [vmem:[%s0 + $0x1b0] sm:$0xff]
  %v70 = vld [vmem:[%s0 + $0x1b8] sm:$0xff]
  %v71 = vld [vmem:[%s0 + $0x1c0] sm:$0xff]
  %v72 = vld [vmem:[%s0 + $0x1c8] sm:$0xff]
  %v73 = vld [vmem:[%s0 + $0x1d0] sm:$0xff]
  %v74 = vld [vmem:[%s0 + $0x1d8] sm:$0xff]
  %v75 = vld [vmem:[%s0 + $0x1e0] sm:$0xff]
  %v76 = vld [vmem:[%s0 + $0x1e8] sm:$0xff]
  %v77 = vld [vmem:[%s0 + $0x1f0] sm:$0xff]
  %v78 = vld [vmem:[%s0 + $0x1f8] sm:$0xff]
  %v79 = vld [vmem:[%s0 + $0x200] sm:$0xff]
  %v80 = vld [vmem:[%s0 + $0x208] sm:$0xff]
  %v81 = vld [vmem:[%s0 + $0x210] sm:$0xff]
  %v82 = vld [vmem:[%s0 + $0x218] sm:$0xff]
  %v83 = vld [vmem:[%s0 + $0x220] sm:$0xff]
  %v84 = vld [vmem:[%s0 + $0x228] sm:$0xff]
  %v85 = vld [vmem:[%s0 + $0x230] sm:$0xff]
  %v86 = vld [vmem:[%s0 + $0x238] sm:$0xff]
  %v87 = vld [vmem:[%s0 + $0x240] sm:$0x11]
  %v88 = vld [vmem:[%s1] sm:$0xf]
  %v89 = vld [vmem:[%s1 + $0x4] sm:$0xf]
  %v90 = vld [vmem:[%s1 + $0x8] sm:$0xf]
  %v91 = vld [vmem:[%s1 + $0xc] sm:$0xf]
  %v92 = vld [vmem:[%s1 + $0x10] sm:$0xf]
  %v93 = vld [vmem:[%s1 + $0x14] sm:$0xf]
  %v94 = vld [vmem:[%s1 + $0x18] sm:$0xf]
  %v95 = vld [vmem:[%s1 + $0x1c] sm:$0xf]
  %v96 = vld [vmem:[%s1 + $0x20] sm:$0xf]
  %v97 = vld [vmem:[%s1 + $0x24] sm:$0xf]
  %v98 = vld [vmem:[%s1 + $0x28] sm:$0xf]
  %v99 = vld [vmem:[%s1 + $0x2c] sm:$0xf]
  %v100 = vld [vmem:[%s1 + $0x30] sm:$0xf]
  %v101 = vld [vmem:[%s1 + $0x34] sm:$0xf]
  %v102 = vld [vmem:[%s1 + $0x38] sm:$0xf]
  %v103 = vld [vmem:[%s1 + $0x3c] sm:$0xf]
  %v104 = vld [vmem:[%s1 + $0x40] sm:$0xf]
  %v105 = vld [vmem:[%s1 + $0x44] sm:$0xf]
  %v106 = vld [vmem:[%s1 + $0x48] sm:$0xf]
  %v107 = vld [vmem:[%s1 + $0x4c] sm:$0xf]
  %v108 = vld [vmem:[%s1 + $0x50] sm:$0xf]
  %v109 = vld [vmem:[%s1 + $0x54] sm:$0xf]
  %v110 = vld [vmem:[%s1 + $0x58] sm:$0xf]
  %v111 = vld [vmem:[%s1 + $0x5c] sm:$0xf]
  %v112 = vld [vmem:[%s1 + $0x60] sm:$0xf]
  %v113 = vld [vmem:[%s1 + $0x64] sm:$0xf]
  %v114 = vld [vmem:[%s1 + $0x68] sm:$0xf]
  %v115 = vld [vmem:[%s1 + $0x6c] sm:$0xf]
  %v116 = vld [vmem:[%s1 + $0x70] sm:$0xf]
  %v117 = vld [vmem:[%s1 + $0x74] sm:$0xf]
  %v118 = vld [vmem:[%s1 + $0x78] sm:$0xf]
  %v119 = vld [vmem:[%s1 + $0x7c] sm:$0xf]
  %v120 = vld [vmem:[%s2] sm:$0x1]
  %v122 = vlaneseq
  %v123 = vshrl.u32 %v122, 7
  %v124 = vsub.s32 0, %v123
  %v125 = vrot.slane %v120, %v124
  %v200 = vunpack.c.l.b16 %v15
  %v201 = vunpack.c.h.b16 %v15
  %v202 = vunpack.c.l.b16 %v16
  %v203 = vunpack.c.h.b16 %v16
  %v204 = vunpack.c.l.b16 %v17
  %v205 = vunpack.c.h.b16 %v17
  %v206 = vunpack.c.l.b16 %v18
  %v207 = vunpack.c.h.b16 %v18
  %v208 = vunpack.c.l.b16 %v19
  %v209 = vunpack.c.h.b16 %v19
  %v210 = vunpack.c.l.b16 %v20
  %v211 = vunpack.c.h.b16 %v20
  %v212 = vunpack.c.l.b16 %v21
  %v213 = vunpack.c.h.b16 %v21
  %v214 = vunpack.c.l.b16 %v22
  %v215 = vunpack.c.h.b16 %v22
  %v216 = vunpack.c.l.b16 %v23
  %v217 = vunpack.c.h.b16 %v23
  %v218 = vunpack.c.l.b16 %v24
  %v219 = vunpack.c.h.b16 %v24
  %v220 = vunpack.c.l.b16 %v25
  %v221 = vunpack.c.h.b16 %v25
  %v222 = vunpack.c.l.b16 %v26
  %v223 = vunpack.c.h.b16 %v26
  %v224 = vunpack.c.l.b16 %v27
  %v225 = vunpack.c.h.b16 %v27
  %v226 = vunpack.c.l.b16 %v28
  %v227 = vunpack.c.h.b16 %v28
  %v228 = vunpack.c.l.b16 %v29
  %v229 = vunpack.c.h.b16 %v29
  %v230 = vunpack.c.l.b16 %v30
  %v231 = vunpack.c.h.b16 %v30
  %v232 = vunpack.c.l.b16 %v31
  %v233 = vunpack.c.h.b16 %v31
  %v234 = vunpack.c.l.b16 %v32
  %v235 = vunpack.c.h.b16 %v32
  %v236 = vunpack.c.l.b16 %v33
  %v237 = vunpack.c.h.b16 %v33
  %v238 = vunpack.c.l.b16 %v34
  %v239 = vunpack.c.h.b16 %v34
  %v240 = vunpack.c.l.b16 %v35
  %v241 = vunpack.c.h.b16 %v35
  %v242 = vunpack.c.l.b16 %v36
  %v243 = vunpack.c.h.b16 %v36
  %v244 = vunpack.c.l.b16 %v37
  %v245 = vunpack.c.h.b16 %v37
  %v246 = vunpack.c.l.b16 %v38
  %v247 = vunpack.c.h.b16 %v38
  %v248 = vunpack.c.l.b16 %v39
  %v249 = vunpack.c.h.b16 %v39
  %v250 = vunpack.c.l.b16 %v40
  %v251 = vunpack.c.h.b16 %v40
  %v252 = vunpack.c.l.b16 %v41
  %v253 = vunpack.c.h.b16 %v41
  %v254 = vunpack.c.l.b16 %v42
  %v255 = vunpack.c.h.b16 %v42
  %v256 = vunpack.c.l.b16 %v43
  %v257 = vunpack.c.h.b16 %v43
  %v258 = vunpack.c.l.b16 %v44
  %v259 = vunpack.c.h.b16 %v44
  %v260 = vunpack.c.l.b16 %v45
  %v261 = vunpack.c.h.b16 %v45
  %v262 = vunpack.c.l.b16 %v46
  %v263 = vunpack.c.h.b16 %v46
  %v264 = vunpack.c.l.b16 %v47
  %v265 = vunpack.c.h.b16 %v47
  %v266 = vunpack.c.l.b16 %v48
  %v267 = vunpack.c.h.b16 %v48
  %v268 = vunpack.c.l.b16 %v49
  %v269 = vunpack.c.h.b16 %v49
  %v270 = vunpack.c.l.b16 %v50
  %v271 = vunpack.c.h.b16 %v50
  %v272 = vunpack.c.l.b16 %v51
  %v273 = vunpack.c.h.b16 %v51
  %v274 = vunpack.c.l.b16 %v52
  %v275 = vunpack.c.h.b16 %v52
  %v276 = vunpack.c.l.b16 %v53
  %v277 = vunpack.c.h.b16 %v53
  %v278 = vunpack.c.l.b16 %v54
  %v279 = vunpack.c.h.b16 %v54
  %v280 = vunpack.c.l.b16 %v55
  %v281 = vunpack.c.h.b16 %v55
  %v282 = vunpack.c.l.b16 %v56
  %v283 = vunpack.c.h.b16 %v56
  %v284 = vunpack.c.l.b16 %v57
  %v285 = vunpack.c.h.b16 %v57
  %v286 = vunpack.c.l.b16 %v58
  %v287 = vunpack.c.h.b16 %v58
  %v288 = vunpack.c.l.b16 %v59
  %v289 = vunpack.c.h.b16 %v59
  %v290 = vunpack.c.l.b16 %v60
  %v291 = vunpack.c.h.b16 %v60
  %v292 = vunpack.c.l.b16 %v61
  %v293 = vunpack.c.h.b16 %v61
  %v294 = vunpack.c.l.b16 %v62
  %v295 = vunpack.c.h.b16 %v62
  %v296 = vunpack.c.l.b16 %v63
  %v297 = vunpack.c.h.b16 %v63
  %v298 = vunpack.c.l.b16 %v64
  %v299 = vunpack.c.h.b16 %v64
  %v300 = vunpack.c.l.b16 %v65
  %v301 = vunpack.c.h.b16 %v65
  %v302 = vunpack.c.l.b16 %v66
  %v303 = vunpack.c.h.b16 %v66
  %v304 = vunpack.c.l.b16 %v67
  %v305 = vunpack.c.h.b16 %v67
  %v306 = vunpack.c.l.b16 %v68
  %v307 = vunpack.c.h.b16 %v68
  %v308 = vunpack.c.l.b16 %v69
  %v309 = vunpack.c.h.b16 %v69
  %v310 = vunpack.c.l.b16 %v70
  %v311 = vunpack.c.h.b16 %v70
  %v312 = vunpack.c.l.b16 %v71
  %v313 = vunpack.c.h.b16 %v71
  %v314 = vunpack.c.l.b16 %v72
  %v315 = vunpack.c.h.b16 %v72
  %v316 = vunpack.c.l.b16 %v73
  %v317 = vunpack.c.h.b16 %v73
  %v318 = vunpack.c.l.b16 %v74
  %v319 = vunpack.c.h.b16 %v74
  %v320 = vunpack.c.l.b16 %v75
  %v321 = vunpack.c.h.b16 %v75
  %v322 = vunpack.c.l.b16 %v76
  %v323 = vunpack.c.h.b16 %v76
  %v324 = vunpack.c.l.b16 %v77
  %v325 = vunpack.c.h.b16 %v77
  %v326 = vunpack.c.l.b16 %v78
  %v327 = vunpack.c.h.b16 %v78
  %v328 = vunpack.c.l.b16 %v79
  %v329 = vunpack.c.h.b16 %v79
  %v330 = vunpack.c.l.b16 %v80
  %v331 = vunpack.c.h.b16 %v80
  %v332 = vunpack.c.l.b16 %v81
  %v333 = vunpack.c.h.b16 %v81
  %v334 = vunpack.c.l.b16 %v82
  %v335 = vunpack.c.h.b16 %v82
  %v336 = vunpack.c.l.b16 %v83
  %v337 = vunpack.c.h.b16 %v83
  %v338 = vunpack.c.l.b16 %v84
  %v339 = vunpack.c.h.b16 %v84
  %v340 = vunpack.c.l.b16 %v85
  %v341 = vunpack.c.h.b16 %v85
  %v342 = vunpack.c.l.b16 %v86
  %v343 = vunpack.c.h.b16 %v86
  %v344 = vunpack.c.l.b16 %v87
  %v345 = vunpack.c.h.b16 %v87
  %v346 = vpack.c.b16 %v202, %v200
  %v347 = vpack.c.b16 %v203, %v201
  %v348 = vpack.c.b16 %v206, %v204
  %v349 = vpack.c.b16 %v207, %v205
  %v350 = vpack.c.b16 %v210, %v208
  %v351 = vpack.c.b16 %v211, %v209
  %v352 = vpack.c.b16 %v214, %v212
  %v353 = vpack.c.b16 %v215, %v213
  %v354 = vpack.c.b16 %v218, %v216
  %v355 = vpack.c.b16 %v219, %v217
  %v356 = vpack.c.b16 %v222, %v220
  %v357 = vpack.c.b16 %v223, %v221
  %v358 = vpack.c.b16 %v226, %v224
  %v359 = vpack.c.b16 %v227, %v225
  %v360 = vpack.c.b16 %v230, %v228
  %v361 = vpack.c.b16 %v231, %v229
  %v362 = vpack.c.b16 %v234, %v232
  %v363 = vpack.c.b16 %v235, %v233
  %v364 = vpack.c.b16 %v238, %v236
  %v365 = vpack.c.b16 %v239, %v237
  %v366 = vpack.c.b16 %v242, %v240
  %v367 = vpack.c.b16 %v243, %v241
  %v368 = vpack.c.b16 %v246, %v244
  %v369 = vpack.c.b16 %v247, %v245
  %v370 = vpack.c.b16 %v250, %v248
  %v371 = vpack.c.b16 %v251, %v249
  %v372 = vpack.c.b16 %v254, %v252
  %v373 = vpack.c.b16 %v255, %v253
  %v374 = vpack.c.b16 %v258, %v256
  %v375 = vpack.c.b16 %v259, %v257
  %v376 = vpack.c.b16 %v262, %v260
  %v377 = vpack.c.b16 %v263, %v261
  %v378 = vpack.c.b16 %v266, %v264
  %v379 = vpack.c.b16 %v267, %v265
  %v380 = vpack.c.b16 %v270, %v268
  %v381 = vpack.c.b16 %v271, %v269
  %v382 = vpack.c.b16 %v274, %v272
  %v383 = vpack.c.b16 %v275, %v273
  %v384 = vpack.c.b16 %v278, %v276
  %v385 = vpack.c.b16 %v279, %v277
  %v386 = vpack.c.b16 %v282, %v280
  %v387 = vpack.c.b16 %v283, %v281
  %v388 = vpack.c.b16 %v286, %v284
  %v389 = vpack.c.b16 %v287, %v285
  %v390 = vpack.c.b16 %v290, %v288
  %v391 = vpack.c.b16 %v291, %v289
  %v392 = vpack.c.b16 %v294, %v292
  %v393 = vpack.c.b16 %v295, %v293
  %v394 = vpack.c.b16 %v298, %v296
  %v395 = vpack.c.b16 %v299, %v297
  %v396 = vpack.c.b16 %v302, %v300
  %v397 = vpack.c.b16 %v303, %v301
  %v398 = vpack.c.b16 %v306, %v304
  %v399 = vpack.c.b16 %v307, %v305
  %v400 = vpack.c.b16 %v310, %v308
  %v401 = vpack.c.b16 %v311, %v309
  %v402 = vpack.c.b16 %v314, %v312
  %v403 = vpack.c.b16 %v315, %v313
  %v404 = vpack.c.b16 %v318, %v316
  %v405 = vpack.c.b16 %v319, %v317
  %v406 = vpack.c.b16 %v322, %v320
  %v407 = vpack.c.b16 %v323, %v321
  %v408 = vpack.c.b16 %v326, %v324
  %v409 = vpack.c.b16 %v327, %v325
  %v410 = vpack.c.b16 %v330, %v328
  %v411 = vpack.c.b16 %v331, %v329
  %v412 = vpack.c.b16 %v334, %v332
  %v413 = vpack.c.b16 %v335, %v333
  %v414 = vpack.c.b16 %v338, %v336
  %v415 = vpack.c.b16 %v339, %v337
  %v416 = vpack.c.b16 %v342, %v340
  %v417 = vpack.c.b16 %v343, %v341
  %v418 = vpack.c.b16 %v344, %v344
  %v419 = vpack.c.b16 %v345, %v345
  %v526 = vunpack.c.l.b16 %v88
  %v527 = vunpack.c.l.b16 %v89
  %v528 = vunpack.c.l.b16 %v90
  %v529 = vunpack.c.l.b16 %v91
  %v530 = vunpack.c.l.b16 %v92
  %v531 = vunpack.c.l.b16 %v93
  %v532 = vunpack.c.l.b16 %v94
  %v533 = vunpack.c.l.b16 %v95
  %v534 = vunpack.c.l.b16 %v96
  %v535 = vunpack.c.l.b16 %v97
  %v536 = vunpack.c.l.b16 %v98
  %v537 = vunpack.c.l.b16 %v99
  %v538 = vunpack.c.l.b16 %v100
  %v539 = vunpack.c.l.b16 %v101
  %v540 = vunpack.c.l.b16 %v102
  %v541 = vunpack.c.l.b16 %v103
  %v542 = vunpack.c.l.b16 %v104
  %v543 = vunpack.c.l.b16 %v105
  %v544 = vunpack.c.l.b16 %v106
  %v545 = vunpack.c.l.b16 %v107
  %v546 = vunpack.c.l.b16 %v108
  %v547 = vunpack.c.l.b16 %v109
  %v548 = vunpack.c.l.b16 %v110
  %v549 = vunpack.c.l.b16 %v111
  %v550 = vunpack.c.l.b16 %v112
  %v551 = vunpack.c.l.b16 %v113
  %v552 = vunpack.c.l.b16 %v114
  %v553 = vunpack.c.l.b16 %v115
  %v554 = vunpack.c.l.b16 %v116
  %v555 = vunpack.c.l.b16 %v117
  %v556 = vunpack.c.l.b16 %v118
  %v557 = vunpack.c.l.b16 %v119
  %v558 = vpack.c.b16 %v527, %v526
  %v559 = vpack.c.b16 %v529, %v528
  %v560 = vpack.c.b16 %v531, %v530
  %v561 = vpack.c.b16 %v533, %v532
  %v562 = vpack.c.b16 %v535, %v534
  %v563 = vpack.c.b16 %v537, %v536
  %v564 = vpack.c.b16 %v539, %v538
  %v565 = vpack.c.b16 %v541, %v540
  %v566 = vpack.c.b16 %v543, %v542
  %v567 = vpack.c.b16 %v545, %v544
  %v568 = vpack.c.b16 %v547, %v546
  %v569 = vpack.c.b16 %v549, %v548
  %v570 = vpack.c.b16 %v551, %v550
  %v571 = vpack.c.b16 %v553, %v552
  %v572 = vpack.c.b16 %v555, %v554
  %v573 = vpack.c.b16 %v557, %v556
  %590 = vmatprep.subr.bf16.mxu0 0
  %591 = vmatpush1.bf16.msra.mxu0 %v565
  %592 = vmatprep.subr.bf16.mxu0 0
  %593 = vmatpush1.bf16.msra.mxu0 %v564
  %594 = vmatprep.subr.bf16.mxu0 0
  %595 = vmatpush1.bf16.msra.mxu0 %v563
  %596 = vmatprep.subr.bf16.mxu0 0
  %597 = vmatpush1.bf16.msra.mxu0 %v562
  %598 = vmatprep.subr.bf16.mxu0 0
  %599 = vmatpush1.bf16.msra.mxu0 %v561
  %600 = vmatprep.subr.bf16.mxu0 0
  %601 = vmatpush1.bf16.msra.mxu0 %v560
  %602 = vmatprep.subr.bf16.mxu0 0
  %603 = vmatpush1.bf16.msra.mxu0 %v559
  %604 = vmatprep.subr.bf16.mxu0 0
  %605 = vmatpush1.bf16.msra.mxu0 %v558
  %606 = vmatprep.subr.bf16.mxu0 0
  %607 = vmatpush2.bf16.msra.mxu0 %v573
  %608 = vmatprep.subr.bf16.mxu0 0
  %609 = vmatpush2.bf16.msra.mxu0 %v572
  %610 = vmatprep.subr.bf16.mxu0 0
  %611 = vmatpush2.bf16.msra.mxu0 %v571
  %612 = vmatprep.subr.bf16.mxu0 0
  %613 = vmatpush2.bf16.msra.mxu0 %v570
  %614 = vmatprep.subr.bf16.mxu0 0
  %615 = vmatpush2.bf16.msra.mxu0 %v569
  %616 = vmatprep.subr.bf16.mxu0 0
  %617 = vmatpush2.bf16.msra.mxu0 %v568
  %618 = vmatprep.subr.bf16.mxu0 0
  %619 = vmatpush2.bf16.msra.mxu0 %v567
  %620 = vmatprep.subr.bf16.mxu0 0
  %621 = vmatpush2.bf16.msra.mxu0 %v566
  %622 = vmatprep.mubr.bf16.mxu0 %v347
  %623 = vmatmul.mubr.bf16.gmra.mxu0 %v346
  %v624 = vpop.f32.mrf.mxu0
  %v625 = vadd.f32 %v125, %v624
  %v626 = vpop.f32.mrf.mxu0
  %v627 = vpop.f32.mrf.mxu0
  %v628 = vadd.f32 %v125, %v627
  %v629 = vpop.f32.mrf.mxu0
  %630 = vmatprep.mubr.bf16.mxu0 %v349
  %631 = vmatmul.mubr.bf16.gmra.mxu0 %v348
  %v632 = vpop.f32.mrf.mxu0
  %v633 = vadd.f32 %v125, %v632
  %v634 = vpop.f32.mrf.mxu0
  %v635 = vpop.f32.mrf.mxu0
  %v636 = vadd.f32 %v125, %v635
  %v637 = vpop.f32.mrf.mxu0
  %638 = vmatprep.mubr.bf16.mxu0 %v351
  %639 = vmatmul.mubr.bf16.gmra.mxu0 %v350
  %v640 = vpop.f32.mrf.mxu0
  %v641 = vadd.f32 %v125, %v640
  %v642 = vpop.f32.mrf.mxu0
  %v643 = vpop.f32.mrf.mxu0
  %v644 = vadd.f32 %v125, %v643
  %v645 = vpop.f32.mrf.mxu0
  %646 = vmatprep.mubr.bf16.mxu0 %v353
  %647 = vmatmul.mubr.bf16.gmra.mxu0 %v352
  %v648 = vpop.f32.mrf.mxu0
  %v649 = vadd.f32 %v125, %v648
  %v650 = vpop.f32.mrf.mxu0
  %v651 = vpop.f32.mrf.mxu0
  %v652 = vadd.f32 %v125, %v651
  %v653 = vpop.f32.mrf.mxu0
  %654 = vmatprep.mubr.bf16.mxu0 %v355
  %655 = vmatmul.mubr.bf16.gmra.mxu0 %v354
  %v656 = vpop.f32.mrf.mxu0
  %v657 = vadd.f32 %v125, %v656
  %v658 = vpop.f32.mrf.mxu0
  %v659 = vpop.f32.mrf.mxu0
  %v660 = vadd.f32 %v125, %v659
  %v661 = vpop.f32.mrf.mxu0
  %662 = vmatprep.mubr.bf16.mxu0 %v357
  %663 = vmatmul.mubr.bf16.gmra.mxu0 %v356
  %v664 = vpop.f32.mrf.mxu0
  %v665 = vadd.f32 %v125, %v664
  %v666 = vpop.f32.mrf.mxu0
  %v667 = vpop.f32.mrf.mxu0
  %v668 = vadd.f32 %v125, %v667
  %v669 = vpop.f32.mrf.mxu0
  %670 = vmatprep.mubr.bf16.mxu0 %v359
  %671 = vmatmul.mubr.bf16.gmra.mxu0 %v358
  %v672 = vpop.f32.mrf.mxu0
  %v673 = vadd.f32 %v125, %v672
  %v674 = vpop.f32.mrf.mxu0
  %v675 = vpop.f32.mrf.mxu0
  %v676 = vadd.f32 %v125, %v675
  %v677 = vpop.f32.mrf.mxu0
  %678 = vmatprep.mubr.bf16.mxu0 %v361
  %679 = vmatmul.mubr.bf16.gmra.mxu0 %v360
  %v680 = vpop.f32.mrf.mxu0
  %v681 = vadd.f32 %v125, %v680
  %v682 = vpop.f32.mrf.mxu0
  %v683 = vpop.f32.mrf.mxu0
  %v684 = vadd.f32 %v125, %v683
  %v685 = vpop.f32.mrf.mxu0
  %686 = vmatprep.mubr.bf16.mxu0 %v363
  %687 = vmatmul.mubr.bf16.gmra.mxu0 %v362
  %v688 = vpop.f32.mrf.mxu0
  %v689 = vadd.f32 %v125, %v688
  %v690 = vpop.f32.mrf.mxu0
  %v691 = vpop.f32.mrf.mxu0
  %v692 = vadd.f32 %v125, %v691
  %v693 = vpop.f32.mrf.mxu0
  %694 = vmatprep.mubr.bf16.mxu0 %v365
  %695 = vmatmul.mubr.bf16.gmra.mxu0 %v364
  %v696 = vpop.f32.mrf.mxu0
  %v697 = vadd.f32 %v125, %v696
  %v698 = vpop.f32.mrf.mxu0
  %v699 = vpop.f32.mrf.mxu0
  %v700 = vadd.f32 %v125, %v699
  %v701 = vpop.f32.mrf.mxu0
  %702 = vmatprep.mubr.bf16.mxu0 %v367
  %703 = vmatmul.mubr.bf16.gmra.mxu0 %v366
  %v704 = vpop.f32.mrf.mxu0
  %v705 = vadd.f32 %v125, %v704
  %v706 = vpop.f32.mrf.mxu0
  %v707 = vpop.f32.mrf.mxu0
  %v708 = vadd.f32 %v125, %v707
  %v709 = vpop.f32.mrf.mxu0
  %710 = vmatprep.mubr.bf16.mxu0 %v369
  %711 = vmatmul.mubr.bf16.gmra.mxu0 %v368
  %v712 = vpop.f32.mrf.mxu0
  %v713 = vadd.f32 %v125, %v712
  %v714 = vpop.f32.mrf.mxu0
  %v715 = vpop.f32.mrf.mxu0
  %v716 = vadd.f32 %v125, %v715
  %v717 = vpop.f32.mrf.mxu0
  %718 = vmatprep.mubr.bf16.mxu0 %v371
  %719 = vmatmul.mubr.bf16.gmra.mxu0 %v370
  %v720 = vpop.f32.mrf.mxu0
  %v721 = vadd.f32 %v125, %v720
  %v722 = vpop.f32.mrf.mxu0
  %v723 = vpop.f32.mrf.mxu0
  %v724 = vadd.f32 %v125, %v723
  %v725 = vpop.f32.mrf.mxu0
  %726 = vmatprep.mubr.bf16.mxu0 %v373
  %727 = vmatmul.mubr.bf16.gmra.mxu0 %v372
  %v728 = vpop.f32.mrf.mxu0
  %v729 = vadd.f32 %v125, %v728
  %v730 = vpop.f32.mrf.mxu0
  %v731 = vpop.f32.mrf.mxu0
  %v732 = vadd.f32 %v125, %v731
  %v733 = vpop.f32.mrf.mxu0
  %734 = vmatprep.mubr.bf16.mxu0 %v375
  %735 = vmatmul.mubr.bf16.gmra.mxu0 %v374
  %v736 = vpop.f32.mrf.mxu0
  %v737 = vadd.f32 %v125, %v736
  %v738 = vpop.f32.mrf.mxu0
  %v739 = vpop.f32.mrf.mxu0
  %v740 = vadd.f32 %v125, %v739
  %v741 = vpop.f32.mrf.mxu0
  %742 = vmatprep.mubr.bf16.mxu0 %v377
  %743 = vmatmul.mubr.bf16.gmra.mxu0 %v376
  %v744 = vpop.f32.mrf.mxu0
  %v745 = vadd.f32 %v125, %v744
  %v746 = vpop.f32.mrf.mxu0
  %v747 = vpop.f32.mrf.mxu0
  %v748 = vadd.f32 %v125, %v747
  %v749 = vpop.f32.mrf.mxu0
  %750 = vmatprep.mubr.bf16.mxu0 %v379
  %751 = vmatmul.mubr.bf16.gmra.mxu0 %v378
  %v752 = vpop.f32.mrf.mxu0
  %v753 = vadd.f32 %v125, %v752
  %v754 = vpop.f32.mrf.mxu0
  %v755 = vpop.f32.mrf.mxu0
  %v756 = vadd.f32 %v125, %v755
  %v757 = vpop.f32.mrf.mxu0
  %758 = vmatprep.mubr.bf16.mxu0 %v381
  %759 = vmatmul.mubr.bf16.gmra.mxu0 %v380
  %v760 = vpop.f32.mrf.mxu0
  %v761 = vadd.f32 %v125, %v760
  %v762 = vpop.f32.mrf.mxu0
  %v763 = vpop.f32.mrf.mxu0
  %v764 = vadd.f32 %v125, %v763
  %v765 = vpop.f32.mrf.mxu0
  %766 = vmatprep.mubr.bf16.mxu0 %v383
  %767 = vmatmul.mubr.bf16.gmra.mxu0 %v382
  %v768 = vpop.f32.mrf.mxu0
  %v769 = vadd.f32 %v125, %v768
  %v770 = vpop.f32.mrf.mxu0
  %v771 = vpop.f32.mrf.mxu0
  %v772 = vadd.f32 %v125, %v771
  %v773 = vpop.f32.mrf.mxu0
  %774 = vmatprep.mubr.bf16.mxu0 %v385
  %775 = vmatmul.mubr.bf16.gmra.mxu0 %v384
  %v776 = vpop.f32.mrf.mxu0
  %v777 = vadd.f32 %v125, %v776
  %v778 = vpop.f32.mrf.mxu0
  %v779 = vpop.f32.mrf.mxu0
  %v780 = vadd.f32 %v125, %v779
  %v781 = vpop.f32.mrf.mxu0
  %782 = vmatprep.mubr.bf16.mxu0 %v387
  %783 = vmatmul.mubr.bf16.gmra.mxu0 %v386
  %v784 = vpop.f32.mrf.mxu0
  %v785 = vadd.f32 %v125, %v784
  %v786 = vpop.f32.mrf.mxu0
  %v787 = vpop.f32.mrf.mxu0
  %v788 = vadd.f32 %v125, %v787
  %v789 = vpop.f32.mrf.mxu0
  %790 = vmatprep.mubr.bf16.mxu0 %v389
  %791 = vmatmul.mubr.bf16.gmra.mxu0 %v388
  %v792 = vpop.f32.mrf.mxu0
  %v793 = vadd.f32 %v125, %v792
  %v794 = vpop.f32.mrf.mxu0
  %v795 = vpop.f32.mrf.mxu0
  %v796 = vadd.f32 %v125, %v795
  %v797 = vpop.f32.mrf.mxu0
  %798 = vmatprep.mubr.bf16.mxu0 %v391
  %799 = vmatmul.mubr.bf16.gmra.mxu0 %v390
  %v800 = vpop.f32.mrf.mxu0
  %v801 = vadd.f32 %v125, %v800
  %v802 = vpop.f32.mrf.mxu0
  %v803 = vpop.f32.mrf.mxu0
  %v804 = vadd.f32 %v125, %v803
  %v805 = vpop.f32.mrf.mxu0
  %806 = vmatprep.mubr.bf16.mxu0 %v393
  %807 = vmatmul.mubr.bf16.gmra.mxu0 %v392
  %v808 = vpop.f32.mrf.mxu0
  %v809 = vadd.f32 %v125, %v808
  %v810 = vpop.f32.mrf.mxu0
  %v811 = vpop.f32.mrf.mxu0
  %v812 = vadd.f32 %v125, %v811
  %v813 = vpop.f32.mrf.mxu0
  %814 = vmatprep.mubr.bf16.mxu0 %v395
  %815 = vmatmul.mubr.bf16.gmra.mxu0 %v394
  %v816 = vpop.f32.mrf.mxu0
  %v817 = vadd.f32 %v125, %v816
  %v818 = vpop.f32.mrf.mxu0
  %v819 = vpop.f32.mrf.mxu0
  %v820 = vadd.f32 %v125, %v819
  %v821 = vpop.f32.mrf.mxu0
  %822 = vmatprep.mubr.bf16.mxu0 %v397
  %823 = vmatmul.mubr.bf16.gmra.mxu0 %v396
  %v824 = vpop.f32.mrf.mxu0
  %v825 = vadd.f32 %v125, %v824
  %v826 = vpop.f32.mrf.mxu0
  %v827 = vpop.f32.mrf.mxu0
  %v828 = vadd.f32 %v125, %v827
  %v829 = vpop.f32.mrf.mxu0
  %830 = vmatprep.mubr.bf16.mxu0 %v399
  %831 = vmatmul.mubr.bf16.gmra.mxu0 %v398
  %v832 = vpop.f32.mrf.mxu0
  %v833 = vadd.f32 %v125, %v832
  %v834 = vpop.f32.mrf.mxu0
  %v835 = vpop.f32.mrf.mxu0
  %v836 = vadd.f32 %v125, %v835
  %v837 = vpop.f32.mrf.mxu0
  %838 = vmatprep.mubr.bf16.mxu0 %v401
  %839 = vmatmul.mubr.bf16.gmra.mxu0 %v400
  %v840 = vpop.f32.mrf.mxu0
  %v841 = vadd.f32 %v125, %v840
  %v842 = vpop.f32.mrf.mxu0
  %v843 = vpop.f32.mrf.mxu0
  %v844 = vadd.f32 %v125, %v843
  %v845 = vpop.f32.mrf.mxu0
  %846 = vmatprep.mubr.bf16.mxu0 %v403
  %847 = vmatmul.mubr.bf16.gmra.mxu0 %v402
  %v848 = vpop.f32.mrf.mxu0
  %v849 = vadd.f32 %v125, %v848
  %v850 = vpop.f32.mrf.mxu0
  %v851 = vpop.f32.mrf.mxu0
  %v852 = vadd.f32 %v125, %v851
  %v853 = vpop.f32.mrf.mxu0
  %854 = vmatprep.mubr.bf16.mxu0 %v405
  %855 = vmatmul.mubr.bf16.gmra.mxu0 %v404
  %v856 = vpop.f32.mrf.mxu0
  %v857 = vadd.f32 %v125, %v856
  %v858 = vpop.f32.mrf.mxu0
  %v859 = vpop.f32.mrf.mxu0
  %v860 = vadd.f32 %v125, %v859
  %v861 = vpop.f32.mrf.mxu0
  %862 = vmatprep.mubr.bf16.mxu0 %v407
  %863 = vmatmul.mubr.bf16.gmra.mxu0 %v406
  %v864 = vpop.f32.mrf.mxu0
  %v865 = vadd.f32 %v125, %v864
  %v866 = vpop.f32.mrf.mxu0
  %v867 = vpop.f32.mrf.mxu0
  %v868 = vadd.f32 %v125, %v867
  %v869 = vpop.f32.mrf.mxu0
  %870 = vmatprep.mubr.bf16.mxu0 %v409
  %871 = vmatmul.mubr.bf16.gmra.mxu0 %v408
  %v872 = vpop.f32.mrf.mxu0
  %v873 = vadd.f32 %v125, %v872
  %v874 = vpop.f32.mrf.mxu0
  %v875 = vpop.f32.mrf.mxu0
  %v876 = vadd.f32 %v125, %v875
  %v877 = vpop.f32.mrf.mxu0
  %878 = vmatprep.mubr.bf16.mxu0 %v411
  %879 = vmatmul.mubr.bf16.gmra.mxu0 %v410
  %v880 = vpop.f32.mrf.mxu0
  %v881 = vadd.f32 %v125, %v880
  %v882 = vpop.f32.mrf.mxu0
  %v883 = vpop.f32.mrf.mxu0
  %v884 = vadd.f32 %v125, %v883
  %v885 = vpop.f32.mrf.mxu0
  %886 = vmatprep.mubr.bf16.mxu0 %v413
  %887 = vmatmul.mubr.bf16.gmra.mxu0 %v412
  %v888 = vpop.f32.mrf.mxu0
  %v889 = vadd.f32 %v125, %v888
  %v890 = vpop.f32.mrf.mxu0
  %v891 = vpop.f32.mrf.mxu0
  %v892 = vadd.f32 %v125, %v891
  %v893 = vpop.f32.mrf.mxu0
  %894 = vmatprep.mubr.bf16.mxu0 %v415
  %895 = vmatmul.mubr.bf16.gmra.mxu0 %v414
  %v896 = vpop.f32.mrf.mxu0
  %v897 = vadd.f32 %v125, %v896
  %v898 = vpop.f32.mrf.mxu0
  %v899 = vpop.f32.mrf.mxu0
  %v900 = vadd.f32 %v125, %v899
  %v901 = vpop.f32.mrf.mxu0
  %902 = vmatprep.mubr.bf16.mxu0 %v417
  %903 = vmatmul.mubr.bf16.gmra.mxu0 %v416
  %v904 = vpop.f32.mrf.mxu0
  %v905 = vadd.f32 %v125, %v904
  %v906 = vpop.f32.mrf.mxu0
  %v907 = vpop.f32.mrf.mxu0
  %v908 = vadd.f32 %v125, %v907
  %v909 = vpop.f32.mrf.mxu0
  %910 = vmatprep.mubr.bf16.mxu0 %v419
  %911 = vmatmul.mubr.bf16.gmra.mxu0 %v418
  %v912 = vpop.f32.mrf.mxu0
  %v913 = vadd.f32 %v125, %v912
  %v914 = vpop.f32.mrf.mxu0
  %v915 = vpop.f32.mrf.mxu0
  %v916 = vpop.f32.mrf.mxu0
  %917 = vdwg.mxu0
  %v918 = vmax.f32 %v625, 0.0
  %v919 = vmax.f32 %v628, 0.0
  %v920 = vmax.f32 %v633, 0.0
  %v921 = vmax.f32 %v636, 0.0
  %v922 = vmax.f32 %v641, 0.0
  %v923 = vmax.f32 %v644, 0.0
  %v924 = vmax.f32 %v649, 0.0
  %v925 = vmax.f32 %v652, 0.0
  %v926 = vmax.f32 %v657, 0.0
  %v927 = vmax.f32 %v660, 0.0
  %v928 = vmax.f32 %v665, 0.0
  %v929 = vmax.f32 %v668, 0.0
  %v930 = vmax.f32 %v673, 0.0
  %v931 = vmax.f32 %v676, 0.0
  %v932 = vmax.f32 %v681, 0.0
  %v933 = vmax.f32 %v684, 0.0
  %v934 = vmax.f32 %v689, 0.0
  %v935 = vmax.f32 %v692, 0.0
  %v936 = vmax.f32 %v697, 0.0
  %v937 = vmax.f32 %v700, 0.0
  %v938 = vmax.f32 %v705, 0.0
  %v939 = vmax.f32 %v708, 0.0
  %v940 = vmax.f32 %v713, 0.0
  %v941 = vmax.f32 %v716, 0.0
  %v942 = vmax.f32 %v721, 0.0
  %v943 = vmax.f32 %v724, 0.0
  %v944 = vmax.f32 %v729, 0.0
  %v945 = vmax.f32 %v732, 0.0
  %v946 = vmax.f32 %v737, 0.0
  %v947 = vmax.f32 %v740, 0.0
  %v948 = vmax.f32 %v745, 0.0
  %v949 = vmax.f32 %v748, 0.0
  %v950 = vmax.f32 %v753, 0.0
  %v951 = vmax.f32 %v756, 0.0
  %v952 = vmax.f32 %v761, 0.0
  %v953 = vmax.f32 %v764, 0.0
  %v954 = vmax.f32 %v769, 0.0
  %v955 = vmax.f32 %v772, 0.0
  %v956 = vmax.f32 %v777, 0.0
  %v957 = vmax.f32 %v780, 0.0
  %v958 = vmax.f32 %v785, 0.0
  %v959 = vmax.f32 %v788, 0.0
  %v960 = vmax.f32 %v793, 0.0
  %v961 = vmax.f32 %v796, 0.0
  %v962 = vmax.f32 %v801, 0.0
  %v963 = vmax.f32 %v804, 0.0
  %v964 = vmax.f32 %v809, 0.0
  %v965 = vmax.f32 %v812, 0.0
  %v966 = vmax.f32 %v817, 0.0
  %v967 = vmax.f32 %v820, 0.0
  %v968 = vmax.f32 %v825, 0.0
  %v969 = vmax.f32 %v828, 0.0
  %v970 = vmax.f32 %v833, 0.0
  %v971 = vmax.f32 %v836, 0.0
  %v972 = vmax.f32 %v841, 0.0
  %v973 = vmax.f32 %v844, 0.0
  %v974 = vmax.f32 %v849, 0.0
  %v975 = vmax.f32 %v852, 0.0
  %v976 = vmax.f32 %v857, 0.0
  %v977 = vmax.f32 %v860, 0.0
  %v978 = vmax.f32 %v865, 0.0
  %v979 = vmax.f32 %v868, 0.0
  %v980 = vmax.f32 %v873, 0.0
  %v981 = vmax.f32 %v876, 0.0
  %v982 = vmax.f32 %v881, 0.0
  %v983 = vmax.f32 %v884, 0.0
  %v984 = vmax.f32 %v889, 0.0
  %v985 = vmax.f32 %v892, 0.0
  %v986 = vmax.f32 %v897, 0.0
  %v987 = vmax.f32 %v900, 0.0
  %v988 = vmax.f32 %v905, 0.0
  %v989 = vmax.f32 %v908, 0.0
  %v990 = vmax.f32 %v913, 0.0
  %v991 = vpack.c.bf16 %v919, %v918
  %v992 = vpack.c.bf16 %v921, %v920
  %v993 = vpack.c.bf16 %v923, %v922
  %v994 = vpack.c.bf16 %v925, %v924
  %v995 = vpack.c.bf16 %v927, %v926
  %v996 = vpack.c.bf16 %v929, %v928
  %v997 = vpack.c.bf16 %v931, %v930
  %v998 = vpack.c.bf16 %v933, %v932
  %v999 = vpack.c.bf16 %v935, %v934
  %v1000 = vpack.c.bf16 %v937, %v936
  %v1001 = vpack.c.bf16 %v939, %v938
  %v1002 = vpack.c.bf16 %v941, %v940
  %v1003 = vpack.c.bf16 %v943, %v942
  %v1004 = vpack.c.bf16 %v945, %v944
  %v1005 = vpack.c.bf16 %v947, %v946
  %v1006 = vpack.c.bf16 %v949, %v948
  %v1007 = vpack.c.bf16 %v951, %v950
  %v1008 = vpack.c.bf16 %v953, %v952
  %v1009 = vpack.c.bf16 %v955, %v954
  %v1010 = vpack.c.bf16 %v957, %v956
  %v1011 = vpack.c.bf16 %v959, %v958
  %v1012 = vpack.c.bf16 %v961, %v960
  %v1013 = vpack.c.bf16 %v963, %v962
  %v1014 = vpack.c.bf16 %v965, %v964
  %v1015 = vpack.c.bf16 %v967, %v966
  %v1016 = vpack.c.bf16 %v969, %v968
  %v1017 = vpack.c.bf16 %v971, %v970
  %v1018 = vpack.c.bf16 %v973, %v972
  %v1019 = vpack.c.bf16 %v975, %v974
  %v1020 = vpack.c.bf16 %v977, %v976
  %v1021 = vpack.c.bf16 %v979, %v978
  %v1022 = vpack.c.bf16 %v981, %v980
  %v1023 = vpack.c.bf16 %v983, %v982
  %v1024 = vpack.c.bf16 %v985, %v984
  %v1025 = vpack.c.bf16 %v987, %v986
  %v1026 = vpack.c.bf16 %v989, %v988
  %v1027 = vpack.c.bf16 %v990, %v990
  %v1065 = vunpack.c.l.b16 %v991
  %v1066 = vunpack.c.h.b16 %v991
  %v1067 = vunpack.c.l.b16 %v992
  %v1068 = vunpack.c.h.b16 %v992
  %v1069 = vunpack.c.l.b16 %v993
  %v1070 = vunpack.c.h.b16 %v993
  %v1071 = vunpack.c.l.b16 %v994
  %v1072 = vunpack.c.h.b16 %v994
  %v1073 = vunpack.c.l.b16 %v995
  %v1074 = vunpack.c.h.b16 %v995
  %v1075 = vunpack.c.l.b16 %v996
  %v1076 = vunpack.c.h.b16 %v996
  %v1077 = vunpack.c.l.b16 %v997
  %v1078 = vunpack.c.h.b16 %v997
  %v1079 = vunpack.c.l.b16 %v998
  %v1080 = vunpack.c.h.b16 %v998
  %v1081 = vunpack.c.l.b16 %v999
  %v1082 = vunpack.c.h.b16 %v999
  %v1083 = vunpack.c.l.b16 %v1000
  %v1084 = vunpack.c.h.b16 %v1000
  %v1085 = vunpack.c.l.b16 %v1001
  %v1086 = vunpack.c.h.b16 %v1001
  %v1087 = vunpack.c.l.b16 %v1002
  %v1088 = vunpack.c.h.b16 %v1002
  %v1089 = vunpack.c.l.b16 %v1003
  %v1090 = vunpack.c.h.b16 %v1003
  %v1091 = vunpack.c.l.b16 %v1004
  %v1092 = vunpack.c.h.b16 %v1004
  %v1093 = vunpack.c.l.b16 %v1005
  %v1094 = vunpack.c.h.b16 %v1005
  %v1095 = vunpack.c.l.b16 %v1006
  %v1096 = vunpack.c.h.b16 %v1006
  %v1097 = vunpack.c.l.b16 %v1007
  %v1098 = vunpack.c.h.b16 %v1007
  %v1099 = vunpack.c.l.b16 %v1008
  %v1100 = vunpack.c.h.b16 %v1008
  %v1101 = vunpack.c.l.b16 %v1009
  %v1102 = vunpack.c.h.b16 %v1009
  %v1103 = vunpack.c.l.b16 %v1010
  %v1104 = vunpack.c.h.b16 %v1010
  %v1105 = vunpack.c.l.b16 %v1011
  %v1106 = vunpack.c.h.b16 %v1011
  %v1107 = vunpack.c.l.b16 %v1012
  %v1108 = vunpack.c.h.b16 %v1012
  %v1109 = vunpack.c.l.b16 %v1013
  %v1110 = vunpack.c.h.b16 %v1013
  %v1111 = vunpack.c.l.b16 %v1014
  %v1112 = vunpack.c.h.b16 %v1014
  %v1113 = vunpack.c.l.b16 %v1015
  %v1114 = vunpack.c.h.b16 %v1015
  %v1115 = vunpack.c.l.b16 %v1016
  %v1116 = vunpack.c.h.b16 %v1016
  %v1117 = vunpack.c.l.b16 %v1017
  %v1118 = vunpack.c.h.b16 %v1017
  %v1119 = vunpack.c.l.b16 %v1018
  %v1120 = vunpack.c.h.b16 %v1018
  %v1121 = vunpack.c.l.b16 %v1019
  %v1122 = vunpack.c.h.b16 %v1019
  %v1123 = vunpack.c.l.b16 %v1020
  %v1124 = vunpack.c.h.b16 %v1020
  %v1125 = vunpack.c.l.b16 %v1021
  %v1126 = vunpack.c.h.b16 %v1021
  %v1127 = vunpack.c.l.b16 %v1022
  %v1128 = vunpack.c.h.b16 %v1022
  %v1129 = vunpack.c.l.b16 %v1023
  %v1130 = vunpack.c.h.b16 %v1023
  %v1131 = vunpack.c.l.b16 %v1024
  %v1132 = vunpack.c.h.b16 %v1024
  %v1133 = vunpack.c.l.b16 %v1025
  %v1134 = vunpack.c.h.b16 %v1025
  %v1135 = vunpack.c.l.b16 %v1026
  %v1136 = vunpack.c.h.b16 %v1026
  %v1137 = vunpack.c.l.b16 %v1027
  %v1138 = vpack.c.b16 %v1065, %v1065
  %v1139 = vpack.c.b16 %v1066, %v1066
  %v1140 = vpack.c.b16 %v1067, %v1067
  %v1141 = vpack.c.b16 %v1068, %v1068
  %v1142 = vpack.c.b16 %v1069, %v1069
  %v1143 = vpack.c.b16 %v1070, %v1070
  %v1144 = vpack.c.b16 %v1071, %v1071
  %v1145 = vpack.c.b16 %v1072, %v1072
  %v1146 = vpack.c.b16 %v1073, %v1073
  %v1147 = vpack.c.b16 %v1074, %v1074
  %v1148 = vpack.c.b16 %v1075, %v1075
  %v1149 = vpack.c.b16 %v1076, %v1076
  %v1150 = vpack.c.b16 %v1077, %v1077
  %v1151 = vpack.c.b16 %v1078, %v1078
  %v1152 = vpack.c.b16 %v1079, %v1079
  %v1153 = vpack.c.b16 %v1080, %v1080
  %v1154 = vpack.c.b16 %v1081, %v1081
  %v1155 = vpack.c.b16 %v1082, %v1082
  %v1156 = vpack.c.b16 %v1083, %v1083
  %v1157 = vpack.c.b16 %v1084, %v1084
  %v1158 = vpack.c.b16 %v1085, %v1085
  %v1159 = vpack.c.b16 %v1086, %v1086
  %v1160 = vpack.c.b16 %v1087, %v1087
  %v1161 = vpack.c.b16 %v1088, %v1088
  %v1162 = vpack.c.b16 %v1089, %v1089
  %v1163 = vpack.c.b16 %v1090, %v1090
  %v1164 = vpack.c.b16 %v1091, %v1091
  %v1165 = vpack.c.b16 %v1092, %v1092
  %v1166 = vpack.c.b16 %v1093, %v1093
  %v1167 = vpack.c.b16 %v1094, %v1094
  %v1168 = vpack.c.b16 %v1095, %v1095
  %v1169 = vpack.c.b16 %v1096, %v1096
  %v1170 = vpack.c.b16 %v1097, %v1097
  %v1171 = vpack.c.b16 %v1098, %v1098
  %v1172 = vpack.c.b16 %v1099, %v1099
  %v1173 = vpack.c.b16 %v1100, %v1100
  %v1174 = vpack.c.b16 %v1101, %v1101
  %v1175 = vpack.c.b16 %v1102, %v1102
  %v1176 = vpack.c.b16 %v1103, %v1103
  %v1177 = vpack.c.b16 %v1104, %v1104
  %v1178 = vpack.c.b16 %v1105, %v1105
  %v1179 = vpack.c.b16 %v1106, %v1106
  %v1180 = vpack.c.b16 %v1107, %v1107
  %v1181 = vpack.c.b16 %v1108, %v1108
  %v1182 = vpack.c.b16 %v1109, %v1109
  %v1183 = vpack.c.b16 %v1110, %v1110
  %v1184 = vpack.c.b16 %v1111, %v1111
  %v1185 = vpack.c.b16 %v1112, %v1112
  %v1186 = vpack.c.b16 %v1113, %v1113
  %v1187 = vpack.c.b16 %v1114, %v1114
  %v1188 = vpack.c.b16 %v1115, %v1115
  %v1189 = vpack.c.b16 %v1116, %v1116
  %v1190 = vpack.c.b16 %v1117, %v1117
  %v1191 = vpack.c.b16 %v1118, %v1118
  %v1192 = vpack.c.b16 %v1119, %v1119
  %v1193 = vpack.c.b16 %v1120, %v1120
  %v1194 = vpack.c.b16 %v1121, %v1121
  %v1195 = vpack.c.b16 %v1122, %v1122
  %v1196 = vpack.c.b16 %v1123, %v1123
  %v1197 = vpack.c.b16 %v1124, %v1124
  %v1198 = vpack.c.b16 %v1125, %v1125
  %v1199 = vpack.c.b16 %v1126, %v1126
  %v1200 = vpack.c.b16 %v1127, %v1127
  %v1201 = vpack.c.b16 %v1128, %v1128
  %v1202 = vpack.c.b16 %v1129, %v1129
  %v1203 = vpack.c.b16 %v1130, %v1130
  %v1204 = vpack.c.b16 %v1131, %v1131
  %v1205 = vpack.c.b16 %v1132, %v1132
  %v1206 = vpack.c.b16 %v1133, %v1133
  %v1207 = vpack.c.b16 %v1134, %v1134
  %v1208 = vpack.c.b16 %v1135, %v1135
  %v1209 = vpack.c.b16 %v1136, %v1136
  %v1210 = vpack.c.b16 %v1137, %v1137
  %1284 = vst [vmem:[%s3] sm:$0xf] %v1138
  %1285 = vst [vmem:[%s3 + $0x4] sm:$0xf] %v1139
  %1286 = vst [vmem:[%s3 + $0x8] sm:$0xf] %v1140
  %1287 = vst [vmem:[%s3 + $0xc] sm:$0xf] %v1141
  %1288 = vst [vmem:[%s3 + $0x10] sm:$0xf] %v1142
  %1289 = vst [vmem:[%s3 + $0x14] sm:$0xf] %v1143
  %1290 = vst [vmem:[%s3 + $0x18] sm:$0xf] %v1144
  %1291 = vst [vmem:[%s3 + $0x1c] sm:$0xf] %v1145
  %1292 = vst [vmem:[%s3 + $0x20] sm:$0xf] %v1146
  %1293 = vst [vmem:[%s3 + $0x24] sm:$0xf] %v1147
  %1294 = vst [vmem:[%s3 + $0x28] sm:$0xf] %v1148
  %1295 = vst [vmem:[%s3 + $0x2c] sm:$0xf] %v1149
  %1296 = vst [vmem:[%s3 + $0x30] sm:$0xf] %v1150
  %1297 = vst [vmem:[%s3 + $0x34] sm:$0xf] %v1151
  %1298 = vst [vmem:[%s3 + $0x38] sm:$0xf] %v1152
  %1299 = vst [vmem:[%s3 + $0x3c] sm:$0xf] %v1153
  %1300 = vst [vmem:[%s3 + $0x40] sm:$0xf] %v1154
  %1301 = vst [vmem:[%s3 + $0x44] sm:$0xf] %v1155
  %1302 = vst [vmem:[%s3 + $0x48] sm:$0xf] %v1156
  %1303 = vst [vmem:[%s3 + $0x4c] sm:$0xf] %v1157
  %1304 = vst [vmem:[%s3 + $0x50] sm:$0xf] %v1158
  %1305 = vst [vmem:[%s3 + $0x54] sm:$0xf] %v1159
  %1306 = vst [vmem:[%s3 + $0x58] sm:$0xf] %v1160
  %1307 = vst [vmem:[%s3 + $0x5c] sm:$0xf] %v1161
  %1308 = vst [vmem:[%s3 + $0x60] sm:$0xf] %v1162
  %1309 = vst [vmem:[%s3 + $0x64] sm:$0xf] %v1163
  %1310 = vst [vmem:[%s3 + $0x68] sm:$0xf] %v1164
  %1311 = vst [vmem:[%s3 + $0x6c] sm:$0xf] %v1165
  %1312 = vst [vmem:[%s3 + $0x70] sm:$0xf] %v1166
  %1313 = vst [vmem:[%s3 + $0x74] sm:$0xf] %v1167
  %1314 = vst [vmem:[%s3 + $0x78] sm:$0xf] %v1168
  %1315 = vst [vmem:[%s3 + $0x7c] sm:$0xf] %v1169
  %1316 = vst [vmem:[%s3 + $0x80] sm:$0xf] %v1170
  %1317 = vst [vmem:[%s3 + $0x84] sm:$0xf] %v1171
  %1318 = vst [vmem:[%s3 + $0x88] sm:$0xf] %v1172
  %1319 = vst [vmem:[%s3 + $0x8c] sm:$0xf] %v1173
  %1320 = vst [vmem:[%s3 + $0x90] sm:$0xf] %v1174
  %1321 = vst [vmem:[%s3 + $0x94] sm:$0xf] %v1175
  %1322 = vst [vmem:[%s3 + $0x98] sm:$0xf] %v1176
  %1323 = vst [vmem:[%s3 + $0x9c] sm:$0xf] %v1177
  %1324 = vst [vmem:[%s3 + $0xa0] sm:$0xf] %v1178
  %1325 = vst [vmem:[%s3 + $0xa4] sm:$0xf] %v1179
  %1326 = vst [vmem:[%s3 + $0xa8] sm:$0xf] %v1180
  %1327 = vst [vmem:[%s3 + $0xac] sm:$0xf] %v1181
  %1328 = vst [vmem:[%s3 + $0xb0] sm:$0xf] %v1182
  %1329 = vst [vmem:[%s3 + $0xb4] sm:$0xf] %v1183
  %1330 = vst [vmem:[%s3 + $0xb8] sm:$0xf] %v1184
  %1331 = vst [vmem:[%s3 + $0xbc] sm:$0xf] %v1185
  %1332 = vst [vmem:[%s3 + $0xc0] sm:$0xf] %v1186
  %1333 = vst [vmem:[%s3 + $0xc4] sm:$0xf] %v1187
  %1334 = vst [vmem:[%s3 + $0xc8] sm:$0xf] %v1188
  %1335 = vst [vmem:[%s3 + $0xcc] sm:$0xf] %v1189
  %1336 = vst [vmem:[%s3 + $0xd0] sm:$0xf] %v1190
  %1337 = vst [vmem:[%s3 + $0xd4] sm:$0xf] %v1191
  %1338 = vst [vmem:[%s3 + $0xd8] sm:$0xf] %v1192
  %1339 = vst [vmem:[%s3 + $0xdc] sm:$0xf] %v1193
  %1340 = vst [vmem:[%s3 + $0xe0] sm:$0xf] %v1194
  %1341 = vst [vmem:[%s3 + $0xe4] sm:$0xf] %v1195
  %1342 = vst [vmem:[%s3 + $0xe8] sm:$0xf] %v1196
  %1343 = vst [vmem:[%s3 + $0xec] sm:$0xf] %v1197
  %1344 = vst [vmem:[%s3 + $0xf0] sm:$0xf] %v1198
  %1345 = vst [vmem:[%s3 + $0xf4] sm:$0xf] %v1199
  %1346 = vst [vmem:[%s3 + $0xf8] sm:$0xf] %v1200
  %1347 = vst [vmem:[%s3 + $0xfc] sm:$0xf] %v1201
  %1348 = vst [vmem:[%s3 + $0x100] sm:$0xf] %v1202
  %1349 = vst [vmem:[%s3 + $0x104] sm:$0xf] %v1203
  %1350 = vst [vmem:[%s3 + $0x108] sm:$0xf] %v1204
  %1351 = vst [vmem:[%s3 + $0x10c] sm:$0xf] %v1205
  %1352 = vst [vmem:[%s3 + $0x110] sm:$0xf] %v1206
  %1353 = vst [vmem:[%s3 + $0x114] sm:$0xf] %v1207
  %1354 = vst [vmem:[%s3 + $0x118] sm:$0xf] %v1208
  %1355 = vst [vmem:[%s3 + $0x11c] sm:$0xf] %v1209
  %1356 = vst [vmem:[%s3 + $0x120] sm:$0x1] %v1210
  // Predicated region
  $region14: #{vae_forward.14} parent=0 // pred_check
    _
  $region15: #{vae_forward.14} parent=0 // pred_check_branch
    %1358 = sbr.rel (0) target = $region17
  $region16: #{vae_forward.14} parent=0 // pred_region
    _
  $region17: #{vae_forward.14} parent=0 // pred_fallthru
    _
  // Predicated region
  $region18: #{vae_forward.14} parent=0 // pred_check
    _
  $region19: #{vae_forward.14} parent=0 // pred_check_branch
    %1360 = sbr.rel (0) target = $region21
  $region20: #{vae_forward.14} parent=0 // pred_region
    _
  $region21: #{vae_forward.14} parent=0 // pred_fallthru
    _

// kernel: vae_forward.15
$region0: #{vae_forward.15}
  #allocation0 [shape = 'u32[]', space=smem, size = 0x4, offset = 0x4, fixed_abs, tag = 'smem constant byte address 0x4 - core index']
  #allocation1 [shape = 'u32[144,128]{1,0:T(1,128)}', space=vmem, size = 0x12000, scoped, tag = 'internal scratch']
  %s0 = inlined_call_operand.vmem [shape: bf16[2048,288], index: 0, kind: input, shape index: {}]
  %s1 = inlined_call_operand.vmem [shape: bf16[288,128], index: 1, kind: input, shape index: {}]
  %s2 = inlined_call_operand.vmem [shape: f32[1,128], index: 2, kind: input, shape index: {}]
  %s3 = inlined_call_operand.vmem [shape: f32[2048,1], index: 3, kind: output, shape index: {}]
  %s4 = sld [smem:[#allocation0]]
  $region45: #{vae_forward.15} parent=0
    _
  %s6 = ssub.s32 1, %s4
  %s7 = scalar_select 0, %s6, %s4
  loop: start=0, step=1, limit=4
  $region2: #{vae_forward.15} parent=0 // loop_pre_header
    _
  $region3: #{vae_forward.15} parent=0 // loop_header
    %s9 = sphi 0, %s13
    %p10 = scmp.ge.s32.totalorder %s9, 4
    %s19 = sphi 0, %s21
    %s22 = sphi 0, %s19
    %s23 = sphi 0, %s22
    %s39 = sphi 0, %s23
    %s43 = sphi 0, %s43
    %s45 = sphi 0, %s43
    %s46 = sphi 0, %s45
    %s60 = sphi 0, %s46
    %s64 = sphi 0, %s64
    %s66 = sphi 0, %s64
    %s67 = sphi 0, %s66
    %s81 = sphi 0, %s67
    %s87 = sphi 0, %s89
    %s90 = sphi 0, %s87
    %s91 = sphi 0, %s90
    %s107 = sphi 0, %s91
  $region4: #{vae_forward.15} parent=0 // loop_header_branch
    %12 = sbr.rel (%p10) target = $region8
  $region5: #{vae_forward.15} parent=0 // loop_body
    %s14 = ssub.s32 %s9, 1
    %s15 = ssub.s32 %s9, 2
    %s16 = sadd.s32 %s9, 1
    %s17 = ssub.s32 %s9, %s16
    %p18 = scmp.eq.s32.totalorder %s17, 0
    %s20 = sadd.s32 %s19, 1
    %s21 = scalar_select %p18, %s19, %s20
    %p24 = pneg %p18
    %p25 = scmp.eq.s32.totalorder %s9, 1
    %p26 = por %p24, %p25
    %p27 = scmp.ne.s32.totalorder %s19, %s22
    %p28 = scmp.eq.s32.totalorder %s9, 0
    %p29 = por %p27, %p28
    %p30 = scmp.ne.s32.totalorder %s19, %s22
    %p31 = scmp.eq.s32.totalorder %s14, 1
    %p32 = por %p30, %p31
    %p33 = scmp.ne.s32.totalorder %s22, %s23
    %p34 = scmp.eq.s32.totalorder %s14, 0
    %p35 = por %p33, %p34
    %p36 = scmp.ne.s32.totalorder %s22, %s23
    %p37 = scmp.eq.s32.totalorder %s15, 1
    %p38 = por %p36, %p37
    %p40 = scmp.ne.s32.totalorder %s23, %s39
    %p41 = scmp.eq.s32.totalorder %s15, 0
    %p42 = por %p40, %p41
    %s44 = sadd.s32 %s43, 1
    %p47 = scmp.eq.s32.totalorder %s9, 1
    %p48 = scmp.ne.s32.totalorder %s43, %s45
    %p49 = scmp.eq.s32.totalorder %s9, 0
    %p50 = por %p48, %p49
    %p51 = scmp.ne.s32.totalorder %s43, %s45
    %p52 = scmp.eq.s32.totalorder %s14, 1
    %p53 = por %p51, %p52
    %p54 = scmp.ne.s32.totalorder %s45, %s46
    %p55 = scmp.eq.s32.totalorder %s14, 0
    %p56 = por %p54, %p55
    %p57 = scmp.ne.s32.totalorder %s45, %s46
    %p58 = scmp.eq.s32.totalorder %s15, 1
    %p59 = por %p57, %p58
    %p61 = scmp.ne.s32.totalorder %s46, %s60
    %p62 = scmp.eq.s32.totalorder %s15, 0
    %p63 = por %p61, %p62
    %s65 = sadd.s32 %s64, 1
    %p68 = scmp.eq.s32.totalorder %s9, 1
    %p69 = scmp.ne.s32.totalorder %s64, %s66
    %p70 = scmp.eq.s32.totalorder %s9, 0
    %p71 = por %p69, %p70
    %p72 = scmp.ne.s32.totalorder %s64, %s66
    %p73 = scmp.eq.s32.totalorder %s14, 1
    %p74 = por %p72, %p73
    %p75 = scmp.ne.s32.totalorder %s66, %s67
    %p76 = scmp.eq.s32.totalorder %s14, 0
    %p77 = por %p75, %p76
    %p78 = scmp.ne.s32.totalorder %s66, %s67
    %p79 = scmp.eq.s32.totalorder %s15, 1
    %p80 = por %p78, %p79
    %p82 = scmp.ne.s32.totalorder %s67, %s81
    %p83 = scmp.eq.s32.totalorder %s15, 0
    %p84 = por %p82, %p83
    %s85 = ssub.s32 %s9, %s16
    %p86 = scmp.eq.s32.totalorder %s85, 0
    %s88 = sadd.s32 %s87, 1
    %s89 = scalar_select %p86, %s87, %s88
    %p92 = pneg %p86
    %p93 = scmp.eq.s32.totalorder %s9, 1
    %p94 = por %p92, %p93
    %p95 = scmp.ne.s32.totalorder %s87, %s90
    %p96 = scmp.eq.s32.totalorder %s9, 0
    %p97 = por %p95, %p96
    %p98 = scmp.ne.s32.totalorder %s87, %s90
    %p99 = scmp.eq.s32.totalorder %s14, 1
    %p100 = por %p98, %p99
    %p101 = scmp.ne.s32.totalorder %s90, %s91
    %p102 = scmp.eq.s32.totalorder %s14, 0
    %p103 = por %p101, %p102
    %p104 = scmp.ne.s32.totalorder %s90, %s91
    %p105 = scmp.eq.s32.totalorder %s15, 1
    %p106 = por %p104, %p105
    %p108 = scmp.ne.s32.totalorder %s91, %s107
    %p109 = scmp.eq.s32.totalorder %s15, 0
    %p110 = por %p108, %p109
    %p111 = scmp.le.s32.totalorder 1, %s9
    %p112 = scmp.lt.s32.totalorder %s9, 3
    %p113 = pnand %p111, %p112
    %p114 = pneg %p113
    // Predicated region
    $region9: #{vae_forward.15} parent=5 // pred_check
      _
    $region10: #{vae_forward.15} parent=5 // pred_check_branch
      %116 = sbr.rel (%p113) target = $region12
    $region11: #{vae_forward.15} parent=5 // pred_region
      %s117 = ssub.s32 %s9, 1
      // Predicated region
      $region13: #{vae_forward.15} parent=11 // pred_check
        %p118 = pneg %p56
      $region14: #{vae_forward.15} parent=11 // pred_check_branch
        %120 = sbr.rel (%p118) target = $region16
      $region15: #{vae_forward.15} parent=11 // pred_region
        _
      $region16: #{vae_forward.15} parent=11 // pred_fallthru
        _
      // Predicated region
      $region17: #{vae_forward.15} parent=11 // pred_check
        %p121 = pneg %p77
      $region18: #{vae_forward.15} parent=11 // pred_check_branch
        %123 = sbr.rel (%p121) target = $region20
      $region19: #{vae_forward.15} parent=11 // pred_region
        _
      $region20: #{vae_forward.15} parent=11 // pred_fallthru
        _
    $region12: #{vae_forward.15} parent=5 // pred_fallthru
      _
    %p124 = scmp.lt.s32.totalorder %s9, 2
    // Predicated region
    $region21: #{vae_forward.15} parent=5 // pred_check
      %p125 = pneg %p124
    $region22: #{vae_forward.15} parent=5 // pred_check_branch
      %127 = sbr.rel (%p125) target = $region24
    $region23: #{vae_forward.15} parent=5 // pred_region
      // Predicated region
      $region25: #{vae_forward.15} parent=23 // pred_check
        %p128 = pneg %p29
      $region26: #{vae_forward.15} parent=23 // pred_check_branch
        %130 = sbr.rel (%p128) target = $region28
      $region27: #{vae_forward.15} parent=23 // pred_region
        %s131 = smul.u32 128, %s9
        %p132 = scmp.lt.s32.totalorder %s131, 255
        %s133 = scalar_select %p132, %s131, 255
        %s134 = smul.addr %s133, 3
        %s135 = smul.addr %s134, 4
        %s136 = scalar_lea.vmem %s0, %s135
        %s137 = smul.u32 128, %s9
      $region28: #{vae_forward.15} parent=23 // pred_fallthru
        _
    $region24: #{vae_forward.15} parent=5 // pred_fallthru
      _
    %p138 = scmp.le.s32.totalorder 1, %s9
    %p139 = scmp.lt.s32.totalorder %s9, 3
    %p140 = pnand %p138, %p139
    %p141 = pneg %p140
    // Predicated region
    $region29: #{vae_forward.15} parent=5 // pred_check
      _
    $region30: #{vae_forward.15} parent=5 // pred_check_branch
      %143 = sbr.rel (%p140) target = $region32
    $region31: #{vae_forward.15} parent=5 // pred_region
      %s144 = ssub.s32 %s9, 1
      %s145 = smul.u32 128, %s14
      %p146 = scmp.lt.s32.totalorder %s145, 255
      %s147 = scalar_select %p146, %s145, 255
      %s148 = smul.addr %s147, 3
      %s149 = smul.addr %s148, 4
      %s150 = scalar_lea.vmem %s0, %s149
      %p151 = pneg %p35
      %p152 = pneg %p32
      %p153 = pneg %p56
      %p154 = pneg %p53
      %p155 = pneg %p77
      %p156 = pneg %p74
      %p157 = pneg %p103
      %p158 = pneg %p100
      %s159 = smul.u32 128, %s14
      %p160 = scmp.lt.s32.totalorder %s159, 255
      %s161 = scalar_select %p160, %s159, 255
      %s162 = smul.addr %s161, 8
      %s163 = scalar_lea.vmem %s3, %s162
      %s164 = smul.u32 128, %s14
      %p165 = scmp.lt.s32.totalorder %s164, 255
      %s166 = scalar_select %p165, %s164, 255
      %s167 = smul.addr %s166, 3
      %s168 = smul.addr %s167, 4
      %s169 = scalar_lea.vmem %s0, %s168
      %s170 = smul.u32 128, %s14
      %s171 = smul.u32 128, %s14
      %p172 = scmp.lt.s32.totalorder %s171, 255
      %s173 = scalar_select %p172, %s171, 255
      %s174 = smul.addr %s173, 8
      %s175 = scalar_lea.vmem %s3, %s174
      %s176 = smul.u32 128, %s14
      %v178 = vld [vmem:[%s169] sm:$0xff]
      %v179 = vld [vmem:[%s169 + $0x8] sm:$0xf]
      %v180 = vld [vmem:[%s169 + $0xc] sm:$0xff]
      %v181 = vld [vmem:[%s169 + $0x14] sm:$0xf]
      %v182 = vld [vmem:[%s169 + $0x18] sm:$0xff]
      %v183 = vld [vmem:[%s169 + $0x20] sm:$0xf]
      %v184 = vld [vmem:[%s169 + $0x24] sm:$0xff]
      %v185 = vld [vmem:[%s169 + $0x2c] sm:$0xf]
      %v186 = vld [vmem:[%s169 + $0x30] sm:$0xff]
      %v187 = vld [vmem:[%s169 + $0x38] sm:$0xf]
      %v188 = vld [vmem:[%s169 + $0x3c] sm:$0xff]
      %v189 = vld [vmem:[%s169 + $0x44] sm:$0xf]
      %v190 = vld [vmem:[%s169 + $0x48] sm:$0xff]
      %v191 = vld [vmem:[%s169 + $0x50] sm:$0xf]
      %v192 = vld [vmem:[%s169 + $0x54] sm:$0xff]
      %v193 = vld [vmem:[%s169 + $0x5c] sm:$0xf]
      %v194 = vld [vmem:[%s169 + $0x60] sm:$0xff]
      %v195 = vld [vmem:[%s169 + $0x68] sm:$0xf]
      %v196 = vld [vmem:[%s169 + $0x6c] sm:$0xff]
      %v197 = vld [vmem:[%s169 + $0x74] sm:$0xf]
      %v198 = vld [vmem:[%s169 + $0x78] sm:$0xff]
      %v199 = vld [vmem:[%s169 + $0x80] sm:$0xf]
      %v200 = vld [vmem:[%s169 + $0x84] sm:$0xff]
      %v201 = vld [vmem:[%s169 + $0x8c] sm:$0xf]
      %v202 = vld [vmem:[%s169 + $0x90] sm:$0xff]
      %v203 = vld [vmem:[%s169 + $0x98] sm:$0xf]
      %v204 = vld [vmem:[%s169 + $0x9c] sm:$0xff]
      %v205 = vld [vmem:[%s169 + $0xa4] sm:$0xf]
      %v206 = vld [vmem:[%s169 + $0xa8] sm:$0xff]
      %v207 = vld [vmem:[%s169 + $0xb0] sm:$0xf]
      %v208 = vld [vmem:[%s169 + $0xb4] sm:$0xff]
      %v209 = vld [vmem:[%s169 + $0xbc] sm:$0xf]
      %v210 = vld [vmem:[%s169 + $0xc0] sm:$0xff]
      %v211 = vld [vmem:[%s169 + $0xc8] sm:$0xf]
      %v212 = vld [vmem:[%s169 + $0xcc] sm:$0xff]
      %v213 = vld [vmem:[%s169 + $0xd4] sm:$0xf]
      %v214 = vld [vmem:[%s169 + $0xd8] sm:$0xff]
      %v215 = vld [vmem:[%s169 + $0xe0] sm:$0xf]
      %v216 = vld [vmem:[%s169 + $0xe4] sm:$0xff]
      %v217 = vld [vmem:[%s169 + $0xec] sm:$0xf]
      %v218 = vld [vmem:[%s169 + $0xf0] sm:$0xff]
      %v219 = vld [vmem:[%s169 + $0xf8] sm:$0xf]
      %v220 = vld [vmem:[%s169 + $0xfc] sm:$0xff]
      %v221 = vld [vmem:[%s169 + $0x104] sm:$0xf]
      %v222 = vld [vmem:[%s169 + $0x108] sm:$0xff]
      %v223 = vld [vmem:[%s169 + $0x110] sm:$0xf]
      %v224 = vld [vmem:[%s169 + $0x114] sm:$0xff]
      %v225 = vld [vmem:[%s169 + $0x11c] sm:$0xf]
      %v226 = vld [vmem:[%s169 + $0x120] sm:$0xff]
      %v227 = vld [vmem:[%s169 + $0x128] sm:$0xf]
      %v228 = vld [vmem:[%s169 + $0x12c] sm:$0xff]
      %v229 = vld [vmem:[%s169 + $0x134] sm:$0xf]
      %v230 = vld [vmem:[%s169 + $0x138] sm:$0xff]
      %v231 = vld [vmem:[%s169 + $0x140] sm:$0xf]
      %v232 = vld [vmem:[%s169 + $0x144] sm:$0xff]
      %v233 = vld [vmem:[%s169 + $0x14c] sm:$0xf]
      %v234 = vld [vmem:[%s169 + $0x150] sm:$0xff]
      %v235 = vld [vmem:[%s169 + $0x158] sm:$0xf]
      %v236 = vld [vmem:[%s169 + $0x15c] sm:$0xff]
      %v237 = vld [vmem:[%s169 + $0x164] sm:$0xf]
      %v238 = vld [vmem:[%s169 + $0x168] sm:$0xff]
      %v239 = vld [vmem:[%s169 + $0x170] sm:$0xf]
      %v240 = vld [vmem:[%s169 + $0x174] sm:$0xff]
      %v241 = vld [vmem:[%s169 + $0x17c] sm:$0xf]
      %v242 = vld [vmem:[%s169 + $0x180] sm:$0xff]
      %v243 = vld [vmem:[%s169 + $0x188] sm:$0xf]
      %v244 = vld [vmem:[%s169 + $0x18c] sm:$0xff]
      %v245 = vld [vmem:[%s169 + $0x194] sm:$0xf]
      %v246 = vld [vmem:[%s169 + $0x198] sm:$0xff]
      %v247 = vld [vmem:[%s169 + $0x1a0] sm:$0xf]
      %v248 = vld [vmem:[%s169 + $0x1a4] sm:$0xff]
      %v249 = vld [vmem:[%s169 + $0x1ac] sm:$0xf]
      %v250 = vld [vmem:[%s169 + $0x1b0] sm:$0xff]
      %v251 = vld [vmem:[%s169 + $0x1b8] sm:$0xf]
      %v252 = vld [vmem:[%s169 + $0x1bc] sm:$0xff]
      %v253 = vld [vmem:[%s169 + $0x1c4] sm:$0xf]
      %v254 = vld [vmem:[%s169 + $0x1c8] sm:$0xff]
      %v255 = vld [vmem:[%s169 + $0x1d0] sm:$0xf]
      %v256 = vld [vmem:[%s169 + $0x1d4] sm:$0xff]
      %v257 = vld [vmem:[%s169 + $0x1dc] sm:$0xf]
      %v258 = vld [vmem:[%s169 + $0x1e0] sm:$0xff]
      %v259 = vld [vmem:[%s169 + $0x1e8] sm:$0xf]
      %v260 = vld [vmem:[%s169 + $0x1ec] sm:$0xff]
      %v261 = vld [vmem:[%s169 + $0x1f4] sm:$0xf]
      %v262 = vld [vmem:[%s169 + $0x1f8] sm:$0xff]
      %v263 = vld [vmem:[%s169 + $0x200] sm:$0xf]
      %v264 = vld [vmem:[%s169 + $0x204] sm:$0xff]
      %v265 = vld [vmem:[%s169 + $0x20c] sm:$0xf]
      %v266 = vld [vmem:[%s169 + $0x210] sm:$0xff]
      %v267 = vld [vmem:[%s169 + $0x218] sm:$0xf]
      %v268 = vld [vmem:[%s169 + $0x21c] sm:$0xff]
      %v269 = vld [vmem:[%s169 + $0x224] sm:$0xf]
      %v270 = vld [vmem:[%s169 + $0x228] sm:$0xff]
      %v271 = vld [vmem:[%s169 + $0x230] sm:$0xf]
      %v272 = vld [vmem:[%s169 + $0x234] sm:$0xff]
      %v273 = vld [vmem:[%s169 + $0x23c] sm:$0xf]
      %v274 = vld [vmem:[%s169 + $0x240] sm:$0xff]
      %v275 = vld [vmem:[%s169 + $0x248] sm:$0xf]
      %v276 = vld [vmem:[%s169 + $0x24c] sm:$0xff]
      %v277 = vld [vmem:[%s169 + $0x254] sm:$0xf]
      %v278 = vld [vmem:[%s169 + $0x258] sm:$0xff]
      %v279 = vld [vmem:[%s169 + $0x260] sm:$0xf]
      %v280 = vld [vmem:[%s169 + $0x264] sm:$0xff]
      %v281 = vld [vmem:[%s169 + $0x26c] sm:$0xf]
      %v282 = vld [vmem:[%s169 + $0x270] sm:$0xff]
      %v283 = vld [vmem:[%s169 + $0x278] sm:$0xf]
      %v284 = vld [vmem:[%s169 + $0x27c] sm:$0xff]
      %v285 = vld [vmem:[%s169 + $0x284] sm:$0xf]
      %v286 = vld [vmem:[%s169 + $0x288] sm:$0xff]
      %v287 = vld [vmem:[%s169 + $0x290] sm:$0xf]
      %v288 = vld [vmem:[%s169 + $0x294] sm:$0xff]
      %v289 = vld [vmem:[%s169 + $0x29c] sm:$0xf]
      %v290 = vld [vmem:[%s169 + $0x2a0] sm:$0xff]
      %v291 = vld [vmem:[%s169 + $0x2a8] sm:$0xf]
      %v292 = vld [vmem:[%s169 + $0x2ac] sm:$0xff]
      %v293 = vld [vmem:[%s169 + $0x2b4] sm:$0xf]
      %v294 = vld [vmem:[%s169 + $0x2b8] sm:$0xff]
      %v295 = vld [vmem:[%s169 + $0x2c0] sm:$0xf]
      %v296 = vld [vmem:[%s169 + $0x2c4] sm:$0xff]
      %v297 = vld [vmem:[%s169 + $0x2cc] sm:$0xf]
      %v298 = vld [vmem:[%s169 + $0x2d0] sm:$0xff]
      %v299 = vld [vmem:[%s169 + $0x2d8] sm:$0xf]
      %v300 = vld [vmem:[%s169 + $0x2dc] sm:$0xff]
      %v301 = vld [vmem:[%s169 + $0x2e4] sm:$0xf]
      %v302 = vld [vmem:[%s169 + $0x2e8] sm:$0xff]
      %v303 = vld [vmem:[%s169 + $0x2f0] sm:$0xf]
      %v304 = vld [vmem:[%s169 + $0x2f4] sm:$0xff]
      %v305 = vld [vmem:[%s169 + $0x2fc] sm:$0xf]
      %v306 = vld [vmem:[%s169 + $0x300] sm:$0xff]
      %v307 = vld [vmem:[%s169 + $0x308] sm:$0xf]
      %v308 = vld [vmem:[%s169 + $0x30c] sm:$0xff]
      %v309 = vld [vmem:[%s169 + $0x314] sm:$0xf]
      %v310 = vld [vmem:[%s169 + $0x318] sm:$0xff]
      %v311 = vld [vmem:[%s169 + $0x320] sm:$0xf]
      %v312 = vld [vmem:[%s169 + $0x324] sm:$0xff]
      %v313 = vld [vmem:[%s169 + $0x32c] sm:$0xf]
      %v314 = vld [vmem:[%s169 + $0x330] sm:$0xff]
      %v315 = vld [vmem:[%s169 + $0x338] sm:$0xf]
      %v316 = vld [vmem:[%s169 + $0x33c] sm:$0xff]
      %v317 = vld [vmem:[%s169 + $0x344] sm:$0xf]
      %v318 = vld [vmem:[%s169 + $0x348] sm:$0xff]
      %v319 = vld [vmem:[%s169 + $0x350] sm:$0xf]
      %v320 = vld [vmem:[%s169 + $0x354] sm:$0xff]
      %v321 = vld [vmem:[%s169 + $0x35c] sm:$0xf]
      %v322 = vld [vmem:[%s169 + $0x360] sm:$0xff]
      %v323 = vld [vmem:[%s169 + $0x368] sm:$0xf]
      %v324 = vld [vmem:[%s169 + $0x36c] sm:$0xff]
      %v325 = vld [vmem:[%s169 + $0x374] sm:$0xf]
      %v326 = vld [vmem:[%s169 + $0x378] sm:$0xff]
      %v327 = vld [vmem:[%s169 + $0x380] sm:$0xf]
      %v328 = vld [vmem:[%s169 + $0x384] sm:$0xff]
      %v329 = vld [vmem:[%s169 + $0x38c] sm:$0xf]
      %v330 = vld [vmem:[%s169 + $0x390] sm:$0xff]
      %v331 = vld [vmem:[%s169 + $0x398] sm:$0xf]
      %v332 = vld [vmem:[%s169 + $0x39c] sm:$0xff]
      %v333 = vld [vmem:[%s169 + $0x3a4] sm:$0xf]
      %v334 = vld [vmem:[%s169 + $0x3a8] sm:$0xff]
      %v335 = vld [vmem:[%s169 + $0x3b0] sm:$0xf]
      %v336 = vld [vmem:[%s169 + $0x3b4] sm:$0xff]
      %v337 = vld [vmem:[%s169 + $0x3bc] sm:$0xf]
      %v338 = vld [vmem:[%s169 + $0x3c0] sm:$0xff]
      %v339 = vld [vmem:[%s169 + $0x3c8] sm:$0xf]
      %v340 = vld [vmem:[%s169 + $0x3cc] sm:$0xff]
      %v341 = vld [vmem:[%s169 + $0x3d4] sm:$0xf]
      %v342 = vld [vmem:[%s169 + $0x3d8] sm:$0xff]
      %v343 = vld [vmem:[%s169 + $0x3e0] sm:$0xf]
      %v344 = vld [vmem:[%s169 + $0x3e4] sm:$0xff]
      %v345 = vld [vmem:[%s169 + $0x3ec] sm:$0xf]
      %v346 = vld [vmem:[%s169 + $0x3f0] sm:$0xff]
      %v347 = vld [vmem:[%s169 + $0x3f8] sm:$0xf]
      %v348 = vld [vmem:[%s169 + $0x3fc] sm:$0xff]
      %v349 = vld [vmem:[%s169 + $0x404] sm:$0xf]
      %v350 = vld [vmem:[%s169 + $0x408] sm:$0xff]
      %v351 = vld [vmem:[%s169 + $0x410] sm:$0xf]
      %v352 = vld [vmem:[%s169 + $0x414] sm:$0xff]
      %v353 = vld [vmem:[%s169 + $0x41c] sm:$0xf]
      %v354 = vld [vmem:[%s169 + $0x420] sm:$0xff]
      %v355 = vld [vmem:[%s169 + $0x428] sm:$0xf]
      %v356 = vld [vmem:[%s169 + $0x42c] sm:$0xff]
      %v357 = vld [vmem:[%s169 + $0x434] sm:$0xf]
      %v358 = vld [vmem:[%s169 + $0x438] sm:$0xff]
      %v359 = vld [vmem:[%s169 + $0x440] sm:$0xf]
      %v360 = vld [vmem:[%s169 + $0x444] sm:$0xff]
      %v361 = vld [vmem:[%s169 + $0x44c] sm:$0xf]
      %v362 = vld [vmem:[%s169 + $0x450] sm:$0xff]
      %v363 = vld [vmem:[%s169 + $0x458] sm:$0xf]
      %v364 = vld [vmem:[%s169 + $0x45c] sm:$0xff]
      %v365 = vld [vmem:[%s169 + $0x464] sm:$0xf]
      %v366 = vld [vmem:[%s169 + $0x468] sm:$0xff]
      %v367 = vld [vmem:[%s169 + $0x470] sm:$0xf]
      %v368 = vld [vmem:[%s169 + $0x474] sm:$0xff]
      %v369 = vld [vmem:[%s169 + $0x47c] sm:$0xf]
      %v370 = vld [vmem:[%s169 + $0x480] sm:$0xff]
      %v371 = vld [vmem:[%s169 + $0x488] sm:$0xf]
      %v372 = vld [vmem:[%s169 + $0x48c] sm:$0xff]
      %v373 = vld [vmem:[%s169 + $0x494] sm:$0xf]
      %v374 = vld [vmem:[%s169 + $0x498] sm:$0xff]
      %v375 = vld [vmem:[%s169 + $0x4a0] sm:$0xf]
      %v376 = vld [vmem:[%s169 + $0x4a4] sm:$0xff]
      %v377 = vld [vmem:[%s169 + $0x4ac] sm:$0xf]
      %v378 = vld [vmem:[%s169 + $0x4b0] sm:$0xff]
      %v379 = vld [vmem:[%s169 + $0x4b8] sm:$0xf]
      %v380 = vld [vmem:[%s169 + $0x4bc] sm:$0xff]
      %v381 = vld [vmem:[%s169 + $0x4c4] sm:$0xf]
      %v382 = vld [vmem:[%s169 + $0x4c8] sm:$0xff]
      %v383 = vld [vmem:[%s169 + $0x4d0] sm:$0xf]
      %v384 = vld [vmem:[%s169 + $0x4d4] sm:$0xff]
      %v385 = vld [vmem:[%s169 + $0x4dc] sm:$0xf]
      %v386 = vld [vmem:[%s169 + $0x4e0] sm:$0xff]
      %v387 = vld [vmem:[%s169 + $0x4e8] sm:$0xf]
      %v388 = vld [vmem:[%s169 + $0x4ec] sm:$0xff]
      %v389 = vld [vmem:[%s169 + $0x4f4] sm:$0xf]
      %v390 = vld [vmem:[%s169 + $0x4f8] sm:$0xff]
      %v391 = vld [vmem:[%s169 + $0x500] sm:$0xf]
      %v392 = vld [vmem:[%s169 + $0x504] sm:$0xff]
      %v393 = vld [vmem:[%s169 + $0x50c] sm:$0xf]
      %v394 = vld [vmem:[%s169 + $0x510] sm:$0xff]
      %v395 = vld [vmem:[%s169 + $0x518] sm:$0xf]
      %v396 = vld [vmem:[%s169 + $0x51c] sm:$0xff]
      %v397 = vld [vmem:[%s169 + $0x524] sm:$0xf]
      %v398 = vld [vmem:[%s169 + $0x528] sm:$0xff]
      %v399 = vld [vmem:[%s169 + $0x530] sm:$0xf]
      %v400 = vld [vmem:[%s169 + $0x534] sm:$0xff]
      %v401 = vld [vmem:[%s169 + $0x53c] sm:$0xf]
      %v402 = vld [vmem:[%s169 + $0x540] sm:$0xff]
      %v403 = vld [vmem:[%s169 + $0x548] sm:$0xf]
      %v404 = vld [vmem:[%s169 + $0x54c] sm:$0xff]
      %v405 = vld [vmem:[%s169 + $0x554] sm:$0xf]
      %v406 = vld [vmem:[%s169 + $0x558] sm:$0xff]
      %v407 = vld [vmem:[%s169 + $0x560] sm:$0xf]
      %v408 = vld [vmem:[%s169 + $0x564] sm:$0xff]
      %v409 = vld [vmem:[%s169 + $0x56c] sm:$0xf]
      %v410 = vld [vmem:[%s169 + $0x570] sm:$0xff]
      %v411 = vld [vmem:[%s169 + $0x578] sm:$0xf]
      %v412 = vld [vmem:[%s169 + $0x57c] sm:$0xff]
      %v413 = vld [vmem:[%s169 + $0x584] sm:$0xf]
      %v414 = vld [vmem:[%s169 + $0x588] sm:$0xff]
      %v415 = vld [vmem:[%s169 + $0x590] sm:$0xf]
      %v416 = vld [vmem:[%s169 + $0x594] sm:$0xff]
      %v417 = vld [vmem:[%s169 + $0x59c] sm:$0xf]
      %v418 = vld [vmem:[%s169 + $0x5a0] sm:$0xff]
      %v419 = vld [vmem:[%s169 + $0x5a8] sm:$0xf]
      %v420 = vld [vmem:[%s169 + $0x5ac] sm:$0xff]
      %v421 = vld [vmem:[%s169 + $0x5b4] sm:$0xf]
      %v422 = vld [vmem:[%s169 + $0x5b8] sm:$0xff]
      %v423 = vld [vmem:[%s169 + $0x5c0] sm:$0xf]
      %v424 = vld [vmem:[%s169 + $0x5c4] sm:$0xff]
      %v425 = vld [vmem:[%s169 + $0x5cc] sm:$0xf]
      %v426 = vld [vmem:[%s169 + $0x5d0] sm:$0xff]
      %v427 = vld [vmem:[%s169 + $0x5d8] sm:$0xf]
      %v428 = vld [vmem:[%s169 + $0x5dc] sm:$0xff]
      %v429 = vld [vmem:[%s169 + $0x5e4] sm:$0xf]
      %v430 = vld [vmem:[%s169 + $0x5e8] sm:$0xff]
      %v431 = vld [vmem:[%s169 + $0x5f0] sm:$0xf]
      %v432 = vld [vmem:[%s169 + $0x5f4] sm:$0xff]
      %v433 = vld [vmem:[%s169 + $0x5fc] sm:$0xf]
      %v434 = vld [vmem:[%s1] sm:$0xf]
      %v435 = vld [vmem:[%s1 + $0x4] sm:$0xf]
      %v436 = vld [vmem:[%s1 + $0x8] sm:$0xf]
      %v437 = vld [vmem:[%s1 + $0xc] sm:$0xf]
      %v438 = vld [vmem:[%s1 + $0x10] sm:$0xf]
      %v439 = vld [vmem:[%s1 + $0x14] sm:$0xf]
      %v440 = vld [vmem:[%s1 + $0x18] sm:$0xf]
      %v441 = vld [vmem:[%s1 + $0x1c] sm:$0xf]
      %v442 = vld [vmem:[%s1 + $0x20] sm:$0xf]
      %v443 = vld [vmem:[%s1 + $0x24] sm:$0xf]
      %v444 = vld [vmem:[%s1 + $0x28] sm:$0xf]
      %v445 = vld [vmem:[%s1 + $0x2c] sm:$0xf]
      %v446 = vld [vmem:[%s1 + $0x30] sm:$0xf]
      %v447 = vld [vmem:[%s1 + $0x34] sm:$0xf]
      %v448 = vld [vmem:[%s1 + $0x38] sm:$0xf]
      %v449 = vld [vmem:[%s1 + $0x3c] sm:$0xf]
      %v450 = vld [vmem:[%s1 + $0x40] sm:$0xf]
      %v451 = vld [vmem:[%s1 + $0x44] sm:$0xf]
      %v452 = vld [vmem:[%s1 + $0x48] sm:$0xf]
      %v453 = vld [vmem:[%s1 + $0x4c] sm:$0xf]
      %v454 = vld [vmem:[%s1 + $0x50] sm:$0xf]
      %v455 = vld [vmem:[%s1 + $0x54] sm:$0xf]
      %v456 = vld [vmem:[%s1 + $0x58] sm:$0xf]
      %v457 = vld [vmem:[%s1 + $0x5c] sm:$0xf]
      %v458 = vld [vmem:[%s1 + $0x60] sm:$0xf]
      %v459 = vld [vmem:[%s1 + $0x64] sm:$0xf]
      %v460 = vld [vmem:[%s1 + $0x68] sm:$0xf]
      %v461 = vld [vmem:[%s1 + $0x6c] sm:$0xf]
      %v462 = vld [vmem:[%s1 + $0x70] sm:$0xf]
      %v463 = vld [vmem:[%s1 + $0x74] sm:$0xf]
      %v464 = vld [vmem:[%s1 + $0x78] sm:$0xf]
      %v465 = vld [vmem:[%s1 + $0x7c] sm:$0xf]
      %v466 = vld [vmem:[%s1 + $0x80] sm:$0xf]
      %v467 = vld [vmem:[%s1 + $0x84] sm:$0xf]
      %v468 = vld [vmem:[%s1 + $0x88] sm:$0xf]
      %v469 = vld [vmem:[%s1 + $0x8c] sm:$0xf]
      %v470 = vld [vmem:[%s2] sm:$0x1]
      %v472 = vlaneseq
      %v473 = vshrl.u32 %v472, 7
      %v474 = vsub.s32 0, %v473
      %v475 = vrot.slane %v470, %v474
      %v733 = vunpack.c.l.b16 %v178
      %v734 = vunpack.c.h.b16 %v178
      %v735 = vunpack.c.l.b16 %v179
      %v736 = vunpack.c.l.b16 %v180
      %v737 = vunpack.c.h.b16 %v180
      %v738 = vunpack.c.l.b16 %v181
      %v739 = vunpack.c.l.b16 %v182
      %v740 = vunpack.c.h.b16 %v182
      %v741 = vunpack.c.l.b16 %v183
      %v742 = vunpack.c.l.b16 %v184
      %v743 = vunpack.c.h.b16 %v184
      %v744 = vunpack.c.l.b16 %v185
      %v745 = vunpack.c.l.b16 %v186
      %v746 = vunpack.c.h.b16 %v186
      %v747 = vunpack.c.l.b16 %v187
      %v748 = vunpack.c.l.b16 %v188
      %v749 = vunpack.c.h.b16 %v188
      %v750 = vunpack.c.l.b16 %v189
      %v751 = vunpack.c.l.b16 %v190
      %v752 = vunpack.c.h.b16 %v190
      %v753 = vunpack.c.l.b16 %v191
      %v754 = vunpack.c.l.b16 %v192
      %v755 = vunpack.c.h.b16 %v192
      %v756 = vunpack.c.l.b16 %v193
      %v757 = vunpack.c.l.b16 %v194
      %v758 = vunpack.c.h.b16 %v194
      %v759 = vunpack.c.l.b16 %v195
      %v760 = vunpack.c.l.b16 %v196
      %v761 = vunpack.c.h.b16 %v196
      %v762 = vunpack.c.l.b16 %v197
      %v763 = vunpack.c.l.b16 %v198
      %v764 = vunpack.c.h.b16 %v198
      %v765 = vunpack.c.l.b16 %v199
      %v766 = vunpack.c.l.b16 %v200
      %v767 = vunpack.c.h.b16 %v200
      %v768 = vunpack.c.l.b16 %v201
      %v769 = vunpack.c.l.b16 %v202
      %v770 = vunpack.c.h.b16 %v202
      %v771 = vunpack.c.l.b16 %v203
      %v772 = vunpack.c.l.b16 %v204
      %v773 = vunpack.c.h.b16 %v204
      %v774 = vunpack.c.l.b16 %v205
      %v775 = vunpack.c.l.b16 %v206
      %v776 = vunpack.c.h.b16 %v206
      %v777 = vunpack.c.l.b16 %v207
      %v778 = vunpack.c.l.b16 %v208
      %v779 = vunpack.c.h.b16 %v208
      %v780 = vunpack.c.l.b16 %v209
      %v781 = vunpack.c.l.b16 %v210
      %v782 = vunpack.c.h.b16 %v210
      %v783 = vunpack.c.l.b16 %v211
      %v784 = vunpack.c.l.b16 %v212
      %v785 = vunpack.c.h.b16 %v212
      %v786 = vunpack.c.l.b16 %v213
      %v787 = vunpack.c.l.b16 %v214
      %v788 = vunpack.c.h.b16 %v214
      %v789 = vunpack.c.l.b16 %v215
      %v790 = vunpack.c.l.b16 %v216
      %v791 = vunpack.c.h.b16 %v216
      %v792 = vunpack.c.l.b16 %v217
      %v793 = vunpack.c.l.b16 %v218
      %v794 = vunpack.c.h.b16 %v218
      %v795 = vunpack.c.l.b16 %v219
      %v796 = vunpack.c.l.b16 %v220
      %v797 = vunpack.c.h.b16 %v220
      %v798 = vunpack.c.l.b16 %v221
      %v799 = vunpack.c.l.b16 %v222
      %v800 = vunpack.c.h.b16 %v222
      %v801 = vunpack.c.l.b16 %v223
      %v802 = vunpack.c.l.b16 %v224
      %v803 = vunpack.c.h.b16 %v224
      %v804 = vunpack.c.l.b16 %v225
      %v805 = vunpack.c.l.b16 %v226
      %v806 = vunpack.c.h.b16 %v226
      %v807 = vunpack.c.l.b16 %v227
      %v808 = vunpack.c.l.b16 %v228
      %v809 = vunpack.c.h.b16 %v228
      %v810 = vunpack.c.l.b16 %v229
      %v811 = vunpack.c.l.b16 %v230
      %v812 = vunpack.c.h.b16 %v230
      %v813 = vunpack.c.l.b16 %v231
      %v814 = vunpack.c.l.b16 %v232
      %v815 = vunpack.c.h.b16 %v232
      %v816 = vunpack.c.l.b16 %v233
      %v817 = vunpack.c.l.b16 %v234
      %v818 = vunpack.c.h.b16 %v234
      %v819 = vunpack.c.l.b16 %v235
      %v820 = vunpack.c.l.b16 %v236
      %v821 = vunpack.c.h.b16 %v236
      %v822 = vunpack.c.l.b16 %v237
      %v823 = vunpack.c.l.b16 %v238
      %v824 = vunpack.c.h.b16 %v238
      %v825 = vunpack.c.l.b16 %v239
      %v826 = vunpack.c.l.b16 %v240
      %v827 = vunpack.c.h.b16 %v240
      %v828 = vunpack.c.l.b16 %v241
      %v829 = vunpack.c.l.b16 %v242
      %v830 = vunpack.c.h.b16 %v242
      %v831 = vunpack.c.l.b16 %v243
      %v832 = vunpack.c.l.b16 %v244
      %v833 = vunpack.c.h.b16 %v244
      %v834 = vunpack.c.l.b16 %v245
      %v835 = vunpack.c.l.b16 %v246
      %v836 = vunpack.c.h.b16 %v246
      %v837 = vunpack.c.l.b16 %v247
      %v838 = vunpack.c.l.b16 %v248
      %v839 = vunpack.c.h.b16 %v248
      %v840 = vunpack.c.l.b16 %v249
      %v841 = vunpack.c.l.b16 %v250
      %v842 = vunpack.c.h.b16 %v250
      %v843 = vunpack.c.l.b16 %v251
      %v844 = vunpack.c.l.b16 %v252
      %v845 = vunpack.c.h.b16 %v252
      %v846 = vunpack.c.l.b16 %v253
      %v847 = vunpack.c.l.b16 %v254
      %v848 = vunpack.c.h.b16 %v254
      %v849 = vunpack.c.l.b16 %v255
      %v850 = vunpack.c.l.b16 %v256
      %v851 = vunpack.c.h.b16 %v256
      %v852 = vunpack.c.l.b16 %v257
      %v853 = vunpack.c.l.b16 %v258
      %v854 = vunpack.c.h.b16 %v258
      %v855 = vunpack.c.l.b16 %v259
      %v856 = vunpack.c.l.b16 %v260
      %v857 = vunpack.c.h.b16 %v260
      %v858 = vunpack.c.l.b16 %v261
      %v859 = vunpack.c.l.b16 %v262
      %v860 = vunpack.c.h.b16 %v262
      %v861 = vunpack.c.l.b16 %v263
      %v862 = vunpack.c.l.b16 %v264
      %v863 = vunpack.c.h.b16 %v264
      %v864 = vunpack.c.l.b16 %v265
      %v865 = vunpack.c.l.b16 %v266
      %v866 = vunpack.c.h.b16 %v266
      %v867 = vunpack.c.l.b16 %v267
      %v868 = vunpack.c.l.b16 %v268
      %v869 = vunpack.c.h.b16 %v268
      %v870 = vunpack.c.l.b16 %v269
      %v871 = vunpack.c.l.b16 %v270
      %v872 = vunpack.c.h.b16 %v270
      %v873 = vunpack.c.l.b16 %v271
      %v874 = vunpack.c.l.b16 %v272
      %v875 = vunpack.c.h.b16 %v272
      %v876 = vunpack.c.l.b16 %v273
      %v877 = vunpack.c.l.b16 %v274
      %v878 = vunpack.c.h.b16 %v274
      %v879 = vunpack.c.l.b16 %v275
      %v880 = vunpack.c.l.b16 %v276
      %v881 = vunpack.c.h.b16 %v276
      %v882 = vunpack.c.l.b16 %v277
      %v883 = vunpack.c.l.b16 %v278
      %v884 = vunpack.c.h.b16 %v278
      %v885 = vunpack.c.l.b16 %v279
      %v886 = vunpack.c.l.b16 %v280
      %v887 = vunpack.c.h.b16 %v280
      %v888 = vunpack.c.l.b16 %v281
      %v889 = vunpack.c.l.b16 %v282
      %v890 = vunpack.c.h.b16 %v282
      %v891 = vunpack.c.l.b16 %v283
      %v892 = vunpack.c.l.b16 %v284
      %v893 = vunpack.c.h.b16 %v284
      %v894 = vunpack.c.l.b16 %v285
      %v895 = vunpack.c.l.b16 %v286
      %v896 = vunpack.c.h.b16 %v286
      %v897 = vunpack.c.l.b16 %v287
      %v898 = vunpack.c.l.b16 %v288
      %v899 = vunpack.c.h.b16 %v288
      %v900 = vunpack.c.l.b16 %v289
      %v901 = vunpack.c.l.b16 %v290
      %v902 = vunpack.c.h.b16 %v290
      %v903 = vunpack.c.l.b16 %v291
      %v904 = vunpack.c.l.b16 %v292
      %v905 = vunpack.c.h.b16 %v292
      %v906 = vunpack.c.l.b16 %v293
      %v907 = vunpack.c.l.b16 %v294
      %v908 = vunpack.c.h.b16 %v294
      %v909 = vunpack.c.l.b16 %v295
      %v910 = vunpack.c.l.b16 %v296
      %v911 = vunpack.c.h.b16 %v296
      %v912 = vunpack.c.l.b16 %v297
      %v913 = vunpack.c.l.b16 %v298
      %v914 = vunpack.c.h.b16 %v298
      %v915 = vunpack.c.l.b16 %v299
      %v916 = vunpack.c.l.b16 %v300
      %v917 = vunpack.c.h.b16 %v300
      %v918 = vunpack.c.l.b16 %v301
      %v919 = vunpack.c.l.b16 %v302
      %v920 = vunpack.c.h.b16 %v302
      %v921 = vunpack.c.l.b16 %v303
      %v922 = vunpack.c.l.b16 %v304
      %v923 = vunpack.c.h.b16 %v304
      %v924 = vunpack.c.l.b16 %v305
      %v925 = vunpack.c.l.b16 %v306
      %v926 = vunpack.c.h.b16 %v306
      %v927 = vunpack.c.l.b16 %v307
      %v928 = vunpack.c.l.b16 %v308
      %v929 = vunpack.c.h.b16 %v308
      %v930 = vunpack.c.l.b16 %v309
      %v931 = vunpack.c.l.b16 %v310
      %v932 = vunpack.c.h.b16 %v310
      %v933 = vunpack.c.l.b16 %v311
      %v934 = vunpack.c.l.b16 %v312
      %v935 = vunpack.c.h.b16 %v312
      %v936 = vunpack.c.l.b16 %v313
      %v937 = vunpack.c.l.b16 %v314
      %v938 = vunpack.c.h.b16 %v314
      %v939 = vunpack.c.l.b16 %v315
      %v940 = vunpack.c.l.b16 %v316
      %v941 = vunpack.c.h.b16 %v316
      %v942 = vunpack.c.l.b16 %v317
      %v943 = vunpack.c.l.b16 %v318
      %v944 = vunpack.c.h.b16 %v318
      %v945 = vunpack.c.l.b16 %v319
      %v946 = vunpack.c.l.b16 %v320
      %v947 = vunpack.c.h.b16 %v320
      %v948 = vunpack.c.l.b16 %v321
      %v949 = vunpack.c.l.b16 %v322
      %v950 = vunpack.c.h.b16 %v322
      %v951 = vunpack.c.l.b16 %v323
      %v952 = vunpack.c.l.b16 %v324
      %v953 = vunpack.c.h.b16 %v324
      %v954 = vunpack.c.l.b16 %v325
      %v955 = vunpack.c.l.b16 %v326
      %v956 = vunpack.c.h.b16 %v326
      %v957 = vunpack.c.l.b16 %v327
      %v958 = vunpack.c.l.b16 %v328
      %v959 = vunpack.c.h.b16 %v328
      %v960 = vunpack.c.l.b16 %v329
      %v961 = vunpack.c.l.b16 %v330
      %v962 = vunpack.c.h.b16 %v330
      %v963 = vunpack.c.l.b16 %v331
      %v964 = vunpack.c.l.b16 %v332
      %v965 = vunpack.c.h.b16 %v332
      %v966 = vunpack.c.l.b16 %v333
      %v967 = vunpack.c.l.b16 %v334
      %v968 = vunpack.c.h.b16 %v334
      %v969 = vunpack.c.l.b16 %v335
      %v970 = vunpack.c.l.b16 %v336
      %v971 = vunpack.c.h.b16 %v336
      %v972 = vunpack.c.l.b16 %v337
      %v973 = vunpack.c.l.b16 %v338
      %v974 = vunpack.c.h.b16 %v338
      %v975 = vunpack.c.l.b16 %v339
      %v976 = vunpack.c.l.b16 %v340
      %v977 = vunpack.c.h.b16 %v340
      %v978 = vunpack.c.l.b16 %v341
      %v979 = vunpack.c.l.b16 %v342
      %v980 = vunpack.c.h.b16 %v342
      %v981 = vunpack.c.l.b16 %v343
      %v982 = vunpack.c.l.b16 %v344
      %v983 = vunpack.c.h.b16 %v344
      %v984 = vunpack.c.l.b16 %v345
      %v985 = vunpack.c.l.b16 %v346
      %v986 = vunpack.c.h.b16 %v346
      %v987 = vunpack.c.l.b16 %v347
      %v988 = vunpack.c.l.b16 %v348
      %v989 = vunpack.c.h.b16 %v348
      %v990 = vunpack.c.l.b16 %v349
      %v991 = vunpack.c.l.b16 %v350
      %v992 = vunpack.c.h.b16 %v350
      %v993 = vunpack.c.l.b16 %v351
      %v994 = vunpack.c.l.b16 %v352
      %v995 = vunpack.c.h.b16 %v352
      %v996 = vunpack.c.l.b16 %v353
      %v997 = vunpack.c.l.b16 %v354
      %v998 = vunpack.c.h.b16 %v354
      %v999 = vunpack.c.l.b16 %v355
      %v1000 = vunpack.c.l.b16 %v356
      %v1001 = vunpack.c.h.b16 %v356
      %v1002 = vunpack.c.l.b16 %v357
      %v1003 = vunpack.c.l.b16 %v358
      %v1004 = vunpack.c.h.b16 %v358
      %v1005 = vunpack.c.l.b16 %v359
      %v1006 = vunpack.c.l.b16 %v360
      %v1007 = vunpack.c.h.b16 %v360
      %v1008 = vunpack.c.l.b16 %v361
      %v1009 = vunpack.c.l.b16 %v362
      %v1010 = vunpack.c.h.b16 %v362
      %v1011 = vunpack.c.l.b16 %v363
      %v1012 = vunpack.c.l.b16 %v364
      %v1013 = vunpack.c.h.b16 %v364
      %v1014 = vunpack.c.l.b16 %v365
      %v1015 = vunpack.c.l.b16 %v366
      %v1016 = vunpack.c.h.b16 %v366
      %v1017 = vunpack.c.l.b16 %v367
      %v1018 = vunpack.c.l.b16 %v368
      %v1019 = vunpack.c.h.b16 %v368
      %v1020 = vunpack.c.l.b16 %v369
      %v1021 = vunpack.c.l.b16 %v370
      %v1022 = vunpack.c.h.b16 %v370
      %v1023 = vunpack.c.l.b16 %v371
      %v1024 = vunpack.c.l.b16 %v372
      %v1025 = vunpack.c.h.b16 %v372
      %v1026 = vunpack.c.l.b16 %v373
      %v1027 = vunpack.c.l.b16 %v374
      %v1028 = vunpack.c.h.b16 %v374
      %v1029 = vunpack.c.l.b16 %v375
      %v1030 = vunpack.c.l.b16 %v376
      %v1031 = vunpack.c.h.b16 %v376
      %v1032 = vunpack.c.l.b16 %v377
      %v1033 = vunpack.c.l.b16 %v378
      %v1034 = vunpack.c.h.b16 %v378
      %v1035 = vunpack.c.l.b16 %v379
      %v1036 = vunpack.c.l.b16 %v380
      %v1037 = vunpack.c.h.b16 %v380
      %v1038 = vunpack.c.l.b16 %v381
      %v1039 = vunpack.c.l.b16 %v382
      %v1040 = vunpack.c.h.b16 %v382
      %v1041 = vunpack.c.l.b16 %v383
      %v1042 = vunpack.c.l.b16 %v384
      %v1043 = vunpack.c.h.b16 %v384
      %v1044 = vunpack.c.l.b16 %v385
      %v1045 = vunpack.c.l.b16 %v386
      %v1046 = vunpack.c.h.b16 %v386
      %v1047 = vunpack.c.l.b16 %v387
      %v1048 = vunpack.c.l.b16 %v388
      %v1049 = vunpack.c.h.b16 %v388
      %v1050 = vunpack.c.l.b16 %v389
      %v1051 = vunpack.c.l.b16 %v390
      %v1052 = vunpack.c.h.b16 %v390
      %v1053 = vunpack.c.l.b16 %v391
      %v1054 = vunpack.c.l.b16 %v392
      %v1055 = vunpack.c.h.b16 %v392
      %v1056 = vunpack.c.l.b16 %v393
      %v1057 = vunpack.c.l.b16 %v394
      %v1058 = vunpack.c.h.b16 %v394
      %v1059 = vunpack.c.l.b16 %v395
      %v1060 = vunpack.c.l.b16 %v396
      %v1061 = vunpack.c.h.b16 %v396
      %v1062 = vunpack.c.l.b16 %v397
      %v1063 = vunpack.c.l.b16 %v398
      %v1064 = vunpack.c.h.b16 %v398
      %v1065 = vunpack.c.l.b16 %v399
      %v1066 = vunpack.c.l.b16 %v400
      %v1067 = vunpack.c.h.b16 %v400
      %v1068 = vunpack.c.l.b16 %v401
      %v1069 = vunpack.c.l.b16 %v402
      %v1070 = vunpack.c.h.b16 %v402
      %v1071 = vunpack.c.l.b16 %v403
      %v1072 = vunpack.c.l.b16 %v404
      %v1073 = vunpack.c.h.b16 %v404
      %v1074 = vunpack.c.l.b16 %v405
      %v1075 = vunpack.c.l.b16 %v406
      %v1076 = vunpack.c.h.b16 %v406
      %v1077 = vunpack.c.l.b16 %v407
      %v1078 = vunpack.c.l.b16 %v408
      %v1079 = vunpack.c.h.b16 %v408
      %v1080 = vunpack.c.l.b16 %v409
      %v1081 = vunpack.c.l.b16 %v410
      %v1082 = vunpack.c.h.b16 %v410
      %v1083 = vunpack.c.l.b16 %v411
      %v1084 = vunpack.c.l.b16 %v412
      %v1085 = vunpack.c.h.b16 %v412
      %v1086 = vunpack.c.l.b16 %v413
      %v1087 = vunpack.c.l.b16 %v414
      %v1088 = vunpack.c.h.b16 %v414
      %v1089 = vunpack.c.l.b16 %v415
      %v1090 = vunpack.c.l.b16 %v416
      %v1091 = vunpack.c.h.b16 %v416
      %v1092 = vunpack.c.l.b16 %v417
      %v1093 = vunpack.c.l.b16 %v418
      %v1094 = vunpack.c.h.b16 %v418
      %v1095 = vunpack.c.l.b16 %v419
      %v1096 = vunpack.c.l.b16 %v420
      %v1097 = vunpack.c.h.b16 %v420
      %v1098 = vunpack.c.l.b16 %v421
      %v1099 = vunpack.c.l.b16 %v422
      %v1100 = vunpack.c.h.b16 %v422
      %v1101 = vunpack.c.l.b16 %v423
      %v1102 = vunpack.c.l.b16 %v424
      %v1103 = vunpack.c.h.b16 %v424
      %v1104 = vunpack.c.l.b16 %v425
      %v1105 = vunpack.c.l.b16 %v426
      %v1106 = vunpack.c.h.b16 %v426
      %v1107 = vunpack.c.l.b16 %v427
      %v1108 = vunpack.c.l.b16 %v428
      %v1109 = vunpack.c.h.b16 %v428
      %v1110 = vunpack.c.l.b16 %v429
      %v1111 = vunpack.c.l.b16 %v430
      %v1112 = vunpack.c.h.b16 %v430
      %v1113 = vunpack.c.l.b16 %v431
      %v1114 = vunpack.c.l.b16 %v432
      %v1115 = vunpack.c.h.b16 %v432
      %v1116 = vunpack.c.l.b16 %v433
      %v1117 = vpack.c.b16 %v736, %v733
      %v1118 = vpack.c.b16 %v737, %v734
      %v1119 = vpack.c.b16 %v738, %v735
      %v1120 = vpack.c.b16 %v742, %v739
      %v1121 = vpack.c.b16 %v743, %v740
      %v1122 = vpack.c.b16 %v744, %v741
      %v1123 = vpack.c.b16 %v748, %v745
      %v1124 = vpack.c.b16 %v749, %v746
      %v1125 = vpack.c.b16 %v750, %v747
      %v1126 = vpack.c.b16 %v754, %v751
      %v1127 = vpack.c.b16 %v755, %v752
      %v1128 = vpack.c.b16 %v756, %v753
      %v1129 = vpack.c.b16 %v760, %v757
      %v1130 = vpack.c.b16 %v761, %v758
      %v1131 = vpack.c.b16 %v762, %v759
      %v1132 = vpack.c.b16 %v766, %v763
      %v1133 = vpack.c.b16 %v767, %v764
      %v1134 = vpack.c.b16 %v768, %v765
      %v1135 = vpack.c.b16 %v772, %v769
      %v1136 = vpack.c.b16 %v773, %v770
      %v1137 = vpack.c.b16 %v774, %v771
      %v1138 = vpack.c.b16 %v778, %v775
      %v1139 = vpack.c.b16 %v779, %v776
      %v1140 = vpack.c.b16 %v780, %v777
      %v1141 = vpack.c.b16 %v784, %v781
      %v1142 = vpack.c.b16 %v785, %v782
      %v1143 = vpack.c.b16 %v786, %v783
      %v1144 = vpack.c.b16 %v790, %v787
      %v1145 = vpack.c.b16 %v791, %v788
      %v1146 = vpack.c.b16 %v792, %v789
      %v1147 = vpack.c.b16 %v796, %v793
      %v1148 = vpack.c.b16 %v797, %v794
      %v1149 = vpack.c.b16 %v798, %v795
      %v1150 = vpack.c.b16 %v802, %v799
      %v1151 = vpack.c.b16 %v803, %v800
      %v1152 = vpack.c.b16 %v804, %v801
      %v1153 = vpack.c.b16 %v808, %v805
      %v1154 = vpack.c.b16 %v809, %v806
      %v1155 = vpack.c.b16 %v810, %v807
      %v1156 = vpack.c.b16 %v814, %v811
      %v1157 = vpack.c.b16 %v815, %v812
      %v1158 = vpack.c.b16 %v816, %v813
      %v1159 = vpack.c.b16 %v820, %v817
      %v1160 = vpack.c.b16 %v821, %v818
      %v1161 = vpack.c.b16 %v822, %v819
      %v1162 = vpack.c.b16 %v826, %v823
      %v1163 = vpack.c.b16 %v827, %v824
      %v1164 = vpack.c.b16 %v828, %v825
      %v1165 = vpack.c.b16 %v832, %v829
      %v1166 = vpack.c.b16 %v833, %v830
      %v1167 = vpack.c.b16 %v834, %v831
      %v1168 = vpack.c.b16 %v838, %v835
      %v1169 = vpack.c.b16 %v839, %v836
      %v1170 = vpack.c.b16 %v840, %v837
      %v1171 = vpack.c.b16 %v844, %v841
      %v1172 = vpack.c.b16 %v845, %v842
      %v1173 = vpack.c.b16 %v846, %v843
      %v1174 = vpack.c.b16 %v850, %v847
      %v1175 = vpack.c.b16 %v851, %v848
      %v1176 = vpack.c.b16 %v852, %v849
      %v1177 = vpack.c.b16 %v856, %v853
      %v1178 = vpack.c.b16 %v857, %v854
      %v1179 = vpack.c.b16 %v858, %v855
      %v1180 = vpack.c.b16 %v862, %v859
      %v1181 = vpack.c.b16 %v863, %v860
      %v1182 = vpack.c.b16 %v864, %v861
      %v1183 = vpack.c.b16 %v868, %v865
      %v1184 = vpack.c.b16 %v869, %v866
      %v1185 = vpack.c.b16 %v870, %v867
      %v1186 = vpack.c.b16 %v874, %v871
      %v1187 = vpack.c.b16 %v875, %v872
      %v1188 = vpack.c.b16 %v876, %v873
      %v1189 = vpack.c.b16 %v880, %v877
      %v1190 = vpack.c.b16 %v881, %v878
      %v1191 = vpack.c.b16 %v882, %v879
      %v1192 = vpack.c.b16 %v886, %v883
      %v1193 = vpack.c.b16 %v887, %v884
      %v1194 = vpack.c.b16 %v888, %v885
      %v1195 = vpack.c.b16 %v892, %v889
      %v1196 = vpack.c.b16 %v893, %v890
      %v1197 = vpack.c.b16 %v894, %v891
      %v1198 = vpack.c.b16 %v898, %v895
      %v1199 = vpack.c.b16 %v899, %v896
      %v1200 = vpack.c.b16 %v900, %v897
      %v1201 = vpack.c.b16 %v904, %v901
      %v1202 = vpack.c.b16 %v905, %v902
      %v1203 = vpack.c.b16 %v906, %v903
      %v1204 = vpack.c.b16 %v910, %v907
      %v1205 = vpack.c.b16 %v911, %v908
      %v1206 = vpack.c.b16 %v912, %v909
      %v1207 = vpack.c.b16 %v916, %v913
      %v1208 = vpack.c.b16 %v917, %v914
      %v1209 = vpack.c.b16 %v918, %v915
      %v1210 = vpack.c.b16 %v922, %v919
      %v1211 = vpack.c.b16 %v923, %v920
      %v1212 = vpack.c.b16 %v924, %v921
      %v1213 = vpack.c.b16 %v928, %v925
      %v1214 = vpack.c.b16 %v929, %v926
      %v1215 = vpack.c.b16 %v930, %v927
      %v1216 = vpack.c.b16 %v934, %v931
      %v1217 = vpack.c.b16 %v935, %v932
      %v1218 = vpack.c.b16 %v936, %v933
      %v1219 = vpack.c.b16 %v940, %v937
      %v1220 = vpack.c.b16 %v941, %v938
      %v1221 = vpack.c.b16 %v942, %v939
      %v1222 = vpack.c.b16 %v946, %v943
      %v1223 = vpack.c.b16 %v947, %v944
      %v1224 = vpack.c.b16 %v948, %v945
      %v1225 = vpack.c.b16 %v952, %v949
      %v1226 = vpack.c.b16 %v953, %v950
      %v1227 = vpack.c.b16 %v954, %v951
      %v1228 = vpack.c.b16 %v958, %v955
      %v1229 = vpack.c.b16 %v959, %v956
      %v1230 = vpack.c.b16 %v960, %v957
      %v1231 = vpack.c.b16 %v964, %v961
      %v1232 = vpack.c.b16 %v965, %v962
      %v1233 = vpack.c.b16 %v966, %v963
      %v1234 = vpack.c.b16 %v970, %v967
      %v1235 = vpack.c.b16 %v971, %v968
      %v1236 = vpack.c.b16 %v972, %v969
      %v1237 = vpack.c.b16 %v976, %v973
      %v1238 = vpack.c.b16 %v977, %v974
      %v1239 = vpack.c.b16 %v978, %v975
      %v1240 = vpack.c.b16 %v982, %v979
      %v1241 = vpack.c.b16 %v983, %v980
      %v1242 = vpack.c.b16 %v984, %v981
      %v1243 = vpack.c.b16 %v988, %v985
      %v1244 = vpack.c.b16 %v989, %v986
      %v1245 = vpack.c.b16 %v990, %v987
      %v1246 = vpack.c.b16 %v994, %v991
      %v1247 = vpack.c.b16 %v995, %v992
      %v1248 = vpack.c.b16 %v996, %v993
      %v1249 = vpack.c.b16 %v1000, %v997
      %v1250 = vpack.c.b16 %v1001, %v998
      %v1251 = vpack.c.b16 %v1002, %v999
      %v1252 = vpack.c.b16 %v1006, %v1003
      %v1253 = vpack.c.b16 %v1007, %v1004
      %v1254 = vpack.c.b16 %v1008, %v1005
      %v1255 = vpack.c.b16 %v1012, %v1009
      %v1256 = vpack.c.b16 %v1013, %v1010
      %v1257 = vpack.c.b16 %v1014, %v1011
      %v1258 = vpack.c.b16 %v1018, %v1015
      %v1259 = vpack.c.b16 %v1019, %v1016
      %v1260 = vpack.c.b16 %v1020, %v1017
      %v1261 = vpack.c.b16 %v1024, %v1021
      %v1262 = vpack.c.b16 %v1025, %v1022
      %v1263 = vpack.c.b16 %v1026, %v1023
      %v1264 = vpack.c.b16 %v1030, %v1027
      %v1265 = vpack.c.b16 %v1031, %v1028
      %v1266 = vpack.c.b16 %v1032, %v1029
      %v1267 = vpack.c.b16 %v1036, %v1033
      %v1268 = vpack.c.b16 %v1037, %v1034
      %v1269 = vpack.c.b16 %v1038, %v1035
      %v1270 = vpack.c.b16 %v1042, %v1039
      %v1271 = vpack.c.b16 %v1043, %v1040
      %v1272 = vpack.c.b16 %v1044, %v1041
      %v1273 = vpack.c.b16 %v1048, %v1045
      %v1274 = vpack.c.b16 %v1049, %v1046
      %v1275 = vpack.c.b16 %v1050, %v1047
      %v1276 = vpack.c.b16 %v1054, %v1051
      %v1277 = vpack.c.b16 %v1055, %v1052
      %v1278 = vpack.c.b16 %v1056, %v1053
      %v1279 = vpack.c.b16 %v1060, %v1057
      %v1280 = vpack.c.b16 %v1061, %v1058
      %v1281 = vpack.c.b16 %v1062, %v1059
      %v1282 = vpack.c.b16 %v1066, %v1063
      %v1283 = vpack.c.b16 %v1067, %v1064
      %v1284 = vpack.c.b16 %v1068, %v1065
      %v1285 = vpack.c.b16 %v1072, %v1069
      %v1286 = vpack.c.b16 %v1073, %v1070
      %v1287 = vpack.c.b16 %v1074, %v1071
      %v1288 = vpack.c.b16 %v1078, %v1075
      %v1289 = vpack.c.b16 %v1079, %v1076
      %v1290 = vpack.c.b16 %v1080, %v1077
      %v1291 = vpack.c.b16 %v1084, %v1081
      %v1292 = vpack.c.b16 %v1085, %v1082
      %v1293 = vpack.c.b16 %v1086, %v1083
      %v1294 = vpack.c.b16 %v1090, %v1087
      %v1295 = vpack.c.b16 %v1091, %v1088
      %v1296 = vpack.c.b16 %v1092, %v1089
      %v1297 = vpack.c.b16 %v1096, %v1093
      %v1298 = vpack.c.b16 %v1097, %v1094
      %v1299 = vpack.c.b16 %v1098, %v1095
      %v1300 = vpack.c.b16 %v1102, %v1099
      %v1301 = vpack.c.b16 %v1103, %v1100
      %v1302 = vpack.c.b16 %v1104, %v1101
      %v1303 = vpack.c.b16 %v1108, %v1105
      %v1304 = vpack.c.b16 %v1109, %v1106
      %v1305 = vpack.c.b16 %v1110, %v1107
      %v1306 = vpack.c.b16 %v1114, %v1111
      %v1307 = vpack.c.b16 %v1115, %v1112
      %v1308 = vpack.c.b16 %v1116, %v1113
      %v1473 = vunpack.c.l.b16 %v434
      %v1474 = vunpack.c.l.b16 %v435
      %v1475 = vunpack.c.l.b16 %v436
      %v1476 = vunpack.c.l.b16 %v437
      %v1477 = vunpack.c.l.b16 %v438
      %v1478 = vunpack.c.l.b16 %v439
      %v1479 = vunpack.c.l.b16 %v440
      %v1480 = vunpack.c.l.b16 %v441
      %v1481 = vunpack.c.l.b16 %v442
      %v1482 = vunpack.c.l.b16 %v443
      %v1483 = vunpack.c.l.b16 %v444
      %v1484 = vunpack.c.l.b16 %v445
      %v1485 = vunpack.c.l.b16 %v446
      %v1486 = vunpack.c.l.b16 %v447
      %v1487 = vunpack.c.l.b16 %v448
      %v1488 = vunpack.c.l.b16 %v449
      %v1489 = vunpack.c.l.b16 %v450
      %v1490 = vunpack.c.l.b16 %v451
      %v1491 = vunpack.c.l.b16 %v452
      %v1492 = vunpack.c.l.b16 %v453
      %v1493 = vunpack.c.l.b16 %v454
      %v1494 = vunpack.c.l.b16 %v455
      %v1495 = vunpack.c.l.b16 %v456
      %v1496 = vunpack.c.l.b16 %v457
      %v1497 = vunpack.c.l.b16 %v458
      %v1498 = vunpack.c.l.b16 %v459
      %v1499 = vunpack.c.l.b16 %v460
      %v1500 = vunpack.c.l.b16 %v461
      %v1501 = vunpack.c.l.b16 %v462
      %v1502 = vunpack.c.l.b16 %v463
      %v1503 = vunpack.c.l.b16 %v464
      %v1504 = vunpack.c.l.b16 %v465
      %v1505 = vunpack.c.l.b16 %v466
      %v1506 = vunpack.c.l.b16 %v467
      %v1507 = vunpack.c.l.b16 %v468
      %v1508 = vunpack.c.l.b16 %v469
      %v1509 = vpack.c.b16 %v1474, %v1473
      %v1510 = vpack.c.b16 %v1476, %v1475
      %v1511 = vpack.c.b16 %v1478, %v1477
      %v1512 = vpack.c.b16 %v1480, %v1479
      %v1513 = vpack.c.b16 %v1482, %v1481
      %v1514 = vpack.c.b16 %v1484, %v1483
      %v1515 = vpack.c.b16 %v1486, %v1485
      %v1516 = vpack.c.b16 %v1488, %v1487
      %v1517 = vpack.c.b16 %v1490, %v1489
      %v1518 = vpack.c.b16 %v1492, %v1491
      %v1519 = vpack.c.b16 %v1494, %v1493
      %v1520 = vpack.c.b16 %v1496, %v1495
      %v1521 = vpack.c.b16 %v1498, %v1497
      %v1522 = vpack.c.b16 %v1500, %v1499
      %v1523 = vpack.c.b16 %v1502, %v1501
      %v1524 = vpack.c.b16 %v1504, %v1503
      %v1525 = vpack.c.b16 %v1506, %v1505
      %v1526 = vpack.c.b16 %v1508, %v1507
      %vm1545 = vcmask 261120
      %v1547 = vsel %vm1545, %v1119, 0
      %v1550 = vsel %vm1545, %v1122, 0
      %v1553 = vsel %vm1545, %v1125, 0
      %v1556 = vsel %vm1545, %v1128, 0
      %v1559 = vsel %vm1545, %v1131, 0
      %v1562 = vsel %vm1545, %v1134, 0
      %v1565 = vsel %vm1545, %v1137, 0
      %v1568 = vsel %vm1545, %v1140, 0
      %v1571 = vsel %vm1545, %v1143, 0
      %v1574 = vsel %vm1545, %v1146, 0
      %v1577 = vsel %vm1545, %v1149, 0
      %v1580 = vsel %vm1545, %v1152, 0
      %v1583 = vsel %vm1545, %v1155, 0
      %v1586 = vsel %vm1545, %v1158, 0
      %v1589 = vsel %vm1545, %v1161, 0
      %v1592 = vsel %vm1545, %v1164, 0
      %v1595 = vsel %vm1545, %v1167, 0
      %v1598 = vsel %vm1545, %v1170, 0
      %v1601 = vsel %vm1545, %v1173, 0
      %v1604 = vsel %vm1545, %v1176, 0
      %v1607 = vsel %vm1545, %v1179, 0
      %v1610 = vsel %vm1545, %v1182, 0
      %v1613 = vsel %vm1545, %v1185, 0
      %v1616 = vsel %vm1545, %v1188, 0
      %v1619 = vsel %vm1545, %v1191, 0
      %v1622 = vsel %vm1545, %v1194, 0
      %v1625 = vsel %vm1545, %v1197, 0
      %v1628 = vsel %vm1545, %v1200, 0
      %v1631 = vsel %vm1545, %v1203, 0
      %v1634 = vsel %vm1545, %v1206, 0
      %v1637 = vsel %vm1545, %v1209, 0
      %v1640 = vsel %vm1545, %v1212, 0
      %v1643 = vsel %vm1545, %v1215, 0
      %v1646 = vsel %vm1545, %v1218, 0
      %v1649 = vsel %vm1545, %v1221, 0
      %v1652 = vsel %vm1545, %v1224, 0
      %v1655 = vsel %vm1545, %v1227, 0
      %v1658 = vsel %vm1545, %v1230, 0
      %v1661 = vsel %vm1545, %v1233, 0
      %v1664 = vsel %vm1545, %v1236, 0
      %v1667 = vsel %vm1545, %v1239, 0
      %v1670 = vsel %vm1545, %v1242, 0
      %v1673 = vsel %vm1545, %v1245, 0
      %v1676 = vsel %vm1545, %v1248, 0
      %v1679 = vsel %vm1545, %v1251, 0
      %v1682 = vsel %vm1545, %v1254, 0
      %v1685 = vsel %vm1545, %v1257, 0
      %v1688 = vsel %vm1545, %v1260, 0
      %v1691 = vsel %vm1545, %v1263, 0
      %v1694 = vsel %vm1545, %v1266, 0
      %v1697 = vsel %vm1545, %v1269, 0
      %v1700 = vsel %vm1545, %v1272, 0
      %v1703 = vsel %vm1545, %v1275, 0
      %v1706 = vsel %vm1545, %v1278, 0
      %v1709 = vsel %vm1545, %v1281, 0
      %v1712 = vsel %vm1545, %v1284, 0
      %v1715 = vsel %vm1545, %v1287, 0
      %v1718 = vsel %vm1545, %v1290, 0
      %v1721 = vsel %vm1545, %v1293, 0
      %v1724 = vsel %vm1545, %v1296, 0
      %v1727 = vsel %vm1545, %v1299, 0
      %v1730 = vsel %vm1545, %v1302, 0
      %v1733 = vsel %vm1545, %v1305, 0
      %v1736 = vsel %vm1545, %v1308, 0
      %1738 = vmatprep.subr.bf16.mxu0 0
      %1739 = vmatpush1.bf16.msra.mxu0 %v1516
      %1740 = vmatprep.subr.bf16.mxu0 0
      %1741 = vmatpush1.bf16.msra.mxu0 %v1515
      %1742 = vmatprep.subr.bf16.mxu0 0
      %1743 = vmatpush1.bf16.msra.mxu0 %v1514
      %1744 = vmatprep.subr.bf16.mxu0 0
      %1745 = vmatpush1.bf16.msra.mxu0 %v1513
      %1746 = vmatprep.subr.bf16.mxu0 0
      %1747 = vmatpush1.bf16.msra.mxu0 %v1512
      %1748 = vmatprep.subr.bf16.mxu0 0
      %1749 = vmatpush1.bf16.msra.mxu0 %v1511
      %1750 = vmatprep.subr.bf16.mxu0 0
      %1751 = vmatpush1.bf16.msra.mxu0 %v1510
      %1752 = vmatprep.subr.bf16.mxu0 0
      %1753 = vmatpush1.bf16.msra.mxu0 %v1509
      %1754 = vmatprep.subr.bf16.mxu0 0
      %1755 = vmatpush2.bf16.msra.mxu0 %v1524
      %1756 = vmatprep.subr.bf16.mxu0 0
      %1757 = vmatpush2.bf16.msra.mxu0 %v1523
      %1758 = vmatprep.subr.bf16.mxu0 0
      %1759 = vmatpush2.bf16.msra.mxu0 %v1522
      %1760 = vmatprep.subr.bf16.mxu0 0
      %1761 = vmatpush2.bf16.msra.mxu0 %v1521
      %1762 = vmatprep.subr.bf16.mxu0 0
      %1763 = vmatpush2.bf16.msra.mxu0 %v1520
      %1764 = vmatprep.subr.bf16.mxu0 0
      %1765 = vmatpush2.bf16.msra.mxu0 %v1519
      %1766 = vmatprep.subr.bf16.mxu0 0
      %1767 = vmatpush2.bf16.msra.mxu0 %v1518
      %1768 = vmatprep.subr.bf16.mxu0 0
      %1769 = vmatpush2.bf16.msra.mxu0 %v1517
      %1770 = vmatprep.mubr.bf16.mxu0 %v1118
      %1771 = vmatmul.mubr.bf16.gmra.mxu0 %v1117
      %v1772 = vpop.f32.mrf.mxu0
      %v1773 = vadd.f32 %v475, %v1772
      %v1774 = vpop.f32.mrf.mxu0
      %v1775 = vpop.f32.mrf.mxu0
      %v1776 = vadd.f32 %v475, %v1775
      %v1777 = vpop.f32.mrf.mxu0
      %1778 = vmatprep.mubr.bf16.mxu0 %v1121
      %1779 = vmatmul.mubr.bf16.gmra.mxu0 %v1120
      %v1780 = vpop.f32.mrf.mxu0
      %v1781 = vadd.f32 %v475, %v1780
      %v1782 = vpop.f32.mrf.mxu0
      %v1783 = vpop.f32.mrf.mxu0
      %v1784 = vadd.f32 %v475, %v1783
      %v1785 = vpop.f32.mrf.mxu0
      %1786 = vmatprep.mubr.bf16.mxu0 %v1124
      %1787 = vmatmul.mubr.bf16.gmra.mxu0 %v1123
      %v1788 = vpop.f32.mrf.mxu0
      %v1789 = vadd.f32 %v475, %v1788
      %v1790 = vpop.f32.mrf.mxu0
      %v1791 = vpop.f32.mrf.mxu0
      %v1792 = vadd.f32 %v475, %v1791
      %v1793 = vpop.f32.mrf.mxu0
      %1794 = vmatprep.mubr.bf16.mxu0 %v1127
      %1795 = vmatmul.mubr.bf16.gmra.mxu0 %v1126
      %v1796 = vpop.f32.mrf.mxu0
      %v1797 = vadd.f32 %v475, %v1796
      %v1798 = vpop.f32.mrf.mxu0
      %v1799 = vpop.f32.mrf.mxu0
      %v1800 = vadd.f32 %v475, %v1799
      %v1801 = vpop.f32.mrf.mxu0
      %1802 = vmatprep.mubr.bf16.mxu0 %v1130
      %1803 = vmatmul.mubr.bf16.gmra.mxu0 %v1129
      %v1804 = vpop.f32.mrf.mxu0
      %v1805 = vadd.f32 %v475, %v1804
      %v1806 = vpop.f32.mrf.mxu0
      %v1807 = vpop.f32.mrf.mxu0
      %v1808 = vadd.f32 %v475, %v1807
      %v1809 = vpop.f32.mrf.mxu0
      %1810 = vmatprep.mubr.bf16.mxu0 %v1133
      %1811 = vmatmul.mubr.bf16.gmra.mxu0 %v1132
      %v1812 = vpop.f32.mrf.mxu0
      %v1813 = vadd.f32 %v475, %v1812
      %v1814 = vpop.f32.mrf.mxu0
      %v1815 = vpop.f32.mrf.mxu0
      %v1816 = vadd.f32 %v475, %v1815
      %v1817 = vpop.f32.mrf.mxu0
      %1818 = vmatprep.mubr.bf16.mxu0 %v1136
      %1819 = vmatmul.mubr.bf16.gmra.mxu0 %v1135
      %v1820 = vpop.f32.mrf.mxu0
      %v1821 = vadd.f32 %v475, %v1820
      %v1822 = vpop.f32.mrf.mxu0
      %v1823 = vpop.f32.mrf.mxu0
      %v1824 = vadd.f32 %v475, %v1823
      %v1825 = vpop.f32.mrf.mxu0
      %1826 = vmatprep.mubr.bf16.mxu0 %v1139
      %1827 = vmatmul.mubr.bf16.gmra.mxu0 %v1138
      %v1828 = vpop.f32.mrf.mxu0
      %v1829 = vadd.f32 %v475, %v1828
      %v1830 = vpop.f32.mrf.mxu0
      %v1831 = vpop.f32.mrf.mxu0
      %v1832 = vadd.f32 %v475, %v1831
      %v1833 = vpop.f32.mrf.mxu0
      %1834 = vmatprep.mubr.bf16.mxu0 %v1142
      %1835 = vmatmul.mubr.bf16.gmra.mxu0 %v1141
      %v1836 = vpop.f32.mrf.mxu0
      %v1837 = vadd.f32 %v475, %v1836
      %v1838 = vpop.f32.mrf.mxu0
      %v1839 = vpop.f32.mrf.mxu0
      %v1840 = vadd.f32 %v475, %v1839
      %v1841 = vpop.f32.mrf.mxu0
      %1842 = vmatprep.mubr.bf16.mxu0 %v1145
      %1843 = vmatmul.mubr.bf16.gmra.mxu0 %v1144
      %v1844 = vpop.f32.mrf.mxu0
      %v1845 = vadd.f32 %v475, %v1844
      %v1846 = vpop.f32.mrf.mxu0
      %v1847 = vpop.f32.mrf.mxu0
      %v1848 = vadd.f32 %v475, %v1847
      %v1849 = vpop.f32.mrf.mxu0
      %1850 = vmatprep.mubr.bf16.mxu0 %v1148
      %1851 = vmatmul.mubr.bf16.gmra.mxu0 %v1147
      %v1852 = vpop.f32.mrf.mxu0
      %v1853 = vadd.f32 %v475, %v1852
      %v1854 = vpop.f32.mrf.mxu0
      %v1855 = vpop.f32.mrf.mxu0
      %v1856 = vadd.f32 %v475, %v1855
      %v1857 = vpop.f32.mrf.mxu0
      %1858 = vmatprep.mubr.bf16.mxu0 %v1151
      %1859 = vmatmul.mubr.bf16.gmra.mxu0 %v1150
      %v1860 = vpop.f32.mrf.mxu0
      %v1861 = vadd.f32 %v475, %v1860
      %v1862 = vpop.f32.mrf.mxu0
      %v1863 = vpop.f32.mrf.mxu0
      %v1864 = vadd.f32 %v475, %v1863
      %v1865 = vpop.f32.mrf.mxu0
      %1866 = vmatprep.mubr.bf16.mxu0 %v1154
      %1867 = vmatmul.mubr.bf16.gmra.mxu0 %v1153
      %v1868 = vpop.f32.mrf.mxu0
      %v1869 = vadd.f32 %v475, %v1868
      %v1870 = vpop.f32.mrf.mxu0
      %v1871 = vpop.f32.mrf.mxu0
      %v1872 = vadd.f32 %v475, %v1871
      %v1873 = vpop.f32.mrf.mxu0
      %1874 = vmatprep.mubr.bf16.mxu0 %v1157
      %1875 = vmatmul.mubr.bf16.gmra.mxu0 %v1156
      %v1876 = vpop.f32.mrf.mxu0
      %v1877 = vadd.f32 %v475, %v1876
      %v1878 = vpop.f32.mrf.mxu0
      %v1879 = vpop.f32.mrf.mxu0
      %v1880 = vadd.f32 %v475, %v1879
      %v1881 = vpop.f32.mrf.mxu0
      %1882 = vmatprep.mubr.bf16.mxu0 %v1160
      %1883 = vmatmul.mubr.bf16.gmra.mxu0 %v1159
      %v1884 = vpop.f32.mrf.mxu0
      %v1885 = vadd.f32 %v475, %v1884
      %v1886 = vpop.f32.mrf.mxu0
      %v1887 = vpop.f32.mrf.mxu0
      %v1888 = vadd.f32 %v475, %v1887
      %v1889 = vpop.f32.mrf.mxu0
      %1890 = vmatprep.mubr.bf16.mxu0 %v1163
      %1891 = vmatmul.mubr.bf16.gmra.mxu0 %v1162
      %v1892 = vpop.f32.mrf.mxu0
      %v1893 = vadd.f32 %v475, %v1892
      %v1894 = vpop.f32.mrf.mxu0
      %v1895 = vpop.f32.mrf.mxu0
      %v1896 = vadd.f32 %v475, %v1895
      %v1897 = vpop.f32.mrf.mxu0
      %1898 = vmatprep.mubr.bf16.mxu0 %v1166
      %1899 = vmatmul.mubr.bf16.gmra.mxu0 %v1165
      %v1900 = vpop.f32.mrf.mxu0
      %v1901 = vadd.f32 %v475, %v1900
      %v1902 = vpop.f32.mrf.mxu0
      %v1903 = vpop.f32.mrf.mxu0
      %v1904 = vadd.f32 %v475, %v1903
      %v1905 = vpop.f32.mrf.mxu0
      %1906 = vmatprep.mubr.bf16.mxu0 %v1169
      %1907 = vmatmul.mubr.bf16.gmra.mxu0 %v1168
      %v1908 = vpop.f32.mrf.mxu0
      %v1909 = vadd.f32 %v475, %v1908
      %v1910 = vpop.f32.mrf.mxu0
      %v1911 = vpop.f32.mrf.mxu0
      %v1912 = vadd.f32 %v475, %v1911
      %v1913 = vpop.f32.mrf.mxu0
      %1914 = vmatprep.mubr.bf16.mxu0 %v1172
      %1915 = vmatmul.mubr.bf16.gmra.mxu0 %v1171
      %v1916 = vpop.f32.mrf.mxu0
      %v1917 = vadd.f32 %v475, %v1916
      %v1918 = vpop.f32.mrf.mxu0
      %v1919 = vpop.f32.mrf.mxu0
      %v1920 = vadd.f32 %v475, %v1919
      %v1921 = vpop.f32.mrf.mxu0
      %1922 = vmatprep.mubr.bf16.mxu0 %v1175
      %1923 = vmatmul.mubr.bf16.gmra.mxu0 %v1174
      %v1924 = vpop.f32.mrf.mxu0
      %v1925 = vadd.f32 %v475, %v1924
      %v1926 = vpop.f32.mrf.mxu0
      %v1927 = vpop.f32.mrf.mxu0
      %v1928 = vadd.f32 %v475, %v1927
      %v1929 = vpop.f32.mrf.mxu0
      %1930 = vmatprep.mubr.bf16.mxu0 %v1178
      %1931 = vmatmul.mubr.bf16.gmra.mxu0 %v1177
      %v1932 = vpop.f32.mrf.mxu0
      %v1933 = vadd.f32 %v475, %v1932
      %v1934 = vpop.f32.mrf.mxu0
      %v1935 = vpop.f32.mrf.mxu0
      %v1936 = vadd.f32 %v475, %v1935
      %v1937 = vpop.f32.mrf.mxu0
      %1938 = vmatprep.mubr.bf16.mxu0 %v1181
      %1939 = vmatmul.mubr.bf16.gmra.mxu0 %v1180
      %v1940 = vpop.f32.mrf.mxu0
      %v1941 = vadd.f32 %v475, %v1940
      %v1942 = vpop.f32.mrf.mxu0
      %v1943 = vpop.f32.mrf.mxu0
      %v1944 = vadd.f32 %v475, %v1943
      %v1945 = vpop.f32.mrf.mxu0
      %1946 = vmatprep.mubr.bf16.mxu0 %v1184
      %1947 = vmatmul.mubr.bf16.gmra.mxu0 %v1183
      %v1948 = vpop.f32.mrf.mxu0
      %v1949 = vadd.f32 %v475, %v1948
      %v1950 = vpop.f32.mrf.mxu0
      %v1951 = vpop.f32.mrf.mxu0
      %v1952 = vadd.f32 %v475, %v1951
      %v1953 = vpop.f32.mrf.mxu0
      %1954 = vmatprep.mubr.bf16.mxu0 %v1187
      %1955 = vmatmul.mubr.bf16.gmra.mxu0 %v1186
      %v1956 = vpop.f32.mrf.mxu0
      %v1957 = vadd.f32 %v475, %v1956
      %v1958 = vpop.f32.mrf.mxu0
      %v1959 = vpop.f32.mrf.mxu0
      %v1960 = vadd.f32 %v475, %v1959
      %v1961 = vpop.f32.mrf.mxu0
      %1962 = vmatprep.mubr.bf16.mxu0 %v1190
      %1963 = vmatmul.mubr.bf16.gmra.mxu0 %v1189
      %v1964 = vpop.f32.mrf.mxu0
      %v1965 = vadd.f32 %v475, %v1964
      %v1966 = vpop.f32.mrf.mxu0
      %v1967 = vpop.f32.mrf.mxu0
      %v1968 = vadd.f32 %v475, %v1967
      %v1969 = vpop.f32.mrf.mxu0
      %1970 = vmatprep.mubr.bf16.mxu0 %v1193
      %1971 = vmatmul.mubr.bf16.gmra.mxu0 %v1192
      %v1972 = vpop.f32.mrf.mxu0
      %v1973 = vadd.f32 %v475, %v1972
      %v1974 = vpop.f32.mrf.mxu0
      %v1975 = vpop.f32.mrf.mxu0
      %v1976 = vadd.f32 %v475, %v1975
      %v1977 = vpop.f32.mrf.mxu0
      %1978 = vmatprep.mubr.bf16.mxu0 %v1196
      %1979 = vmatmul.mubr.bf16.gmra.mxu0 %v1195
      %v1980 = vpop.f32.mrf.mxu0
      %v1981 = vadd.f32 %v475, %v1980
      %v1982 = vpop.f32.mrf.mxu0
      %v1983 = vpop.f32.mrf.mxu0
      %v1984 = vadd.f32 %v475, %v1983
      %v1985 = vpop.f32.mrf.mxu0
      %1986 = vmatprep.mubr.bf16.mxu0 %v1199
      %1987 = vmatmul.mubr.bf16.gmra.mxu0 %v1198
      %v1988 = vpop.f32.mrf.mxu0
      %v1989 = vadd.f32 %v475, %v1988
      %v1990 = vpop.f32.mrf.mxu0
      %v1991 = vpop.f32.mrf.mxu0
      %v1992 = vadd.f32 %v475, %v1991
      %v1993 = vpop.f32.mrf.mxu0
      %1994 = vmatprep.mubr.bf16.mxu0 %v1202
      %1995 = vmatmul.mubr.bf16.gmra.mxu0 %v1201
      %v1996 = vpop.f32.mrf.mxu0
      %v1997 = vadd.f32 %v475, %v1996
      %v1998 = vpop.f32.mrf.mxu0
      %v1999 = vpop.f32.mrf.mxu0
      %v2000 = vadd.f32 %v475, %v1999
      %v2001 = vpop.f32.mrf.mxu0
      %2002 = vmatprep.mubr.bf16.mxu0 %v1205
      %2003 = vmatmul.mubr.bf16.gmra.mxu0 %v1204
      %v2004 = vpop.f32.mrf.mxu0
      %v2005 = vadd.f32 %v475, %v2004
      %v2006 = vpop.f32.mrf.mxu0
      %v2007 = vpop.f32.mrf.mxu0
      %v2008 = vadd.f32 %v475, %v2007
      %v2009 = vpop.f32.mrf.mxu0
      %2010 = vmatprep.mubr.bf16.mxu0 %v1208
      %2011 = vmatmul.mubr.bf16.gmra.mxu0 %v1207
      %v2012 = vpop.f32.mrf.mxu0
      %v2013 = vadd.f32 %v475, %v2012
      %v2014 = vpop.f32.mrf.mxu0
      %v2015 = vpop.f32.mrf.mxu0
      %v2016 = vadd.f32 %v475, %v2015
      %v2017 = vpop.f32.mrf.mxu0
      %2018 = vmatprep.mubr.bf16.mxu0 %v1211
      %2019 = vmatmul.mubr.bf16.gmra.mxu0 %v1210
      %v2020 = vpop.f32.mrf.mxu0
      %v2021 = vadd.f32 %v475, %v2020
      %v2022 = vpop.f32.mrf.mxu0
      %v2023 = vpop.f32.mrf.mxu0
      %v2024 = vadd.f32 %v475, %v2023
      %v2025 = vpop.f32.mrf.mxu0
      %2026 = vmatprep.mubr.bf16.mxu0 %v1214
      %2027 = vmatmul.mubr.bf16.gmra.mxu0 %v1213
      %v2028 = vpop.f32.mrf.mxu0
      %v2029 = vadd.f32 %v475, %v2028
      %v2030 = vpop.f32.mrf.mxu0
      %v2031 = vpop.f32.mrf.mxu0
      %v2032 = vadd.f32 %v475, %v2031
      %v2033 = vpop.f32.mrf.mxu0
      %2034 = vmatprep.mubr.bf16.mxu0 %v1217
      %2035 = vmatmul.mubr.bf16.gmra.mxu0 %v1216
      %v2036 = vpop.f32.mrf.mxu0
      %v2037 = vadd.f32 %v475, %v2036
      %v2038 = vpop.f32.mrf.mxu0
      %v2039 = vpop.f32.mrf.mxu0
      %v2040 = vadd.f32 %v475, %v2039
      %v2041 = vpop.f32.mrf.mxu0
      %2042 = vmatprep.mubr.bf16.mxu0 %v1220
      %2043 = vmatmul.mubr.bf16.gmra.mxu0 %v1219
      %v2044 = vpop.f32.mrf.mxu0
      %v2045 = vadd.f32 %v475, %v2044
      %v2046 = vpop.f32.mrf.mxu0
      %v2047 = vpop.f32.mrf.mxu0
      %v2048 = vadd.f32 %v475, %v2047
      %v2049 = vpop.f32.mrf.mxu0
      %2050 = vmatprep.mubr.bf16.mxu0 %v1223
      %2051 = vmatmul.mubr.bf16.gmra.mxu0 %v1222
      %v2052 = vpop.f32.mrf.mxu0
      %v2053 = vadd.f32 %v475, %v2052
      %v2054 = vpop.f32.mrf.mxu0
      %v2055 = vpop.f32.mrf.mxu0
      %v2056 = vadd.f32 %v475, %v2055
      %v2057 = vpop.f32.mrf.mxu0
      %2058 = vmatprep.mubr.bf16.mxu0 %v1226
      %2059 = vmatmul.mubr.bf16.gmra.mxu0 %v1225
      %v2060 = vpop.f32.mrf.mxu0
      %v2061 = vadd.f32 %v475, %v2060
      %v2062 = vpop.f32.mrf.mxu0
      %v2063 = vpop.f32.mrf.mxu0
      %v2064 = vadd.f32 %v475, %v2063
      %v2065 = vpop.f32.mrf.mxu0
      %2066 = vmatprep.mubr.bf16.mxu0 %v1229
      %2067 = vmatmul.mubr.bf16.gmra.mxu0 %v1228
      %v2068 = vpop.f32.mrf.mxu0
      %v2069 = vadd.f32 %v475, %v2068
      %v2070 = vpop.f32.mrf.mxu0
      %v2071 = vpop.f32.mrf.mxu0
      %v2072 = vadd.f32 %v475, %v2071
      %v2073 = vpop.f32.mrf.mxu0
      %2074 = vmatprep.mubr.bf16.mxu0 %v1232
      %2075 = vmatmul.mubr.bf16.gmra.mxu0 %v1231
      %v2076 = vpop.f32.mrf.mxu0
      %v2077 = vadd.f32 %v475, %v2076
      %v2078 = vpop.f32.mrf.mxu0
      %v2079 = vpop.f32.mrf.mxu0
      %v2080 = vadd.f32 %v475, %v2079
      %v2081 = vpop.f32.mrf.mxu0
      %2082 = vmatprep.mubr.bf16.mxu0 %v1235
      %2083 = vmatmul.mubr.bf16.gmra.mxu0 %v1234
      %v2084 = vpop.f32.mrf.mxu0
      %v2085 = vadd.f32 %v475, %v2084
      %v2086 = vpop.f32.mrf.mxu0
      %v2087 = vpop.f32.mrf.mxu0
      %v2088 = vadd.f32 %v475, %v2087
      %v2089 = vpop.f32.mrf.mxu0
      %2090 = vmatprep.mubr.bf16.mxu0 %v1238
      %2091 = vmatmul.mubr.bf16.gmra.mxu0 %v1237
      %v2092 = vpop.f32.mrf.mxu0
      %v2093 = vadd.f32 %v475, %v2092
      %v2094 = vpop.f32.mrf.mxu0
      %v2095 = vpop.f32.mrf.mxu0
      %v2096 = vadd.f32 %v475, %v2095
      %v2097 = vpop.f32.mrf.mxu0
      %2098 = vmatprep.mubr.bf16.mxu0 %v1241
      %2099 = vmatmul.mubr.bf16.gmra.mxu0 %v1240
      %v2100 = vpop.f32.mrf.mxu0
      %v2101 = vadd.f32 %v475, %v2100
      %v2102 = vpop.f32.mrf.mxu0
      %v2103 = vpop.f32.mrf.mxu0
      %v2104 = vadd.f32 %v475, %v2103
      %v2105 = vpop.f32.mrf.mxu0
      %2106 = vmatprep.mubr.bf16.mxu0 %v1244
      %2107 = vmatmul.mubr.bf16.gmra.mxu0 %v1243
      %v2108 = vpop.f32.mrf.mxu0
      %v2109 = vadd.f32 %v475, %v2108
      %v2110 = vpop.f32.mrf.mxu0
      %v2111 = vpop.f32.mrf.mxu0
      %v2112 = vadd.f32 %v475, %v2111
      %v2113 = vpop.f32.mrf.mxu0
      %2114 = vmatprep.mubr.bf16.mxu0 %v1247
      %2115 = vmatmul.mubr.bf16.gmra.mxu0 %v1246
      %v2116 = vpop.f32.mrf.mxu0
      %v2117 = vadd.f32 %v475, %v2116
      %v2118 = vpop.f32.mrf.mxu0
      %v2119 = vpop.f32.mrf.mxu0
      %v2120 = vadd.f32 %v475, %v2119
      %v2121 = vpop.f32.mrf.mxu0
      %2122 = vmatprep.mubr.bf16.mxu0 %v1250
      %2123 = vmatmul.mubr.bf16.gmra.mxu0 %v1249
      %v2124 = vpop.f32.mrf.mxu0
      %v2125 = vadd.f32 %v475, %v2124
      %v2126 = vpop.f32.mrf.mxu0
      %v2127 = vpop.f32.mrf.mxu0
      %v2128 = vadd.f32 %v475, %v2127
      %v2129 = vpop.f32.mrf.mxu0
      %2130 = vmatprep.mubr.bf16.mxu0 %v1253
      %2131 = vmatmul.mubr.bf16.gmra.mxu0 %v1252
      %v2132 = vpop.f32.mrf.mxu0
      %v2133 = vadd.f32 %v475, %v2132
      %v2134 = vpop.f32.mrf.mxu0
      %v2135 = vpop.f32.mrf.mxu0
      %v2136 = vadd.f32 %v475, %v2135
      %v2137 = vpop.f32.mrf.mxu0
      %2138 = vmatprep.mubr.bf16.mxu0 %v1256
      %2139 = vmatmul.mubr.bf16.gmra.mxu0 %v1255
      %v2140 = vpop.f32.mrf.mxu0
      %v2141 = vadd.f32 %v475, %v2140
      %v2142 = vpop.f32.mrf.mxu0
      %v2143 = vpop.f32.mrf.mxu0
      %v2144 = vadd.f32 %v475, %v2143
      %v2145 = vpop.f32.mrf.mxu0
      %2146 = vmatprep.mubr.bf16.mxu0 %v1259
      %2147 = vmatmul.mubr.bf16.gmra.mxu0 %v1258
      %v2148 = vpop.f32.mrf.mxu0
      %v2149 = vadd.f32 %v475, %v2148
      %v2150 = vpop.f32.mrf.mxu0
      %v2151 = vpop.f32.mrf.mxu0
      %v2152 = vadd.f32 %v475, %v2151
      %v2153 = vpop.f32.mrf.mxu0
      %2154 = vmatprep.mubr.bf16.mxu0 %v1262
      %2155 = vmatmul.mubr.bf16.gmra.mxu0 %v1261
      %v2156 = vpop.f32.mrf.mxu0
      %v2157 = vadd.f32 %v475, %v2156
      %v2158 = vpop.f32.mrf.mxu0
      %v2159 = vpop.f32.mrf.mxu0
      %v2160 = vadd.f32 %v475, %v2159
      %v2161 = vpop.f32.mrf.mxu0
      %2162 = vmatprep.mubr.bf16.mxu0 %v1265
      %2163 = vmatmul.mubr.bf16.gmra.mxu0 %v1264
      %v2164 = vpop.f32.mrf.mxu0
      %v2165 = vadd.f32 %v475, %v2164
      %v2166 = vpop.f32.mrf.mxu0
      %v2167 = vpop.f32.mrf.mxu0
      %v2168 = vadd.f32 %v475, %v2167
      %v2169 = vpop.f32.mrf.mxu0
      %2170 = vmatprep.mubr.bf16.mxu0 %v1268
      %2171 = vmatmul.mubr.bf16.gmra.mxu0 %v1267
      %v2172 = vpop.f32.mrf.mxu0
      %v2173 = vadd.f32 %v475, %v2172
      %v2174 = vpop.f32.mrf.mxu0
      %v2175 = vpop.f32.mrf.mxu0
      %v2176 = vadd.f32 %v475, %v2175
      %v2177 = vpop.f32.mrf.mxu0
      %2178 = vmatprep.mubr.bf16.mxu0 %v1271
      %2179 = vmatmul.mubr.bf16.gmra.mxu0 %v1270
      %v2180 = vpop.f32.mrf.mxu0
      %v2181 = vadd.f32 %v475, %v2180
      %v2182 = vpop.f32.mrf.mxu0
      %v2183 = vpop.f32.mrf.mxu0
      %v2184 = vadd.f32 %v475, %v2183
      %v2185 = vpop.f32.mrf.mxu0
      %2186 = vmatprep.mubr.bf16.mxu0 %v1274
      %2187 = vmatmul.mubr.bf16.gmra.mxu0 %v1273
      %v2188 = vpop.f32.mrf.mxu0
      %v2189 = vadd.f32 %v475, %v2188
      %v2190 = vpop.f32.mrf.mxu0
      %v2191 = vpop.f32.mrf.mxu0
      %v2192 = vadd.f32 %v475, %v2191
      %v2193 = vpop.f32.mrf.mxu0
      %2194 = vmatprep.mubr.bf16.mxu0 %v1277
      %2195 = vmatmul.mubr.bf16.gmra.mxu0 %v1276
      %v2196 = vpop.f32.mrf.mxu0
      %v2197 = vadd.f32 %v475, %v2196
      %v2198 = vpop.f32.mrf.mxu0
      %v2199 = vpop.f32.mrf.mxu0
      %v2200 = vadd.f32 %v475, %v2199
      %v2201 = vpop.f32.mrf.mxu0
      %2202 = vmatprep.mubr.bf16.mxu0 %v1280
      %2203 = vmatmul.mubr.bf16.gmra.mxu0 %v1279
      %v2204 = vpop.f32.mrf.mxu0
      %v2205 = vadd.f32 %v475, %v2204
      %v2206 = vpop.f32.mrf.mxu0
      %v2207 = vpop.f32.mrf.mxu0
      %v2208 = vadd.f32 %v475, %v2207
      %v2209 = vpop.f32.mrf.mxu0
      %2210 = vmatprep.mubr.bf16.mxu0 %v1283
      %2211 = vmatmul.mubr.bf16.gmra.mxu0 %v1282
      %v2212 = vpop.f32.mrf.mxu0
      %v2213 = vadd.f32 %v475, %v2212
      %v2214 = vpop.f32.mrf.mxu0
      %v2215 = vpop.f32.mrf.mxu0
      %v2216 = vadd.f32 %v475, %v2215
      %v2217 = vpop.f32.mrf.mxu0
      %2218 = vmatprep.mubr.bf16.mxu0 %v1286
      %2219 = vmatmul.mubr.bf16.gmra.mxu0 %v1285
      %v2220 = vpop.f32.mrf.mxu0
      %v2221 = vadd.f32 %v475, %v2220
      %v2222 = vpop.f32.mrf.mxu0
      %v2223 = vpop.f32.mrf.mxu0
      %v2224 = vadd.f32 %v475, %v2223
      %v2225 = vpop.f32.mrf.mxu0
      %2226 = vmatprep.mubr.bf16.mxu0 %v1289
      %2227 = vmatmul.mubr.bf16.gmra.mxu0 %v1288
      %v2228 = vpop.f32.mrf.mxu0
      %v2229 = vadd.f32 %v475, %v2228
      %v2230 = vpop.f32.mrf.mxu0
      %v2231 = vpop.f32.mrf.mxu0
      %v2232 = vadd.f32 %v475, %v2231
      %v2233 = vpop.f32.mrf.mxu0
      %2234 = vmatprep.mubr.bf16.mxu0 %v1292
      %2235 = vmatmul.mubr.bf16.gmra.mxu0 %v1291
      %v2236 = vpop.f32.mrf.mxu0
      %v2237 = vadd.f32 %v475, %v2236
      %v2238 = vpop.f32.mrf.mxu0
      %v2239 = vpop.f32.mrf.mxu0
      %v2240 = vadd.f32 %v475, %v2239
      %v2241 = vpop.f32.mrf.mxu0
      %2242 = vmatprep.mubr.bf16.mxu0 %v1295
      %2243 = vmatmul.mubr.bf16.gmra.mxu0 %v1294
      %v2244 = vpop.f32.mrf.mxu0
      %v2245 = vadd.f32 %v475, %v2244
      %v2246 = vpop.f32.mrf.mxu0
      %v2247 = vpop.f32.mrf.mxu0
      %v2248 = vadd.f32 %v475, %v2247
      %v2249 = vpop.f32.mrf.mxu0
      %2250 = vmatprep.mubr.bf16.mxu0 %v1298
      %2251 = vmatmul.mubr.bf16.gmra.mxu0 %v1297
      %v2252 = vpop.f32.mrf.mxu0
      %v2253 = vadd.f32 %v475, %v2252
      %v2254 = vpop.f32.mrf.mxu0
      %v2255 = vpop.f32.mrf.mxu0
      %v2256 = vadd.f32 %v475, %v2255
      %v2257 = vpop.f32.mrf.mxu0
      %2258 = vmatprep.mubr.bf16.mxu0 %v1301
      %2259 = vmatmul.mubr.bf16.gmra.mxu0 %v1300
      %v2260 = vpop.f32.mrf.mxu0
      %v2261 = vadd.f32 %v475, %v2260
      %v2262 = vpop.f32.mrf.mxu0
      %v2263 = vpop.f32.mrf.mxu0
      %v2264 = vadd.f32 %v475, %v2263
      %v2265 = vpop.f32.mrf.mxu0
      %2266 = vmatprep.mubr.bf16.mxu0 %v1304
      %2267 = vmatmul.mubr.bf16.gmra.mxu0 %v1303
      %v2268 = vpop.f32.mrf.mxu0
      %v2269 = vadd.f32 %v475, %v2268
      %v2270 = vpop.f32.mrf.mxu0
      %v2271 = vpop.f32.mrf.mxu0
      %v2272 = vadd.f32 %v475, %v2271
      %v2273 = vpop.f32.mrf.mxu0
      %2274 = vmatprep.mubr.bf16.mxu0 %v1307
      %2275 = vmatmul.mubr.bf16.gmra.mxu0 %v1306
      %v2276 = vpop.f32.mrf.mxu0
      %v2277 = vadd.f32 %v475, %v2276
      %v2278 = vpop.f32.mrf.mxu0
      %v2279 = vpop.f32.mrf.mxu0
      %v2280 = vadd.f32 %v475, %v2279
      %v2281 = vpop.f32.mrf.mxu0
      %2282 = vdwg.mxu0
      %2283 = vmatprep.subr.bf16.mxu0 0
      %2284 = vmatpush1.bf16.msra.mxu0 0
      %2285 = vmatprep.subr.bf16.mxu0 0
      %2286 = vmatpush1.bf16.msra.mxu0 0
      %2287 = vmatprep.subr.bf16.mxu0 0
      %2288 = vmatpush1.bf16.msra.mxu0 0
      %2289 = vmatprep.subr.bf16.mxu0 0
      %2290 = vmatpush1.bf16.msra.mxu0 0
      %2291 = vmatprep.subr.bf16.mxu0 0
      %2292 = vmatpush1.bf16.msra.mxu0 0
      %2293 = vmatprep.subr.bf16.mxu0 0
      %2294 = vmatpush1.bf16.msra.mxu0 0
      %2295 = vmatprep.subr.bf16.mxu0 0
      %2296 = vmatpush1.bf16.msra.mxu0 %v1526
      %2297 = vmatprep.subr.bf16.mxu0 0
      %2298 = vmatpush1.bf16.msra.mxu0 %v1525
      %2299 = vmatprep.subr.bf16.mxu0 0
      %2300 = vmatpush2.bf16.msra.mxu0 0
      %2301 = vmatprep.subr.bf16.mxu0 0
      %2302 = vmatpush2.bf16.msra.mxu0 0
      %2303 = vmatprep.subr.bf16.mxu0 0
      %2304 = vmatpush2.bf16.msra.mxu0 0
      %2305 = vmatprep.subr.bf16.mxu0 0
      %2306 = vmatpush2.bf16.msra.mxu0 0
      %2307 = vmatprep.subr.bf16.mxu0 0
      %2308 = vmatpush2.bf16.msra.mxu0 0
      %2309 = vmatprep.subr.bf16.mxu0 0
      %2310 = vmatpush2.bf16.msra.mxu0 0
      %2311 = vmatprep.subr.bf16.mxu0 0
      %2312 = vmatpush2.bf16.msra.mxu0 0
      %2313 = vmatprep.subr.bf16.mxu0 0
      %2314 = vmatpush2.bf16.msra.mxu0 0
      %2315 = vmatprep.mubr.bf16.mxu0 0
      %2316 = vmatmul.mubr.bf16.gmra.mxu0 %v1547
      %v2317 = vpop.f32.mrf.mxu0
      %v2318 = vadd.f32 %v1773, %v2317
      %v2319 = vpop.f32.mrf.mxu0
      %v2320 = vpop.f32.mrf.mxu0
      %v2321 = vadd.f32 %v1776, %v2320
      %v2322 = vpop.f32.mrf.mxu0
      %2323 = vmatprep.mubr.bf16.mxu0 0
      %2324 = vmatmul.mubr.bf16.gmra.mxu0 %v1550
      %v2325 = vpop.f32.mrf.mxu0
      %v2326 = vadd.f32 %v1781, %v2325
      %v2327 = vpop.f32.mrf.mxu0
      %v2328 = vpop.f32.mrf.mxu0
      %v2329 = vadd.f32 %v1784, %v2328
      %v2330 = vpop.f32.mrf.mxu0
      %2331 = vmatprep.mubr.bf16.mxu0 0
      %2332 = vmatmul.mubr.bf16.gmra.mxu0 %v1553
      %v2333 = vpop.f32.mrf.mxu0
      %v2334 = vadd.f32 %v1789, %v2333
      %v2335 = vpop.f32.mrf.mxu0
      %v2336 = vpop.f32.mrf.mxu0
      %v2337 = vadd.f32 %v1792, %v2336
      %v2338 = vpop.f32.mrf.mxu0
      %2339 = vmatprep.mubr.bf16.mxu0 0
      %2340 = vmatmul.mubr.bf16.gmra.mxu0 %v1556
      %v2341 = vpop.f32.mrf.mxu0
      %v2342 = vadd.f32 %v1797, %v2341
      %v2343 = vpop.f32.mrf.mxu0
      %v2344 = vpop.f32.mrf.mxu0
      %v2345 = vadd.f32 %v1800, %v2344
      %v2346 = vpop.f32.mrf.mxu0
      %2347 = vmatprep.mubr.bf16.mxu0 0
      %2348 = vmatmul.mubr.bf16.gmra.mxu0 %v1559
      %v2349 = vpop.f32.mrf.mxu0
      %v2350 = vadd.f32 %v1805, %v2349
      %v2351 = vpop.f32.mrf.mxu0
      %v2352 = vpop.f32.mrf.mxu0
      %v2353 = vadd.f32 %v1808, %v2352
      %v2354 = vpop.f32.mrf.mxu0
      %2355 = vmatprep.mubr.bf16.mxu0 0
      %2356 = vmatmul.mubr.bf16.gmra.mxu0 %v1562
      %v2357 = vpop.f32.mrf.mxu0
      %v2358 = vadd.f32 %v1813, %v2357
      %v2359 = vpop.f32.mrf.mxu0
      %v2360 = vpop.f32.mrf.mxu0
      %v2361 = vadd.f32 %v1816, %v2360
      %v2362 = vpop.f32.mrf.mxu0
      %2363 = vmatprep.mubr.bf16.mxu0 0
      %2364 = vmatmul.mubr.bf16.gmra.mxu0 %v1565
      %v2365 = vpop.f32.mrf.mxu0
      %v2366 = vadd.f32 %v1821, %v2365
      %v2367 = vpop.f32.mrf.mxu0
      %v2368 = vpop.f32.mrf.mxu0
      %v2369 = vadd.f32 %v1824, %v2368
      %v2370 = vpop.f32.mrf.mxu0
      %2371 = vmatprep.mubr.bf16.mxu0 0
      %2372 = vmatmul.mubr.bf16.gmra.mxu0 %v1568
      %v2373 = vpop.f32.mrf.mxu0
      %v2374 = vadd.f32 %v1829, %v2373
      %v2375 = vpop.f32.mrf.mxu0
      %v2376 = vpop.f32.mrf.mxu0
      %v2377 = vadd.f32 %v1832, %v2376
      %v2378 = vpop.f32.mrf.mxu0
      %2379 = vmatprep.mubr.bf16.mxu0 0
      %2380 = vmatmul.mubr.bf16.gmra.mxu0 %v1571
      %v2381 = vpop.f32.mrf.mxu0
      %v2382 = vadd.f32 %v1837, %v2381
      %v2383 = vpop.f32.mrf.mxu0
      %v2384 = vpop.f32.mrf.mxu0
      %v2385 = vadd.f32 %v1840, %v2384
      %v2386 = vpop.f32.mrf.mxu0
      %2387 = vmatprep.mubr.bf16.mxu0 0
      %2388 = vmatmul.mubr.bf16.gmra.mxu0 %v1574
      %v2389 = vpop.f32.mrf.mxu0
      %v2390 = vadd.f32 %v1845, %v2389
      %v2391 = vpop.f32.mrf.mxu0
      %v2392 = vpop.f32.mrf.mxu0
      %v2393 = vadd.f32 %v1848, %v2392
      %v2394 = vpop.f32.mrf.mxu0
      %2395 = vmatprep.mubr.bf16.mxu0 0
      %2396 = vmatmul.mubr.bf16.gmra.mxu0 %v1577
      %v2397 = vpop.f32.mrf.mxu0
      %v2398 = vadd.f32 %v1853, %v2397
      %v2399 = vpop.f32.mrf.mxu0
      %v2400 = vpop.f32.mrf.mxu0
      %v2401 = vadd.f32 %v1856, %v2400
      %v2402 = vpop.f32.mrf.mxu0
      %2403 = vmatprep.mubr.bf16.mxu0 0
      %2404 = vmatmul.mubr.bf16.gmra.mxu0 %v1580
      %v2405 = vpop.f32.mrf.mxu0
      %v2406 = vadd.f32 %v1861, %v2405
      %v2407 = vpop.f32.mrf.mxu0
      %v2408 = vpop.f32.mrf.mxu0
      %v2409 = vadd.f32 %v1864, %v2408
      %v2410 = vpop.f32.mrf.mxu0
      %2411 = vmatprep.mubr.bf16.mxu0 0
      %2412 = vmatmul.mubr.bf16.gmra.mxu0 %v1583
      %v2413 = vpop.f32.mrf.mxu0
      %v2414 = vadd.f32 %v1869, %v2413
      %v2415 = vpop.f32.mrf.mxu0
      %v2416 = vpop.f32.mrf.mxu0
      %v2417 = vadd.f32 %v1872, %v2416
      %v2418 = vpop.f32.mrf.mxu0
      %2419 = vmatprep.mubr.bf16.mxu0 0
      %2420 = vmatmul.mubr.bf16.gmra.mxu0 %v1586
      %v2421 = vpop.f32.mrf.mxu0
      %v2422 = vadd.f32 %v1877, %v2421
      %v2423 = vpop.f32.mrf.mxu0
      %v2424 = vpop.f32.mrf.mxu0
      %v2425 = vadd.f32 %v1880, %v2424
      %v2426 = vpop.f32.mrf.mxu0
      %2427 = vmatprep.mubr.bf16.mxu0 0
      %2428 = vmatmul.mubr.bf16.gmra.mxu0 %v1589
      %v2429 = vpop.f32.mrf.mxu0
      %v2430 = vadd.f32 %v1885, %v2429
      %v2431 = vpop.f32.mrf.mxu0
      %v2432 = vpop.f32.mrf.mxu0
      %v2433 = vadd.f32 %v1888, %v2432
      %v2434 = vpop.f32.mrf.mxu0
      %2435 = vmatprep.mubr.bf16.mxu0 0
      %2436 = vmatmul.mubr.bf16.gmra.mxu0 %v1592
      %v2437 = vpop.f32.mrf.mxu0
      %v2438 = vadd.f32 %v1893, %v2437
      %v2439 = vpop.f32.mrf.mxu0
      %v2440 = vpop.f32.mrf.mxu0
      %v2441 = vadd.f32 %v1896, %v2440
      %v2442 = vpop.f32.mrf.mxu0
      %2443 = vmatprep.mubr.bf16.mxu0 0
      %2444 = vmatmul.mubr.bf16.gmra.mxu0 %v1595
      %v2445 = vpop.f32.mrf.mxu0
      %v2446 = vadd.f32 %v1901, %v2445
      %v2447 = vpop.f32.mrf.mxu0
      %v2448 = vpop.f32.mrf.mxu0
      %v2449 = vadd.f32 %v1904, %v2448
      %v2450 = vpop.f32.mrf.mxu0
      %2451 = vmatprep.mubr.bf16.mxu0 0
      %2452 = vmatmul.mubr.bf16.gmra.mxu0 %v1598
      %v2453 = vpop.f32.mrf.mxu0
      %v2454 = vadd.f32 %v1909, %v2453
      %v2455 = vpop.f32.mrf.mxu0
      %v2456 = vpop.f32.mrf.mxu0
      %v2457 = vadd.f32 %v1912, %v2456
      %v2458 = vpop.f32.mrf.mxu0
      %2459 = vmatprep.mubr.bf16.mxu0 0
      %2460 = vmatmul.mubr.bf16.gmra.mxu0 %v1601
      %v2461 = vpop.f32.mrf.mxu0
      %v2462 = vadd.f32 %v1917, %v2461
      %v2463 = vpop.f32.mrf.mxu0
      %v2464 = vpop.f32.mrf.mxu0
      %v2465 = vadd.f32 %v1920, %v2464
      %v2466 = vpop.f32.mrf.mxu0
      %2467 = vmatprep.mubr.bf16.mxu0 0
      %2468 = vmatmul.mubr.bf16.gmra.mxu0 %v1604
      %v2469 = vpop.f32.mrf.mxu0
      %v2470 = vadd.f32 %v1925, %v2469
      %v2471 = vpop.f32.mrf.mxu0
      %v2472 = vpop.f32.mrf.mxu0
      %v2473 = vadd.f32 %v1928, %v2472
      %v2474 = vpop.f32.mrf.mxu0
      %2475 = vmatprep.mubr.bf16.mxu0 0
      %2476 = vmatmul.mubr.bf16.gmra.mxu0 %v1607
      %v2477 = vpop.f32.mrf.mxu0
      %v2478 = vadd.f32 %v1933, %v2477
      %v2479 = vpop.f32.mrf.mxu0
      %v2480 = vpop.f32.mrf.mxu0
      %v2481 = vadd.f32 %v1936, %v2480
      %v2482 = vpop.f32.mrf.mxu0
      %2483 = vmatprep.mubr.bf16.mxu0 0
      %2484 = vmatmul.mubr.bf16.gmra.mxu0 %v1610
      %v2485 = vpop.f32.mrf.mxu0
      %v2486 = vadd.f32 %v1941, %v2485
      %v2487 = vpop.f32.mrf.mxu0
      %v2488 = vpop.f32.mrf.mxu0
      %v2489 = vadd.f32 %v1944, %v2488
      %v2490 = vpop.f32.mrf.mxu0
      %2491 = vmatprep.mubr.bf16.mxu0 0
      %2492 = vmatmul.mubr.bf16.gmra.mxu0 %v1613
      %v2493 = vpop.f32.mrf.mxu0
      %v2494 = vadd.f32 %v1949, %v2493
      %v2495 = vpop.f32.mrf.mxu0
      %v2496 = vpop.f32.mrf.mxu0
      %v2497 = vadd.f32 %v1952, %v2496
      %v2498 = vpop.f32.mrf.mxu0
      %2499 = vmatprep.mubr.bf16.mxu0 0
      %2500 = vmatmul.mubr.bf16.gmra.mxu0 %v1616
      %v2501 = vpop.f32.mrf.mxu0
      %v2502 = vadd.f32 %v1957, %v2501
      %v2503 = vpop.f32.mrf.mxu0
      %v2504 = vpop.f32.mrf.mxu0
      %v2505 = vadd.f32 %v1960, %v2504
      %v2506 = vpop.f32.mrf.mxu0
      %2507 = vmatprep.mubr.bf16.mxu0 0
      %2508 = vmatmul.mubr.bf16.gmra.mxu0 %v1619
      %v2509 = vpop.f32.mrf.mxu0
      %v2510 = vadd.f32 %v1965, %v2509
      %v2511 = vpop.f32.mrf.mxu0
      %v2512 = vpop.f32.mrf.mxu0
      %v2513 = vadd.f32 %v1968, %v2512
      %v2514 = vpop.f32.mrf.mxu0
      %2515 = vmatprep.mubr.bf16.mxu0 0
      %2516 = vmatmul.mubr.bf16.gmra.mxu0 %v1622
      %v2517 = vpop.f32.mrf.mxu0
      %v2518 = vadd.f32 %v1973, %v2517
      %v2519 = vpop.f32.mrf.mxu0
      %v2520 = vpop.f32.mrf.mxu0
      %v2521 = vadd.f32 %v1976, %v2520
      %v2522 = vpop.f32.mrf.mxu0
      %2523 = vmatprep.mubr.bf16.mxu0 0
      %2524 = vmatmul.mubr.bf16.gmra.mxu0 %v1625
      %v2525 = vpop.f32.mrf.mxu0
      %v2526 = vadd.f32 %v1981, %v2525
      %v2527 = vpop.f32.mrf.mxu0
      %v2528 = vpop.f32.mrf.mxu0
      %v2529 = vadd.f32 %v1984, %v2528
      %v2530 = vpop.f32.mrf.mxu0
      %2531 = vmatprep.mubr.bf16.mxu0 0
      %2532 = vmatmul.mubr.bf16.gmra.mxu0 %v1628
      %v2533 = vpop.f32.mrf.mxu0
      %v2534 = vadd.f32 %v1989, %v2533
      %v2535 = vpop.f32.mrf.mxu0
      %v2536 = vpop.f32.mrf.mxu0
      %v2537 = vadd.f32 %v1992, %v2536
      %v2538 = vpop.f32.mrf.mxu0
      %2539 = vmatprep.mubr.bf16.mxu0 0
      %2540 = vmatmul.mubr.bf16.gmra.mxu0 %v1631
      %v2541 = vpop.f32.mrf.mxu0
      %v2542 = vadd.f32 %v1997, %v2541
      %v2543 = vpop.f32.mrf.mxu0
      %v2544 = vpop.f32.mrf.mxu0
      %v2545 = vadd.f32 %v2000, %v2544
      %v2546 = vpop.f32.mrf.mxu0
      %2547 = vmatprep.mubr.bf16.mxu0 0
      %2548 = vmatmul.mubr.bf16.gmra.mxu0 %v1634
      %v2549 = vpop.f32.mrf.mxu0
      %v2550 = vadd.f32 %v2005, %v2549
      %v2551 = vpop.f32.mrf.mxu0
      %v2552 = vpop.f32.mrf.mxu0
      %v2553 = vadd.f32 %v2008, %v2552
      %v2554 = vpop.f32.mrf.mxu0
      %2555 = vmatprep.mubr.bf16.mxu0 0
      %2556 = vmatmul.mubr.bf16.gmra.mxu0 %v1637
      %v2557 = vpop.f32.mrf.mxu0
      %v2558 = vadd.f32 %v2013, %v2557
      %v2559 = vpop.f32.mrf.mxu0
      %v2560 = vpop.f32.mrf.mxu0
      %v2561 = vadd.f32 %v2016, %v2560
      %v2562 = vpop.f32.mrf.mxu0
      %2563 = vmatprep.mubr.bf16.mxu0 0
      %2564 = vmatmul.mubr.bf16.gmra.mxu0 %v1640
      %v2565 = vpop.f32.mrf.mxu0
      %v2566 = vadd.f32 %v2021, %v2565
      %v2567 = vpop.f32.mrf.mxu0
      %v2568 = vpop.f32.mrf.mxu0
      %v2569 = vadd.f32 %v2024, %v2568
      %v2570 = vpop.f32.mrf.mxu0
      %2571 = vmatprep.mubr.bf16.mxu0 0
      %2572 = vmatmul.mubr.bf16.gmra.mxu0 %v1643
      %v2573 = vpop.f32.mrf.mxu0
      %v2574 = vadd.f32 %v2029, %v2573
      %v2575 = vpop.f32.mrf.mxu0
      %v2576 = vpop.f32.mrf.mxu0
      %v2577 = vadd.f32 %v2032, %v2576
      %v2578 = vpop.f32.mrf.mxu0
      %2579 = vmatprep.mubr.bf16.mxu0 0
      %2580 = vmatmul.mubr.bf16.gmra.mxu0 %v1646
      %v2581 = vpop.f32.mrf.mxu0
      %v2582 = vadd.f32 %v2037, %v2581
      %v2583 = vpop.f32.mrf.mxu0
      %v2584 = vpop.f32.mrf.mxu0
      %v2585 = vadd.f32 %v2040, %v2584
      %v2586 = vpop.f32.mrf.mxu0
      %2587 = vmatprep.mubr.bf16.mxu0 0
      %2588 = vmatmul.mubr.bf16.gmra.mxu0 %v1649
      %v2589 = vpop.f32.mrf.mxu0
      %v2590 = vadd.f32 %v2045, %v2589
      %v2591 = vpop.f32.mrf.mxu0
      %v2592 = vpop.f32.mrf.mxu0
      %v2593 = vadd.f32 %v2048, %v2592
      %v2594 = vpop.f32.mrf.mxu0
      %2595 = vmatprep.mubr.bf16.mxu0 0
      %2596 = vmatmul.mubr.bf16.gmra.mxu0 %v1652
      %v2597 = vpop.f32.mrf.mxu0
      %v2598 = vadd.f32 %v2053, %v2597
      %v2599 = vpop.f32.mrf.mxu0
      %v2600 = vpop.f32.mrf.mxu0
      %v2601 = vadd.f32 %v2056, %v2600
      %v2602 = vpop.f32.mrf.mxu0
      %2603 = vmatprep.mubr.bf16.mxu0 0
      %2604 = vmatmul.mubr.bf16.gmra.mxu0 %v1655
      %v2605 = vpop.f32.mrf.mxu0
      %v2606 = vadd.f32 %v2061, %v2605
      %v2607 = vpop.f32.mrf.mxu0
      %v2608 = vpop.f32.mrf.mxu0
      %v2609 = vadd.f32 %v2064, %v2608
      %v2610 = vpop.f32.mrf.mxu0
      %2611 = vmatprep.mubr.bf16.mxu0 0
      %2612 = vmatmul.mubr.bf16.gmra.mxu0 %v1658
      %v2613 = vpop.f32.mrf.mxu0
      %v2614 = vadd.f32 %v2069, %v2613
      %v2615 = vpop.f32.mrf.mxu0
      %v2616 = vpop.f32.mrf.mxu0
      %v2617 = vadd.f32 %v2072, %v2616
      %v2618 = vpop.f32.mrf.mxu0
      %2619 = vmatprep.mubr.bf16.mxu0 0
      %2620 = vmatmul.mubr.bf16.gmra.mxu0 %v1661
      %v2621 = vpop.f32.mrf.mxu0
      %v2622 = vadd.f32 %v2077, %v2621
      %v2623 = vpop.f32.mrf.mxu0
      %v2624 = vpop.f32.mrf.mxu0
      %v2625 = vadd.f32 %v2080, %v2624
      %v2626 = vpop.f32.mrf.mxu0
      %2627 = vmatprep.mubr.bf16.mxu0 0
      %2628 = vmatmul.mubr.bf16.gmra.mxu0 %v1664
      %v2629 = vpop.f32.mrf.mxu0
      %v2630 = vadd.f32 %v2085, %v2629
      %v2631 = vpop.f32.mrf.mxu0
      %v2632 = vpop.f32.mrf.mxu0
      %v2633 = vadd.f32 %v2088, %v2632
      %v2634 = vpop.f32.mrf.mxu0
      %2635 = vmatprep.mubr.bf16.mxu0 0
      %2636 = vmatmul.mubr.bf16.gmra.mxu0 %v1667
      %v2637 = vpop.f32.mrf.mxu0
      %v2638 = vadd.f32 %v2093, %v2637
      %v2639 = vpop.f32.mrf.mxu0
      %v2640 = vpop.f32.mrf.mxu0
      %v2641 = vadd.f32 %v2096, %v2640
      %v2642 = vpop.f32.mrf.mxu0
      %2643 = vmatprep.mubr.bf16.mxu0 0
      %2644 = vmatmul.mubr.bf16.gmra.mxu0 %v1670
      %v2645 = vpop.f32.mrf.mxu0
      %v2646 = vadd.f32 %v2101, %v2645
      %v2647 = vpop.f32.mrf.mxu0
      %v2648 = vpop.f32.mrf.mxu0
      %v2649 = vadd.f32 %v2104, %v2648
      %v2650 = vpop.f32.mrf.mxu0
      %2651 = vmatprep.mubr.bf16.mxu0 0
      %2652 = vmatmul.mubr.bf16.gmra.mxu0 %v1673
      %v2653 = vpop.f32.mrf.mxu0
      %v2654 = vadd.f32 %v2109, %v2653
      %v2655 = vpop.f32.mrf.mxu0
      %v2656 = vpop.f32.mrf.mxu0
      %v2657 = vadd.f32 %v2112, %v2656
      %v2658 = vpop.f32.mrf.mxu0
      %2659 = vmatprep.mubr.bf16.mxu0 0
      %2660 = vmatmul.mubr.bf16.gmra.mxu0 %v1676
      %v2661 = vpop.f32.mrf.mxu0
      %v2662 = vadd.f32 %v2117, %v2661
      %v2663 = vpop.f32.mrf.mxu0
      %v2664 = vpop.f32.mrf.mxu0
      %v2665 = vadd.f32 %v2120, %v2664
      %v2666 = vpop.f32.mrf.mxu0
      %2667 = vmatprep.mubr.bf16.mxu0 0
      %2668 = vmatmul.mubr.bf16.gmra.mxu0 %v1679
      %v2669 = vpop.f32.mrf.mxu0
      %v2670 = vadd.f32 %v2125, %v2669
      %v2671 = vpop.f32.mrf.mxu0
      %v2672 = vpop.f32.mrf.mxu0
      %v2673 = vadd.f32 %v2128, %v2672
      %v2674 = vpop.f32.mrf.mxu0
      %2675 = vmatprep.mubr.bf16.mxu0 0
      %2676 = vmatmul.mubr.bf16.gmra.mxu0 %v1682
      %v2677 = vpop.f32.mrf.mxu0
      %v2678 = vadd.f32 %v2133, %v2677
      %v2679 = vpop.f32.mrf.mxu0
      %v2680 = vpop.f32.mrf.mxu0
      %v2681 = vadd.f32 %v2136, %v2680
      %v2682 = vpop.f32.mrf.mxu0
      %2683 = vmatprep.mubr.bf16.mxu0 0
      %2684 = vmatmul.mubr.bf16.gmra.mxu0 %v1685
      %v2685 = vpop.f32.mrf.mxu0
      %v2686 = vadd.f32 %v2141, %v2685
      %v2687 = vpop.f32.mrf.mxu0
      %v2688 = vpop.f32.mrf.mxu0
      %v2689 = vadd.f32 %v2144, %v2688
      %v2690 = vpop.f32.mrf.mxu0
      %2691 = vmatprep.mubr.bf16.mxu0 0
      %2692 = vmatmul.mubr.bf16.gmra.mxu0 %v1688
      %v2693 = vpop.f32.mrf.mxu0
      %v2694 = vadd.f32 %v2149, %v2693
      %v2695 = vpop.f32.mrf.mxu0
      %v2696 = vpop.f32.mrf.mxu0
      %v2697 = vadd.f32 %v2152, %v2696
      %v2698 = vpop.f32.mrf.mxu0
      %2699 = vmatprep.mubr.bf16.mxu0 0
      %2700 = vmatmul.mubr.bf16.gmra.mxu0 %v1691
      %v2701 = vpop.f32.mrf.mxu0
      %v2702 = vadd.f32 %v2157, %v2701
      %v2703 = vpop.f32.mrf.mxu0
      %v2704 = vpop.f32.mrf.mxu0
      %v2705 = vadd.f32 %v2160, %v2704
      %v2706 = vpop.f32.mrf.mxu0
      %2707 = vmatprep.mubr.bf16.mxu0 0
      %2708 = vmatmul.mubr.bf16.gmra.mxu0 %v1694
      %v2709 = vpop.f32.mrf.mxu0
      %v2710 = vadd.f32 %v2165, %v2709
      %v2711 = vpop.f32.mrf.mxu0
      %v2712 = vpop.f32.mrf.mxu0
      %v2713 = vadd.f32 %v2168, %v2712
      %v2714 = vpop.f32.mrf.mxu0
      %2715 = vmatprep.mubr.bf16.mxu0 0
      %2716 = vmatmul.mubr.bf16.gmra.mxu0 %v1697
      %v2717 = vpop.f32.mrf.mxu0
      %v2718 = vadd.f32 %v2173, %v2717
      %v2719 = vpop.f32.mrf.mxu0
      %v2720 = vpop.f32.mrf.mxu0
      %v2721 = vadd.f32 %v2176, %v2720
      %v2722 = vpop.f32.mrf.mxu0
      %2723 = vmatprep.mubr.bf16.mxu0 0
      %2724 = vmatmul.mubr.bf16.gmra.mxu0 %v1700
      %v2725 = vpop.f32.mrf.mxu0
      %v2726 = vadd.f32 %v2181, %v2725
      %v2727 = vpop.f32.mrf.mxu0
      %v2728 = vpop.f32.mrf.mxu0
      %v2729 = vadd.f32 %v2184, %v2728
      %v2730 = vpop.f32.mrf.mxu0
      %2731 = vmatprep.mubr.bf16.mxu0 0
      %2732 = vmatmul.mubr.bf16.gmra.mxu0 %v1703
      %v2733 = vpop.f32.mrf.mxu0
      %v2734 = vadd.f32 %v2189, %v2733
      %v2735 = vpop.f32.mrf.mxu0
      %v2736 = vpop.f32.mrf.mxu0
      %v2737 = vadd.f32 %v2192, %v2736
      %v2738 = vpop.f32.mrf.mxu0
      %2739 = vmatprep.mubr.bf16.mxu0 0
      %2740 = vmatmul.mubr.bf16.gmra.mxu0 %v1706
      %v2741 = vpop.f32.mrf.mxu0
      %v2742 = vadd.f32 %v2197, %v2741
      %v2743 = vpop.f32.mrf.mxu0
      %v2744 = vpop.f32.mrf.mxu0
      %v2745 = vadd.f32 %v2200, %v2744
      %v2746 = vpop.f32.mrf.mxu0
      %2747 = vmatprep.mubr.bf16.mxu0 0
      %2748 = vmatmul.mubr.bf16.gmra.mxu0 %v1709
      %v2749 = vpop.f32.mrf.mxu0
      %v2750 = vadd.f32 %v2205, %v2749
      %v2751 = vpop.f32.mrf.mxu0
      %v2752 = vpop.f32.mrf.mxu0
      %v2753 = vadd.f32 %v2208, %v2752
      %v2754 = vpop.f32.mrf.mxu0
      %2755 = vmatprep.mubr.bf16.mxu0 0
      %2756 = vmatmul.mubr.bf16.gmra.mxu0 %v1712
      %v2757 = vpop.f32.mrf.mxu0
      %v2758 = vadd.f32 %v2213, %v2757
      %v2759 = vpop.f32.mrf.mxu0
      %v2760 = vpop.f32.mrf.mxu0
      %v2761 = vadd.f32 %v2216, %v2760
      %v2762 = vpop.f32.mrf.mxu0
      %2763 = vmatprep.mubr.bf16.mxu0 0
      %2764 = vmatmul.mubr.bf16.gmra.mxu0 %v1715
      %v2765 = vpop.f32.mrf.mxu0
      %v2766 = vadd.f32 %v2221, %v2765
      %v2767 = vpop.f32.mrf.mxu0
      %v2768 = vpop.f32.mrf.mxu0
      %v2769 = vadd.f32 %v2224, %v2768
      %v2770 = vpop.f32.mrf.mxu0
      %2771 = vmatprep.mubr.bf16.mxu0 0
      %2772 = vmatmul.mubr.bf16.gmra.mxu0 %v1718
      %v2773 = vpop.f32.mrf.mxu0
      %v2774 = vadd.f32 %v2229, %v2773
      %v2775 = vpop.f32.mrf.mxu0
      %v2776 = vpop.f32.mrf.mxu0
      %v2777 = vadd.f32 %v2232, %v2776
      %v2778 = vpop.f32.mrf.mxu0
      %2779 = vmatprep.mubr.bf16.mxu0 0
      %2780 = vmatmul.mubr.bf16.gmra.mxu0 %v1721
      %v2781 = vpop.f32.mrf.mxu0
      %v2782 = vadd.f32 %v2237, %v2781
      %v2783 = vpop.f32.mrf.mxu0
      %v2784 = vpop.f32.mrf.mxu0
      %v2785 = vadd.f32 %v2240, %v2784
      %v2786 = vpop.f32.mrf.mxu0
      %2787 = vmatprep.mubr.bf16.mxu0 0
      %2788 = vmatmul.mubr.bf16.gmra.mxu0 %v1724
      %v2789 = vpop.f32.mrf.mxu0
      %v2790 = vadd.f32 %v2245, %v2789
      %v2791 = vpop.f32.mrf.mxu0
      %v2792 = vpop.f32.mrf.mxu0
      %v2793 = vadd.f32 %v2248, %v2792
      %v2794 = vpop.f32.mrf.mxu0
      %2795 = vmatprep.mubr.bf16.mxu0 0
      %2796 = vmatmul.mubr.bf16.gmra.mxu0 %v1727
      %v2797 = vpop.f32.mrf.mxu0
      %v2798 = vadd.f32 %v2253, %v2797
      %v2799 = vpop.f32.mrf.mxu0
      %v2800 = vpop.f32.mrf.mxu0
      %v2801 = vadd.f32 %v2256, %v2800
      %v2802 = vpop.f32.mrf.mxu0
      %2803 = vmatprep.mubr.bf16.mxu0 0
      %2804 = vmatmul.mubr.bf16.gmra.mxu0 %v1730
      %v2805 = vpop.f32.mrf.mxu0
      %v2806 = vadd.f32 %v2261, %v2805
      %v2807 = vpop.f32.mrf.mxu0
      %v2808 = vpop.f32.mrf.mxu0
      %v2809 = vadd.f32 %v2264, %v2808
      %v2810 = vpop.f32.mrf.mxu0
      %2811 = vmatprep.mubr.bf16.mxu0 0
      %2812 = vmatmul.mubr.bf16.gmra.mxu0 %v1733
      %v2813 = vpop.f32.mrf.mxu0
      %v2814 = vadd.f32 %v2269, %v2813
      %v2815 = vpop.f32.mrf.mxu0
      %v2816 = vpop.f32.mrf.mxu0
      %v2817 = vadd.f32 %v2272, %v2816
      %v2818 = vpop.f32.mrf.mxu0
      %2819 = vmatprep.mubr.bf16.mxu0 0
      %2820 = vmatmul.mubr.bf16.gmra.mxu0 %v1736
      %v2821 = vpop.f32.mrf.mxu0
      %v2822 = vadd.f32 %v2277, %v2821
      %v2823 = vpop.f32.mrf.mxu0
      %v2824 = vpop.f32.mrf.mxu0
      %v2825 = vadd.f32 %v2280, %v2824
      %v2826 = vpop.f32.mrf.mxu0
      %2827 = vdwg.mxu0
      %v2828 = vmul.f32 %v2318, 0.5
      %v2829 = vmul.f32 %v2321, 0.5
      %v2830 = vmul.f32 %v2326, 0.5
      %v2831 = vmul.f32 %v2329, 0.5
      %v2832 = vmul.f32 %v2334, 0.5
      %v2833 = vmul.f32 %v2337, 0.5
      %v2834 = vmul.f32 %v2342, 0.5
      %v2835 = vmul.f32 %v2345, 0.5
      %v2836 = vmul.f32 %v2350, 0.5
      %v2837 = vmul.f32 %v2353, 0.5
      %v2838 = vmul.f32 %v2358, 0.5
      %v2839 = vmul.f32 %v2361, 0.5
      %v2840 = vmul.f32 %v2366, 0.5
      %v2841 = vmul.f32 %v2369, 0.5
      %v2842 = vmul.f32 %v2374, 0.5
      %v2843 = vmul.f32 %v2377, 0.5
      %v2844 = vmul.f32 %v2382, 0.5
      %v2845 = vmul.f32 %v2385, 0.5
      %v2846 = vmul.f32 %v2390, 0.5
      %v2847 = vmul.f32 %v2393, 0.5
      %v2848 = vmul.f32 %v2398, 0.5
      %v2849 = vmul.f32 %v2401, 0.5
      %v2850 = vmul.f32 %v2406, 0.5
      %v2851 = vmul.f32 %v2409, 0.5
      %v2852 = vmul.f32 %v2414, 0.5
      %v2853 = vmul.f32 %v2417, 0.5
      %v2854 = vmul.f32 %v2422, 0.5
      %v2855 = vmul.f32 %v2425, 0.5
      %v2856 = vmul.f32 %v2430, 0.5
      %v2857 = vmul.f32 %v2433, 0.5
      %v2858 = vmul.f32 %v2438, 0.5
      %v2859 = vmul.f32 %v2441, 0.5
      %v2860 = vmul.f32 %v2446, 0.5
      %v2861 = vmul.f32 %v2449, 0.5
      %v2862 = vmul.f32 %v2454, 0.5
      %v2863 = vmul.f32 %v2457, 0.5
      %v2864 = vmul.f32 %v2462, 0.5
      %v2865 = vmul.f32 %v2465, 0.5
      %v2866 = vmul.f32 %v2470, 0.5
      %v2867 = vmul.f32 %v2473, 0.5
      %v2868 = vmul.f32 %v2478, 0.5
      %v2869 = vmul.f32 %v2481, 0.5
      %v2870 = vmul.f32 %v2486, 0.5
      %v2871 = vmul.f32 %v2489, 0.5
      %v2872 = vmul.f32 %v2494, 0.5
      %v2873 = vmul.f32 %v2497, 0.5
      %v2874 = vmul.f32 %v2502, 0.5
      %v2875 = vmul.f32 %v2505, 0.5
      %v2876 = vmul.f32 %v2510, 0.5
      %v2877 = vmul.f32 %v2513, 0.5
      %v2878 = vmul.f32 %v2518, 0.5
      %v2879 = vmul.f32 %v2521, 0.5
      %v2880 = vmul.f32 %v2526, 0.5
      %v2881 = vmul.f32 %v2529, 0.5
      %v2882 = vmul.f32 %v2534, 0.5
      %v2883 = vmul.f32 %v2537, 0.5
      %v2884 = vmul.f32 %v2542, 0.5
      %v2885 = vmul.f32 %v2545, 0.5
      %v2886 = vmul.f32 %v2550, 0.5
      %v2887 = vmul.f32 %v2553, 0.5
      %v2888 = vmul.f32 %v2558, 0.5
      %v2889 = vmul.f32 %v2561, 0.5
      %v2890 = vmul.f32 %v2566, 0.5
      %v2891 = vmul.f32 %v2569, 0.5
      %v2892 = vmul.f32 %v2574, 0.5
      %v2893 = vmul.f32 %v2577, 0.5
      %v2894 = vmul.f32 %v2582, 0.5
      %v2895 = vmul.f32 %v2585, 0.5
      %v2896 = vmul.f32 %v2590, 0.5
      %v2897 = vmul.f32 %v2593, 0.5
      %v2898 = vmul.f32 %v2598, 0.5
      %v2899 = vmul.f32 %v2601, 0.5
      %v2900 = vmul.f32 %v2606, 0.5
      %v2901 = vmul.f32 %v2609, 0.5
      %v2902 = vmul.f32 %v2614, 0.5
      %v2903 = vmul.f32 %v2617, 0.5
      %v2904 = vmul.f32 %v2622, 0.5
      %v2905 = vmul.f32 %v2625, 0.5
      %v2906 = vmul.f32 %v2630, 0.5
      %v2907 = vmul.f32 %v2633, 0.5
      %v2908 = vmul.f32 %v2638, 0.5
      %v2909 = vmul.f32 %v2641, 0.5
      %v2910 = vmul.f32 %v2646, 0.5
      %v2911 = vmul.f32 %v2649, 0.5
      %v2912 = vmul.f32 %v2654, 0.5
      %v2913 = vmul.f32 %v2657, 0.5
      %v2914 = vmul.f32 %v2662, 0.5
      %v2915 = vmul.f32 %v2665, 0.5
      %v2916 = vmul.f32 %v2670, 0.5
      %v2917 = vmul.f32 %v2673, 0.5
      %v2918 = vmul.f32 %v2678, 0.5
      %v2919 = vmul.f32 %v2681, 0.5
      %v2920 = vmul.f32 %v2686, 0.5
      %v2921 = vmul.f32 %v2689, 0.5
      %v2922 = vmul.f32 %v2694, 0.5
      %v2923 = vmul.f32 %v2697, 0.5
      %v2924 = vmul.f32 %v2702, 0.5
      %v2925 = vmul.f32 %v2705, 0.5
      %v2926 = vmul.f32 %v2710, 0.5
      %v2927 = vmul.f32 %v2713, 0.5
      %v2928 = vmul.f32 %v2718, 0.5
      %v2929 = vmul.f32 %v2721, 0.5
      %v2930 = vmul.f32 %v2726, 0.5
      %v2931 = vmul.f32 %v2729, 0.5
      %v2932 = vmul.f32 %v2734, 0.5
      %v2933 = vmul.f32 %v2737, 0.5
      %v2934 = vmul.f32 %v2742, 0.5
      %v2935 = vmul.f32 %v2745, 0.5
      %v2936 = vmul.f32 %v2750, 0.5
      %v2937 = vmul.f32 %v2753, 0.5
      %v2938 = vmul.f32 %v2758, 0.5
      %v2939 = vmul.f32 %v2761, 0.5
      %v2940 = vmul.f32 %v2766, 0.5
      %v2941 = vmul.f32 %v2769, 0.5
      %v2942 = vmul.f32 %v2774, 0.5
      %v2943 = vmul.f32 %v2777, 0.5
      %v2944 = vmul.f32 %v2782, 0.5
      %v2945 = vmul.f32 %v2785, 0.5
      %v2946 = vmul.f32 %v2790, 0.5
      %v2947 = vmul.f32 %v2793, 0.5
      %v2948 = vmul.f32 %v2798, 0.5
      %v2949 = vmul.f32 %v2801, 0.5
      %v2950 = vmul.f32 %v2806, 0.5
      %v2951 = vmul.f32 %v2809, 0.5
      %v2952 = vmul.f32 %v2814, 0.5
      %v2953 = vmul.f32 %v2817, 0.5
      %v2954 = vmul.f32 %v2822, 0.5
      %v2955 = vmul.f32 %v2825, 0.5
      %v2956 = vtanh.pop %v2828
      %v2957 = vtanh.pop %v2829
      %v2958 = vtanh.pop %v2830
      %v2959 = vtanh.pop %v2831
      %v2960 = vtanh.pop %v2832
      %v2961 = vtanh.pop %v2833
      %v2962 = vtanh.pop %v2834
      %v2963 = vtanh.pop %v2835
      %v2964 = vtanh.pop %v2836
      %v2965 = vtanh.pop %v2837
      %v2966 = vtanh.pop %v2838
      %v2967 = vtanh.pop %v2839
      %v2968 = vtanh.pop %v2840
      %v2969 = vtanh.pop %v2841
      %v2970 = vtanh.pop %v2842
      %v2971 = vtanh.pop %v2843
      %v2972 = vtanh.pop %v2844
      %v2973 = vtanh.pop %v2845
      %v2974 = vtanh.pop %v2846
      %v2975 = vtanh.pop %v2847
      %v2976 = vtanh.pop %v2848
      %v2977 = vtanh.pop %v2849
      %v2978 = vtanh.pop %v2850
      %v2979 = vtanh.pop %v2851
      %v2980 = vtanh.pop %v2852
      %v2981 = vtanh.pop %v2853
      %v2982 = vtanh.pop %v2854
      %v2983 = vtanh.pop %v2855
      %v2984 = vtanh.pop %v2856
      %v2985 = vtanh.pop %v2857
      %v2986 = vtanh.pop %v2858
      %v2987 = vtanh.pop %v2859
      %v2988 = vtanh.pop %v2860
      %v2989 = vtanh.pop %v2861
      %v2990 = vtanh.pop %v2862
      %v2991 = vtanh.pop %v2863
      %v2992 = vtanh.pop %v2864
      %v2993 = vtanh.pop %v2865
      %v2994 = vtanh.pop %v2866
      %v2995 = vtanh.pop %v2867
      %v2996 = vtanh.pop %v2868
      %v2997 = vtanh.pop %v2869
      %v2998 = vtanh.pop %v2870
      %v2999 = vtanh.pop %v2871
      %v3000 = vtanh.pop %v2872
      %v3001 = vtanh.pop %v2873
      %v3002 = vtanh.pop %v2874
      %v3003 = vtanh.pop %v2875
      %v3004 = vtanh.pop %v2876
      %v3005 = vtanh.pop %v2877
      %v3006 = vtanh.pop %v2878
      %v3007 = vtanh.pop %v2879
      %v3008 = vtanh.pop %v2880
      %v3009 = vtanh.pop %v2881
      %v3010 = vtanh.pop %v2882
      %v3011 = vtanh.pop %v2883
      %v3012 = vtanh.pop %v2884
      %v3013 = vtanh.pop %v2885
      %v3014 = vtanh.pop %v2886
      %v3015 = vtanh.pop %v2887
      %v3016 = vtanh.pop %v2888
      %v3017 = vtanh.pop %v2889
      %v3018 = vtanh.pop %v2890
      %v3019 = vtanh.pop %v2891
      %v3020 = vtanh.pop %v2892
      %v3021 = vtanh.pop %v2893
      %v3022 = vtanh.pop %v2894
      %v3023 = vtanh.pop %v2895
      %v3024 = vtanh.pop %v2896
      %v3025 = vtanh.pop %v2897
      %v3026 = vtanh.pop %v2898
      %v3027 = vtanh.pop %v2899
      %v3028 = vtanh.pop %v2900
      %v3029 = vtanh.pop %v2901
      %v3030 = vtanh.pop %v2902
      %v3031 = vtanh.pop %v2903
      %v3032 = vtanh.pop %v2904
      %v3033 = vtanh.pop %v2905
      %v3034 = vtanh.pop %v2906
      %v3035 = vtanh.pop %v2907
      %v3036 = vtanh.pop %v2908
      %v3037 = vtanh.pop %v2909
      %v3038 = vtanh.pop %v2910
      %v3039 = vtanh.pop %v2911
      %v3040 = vtanh.pop %v2912
      %v3041 = vtanh.pop %v2913
      %v3042 = vtanh.pop %v2914
      %v3043 = vtanh.pop %v2915
      %v3044 = vtanh.pop %v2916
      %v3045 = vtanh.pop %v2917
      %v3046 = vtanh.pop %v2918
      %v3047 = vtanh.pop %v2919
      %v3048 = vtanh.pop %v2920
      %v3049 = vtanh.pop %v2921
      %v3050 = vtanh.pop %v2922
      %v3051 = vtanh.pop %v2923
      %v3052 = vtanh.pop %v2924
      %v3053 = vtanh.pop %v2925
      %v3054 = vtanh.pop %v2926
      %v3055 = vtanh.pop %v2927
      %v3056 = vtanh.pop %v2928
      %v3057 = vtanh.pop %v2929
      %v3058 = vtanh.pop %v2930
      %v3059 = vtanh.pop %v2931
      %v3060 = vtanh.pop %v2932
      %v3061 = vtanh.pop %v2933
      %v3062 = vtanh.pop %v2934
      %v3063 = vtanh.pop %v2935
      %v3064 = vtanh.pop %v2936
      %v3065 = vtanh.pop %v2937
      %v3066 = vtanh.pop %v2938
      %v3067 = vtanh.pop %v2939
      %v3068 = vtanh.pop %v2940
      %v3069 = vtanh.pop %v2941
      %v3070 = vtanh.pop %v2942
      %v3071 = vtanh.pop %v2943
      %v3072 = vtanh.pop %v2944
      %v3073 = vtanh.pop %v2945
      %v3074 = vtanh.pop %v2946
      %v3075 = vtanh.pop %v2947
      %v3076 = vtanh.pop %v2948
      %v3077 = vtanh.pop %v2949
      %v3078 = vtanh.pop %v2950
      %v3079 = vtanh.pop %v2951
      %v3080 = vtanh.pop %v2952
      %v3081 = vtanh.pop %v2953
      %v3082 = vtanh.pop %v2954
      %v3083 = vtanh.pop %v2955
      %v3084 = vmul.f32 %v2956, 0.5
      %v3085 = vmul.f32 %v2957, 0.5
      %v3086 = vmul.f32 %v2958, 0.5
      %v3087 = vmul.f32 %v2959, 0.5
      %v3088 = vmul.f32 %v2960, 0.5
      %v3089 = vmul.f32 %v2961, 0.5
      %v3090 = vmul.f32 %v2962, 0.5
      %v3091 = vmul.f32 %v2963, 0.5
      %v3092 = vmul.f32 %v2964, 0.5
      %v3093 = vmul.f32 %v2965, 0.5
      %v3094 = vmul.f32 %v2966, 0.5
      %v3095 = vmul.f32 %v2967, 0.5
      %v3096 = vmul.f32 %v2968, 0.5
      %v3097 = vmul.f32 %v2969, 0.5
      %v3098 = vmul.f32 %v2970, 0.5
      %v3099 = vmul.f32 %v2971, 0.5
      %v3100 = vmul.f32 %v2972, 0.5
      %v3101 = vmul.f32 %v2973, 0.5
      %v3102 = vmul.f32 %v2974, 0.5
      %v3103 = vmul.f32 %v2975, 0.5
      %v3104 = vmul.f32 %v2976, 0.5
      %v3105 = vmul.f32 %v2977, 0.5
      %v3106 = vmul.f32 %v2978, 0.5
      %v3107 = vmul.f32 %v2979, 0.5
      %v3108 = vmul.f32 %v2980, 0.5
      %v3109 = vmul.f32 %v2981, 0.5
      %v3110 = vmul.f32 %v2982, 0.5
      %v3111 = vmul.f32 %v2983, 0.5
      %v3112 = vmul.f32 %v2984, 0.5
      %v3113 = vmul.f32 %v2985, 0.5
      %v3114 = vmul.f32 %v2986, 0.5
      %v3115 = vmul.f32 %v2987, 0.5
      %v3116 = vmul.f32 %v2988, 0.5
      %v3117 = vmul.f32 %v2989, 0.5
      %v3118 = vmul.f32 %v2990, 0.5
      %v3119 = vmul.f32 %v2991, 0.5
      %v3120 = vmul.f32 %v2992, 0.5
      %v3121 = vmul.f32 %v2993, 0.5
      %v3122 = vmul.f32 %v2994, 0.5
      %v3123 = vmul.f32 %v2995, 0.5
      %v3124 = vmul.f32 %v2996, 0.5
      %v3125 = vmul.f32 %v2997, 0.5
      %v3126 = vmul.f32 %v2998, 0.5
      %v3127 = vmul.f32 %v2999, 0.5
      %v3128 = vmul.f32 %v3000, 0.5
      %v3129 = vmul.f32 %v3001, 0.5
      %v3130 = vmul.f32 %v3002, 0.5
      %v3131 = vmul.f32 %v3003, 0.5
      %v3132 = vmul.f32 %v3004, 0.5
      %v3133 = vmul.f32 %v3005, 0.5
      %v3134 = vmul.f32 %v3006, 0.5
      %v3135 = vmul.f32 %v3007, 0.5
      %v3136 = vmul.f32 %v3008, 0.5
      %v3137 = vmul.f32 %v3009, 0.5
      %v3138 = vmul.f32 %v3010, 0.5
      %v3139 = vmul.f32 %v3011, 0.5
      %v3140 = vmul.f32 %v3012, 0.5
      %v3141 = vmul.f32 %v3013, 0.5
      %v3142 = vmul.f32 %v3014, 0.5
      %v3143 = vmul.f32 %v3015, 0.5
      %v3144 = vmul.f32 %v3016, 0.5
      %v3145 = vmul.f32 %v3017, 0.5
      %v3146 = vmul.f32 %v3018, 0.5
      %v3147 = vmul.f32 %v3019, 0.5
      %v3148 = vmul.f32 %v3020, 0.5
      %v3149 = vmul.f32 %v3021, 0.5
      %v3150 = vmul.f32 %v3022, 0.5
      %v3151 = vmul.f32 %v3023, 0.5
      %v3152 = vmul.f32 %v3024, 0.5
      %v3153 = vmul.f32 %v3025, 0.5
      %v3154 = vmul.f32 %v3026, 0.5
      %v3155 = vmul.f32 %v3027, 0.5
      %v3156 = vmul.f32 %v3028, 0.5
      %v3157 = vmul.f32 %v3029, 0.5
      %v3158 = vmul.f32 %v3030, 0.5
      %v3159 = vmul.f32 %v3031, 0.5
      %v3160 = vmul.f32 %v3032, 0.5
      %v3161 = vmul.f32 %v3033, 0.5
      %v3162 = vmul.f32 %v3034, 0.5
      %v3163 = vmul.f32 %v3035, 0.5
      %v3164 = vmul.f32 %v3036, 0.5
      %v3165 = vmul.f32 %v3037, 0.5
      %v3166 = vmul.f32 %v3038, 0.5
      %v3167 = vmul.f32 %v3039, 0.5
      %v3168 = vmul.f32 %v3040, 0.5
      %v3169 = vmul.f32 %v3041, 0.5
      %v3170 = vmul.f32 %v3042, 0.5
      %v3171 = vmul.f32 %v3043, 0.5
      %v3172 = vmul.f32 %v3044, 0.5
      %v3173 = vmul.f32 %v3045, 0.5
      %v3174 = vmul.f32 %v3046, 0.5
      %v3175 = vmul.f32 %v3047, 0.5
      %v3176 = vmul.f32 %v3048, 0.5
      %v3177 = vmul.f32 %v3049, 0.5
      %v3178 = vmul.f32 %v3050, 0.5
      %v3179 = vmul.f32 %v3051, 0.5
      %v3180 = vmul.f32 %v3052, 0.5
      %v3181 = vmul.f32 %v3053, 0.5
      %v3182 = vmul.f32 %v3054, 0.5
      %v3183 = vmul.f32 %v3055, 0.5
      %v3184 = vmul.f32 %v3056, 0.5
      %v3185 = vmul.f32 %v3057, 0.5
      %v3186 = vmul.f32 %v3058, 0.5
      %v3187 = vmul.f32 %v3059, 0.5
      %v3188 = vmul.f32 %v3060, 0.5
      %v3189 = vmul.f32 %v3061, 0.5
      %v3190 = vmul.f32 %v3062, 0.5
      %v3191 = vmul.f32 %v3063, 0.5
      %v3192 = vmul.f32 %v3064, 0.5
      %v3193 = vmul.f32 %v3065, 0.5
      %v3194 = vmul.f32 %v3066, 0.5
      %v3195 = vmul.f32 %v3067, 0.5
      %v3196 = vmul.f32 %v3068, 0.5
      %v3197 = vmul.f32 %v3069, 0.5
      %v3198 = vmul.f32 %v3070, 0.5
      %v3199 = vmul.f32 %v3071, 0.5
      %v3200 = vmul.f32 %v3072, 0.5
      %v3201 = vmul.f32 %v3073, 0.5
      %v3202 = vmul.f32 %v3074, 0.5
      %v3203 = vmul.f32 %v3075, 0.5
      %v3204 = vmul.f32 %v3076, 0.5
      %v3205 = vmul.f32 %v3077, 0.5
      %v3206 = vmul.f32 %v3078, 0.5
      %v3207 = vmul.f32 %v3079, 0.5
      %v3208 = vmul.f32 %v3080, 0.5
      %v3209 = vmul.f32 %v3081, 0.5
      %v3210 = vmul.f32 %v3082, 0.5
      %v3211 = vmul.f32 %v3083, 0.5
      %v3212 = vadd.f32 %v3084, 0.5
      %v3213 = vadd.f32 %v3085, 0.5
      %v3214 = vadd.f32 %v3086, 0.5
      %v3215 = vadd.f32 %v3087, 0.5
      %v3216 = vadd.f32 %v3088, 0.5
      %v3217 = vadd.f32 %v3089, 0.5
      %v3218 = vadd.f32 %v3090, 0.5
      %v3219 = vadd.f32 %v3091, 0.5
      %v3220 = vadd.f32 %v3092, 0.5
      %v3221 = vadd.f32 %v3093, 0.5
      %v3222 = vadd.f32 %v3094, 0.5
      %v3223 = vadd.f32 %v3095, 0.5
      %v3224 = vadd.f32 %v3096, 0.5
      %v3225 = vadd.f32 %v3097, 0.5
      %v3226 = vadd.f32 %v3098, 0.5
      %v3227 = vadd.f32 %v3099, 0.5
      %v3228 = vadd.f32 %v3100, 0.5
      %v3229 = vadd.f32 %v3101, 0.5
      %v3230 = vadd.f32 %v3102, 0.5
      %v3231 = vadd.f32 %v3103, 0.5
      %v3232 = vadd.f32 %v3104, 0.5
      %v3233 = vadd.f32 %v3105, 0.5
      %v3234 = vadd.f32 %v3106, 0.5
      %v3235 = vadd.f32 %v3107, 0.5
      %v3236 = vadd.f32 %v3108, 0.5
      %v3237 = vadd.f32 %v3109, 0.5
      %v3238 = vadd.f32 %v3110, 0.5
      %v3239 = vadd.f32 %v3111, 0.5
      %v3240 = vadd.f32 %v3112, 0.5
      %v3241 = vadd.f32 %v3113, 0.5
      %v3242 = vadd.f32 %v3114, 0.5
      %v3243 = vadd.f32 %v3115, 0.5
      %v3244 = vadd.f32 %v3116, 0.5
      %v3245 = vadd.f32 %v3117, 0.5
      %v3246 = vadd.f32 %v3118, 0.5
      %v3247 = vadd.f32 %v3119, 0.5
      %v3248 = vadd.f32 %v3120, 0.5
      %v3249 = vadd.f32 %v3121, 0.5
      %v3250 = vadd.f32 %v3122, 0.5
      %v3251 = vadd.f32 %v3123, 0.5
      %v3252 = vadd.f32 %v3124, 0.5
      %v3253 = vadd.f32 %v3125, 0.5
      %v3254 = vadd.f32 %v3126, 0.5
      %v3255 = vadd.f32 %v3127, 0.5
      %v3256 = vadd.f32 %v3128, 0.5
      %v3257 = vadd.f32 %v3129, 0.5
      %v3258 = vadd.f32 %v3130, 0.5
      %v3259 = vadd.f32 %v3131, 0.5
      %v3260 = vadd.f32 %v3132, 0.5
      %v3261 = vadd.f32 %v3133, 0.5
      %v3262 = vadd.f32 %v3134, 0.5
      %v3263 = vadd.f32 %v3135, 0.5
      %v3264 = vadd.f32 %v3136, 0.5
      %v3265 = vadd.f32 %v3137, 0.5
      %v3266 = vadd.f32 %v3138, 0.5
      %v3267 = vadd.f32 %v3139, 0.5
      %v3268 = vadd.f32 %v3140, 0.5
      %v3269 = vadd.f32 %v3141, 0.5
      %v3270 = vadd.f32 %v3142, 0.5
      %v3271 = vadd.f32 %v3143, 0.5
      %v3272 = vadd.f32 %v3144, 0.5
      %v3273 = vadd.f32 %v3145, 0.5
      %v3274 = vadd.f32 %v3146, 0.5
      %v3275 = vadd.f32 %v3147, 0.5
      %v3276 = vadd.f32 %v3148, 0.5
      %v3277 = vadd.f32 %v3149, 0.5
      %v3278 = vadd.f32 %v3150, 0.5
      %v3279 = vadd.f32 %v3151, 0.5
      %v3280 = vadd.f32 %v3152, 0.5
      %v3281 = vadd.f32 %v3153, 0.5
      %v3282 = vadd.f32 %v3154, 0.5
      %v3283 = vadd.f32 %v3155, 0.5
      %v3284 = vadd.f32 %v3156, 0.5
      %v3285 = vadd.f32 %v3157, 0.5
      %v3286 = vadd.f32 %v3158, 0.5
      %v3287 = vadd.f32 %v3159, 0.5
      %v3288 = vadd.f32 %v3160, 0.5
      %v3289 = vadd.f32 %v3161, 0.5
      %v3290 = vadd.f32 %v3162, 0.5
      %v3291 = vadd.f32 %v3163, 0.5
      %v3292 = vadd.f32 %v3164, 0.5
      %v3293 = vadd.f32 %v3165, 0.5
      %v3294 = vadd.f32 %v3166, 0.5
      %v3295 = vadd.f32 %v3167, 0.5
      %v3296 = vadd.f32 %v3168, 0.5
      %v3297 = vadd.f32 %v3169, 0.5
      %v3298 = vadd.f32 %v3170, 0.5
      %v3299 = vadd.f32 %v3171, 0.5
      %v3300 = vadd.f32 %v3172, 0.5
      %v3301 = vadd.f32 %v3173, 0.5
      %v3302 = vadd.f32 %v3174, 0.5
      %v3303 = vadd.f32 %v3175, 0.5
      %v3304 = vadd.f32 %v3176, 0.5
      %v3305 = vadd.f32 %v3177, 0.5
      %v3306 = vadd.f32 %v3178, 0.5
      %v3307 = vadd.f32 %v3179, 0.5
      %v3308 = vadd.f32 %v3180, 0.5
      %v3309 = vadd.f32 %v3181, 0.5
      %v3310 = vadd.f32 %v3182, 0.5
      %v3311 = vadd.f32 %v3183, 0.5
      %v3312 = vadd.f32 %v3184, 0.5
      %v3313 = vadd.f32 %v3185, 0.5
      %v3314 = vadd.f32 %v3186, 0.5
      %v3315 = vadd.f32 %v3187, 0.5
      %v3316 = vadd.f32 %v3188, 0.5
      %v3317 = vadd.f32 %v3189, 0.5
      %v3318 = vadd.f32 %v3190, 0.5
      %v3319 = vadd.f32 %v3191, 0.5
      %v3320 = vadd.f32 %v3192, 0.5
      %v3321 = vadd.f32 %v3193, 0.5
      %v3322 = vadd.f32 %v3194, 0.5
      %v3323 = vadd.f32 %v3195, 0.5
      %v3324 = vadd.f32 %v3196, 0.5
      %v3325 = vadd.f32 %v3197, 0.5
      %v3326 = vadd.f32 %v3198, 0.5
      %v3327 = vadd.f32 %v3199, 0.5
      %v3328 = vadd.f32 %v3200, 0.5
      %v3329 = vadd.f32 %v3201, 0.5
      %v3330 = vadd.f32 %v3202, 0.5
      %v3331 = vadd.f32 %v3203, 0.5
      %v3332 = vadd.f32 %v3204, 0.5
      %v3333 = vadd.f32 %v3205, 0.5
      %v3334 = vadd.f32 %v3206, 0.5
      %v3335 = vadd.f32 %v3207, 0.5
      %v3336 = vadd.f32 %v3208, 0.5
      %v3337 = vadd.f32 %v3209, 0.5
      %v3338 = vadd.f32 %v3210, 0.5
      %v3339 = vadd.f32 %v3211, 0.5
      %vm3340 = vcmask 7168
      %3341 = vst.msk [vmem:[%s175] sm:$0xff] %vm3340, %v3212
      %3342 = vst.msk [vmem:[%s175 + $0x8] sm:$0xff] %vm3340, %v3213
      %3343 = vst.msk [vmem:[%s175 + $0x10] sm:$0xff] %vm3340, %v3214
      %3344 = vst.msk [vmem:[%s175 + $0x18] sm:$0xff] %vm3340, %v3215
      %3345 = vst.msk [vmem:[%s175 + $0x20] sm:$0xff] %vm3340, %v3216
      %3346 = vst.msk [vmem:[%s175 + $0x28] sm:$0xff] %vm3340, %v3217
      %3347 = vst.msk [vmem:[%s175 + $0x30] sm:$0xff] %vm3340, %v3218
      %3348 = vst.msk [vmem:[%s175 + $0x38] sm:$0xff] %vm3340, %v3219
      %3349 = vst.msk [vmem:[%s175 + $0x40] sm:$0xff] %vm3340, %v3220
      %3350 = vst.msk [vmem:[%s175 + $0x48] sm:$0xff] %vm3340, %v3221
      %3351 = vst.msk [vmem:[%s175 + $0x50] sm:$0xff] %vm3340, %v3222
      %3352 = vst.msk [vmem:[%s175 + $0x58] sm:$0xff] %vm3340, %v3223
      %3353 = vst.msk [vmem:[%s175 + $0x60] sm:$0xff] %vm3340, %v3224
      %3354 = vst.msk [vmem:[%s175 + $0x68] sm:$0xff] %vm3340, %v3225
      %3355 = vst.msk [vmem:[%s175 + $0x70] sm:$0xff] %vm3340, %v3226
      %3356 = vst.msk [vmem:[%s175 + $0x78] sm:$0xff] %vm3340, %v3227
      %3357 = vst.msk [vmem:[%s175 + $0x80] sm:$0xff] %vm3340, %v3228
      %3358 = vst.msk [vmem:[%s175 + $0x88] sm:$0xff] %vm3340, %v3229
      %3359 = vst.msk [vmem:[%s175 + $0x90] sm:$0xff] %vm3340, %v3230
      %3360 = vst.msk [vmem:[%s175 + $0x98] sm:$0xff] %vm3340, %v3231
      %3361 = vst.msk [vmem:[%s175 + $0xa0] sm:$0xff] %vm3340, %v3232
      %3362 = vst.msk [vmem:[%s175 + $0xa8] sm:$0xff] %vm3340, %v3233
      %3363 = vst.msk [vmem:[%s175 + $0xb0] sm:$0xff] %vm3340, %v3234
      %3364 = vst.msk [vmem:[%s175 + $0xb8] sm:$0xff] %vm3340, %v3235
      %3365 = vst.msk [vmem:[%s175 + $0xc0] sm:$0xff] %vm3340, %v3236
      %3366 = vst.msk [vmem:[%s175 + $0xc8] sm:$0xff] %vm3340, %v3237
      %3367 = vst.msk [vmem:[%s175 + $0xd0] sm:$0xff] %vm3340, %v3238
      %3368 = vst.msk [vmem:[%s175 + $0xd8] sm:$0xff] %vm3340, %v3239
      %3369 = vst.msk [vmem:[%s175 + $0xe0] sm:$0xff] %vm3340, %v3240
      %3370 = vst.msk [vmem:[%s175 + $0xe8] sm:$0xff] %vm3340, %v3241
      %3371 = vst.msk [vmem:[%s175 + $0xf0] sm:$0xff] %vm3340, %v3242
      %3372 = vst.msk [vmem:[%s175 + $0xf8] sm:$0xff] %vm3340, %v3243
      %3373 = vst.msk [vmem:[%s175 + $0x100] sm:$0xff] %vm3340, %v3244
      %3374 = vst.msk [vmem:[%s175 + $0x108] sm:$0xff] %vm3340, %v3245
      %3375 = vst.msk [vmem:[%s175 + $0x110] sm:$0xff] %vm3340, %v3246
      %3376 = vst.msk [vmem:[%s175 + $0x118] sm:$0xff] %vm3340, %v3247
      %3377 = vst.msk [vmem:[%s175 + $0x120] sm:$0xff] %vm3340, %v3248
      %3378 = vst.msk [vmem:[%s175 + $0x128] sm:$0xff] %vm3340, %v3249
      %3379 = vst.msk [vmem:[%s175 + $0x130] sm:$0xff] %vm3340, %v3250
      %3380 = vst.msk [vmem:[%s175 + $0x138] sm:$0xff] %vm3340, %v3251
      %3381 = vst.msk [vmem:[%s175 + $0x140] sm:$0xff] %vm3340, %v3252
      %3382 = vst.msk [vmem:[%s175 + $0x148] sm:$0xff] %vm3340, %v3253
      %3383 = vst.msk [vmem:[%s175 + $0x150] sm:$0xff] %vm3340, %v3254
      %3384 = vst.msk [vmem:[%s175 + $0x158] sm:$0xff] %vm3340, %v3255
      %3385 = vst.msk [vmem:[%s175 + $0x160] sm:$0xff] %vm3340, %v3256
      %3386 = vst.msk [vmem:[%s175 + $0x168] sm:$0xff] %vm3340, %v3257
      %3387 = vst.msk [vmem:[%s175 + $0x170] sm:$0xff] %vm3340, %v3258
      %3388 = vst.msk [vmem:[%s175 + $0x178] sm:$0xff] %vm3340, %v3259
      %3389 = vst.msk [vmem:[%s175 + $0x180] sm:$0xff] %vm3340, %v3260
      %3390 = vst.msk [vmem:[%s175 + $0x188] sm:$0xff] %vm3340, %v3261
      %3391 = vst.msk [vmem:[%s175 + $0x190] sm:$0xff] %vm3340, %v3262
      %3392 = vst.msk [vmem:[%s175 + $0x198] sm:$0xff] %vm3340, %v3263
      %3393 = vst.msk [vmem:[%s175 + $0x1a0] sm:$0xff] %vm3340, %v3264
      %3394 = vst.msk [vmem:[%s175 + $0x1a8] sm:$0xff] %vm3340, %v3265
      %3395 = vst.msk [vmem:[%s175 + $0x1b0] sm:$0xff] %vm3340, %v3266
      %3396 = vst.msk [vmem:[%s175 + $0x1b8] sm:$0xff] %vm3340, %v3267
      %3397 = vst.msk [vmem:[%s175 + $0x1c0] sm:$0xff] %vm3340, %v3268
      %3398 = vst.msk [vmem:[%s175 + $0x1c8] sm:$0xff] %vm3340, %v3269
      %3399 = vst.msk [vmem:[%s175 + $0x1d0] sm:$0xff] %vm3340, %v3270
      %3400 = vst.msk [vmem:[%s175 + $0x1d8] sm:$0xff] %vm3340, %v3271
      %3401 = vst.msk [vmem:[%s175 + $0x1e0] sm:$0xff] %vm3340, %v3272
      %3402 = vst.msk [vmem:[%s175 + $0x1e8] sm:$0xff] %vm3340, %v3273
      %3403 = vst.msk [vmem:[%s175 + $0x1f0] sm:$0xff] %vm3340, %v3274
      %3404 = vst.msk [vmem:[%s175 + $0x1f8] sm:$0xff] %vm3340, %v3275
      %3405 = vst.msk [vmem:[%s175 + $0x200] sm:$0xff] %vm3340, %v3276
      %3406 = vst.msk [vmem:[%s175 + $0x208] sm:$0xff] %vm3340, %v3277
      %3407 = vst.msk [vmem:[%s175 + $0x210] sm:$0xff] %vm3340, %v3278
      %3408 = vst.msk [vmem:[%s175 + $0x218] sm:$0xff] %vm3340, %v3279
      %3409 = vst.msk [vmem:[%s175 + $0x220] sm:$0xff] %vm3340, %v3280
      %3410 = vst.msk [vmem:[%s175 + $0x228] sm:$0xff] %vm3340, %v3281
      %3411 = vst.msk [vmem:[%s175 + $0x230] sm:$0xff] %vm3340, %v3282
      %3412 = vst.msk [vmem:[%s175 + $0x238] sm:$0xff] %vm3340, %v3283
      %3413 = vst.msk [vmem:[%s175 + $0x240] sm:$0xff] %vm3340, %v3284
      %3414 = vst.msk [vmem:[%s175 + $0x248] sm:$0xff] %vm3340, %v3285
      %3415 = vst.msk [vmem:[%s175 + $0x250] sm:$0xff] %vm3340, %v3286
      %3416 = vst.msk [vmem:[%s175 + $0x258] sm:$0xff] %vm3340, %v3287
      %3417 = vst.msk [vmem:[%s175 + $0x260] sm:$0xff] %vm3340, %v3288
      %3418 = vst.msk [vmem:[%s175 + $0x268] sm:$0xff] %vm3340, %v3289
      %3419 = vst.msk [vmem:[%s175 + $0x270] sm:$0xff] %vm3340, %v3290
      %3420 = vst.msk [vmem:[%s175 + $0x278] sm:$0xff] %vm3340, %v3291
      %3421 = vst.msk [vmem:[%s175 + $0x280] sm:$0xff] %vm3340, %v3292
      %3422 = vst.msk [vmem:[%s175 + $0x288] sm:$0xff] %vm3340, %v3293
      %3423 = vst.msk [vmem:[%s175 + $0x290] sm:$0xff] %vm3340, %v3294
      %3424 = vst.msk [vmem:[%s175 + $0x298] sm:$0xff] %vm3340, %v3295
      %3425 = vst.msk [vmem:[%s175 + $0x2a0] sm:$0xff] %vm3340, %v3296
      %3426 = vst.msk [vmem:[%s175 + $0x2a8] sm:$0xff] %vm3340, %v3297
      %3427 = vst.msk [vmem:[%s175 + $0x2b0] sm:$0xff] %vm3340, %v3298
      %3428 = vst.msk [vmem:[%s175 + $0x2b8] sm:$0xff] %vm3340, %v3299
      %3429 = vst.msk [vmem:[%s175 + $0x2c0] sm:$0xff] %vm3340, %v3300
      %3430 = vst.msk [vmem:[%s175 + $0x2c8] sm:$0xff] %vm3340, %v3301
      %3431 = vst.msk [vmem:[%s175 + $0x2d0] sm:$0xff] %vm3340, %v3302
      %3432 = vst.msk [vmem:[%s175 + $0x2d8] sm:$0xff] %vm3340, %v3303
      %3433 = vst.msk [vmem:[%s175 + $0x2e0] sm:$0xff] %vm3340, %v3304
      %3434 = vst.msk [vmem:[%s175 + $0x2e8] sm:$0xff] %vm3340, %v3305
      %3435 = vst.msk [vmem:[%s175 + $0x2f0] sm:$0xff] %vm3340, %v3306
      %3436 = vst.msk [vmem:[%s175 + $0x2f8] sm:$0xff] %vm3340, %v3307
      %3437 = vst.msk [vmem:[%s175 + $0x300] sm:$0xff] %vm3340, %v3308
      %3438 = vst.msk [vmem:[%s175 + $0x308] sm:$0xff] %vm3340, %v3309
      %3439 = vst.msk [vmem:[%s175 + $0x310] sm:$0xff] %vm3340, %v3310
      %3440 = vst.msk [vmem:[%s175 + $0x318] sm:$0xff] %vm3340, %v3311
      %3441 = vst.msk [vmem:[%s175 + $0x320] sm:$0xff] %vm3340, %v3312
      %3442 = vst.msk [vmem:[%s175 + $0x328] sm:$0xff] %vm3340, %v3313
      %3443 = vst.msk [vmem:[%s175 + $0x330] sm:$0xff] %vm3340, %v3314
      %3444 = vst.msk [vmem:[%s175 + $0x338] sm:$0xff] %vm3340, %v3315
      %3445 = vst.msk [vmem:[%s175 + $0x340] sm:$0xff] %vm3340, %v3316
      %3446 = vst.msk [vmem:[%s175 + $0x348] sm:$0xff] %vm3340, %v3317
      %3447 = vst.msk [vmem:[%s175 + $0x350] sm:$0xff] %vm3340, %v3318
      %3448 = vst.msk [vmem:[%s175 + $0x358] sm:$0xff] %vm3340, %v3319
      %3449 = vst.msk [vmem:[%s175 + $0x360] sm:$0xff] %vm3340, %v3320
      %3450 = vst.msk [vmem:[%s175 + $0x368] sm:$0xff] %vm3340, %v3321
      %3451 = vst.msk [vmem:[%s175 + $0x370] sm:$0xff] %vm3340, %v3322
      %3452 = vst.msk [vmem:[%s175 + $0x378] sm:$0xff] %vm3340, %v3323
      %3453 = vst.msk [vmem:[%s175 + $0x380] sm:$0xff] %vm3340, %v3324
      %3454 = vst.msk [vmem:[%s175 + $0x388] sm:$0xff] %vm3340, %v3325
      %3455 = vst.msk [vmem:[%s175 + $0x390] sm:$0xff] %vm3340, %v3326
      %3456 = vst.msk [vmem:[%s175 + $0x398] sm:$0xff] %vm3340, %v3327
      %3457 = vst.msk [vmem:[%s175 + $0x3a0] sm:$0xff] %vm3340, %v3328
      %3458 = vst.msk [vmem:[%s175 + $0x3a8] sm:$0xff] %vm3340, %v3329
      %3459 = vst.msk [vmem:[%s175 + $0x3b0] sm:$0xff] %vm3340, %v3330
      %3460 = vst.msk [vmem:[%s175 + $0x3b8] sm:$0xff] %vm3340, %v3331
      %3461 = vst.msk [vmem:[%s175 + $0x3c0] sm:$0xff] %vm3340, %v3332
      %3462 = vst.msk [vmem:[%s175 + $0x3c8] sm:$0xff] %vm3340, %v3333
      %3463 = vst.msk [vmem:[%s175 + $0x3d0] sm:$0xff] %vm3340, %v3334
      %3464 = vst.msk [vmem:[%s175 + $0x3d8] sm:$0xff] %vm3340, %v3335
      %3465 = vst.msk [vmem:[%s175 + $0x3e0] sm:$0xff] %vm3340, %v3336
      %3466 = vst.msk [vmem:[%s175 + $0x3e8] sm:$0xff] %vm3340, %v3337
      %3467 = vst.msk [vmem:[%s175 + $0x3f0] sm:$0xff] %vm3340, %v3338
      %3468 = vst.msk [vmem:[%s175 + $0x3f8] sm:$0xff] %vm3340, %v3339
      %s3469 = smul.u32 128, %s14
      %p3470 = scmp.lt.s32.totalorder %s3469, 255
      %s3471 = scalar_select %p3470, %s3469, 255
      %s3472 = smul.addr %s3471, 8
      %s3473 = scalar_lea.vmem %s3, %s3472
      // Predicated region
      $region33: #{vae_forward.15} parent=31 // pred_check
        %p3474 = pneg %p100
      $region34: #{vae_forward.15} parent=31 // pred_check_branch
        %3476 = sbr.rel (%p3474) target = $region36
      $region35: #{vae_forward.15} parent=31 // pred_region
        %s3477 = smul.u32 128, %s14
      $region36: #{vae_forward.15} parent=31 // pred_fallthru
        _
    $region32: #{vae_forward.15} parent=5 // pred_fallthru
      _
    %p3478 = scmp.le.s32.totalorder 2, %s9
    // Predicated region
    $region37: #{vae_forward.15} parent=5 // pred_check
      %p3479 = pneg %p3478
    $region38: #{vae_forward.15} parent=5 // pred_check_branch
      %3481 = sbr.rel (%p3479) target = $region40
    $region39: #{vae_forward.15} parent=5 // pred_region
      %s3482 = ssub.s32 %s9, 2
      // Predicated region
      $region41: #{vae_forward.15} parent=39 // pred_check
        %p3483 = pneg %p106
      $region42: #{vae_forward.15} parent=39 // pred_check_branch
        %3485 = sbr.rel (%p3483) target = $region44
      $region43: #{vae_forward.15} parent=39 // pred_region
        %s3486 = smul.u32 128, %s15
        %p3487 = scmp.lt.s32.totalorder %s3486, 255
        %s3488 = scalar_select %p3487, %s3486, 255
        %s3489 = smul.addr %s3488, 8
        %s3490 = scalar_lea.vmem %s3, %s3489
      $region44: #{vae_forward.15} parent=39 // pred_fallthru
        _
    $region40: #{vae_forward.15} parent=5 // pred_fallthru
      _
  $region6: #{vae_forward.15} parent=0 // loop_footer
    %s13 = sadd.s32 1, %s9
  $region7: #{vae_forward.15} parent=0 // loop_footer_branch
    %8 = sbr.rel target = $region3
  $region8: #{vae_forward.15} parent=0 // loop_exit
    _

</llo_original>
